<compile_context>
chip_gen: v7x
topology: tpu7x:2x2x1
jax: 0.10.0
libtpu: 0.0.40
codegen_flags: <defaults>
</compile_context>

<pallas_src>
import functools

import jax
import jax.numpy as jnp
import numpy as np
from jax.experimental import pallas as pl
from jax.experimental.pallas import tpu as pltpu


def _round_up(x, m):
    return (x + m - 1) // m * m


def _pick_tile(n, preferred, multiple):
    """Largest divisor of n that is <= preferred and a multiple of `multiple`
    (falls back to n itself, i.e. the full dimension)."""
    t = min(preferred, n)
    t -= t % multiple
    while t >= multiple:
        if n % t == 0:
            return t
        t -= multiple
    return n


def fourier_gnn_kernel(lap_ref, rhs_ref, feat_ref, coeff_ref, bias_ref,
                       out_ref, x_acc, *, grid_size, tile_k, rhs_resident,
                       packed, half):
    """Grid = (row tiles, K tiles of the L @ E contraction)."""
    k = pl.program_id(1)
    nk = pl.num_programs(1)

    @pl.when(k == 0)
    def _():
        x_acc[...] = jnp.zeros_like(x_acc)

    if rhs_resident:
        # Full [N, Dp] feature matrix is VMEM-resident; slice the current K block.
        start = pl.multiple_of(k * tile_k, tile_k)
        rhs = rhs_ref[pl.ds(start, tile_k), :]
    else:
        rhs = rhs_ref[...]

    # x += L[i_block, k_block] @ E[k_block, :]  (bf16 operands, f32 MXU accumulation)
    x_acc[...] += jnp.dot(lap_ref[...], rhs, preferred_element_type=jnp.float32)

    @pl.when(k == nk - 1)
    def _():
        f_tile = feat_ref[...]               # [tn, Dp] f32 residual / elementwise path
        x = x_acc[...]                       # [tn, Dp] f32
        inter = x * f_tile

        # One EUP cos/sin pair; higher harmonics via the f32 angle-addition recurrence
        # (VPU multiplies only).
        c1 = jnp.cos(inter)
        s1 = jnp.sin(inter)

        if packed:
            lane = jax.lax.broadcasted_iota(jnp.int32, inter.shape, 1)
            cos_lane = lane < half

        cos_pieces = []
        sin_pieces = []
        pieces = []
        cg, sg = c1, s1
        for g in range(grid_size):
            if g > 0:
                cg, sg = cg * c1 - sg * s1, sg * c1 + cg * s1   # cos/sin((g+1)*inter)
            if packed:
                # Pack [cos_g | sin_g] into one 128-lane group.  Rolling by Dp/2 is
                # direction-agnostic; padded lanes hit zero coefficient rows.
                piece = jnp.where(cos_lane, cg, pltpu.roll(sg, shift=half, axis=1))
                pieces.append(piece.astype(jnp.bfloat16))
            else:
                cos_pieces.append(cg.astype(jnp.bfloat16))
                sin_pieces.append(sg.astype(jnp.bfloat16))
        if not packed:
            pieces = cos_pieces + sin_pieces

        # One fused bf16 MXU matmul over all harmonics, f32 accumulation.
        trig = jnp.concatenate(pieces, axis=-1)                  # [tn, K_fused] bf16
        kan = jnp.dot(trig, coeff_ref[...],
                      preferred_element_type=jnp.float32)        # [tn, Dp] f32

        out_ref[...] = (f_tile + x + kan + bias_ref[...]).astype(out_ref.dtype)


def fourier_gnn_layer(lap_matrix, eye_matrix, features, fourier_coeffs, bias,
                      *, tile_n=None, tile_k=None, matmul_dtype=jnp.bfloat16,
                      rhs_resident_bytes=8 * 1024 * 1024):
    """Pallas implementation of FourierGNNLayer.forward.

    lap_matrix:     [N, N]  dense Laplacian
    eye_matrix:     [N, N]  (unused by the PyTorch forward; accepted for parity)
    features:       [N, D_in]
    fourier_coeffs: [2, D_out, D_in, G]   (PyTorch param layout)
    bias:           [1, D_out]
    Returns: [N, D_out]  (requires D_in == D_out for the residual sum, as in PyTorch)
    """
    del eye_matrix  # not used in the reference forward
    N, D_in = features.shape
    two, D_out, D_in2, G = fourier_coeffs.shape
    assert two == 2 and D_in2 == D_in
    assert D_in == D_out, "residual sum requires in_dim == out_dim"

    # Lane-dense feature dim for the residual / output path (padded cols stay zero).
    Dp = max(_round_up(D_in, 128), 128)
    pad_d = Dp - D_in
    half = Dp // 2

    # ---- tile selection ---------------------------------------------------------
    if tile_n is None:
        tile_n = _pick_tile(N, 256, 8)
        if tile_n == N and N % 16 == 0:
            tile_n = N // 2        # keep >= 2 "parallel" row tiles (v7x megacore)
    if tile_k is None:
        tile_k = _pick_tile(N, min(N, 2048), 128)
    assert N % tile_n == 0 and N % tile_k == 0
    assert tile_n % 8 == 0 or tile_n == N
    assert tile_k % 128 == 0 or tile_k == N
    num_m = N // tile_n
    num_k = N // tile_k

    # ---- operands ---------------------------------------------------------------
    feat_p = jnp.pad(features, ((0, 0), (0, pad_d))) if pad_d else features
    feat_f32 = feat_p.astype(jnp.float32)       # residual / elementwise path
    feat_mm = feat_p.astype(matmul_dtype)       # L @ E right-hand side
    lap_mm = lap_matrix.astype(matmul_dtype)    # dominant N^2 HBM stream

    # Keep the matmul RHS VMEM-resident (fetched once) when it fits; otherwise stream
    # per-K blocks (re-fetched per row tile, amortized by the large tile_n).
    rhs_resident = (num_k > 1) and (
        N * Dp * np.dtype(matmul_dtype).itemsize <= rhs_resident_bytes)

    # ---- fused Fourier coefficients (bf16) ---------------------------------------
    ccoef = jnp.transpose(fourier_coeffs[0], (2, 1, 0)).astype(jnp.float32)  # [G, I, O]
    scoef = jnp.transpose(fourier_coeffs[1], (2, 1, 0)).astype(jnp.float32)  # [G, I, O]

    packed = (D_in % 128 != 0) and (2 * D_in <= Dp)
    if packed:
        # Per harmonic block of Dp rows: cos rows at [0:D_in], sin rows at [half:half+D_in],
        # zeros elsewhere -> matches the in-kernel [cos_g | rolled sin_g] lane packing.
        blk = jnp.zeros((G, Dp, Dp), jnp.float32)
        blk = blk.at[:, :D_in, :D_out].set(ccoef)
        blk = blk.at[:, half:half + D_in, :D_out].set(scoef)
        coeff_cat = blk.reshape(G * Dp, Dp)                       # K = G*Dp
    elif D_in % 128 == 0:
        # No padding anywhere (Dp == D_in == D_out): K = 2*G*D_in.
        coeff_cat = jnp.concatenate(
            [ccoef.reshape(G * D_in, D_out), scoef.reshape(G * D_in, D_out)], axis=0)
    else:
        # Fallback for 64 < D_in % 128: zero-padded K (correct, not optimal).
        cpad = ((0, 0), (0, Dp - D_in), (0, Dp - D_out))
        ccoef_p = jnp.pad(ccoef, cpad)
        scoef_p = jnp.pad(scoef, cpad)
        coeff_cat = jnp.concatenate(
            [ccoef_p.reshape(G * Dp, Dp), scoef_p.reshape(G * Dp, Dp)], axis=0)
    coeff_cat = coeff_cat.astype(jnp.bfloat16)
    k_fused = coeff_cat.shape[0]

    bias_p = jnp.pad(bias.astype(jnp.float32), ((0, 0), (0, Dp - D_out)))    # [1, Dp]

    kernel = functools.partial(
        fourier_gnn_kernel, grid_size=G, tile_k=tile_k,
        rhs_resident=rhs_resident, packed=packed, half=half)

    if rhs_resident:
        rhs_spec = pl.BlockSpec((N, Dp), lambda i, k: (0, 0))        # resident, sliced in-kernel
    else:
        rhs_spec = pl.BlockSpec((tile_k, Dp), lambda i, k: (k, 0))   # streamed per K block

    out_p = pl.pallas_call(
        kernel,
        out_shape=jax.ShapeDtypeStruct((N, Dp), features.dtype),
        grid_spec=pltpu.PrefetchScalarGridSpec(
            num_scalar_prefetch=0,
            grid=(num_m, num_k),
            in_specs=[
                pl.BlockSpec((tile_n, tile_k), lambda i, k: (i, k)),  # Laplacian tile (bf16)
                rhs_spec,                                             # matmul RHS feats (bf16)
                pl.BlockSpec((tile_n, Dp), lambda i, k: (i, 0)),      # f32 feature row tile
                pl.BlockSpec((k_fused, Dp), lambda i, k: (0, 0)),     # fused KAN coeffs (bf16)
                pl.BlockSpec((1, Dp), lambda i, k: (0, 0)),           # bias (f32)
            ],
            out_specs=pl.BlockSpec((tile_n, Dp), lambda i, k: (i, 0)),
            scratch_shapes=[pltpu.VMEM((tile_n, Dp), jnp.float32)],   # x = L @ E accumulator
        ),
        compiler_params=pltpu.CompilerParams(
            dimension_semantics=("parallel", "arbitrary")),
    )(lap_mm, feat_mm, feat_f32, coeff_cat, bias_p)

    return out_p[:, :D_out] if Dp != D_out else out_p


def _reference(lap, features, coeffs, bias, matmul_dtype=jnp.bfloat16):
    """Pure-JAX reference mirroring the PyTorch forward (L@E in the same bf16-in/f32-acc
    precision as the kernel so the comparison is apples-to-apples)."""
    x = jnp.dot(lap.astype(matmul_dtype), features.astype(matmul_dtype),
                preferred_element_type=jnp.float32)
    inter = x * features
    G = coeffs.shape[-1]
    k = jnp.arange(1, G + 1, dtype=jnp.float32).reshape(1, 1, 1, G)
    xr = inter.reshape(inter.shape[0], 1, inter.shape[1], 1)
    c = jnp.cos(k * xr)
    s = jnp.sin(k * xr)
    y = jnp.sum(c * coeffs[0:1], axis=(-2, -1)) + jnp.sum(s * coeffs[1:2], axis=(-2, -1))
    y = y + bias
    return features + x + y


if __name__ == "__main__":
    # N=512 nodes, in_dim == out_dim == 64 (exercises the packed cos|sin lane path),
    # grid_size G=4.
    N, D, G = 512, 64, 4
    key = jax.random.PRNGKey(0)
    k1, k2, k3 = jax.random.split(key, 3)

    lap = jax.random.normal(k1, (N, N), dtype=jnp.float32) * 0.1
    eye = jnp.eye(N, dtype=jnp.float32)
    features = jax.random.normal(k2, (N, D), dtype=jnp.float32)

    # KANLayer params (same shapes/init scale as NaiveFourierKANLayer).
    fourier_coeffs = jax.random.normal(k3, (2, D, D, G), dtype=jnp.float32) / (
        np.sqrt(D) * np.sqrt(G))
    bias = jnp.zeros((1, D), dtype=jnp.float32)

    ref = _reference(lap, features, fourier_coeffs, bias)

    # Default tiles: tile_n=256, tile_k=N -> grid (2, 1), K axis collapsed,
    # feature RHS fetched once.
    out = jax.block_until_ready(
        fourier_gnn_layer(lap, eye, features, fourier_coeffs, bias))
    np.testing.assert_allclose(np.asarray(out), np.asarray(ref), rtol=5e-2, atol=5e-2)

    # K-tiled path with the VMEM-resident matmul RHS (exercises the f32 accumulator
    # and in-kernel pl.ds slicing of the resident feature matrix).
    out2 = jax.block_until_ready(
        fourier_gnn_layer(lap, eye, features, fourier_coeffs, bias,
                          tile_n=128, tile_k=128))
    np.testing.assert_allclose(np.asarray(out2), np.asarray(ref), rtol=5e-2, atol=5e-2)

    print("KERNEL_OK")
</pallas_src>

<mosaic_0001>
module attributes {stable_mosaic.version = 11 : i64} {
  func.func @fourier_gnn_kernel(%arg0: i32, %arg1: i32, %arg2: memref<256x512xbf16, #tpu.memory_space<vmem>>, %arg3: memref<512x128xbf16, #tpu.memory_space<vmem>>, %arg4: memref<256x128xf32, #tpu.memory_space<vmem>>, %arg5: memref<512x128xbf16, #tpu.memory_space<vmem>>, %arg6: memref<1x128xf32, #tpu.memory_space<vmem>>, %arg7: memref<256x128xf32, #tpu.memory_space<vmem>>, %arg8: memref<256x128xf32, #tpu.memory_space<vmem>>) attributes {dimension_semantics = [#tpu.dimension_semantics<parallel>, #tpu.dimension_semantics<arbitrary>], iteration_bounds = array<i64: 2, 1>, scalar_prefetch = 0 : i64, scratch_operands = 1 : i64, tpu.core_type = #tpu.core_type<tc>, window_params = [{transform_indices = @transform_0, window_bounds = array<i64: 256, 512>}, {transform_indices = @transform_1, window_bounds = array<i64: 512, 128>}, {transform_indices = @transform_2, window_bounds = array<i64: 256, 128>}, {pipeline_mode = #tpu.pipeline_mode<synchronous>, transform_indices = @transform_3, window_bounds = array<i64: 512, 128>}, {pipeline_mode = #tpu.pipeline_mode<synchronous>, transform_indices = @transform_4, window_bounds = array<i64: 1, 128>}, {transform_indices = @transform_5, window_bounds = array<i64: 256, 128>}]} {
    %c0_i32 = arith.constant 0 : i32
    %0 = arith.cmpi eq, %arg1, %c0_i32 : i32
    %1 = arith.extui %0 : i1 to i32
    %c0_i32_0 = arith.constant 0 : i32
    %2 = arith.cmpi ne, %1, %c0_i32_0 : i32
    scf.if %2 {
      %cst_10 = arith.constant 0.000000e+00 : f32
      %12 = vector.broadcast %cst_10 : f32 to vector<256x128xf32>
      %c0_11 = arith.constant 0 : index
      %c0_12 = arith.constant 0 : index
      %13 = vector.load %arg8[%c0_11, %c0_12] : memref<256x128xf32, #tpu.memory_space<vmem>>, vector<256x128xf32>
      tpu.vector_store %arg8[%c0_11, %c0_12], %12 {strides = array<i32>} : memref<256x128xf32, #tpu.memory_space<vmem>>, vector<256x128xf32>,
    } else {
    }
    %c0 = arith.constant 0 : index
    %c0_1 = arith.constant 0 : index
    %3 = vector.load %arg3[%c0, %c0_1] : memref<512x128xbf16, #tpu.memory_space<vmem>>, vector<512x128xbf16>
    %c0_2 = arith.constant 0 : index
    %c0_3 = arith.constant 0 : index
    %4 = vector.load %arg8[%c0_2, %c0_3] : memref<256x128xf32, #tpu.memory_space<vmem>>, vector<256x128xf32>
    %c0_4 = arith.constant 0 : index
    %c0_5 = arith.constant 0 : index
    %5 = vector.load %arg2[%c0_4, %c0_5] : memref<256x512xbf16, #tpu.memory_space<vmem>>, vector<256x512xbf16>
    %cst = arith.constant dense<0.000000e+00> : vector<256x128xf32>
    %6 = tpu.matmul %5, %3, %cst {dimension_numbers = #tpu.dot_dimension_numbers<[1], [0], [0], [1], [0, 0, 1, 1], [], []>} : vector<256x512xbf16>, vector<512x128xbf16>, vector<256x128xf32> -> vector<256x128xf32>
    %7 = arith.addf %4, %6 : vector<256x128xf32>
    %c0_6 = arith.constant 0 : index
    %c0_7 = arith.constant 0 : index
    %8 = vector.load %arg8[%c0_6, %c0_7] : memref<256x128xf32, #tpu.memory_space<vmem>>, vector<256x128xf32>
    tpu.vector_store %arg8[%c0_6, %c0_7], %7 {strides = array<i32>} : memref<256x128xf32, #tpu.memory_space<vmem>>, vector<256x128xf32>,
    %c0_i32_8 = arith.constant 0 : i32
    %9 = arith.cmpi eq, %arg1, %c0_i32_8 : i32
    %10 = arith.extui %9 : i1 to i32
    %c0_i32_9 = arith.constant 0 : i32
    %11 = arith.cmpi ne, %10, %c0_i32_9 : i32
    scf.if %11 {
      %c0_10 = arith.constant 0 : index
      %c0_11 = arith.constant 0 : index
      %12 = vector.load %arg4[%c0_10, %c0_11] : memref<256x128xf32, #tpu.memory_space<vmem>>, vector<256x128xf32>
      %c0_12 = arith.constant 0 : index
      %c0_13 = arith.constant 0 : index
      %13 = vector.load %arg8[%c0_12, %c0_13] : memref<256x128xf32, #tpu.memory_space<vmem>>, vector<256x128xf32>
      %14 = arith.mulf %13, %12 : vector<256x128xf32>
      %15 = math.cos %14 : vector<256x128xf32>
      %16 = math.sin %14 : vector<256x128xf32>
      %17 = tpu.iota {dimensions = array<i32: 1>} : vector<256x128xi32>
      %c64_i32 = arith.constant 64 : i32
      %18 = vector.broadcast %c64_i32 : i32 to vector<256x128xi32>
      %19 = arith.cmpi slt, %17, %18 : vector<256x128xi32>
      %c64_i32_14 = arith.constant 64 : i32
      %20 = tpu.dynamic_rotate %16 by %c64_i32_14 dim 1 : vector<256x128xf32>, i32 -> vector<256x128xf32>
      %21 = arith.select %19, %15, %20 : vector<256x128xi1>, vector<256x128xf32>
      %22 = arith.truncf %21 : vector<256x128xf32> to vector<256x128xbf16>
      %23 = arith.mulf %15, %15 : vector<256x128xf32>
      %24 = arith.mulf %16, %16 : vector<256x128xf32>
      %25 = arith.subf %23, %24 : vector<256x128xf32>
      %26 = arith.mulf %16, %15 : vector<256x128xf32>
      %27 = arith.mulf %15, %16 : vector<256x128xf32>
      %28 = arith.addf %26, %27 : vector<256x128xf32>
      %c64_i32_15 = arith.constant 64 : i32
      %29 = tpu.dynamic_rotate %28 by %c64_i32_15 dim 1 : vector<256x128xf32>, i32 -> vector<256x128xf32>
      %30 = arith.select %19, %25, %29 : vector<256x128xi1>, vector<256x128xf32>
      %31 = arith.truncf %30 : vector<256x128xf32> to vector<256x128xbf16>
      %32 = arith.mulf %25, %15 : vector<256x128xf32>
      %33 = arith.mulf %28, %16 : vector<256x128xf32>
      %34 = arith.subf %32, %33 : vector<256x128xf32>
      %35 = arith.mulf %28, %15 : vector<256x128xf32>
      %36 = arith.mulf %25, %16 : vector<256x128xf32>
      %37 = arith.addf %35, %36 : vector<256x128xf32>
      %c64_i32_16 = arith.constant 64 : i32
      %38 = tpu.dynamic_rotate %37 by %c64_i32_16 dim 1 : vector<256x128xf32>, i32 -> vector<256x128xf32>
      %39 = arith.select %19, %34, %38 : vector<256x128xi1>, vector<256x128xf32>
      %40 = arith.truncf %39 : vector<256x128xf32> to vector<256x128xbf16>
      %41 = arith.mulf %34, %15 : vector<256x128xf32>
      %42 = arith.mulf %37, %16 : vector<256x128xf32>
      %43 = arith.subf %41, %42 : vector<256x128xf32>
      %44 = arith.mulf %37, %15 : vector<256x128xf32>
      %45 = arith.mulf %34, %16 : vector<256x128xf32>
      %46 = arith.addf %44, %45 : vector<256x128xf32>
      %c64_i32_17 = arith.constant 64 : i32
      %47 = tpu.dynamic_rotate %46 by %c64_i32_17 dim 1 : vector<256x128xf32>, i32 -> vector<256x128xf32>
      %48 = arith.select %19, %43, %47 : vector<256x128xi1>, vector<256x128xf32>
      %49 = arith.truncf %48 : vector<256x128xf32> to vector<256x128xbf16>
      %50 = tpu.concatenate %22, %31, %40, %49 in 1 : vector<256x128xbf16>, vector<256x128xbf16>, vector<256x128xbf16>, vector<256x128xbf16> -> vector<256x512xbf16>
      %c0_18 = arith.constant 0 : index
      %c0_19 = arith.constant 0 : index
      %51 = vector.load %arg5[%c0_18, %c0_19] : memref<512x128xbf16, #tpu.memory_space<vmem>>, vector<512x128xbf16>
      %cst_20 = arith.constant dense<0.000000e+00> : vector<256x128xf32>
      %52 = tpu.matmul %50, %51, %cst_20 {dimension_numbers = #tpu.dot_dimension_numbers<[1], [0], [0], [1], [0, 0, 1, 1], [], []>} : vector<256x512xbf16>, vector<512x128xbf16>, vector<256x128xf32> -> vector<256x128xf32>
      %53 = arith.addf %12, %13 : vector<256x128xf32>
      %54 = arith.addf %53, %52 : vector<256x128xf32>
      %c0_21 = arith.constant 0 : index
      %c0_22 = arith.constant 0 : index
      %55 = vector.load %arg6[%c0_21, %c0_22] : memref<1x128xf32, #tpu.memory_space<vmem>>, vector<1x128xf32>
      %56 = vector.broadcast %55 : vector<1x128xf32> to vector<256x128xf32>
      %57 = arith.addf %54, %56 : vector<256x128xf32>
      %c0_23 = arith.constant 0 : index
      %c0_24 = arith.constant 0 : index
      %58 = vector.load %arg7[%c0_23, %c0_24] : memref<256x128xf32, #tpu.memory_space<vmem>>, vector<256x128xf32>
      tpu.vector_store %arg7[%c0_23, %c0_24], %57 {strides = array<i32>} : memref<256x128xf32, #tpu.memory_space<vmem>>, vector<256x128xf32>,
    } else {
    }
    return
  }
  func.func @transform_0(%arg0: i32, %arg1: i32) -> (i32, i32) {
    %c0_i32 = arith.constant 0 : i32
    return %arg0, %arg1 : i32, i32
  }
  func.func @transform_1(%arg0: i32, %arg1: i32) -> (i32, i32) {
    %c0_i32 = arith.constant 0 : i32
    %c0_i32_0 = arith.constant 0 : i32
    return %arg1, %c0_i32 : i32, i32
  }
  func.func @transform_2(%arg0: i32, %arg1: i32) -> (i32, i32) {
    %c0_i32 = arith.constant 0 : i32
    %c0_i32_0 = arith.constant 0 : i32
    return %arg0, %c0_i32 : i32, i32
  }
  func.func @transform_3(%arg0: i32, %arg1: i32) -> (i32, i32) {
    %c0_i32 = arith.constant 0 : i32
    %c0_i32_0 = arith.constant 0 : i32
    %c0_i32_1 = arith.constant 0 : i32
    return %c0_i32, %c0_i32_0 : i32, i32
  }
  func.func @transform_4(%arg0: i32, %arg1: i32) -> (i32, i32) {
    %c0_i32 = arith.constant 0 : i32
    %c0_i32_0 = arith.constant 0 : i32
    %c0_i32_1 = arith.constant 0 : i32
    return %c0_i32, %c0_i32_0 : i32, i32
  }
  func.func @transform_5(%arg0: i32, %arg1: i32) -> (i32, i32) {
    %c0_i32 = arith.constant 0 : i32
    %c0_i32_0 = arith.constant 0 : i32
    return %arg0, %c0_i32 : i32, i32
  }
}

</mosaic_0001>

<llo_original>
// kernel: tpu_custom_call.1
$region0: #{tpu_custom_call.1}
  #allocation0 [shape = 'u32[]', space=smem, size = 0x4, offset = 0x4, fixed_abs, tag = 'smem constant byte address 0x4 - core index']
  #allocation1 [shape = 'u32[144,128]{1,0:T(1,128)}', space=vmem, size = 0x12000, scoped, tag = 'internal scratch']
  #allocation2 [shape = 'f32[256,128]{1,0:T(8,128)}', space=vmem, size = 0x20000, scoped, tag = 'scratch operand']
  %s0 = inlined_call_operand.hbm [shape: bf16[512,512], index: 0, kind: input, shape index: {}]
  %s1 = inlined_call_operand.hbm [shape: bf16[512,128], index: 1, kind: input, shape index: {}]
  %s2 = inlined_call_operand.hbm [shape: f32[512,128], index: 2, kind: input, shape index: {}]
  %s3 = inlined_call_operand.hbm [shape: bf16[512,128], index: 3, kind: input, shape index: {}]
  %s4 = inlined_call_operand.vmem [shape: f32[1,128], index: 4, kind: input, shape index: {}]
  %s5 = inlined_call_operand.hbm [shape: f32[512,128], index: 5, kind: output, shape index: {}]
  %s6 = sld [smem:[#allocation0]]
  $region77: #{tpu_custom_call.1} parent=0
    _
  %s8 = ssub.s32 1, %s6
  %s9 = scalar_select 0, %s8, %s6
  $region1: #{tpu_custom_call.1} parent=0
    #allocation3 [shape = 'u8[524288]{0}', space=vmem, size = 0x80000, scoped, tag = 'input window, operand 0']
    #allocation4 [shape = 's32[2]{0}', space=sflag, size = 0x8, scoped, tag = 'scoped memory for tpu_custom_call.1']
    #allocation5 [shape = 's32[2]{0}', space=sflag, size = 0x8, scoped, tag = 'scoped memory for tpu_custom_call.1']
    #allocation6 [shape = 'u8[131072]{0}', space=vmem, size = 0x20000, scoped, tag = 'input window, operand 1, single buffered']
    #allocation7 [shape = 's32[1]{0}', space=sflag, size = 0x4, scoped, tag = 'scoped memory for tpu_custom_call.1']
    #allocation8 [shape = 'u8[262144]{0}', space=vmem, size = 0x40000, scoped, tag = 'input window, operand 2']
    #allocation9 [shape = 'u8[131072]{0}', space=vmem, size = 0x20000, scoped, tag = 'input window, operand 3, single buffered']
    #allocation10 [shape = 'u8[262144]{0}', space=vmem, size = 0x40000, scoped, tag = 'output window, operand 0']
    %10 = vsyncpa [#allocation4], 0
    %s11 = scalar_lea.sflag [#allocation4], 1
    %12 = vsyncpa %s11, 0
    %13 = vsyncpa [#allocation7], 0
    %14 = vsyncpa [#allocation5], 0
    %s15 = scalar_lea.sflag [#allocation5], 1
    %16 = vsyncpa %s15, 0
    loop: start=0, step=1, limit=4
    $region2: #{tpu_custom_call.1} parent=1 // loop_pre_header
      _
    $region3: #{tpu_custom_call.1} parent=1 // loop_header
      %s18 = sphi 0, %s22
      %p19 = scmp.ge.s32.totalorder %s18, 4
      %s25 = sphi 0, %s37
      %s26 = sphi 0, %s33
      %s27 = sphi 0, %s25
      %s28 = sphi 0, %s26
      %s29 = sphi 0, %s27
      %s30 = sphi 0, %s28
      %s42 = sphi 0, %s44
      %s45 = sphi 0, %s42
      %s46 = sphi 0, %s45
      %s62 = sphi 0, %s46
      %s68 = sphi 0, %s70
      %s71 = sphi 0, %s68
      %s72 = sphi 0, %s71
      %s88 = sphi 0, %s72
      %s94 = sphi 0, %s96
      %s97 = sphi 0, %s94
      %s98 = sphi 0, %s97
      %s114 = sphi 0, %s98
      %s118 = sphi 0, %s118
      %s120 = sphi 0, %s118
      %s121 = sphi 0, %s120
      %s135 = sphi 0, %s121
      %s139 = sphi 0, %s139
      %s141 = sphi 0, %s139
      %s142 = sphi 0, %s141
      %s156 = sphi 0, %s142
      %s162 = sphi 0, %s164
      %s165 = sphi 0, %s162
      %s166 = sphi 0, %s165
      %s182 = sphi 0, %s166
    $region4: #{tpu_custom_call.1} parent=1 // loop_header_branch
      %21 = sbr.rel (%p19) target = $region8
    $region5: #{tpu_custom_call.1} parent=1 // loop_body
      %s23 = ssub.s32 %s18, 1
      %s24 = ssub.s32 %s18, 2
      %s31 = sadd.s32 1, %s26
      %p32 = scmp.ge.s32.totalorder %s31, 1
      %s33 = scalar_select %p32, 0, %s31
      %s34 = sadd.s32 1, %s25
      %s35 = scalar_select %p32, %s34, %s25
      %p36 = scmp.ge.s32.totalorder %s35, 2
      %s37 = scalar_select %p36, 0, %s35
      %s38 = ssub.s32 %s25, %s37
      %s39 = ssub.s32 %s26, %s33
      %s40 = sor.u32 %s38, %s39
      %p41 = scmp.eq.s32.totalorder %s40, 0
      %s43 = sadd.s32 %s42, 1
      %s44 = scalar_select %p41, %s42, %s43
      %p47 = pneg %p41
      %p48 = scmp.eq.s32.totalorder %s18, 1
      %p49 = por %p47, %p48
      %p50 = scmp.ne.s32.totalorder %s42, %s45
      %p51 = scmp.eq.s32.totalorder %s18, 0
      %p52 = por %p50, %p51
      %p53 = scmp.ne.s32.totalorder %s42, %s45
      %p54 = scmp.eq.s32.totalorder %s23, 1
      %p55 = por %p53, %p54
      %p56 = scmp.ne.s32.totalorder %s45, %s46
      %p57 = scmp.eq.s32.totalorder %s23, 0
      %p58 = por %p56, %p57
      %p59 = scmp.ne.s32.totalorder %s45, %s46
      %p60 = scmp.eq.s32.totalorder %s24, 1
      %p61 = por %p59, %p60
      %p63 = scmp.ne.s32.totalorder %s46, %s62
      %p64 = scmp.eq.s32.totalorder %s24, 0
      %p65 = por %p63, %p64
      %s66 = ssub.s32 %s26, %s33
      %p67 = scmp.eq.s32.totalorder %s66, 0
      %s69 = sadd.s32 %s68, 1
      %s70 = scalar_select %p67, %s68, %s69
      %p73 = pneg %p67
      %p74 = scmp.eq.s32.totalorder %s18, 1
      %p75 = por %p73, %p74
      %p76 = scmp.ne.s32.totalorder %s68, %s71
      %p77 = scmp.eq.s32.totalorder %s18, 0
      %p78 = por %p76, %p77
      %p79 = scmp.ne.s32.totalorder %s68, %s71
      %p80 = scmp.eq.s32.totalorder %s23, 1
      %p81 = por %p79, %p80
      %p82 = scmp.ne.s32.totalorder %s71, %s72
      %p83 = scmp.eq.s32.totalorder %s23, 0
      %p84 = por %p82, %p83
      %p85 = scmp.ne.s32.totalorder %s71, %s72
      %p86 = scmp.eq.s32.totalorder %s24, 1
      %p87 = por %p85, %p86
      %p89 = scmp.ne.s32.totalorder %s72, %s88
      %p90 = scmp.eq.s32.totalorder %s24, 0
      %p91 = por %p89, %p90
      %s92 = ssub.s32 %s25, %s37
      %p93 = scmp.eq.s32.totalorder %s92, 0
      %s95 = sadd.s32 %s94, 1
      %s96 = scalar_select %p93, %s94, %s95
      %p99 = pneg %p93
      %p100 = scmp.eq.s32.totalorder %s18, 1
      %p101 = por %p99, %p100
      %p102 = scmp.ne.s32.totalorder %s94, %s97
      %p103 = scmp.eq.s32.totalorder %s18, 0
      %p104 = por %p102, %p103
      %p105 = scmp.ne.s32.totalorder %s94, %s97
      %p106 = scmp.eq.s32.totalorder %s23, 1
      %p107 = por %p105, %p106
      %p108 = scmp.ne.s32.totalorder %s97, %s98
      %p109 = scmp.eq.s32.totalorder %s23, 0
      %p110 = por %p108, %p109
      %p111 = scmp.ne.s32.totalorder %s97, %s98
      %p112 = scmp.eq.s32.totalorder %s24, 1
      %p113 = por %p111, %p112
      %p115 = scmp.ne.s32.totalorder %s98, %s114
      %p116 = scmp.eq.s32.totalorder %s24, 0
      %p117 = por %p115, %p116
      %s119 = sadd.s32 %s118, 1
      %p122 = scmp.eq.s32.totalorder %s18, 1
      %p123 = scmp.ne.s32.totalorder %s118, %s120
      %p124 = scmp.eq.s32.totalorder %s18, 0
      %p125 = por %p123, %p124
      %p126 = scmp.ne.s32.totalorder %s118, %s120
      %p127 = scmp.eq.s32.totalorder %s23, 1
      %p128 = por %p126, %p127
      %p129 = scmp.ne.s32.totalorder %s120, %s121
      %p130 = scmp.eq.s32.totalorder %s23, 0
      %p131 = por %p129, %p130
      %p132 = scmp.ne.s32.totalorder %s120, %s121
      %p133 = scmp.eq.s32.totalorder %s24, 1
      %p134 = por %p132, %p133
      %p136 = scmp.ne.s32.totalorder %s121, %s135
      %p137 = scmp.eq.s32.totalorder %s24, 0
      %p138 = por %p136, %p137
      %s140 = sadd.s32 %s139, 1
      %p143 = scmp.eq.s32.totalorder %s18, 1
      %p144 = scmp.ne.s32.totalorder %s139, %s141
      %p145 = scmp.eq.s32.totalorder %s18, 0
      %p146 = por %p144, %p145
      %p147 = scmp.ne.s32.totalorder %s139, %s141
      %p148 = scmp.eq.s32.totalorder %s23, 1
      %p149 = por %p147, %p148
      %p150 = scmp.ne.s32.totalorder %s141, %s142
      %p151 = scmp.eq.s32.totalorder %s23, 0
      %p152 = por %p150, %p151
      %p153 = scmp.ne.s32.totalorder %s141, %s142
      %p154 = scmp.eq.s32.totalorder %s24, 1
      %p155 = por %p153, %p154
      %p157 = scmp.ne.s32.totalorder %s142, %s156
      %p158 = scmp.eq.s32.totalorder %s24, 0
      %p159 = por %p157, %p158
      %s160 = ssub.s32 %s25, %s37
      %p161 = scmp.eq.s32.totalorder %s160, 0
      %s163 = sadd.s32 %s162, 1
      %s164 = scalar_select %p161, %s162, %s163
      %p167 = pneg %p161
      %p168 = scmp.eq.s32.totalorder %s18, 1
      %p169 = por %p167, %p168
      %p170 = scmp.ne.s32.totalorder %s162, %s165
      %p171 = scmp.eq.s32.totalorder %s18, 0
      %p172 = por %p170, %p171
      %p173 = scmp.ne.s32.totalorder %s162, %s165
      %p174 = scmp.eq.s32.totalorder %s23, 1
      %p175 = por %p173, %p174
      %p176 = scmp.ne.s32.totalorder %s165, %s166
      %p177 = scmp.eq.s32.totalorder %s23, 0
      %p178 = por %p176, %p177
      %p179 = scmp.ne.s32.totalorder %s165, %s166
      %p180 = scmp.eq.s32.totalorder %s24, 1
      %p181 = por %p179, %p180
      %p183 = scmp.ne.s32.totalorder %s166, %s182
      %p184 = scmp.eq.s32.totalorder %s24, 0
      %p185 = por %p183, %p184
      %p186 = scmp.le.s32.totalorder 1, %s18
      %p187 = scmp.lt.s32.totalorder %s18, 3
      %p188 = pnand %p186, %p187
      %p189 = pneg %p188
      // Predicated region
      $region9: #{tpu_custom_call.1} parent=5 // pred_check
        _
      $region10: #{tpu_custom_call.1} parent=5 // pred_check_branch
        %191 = sbr.rel (%p188) target = $region12
      $region11: #{tpu_custom_call.1} parent=5 // pred_region
        %s192 = ssub.s32 %s18, 1
        // Predicated region
        $region13: #{tpu_custom_call.1} parent=11 // pred_check
          %p193 = pneg %p84
        $region14: #{tpu_custom_call.1} parent=11 // pred_check_branch
          %195 = sbr.rel (%p193) target = $region16
        $region15: #{tpu_custom_call.1} parent=11 // pred_region
          %s196 = smul.u32 64, %s28
          %s198 = ssub.s32 4096, 4096
          %199 = vsyncadd [#allocation7], %s198
          %s200 = smul.addr %s196, 64
          %s201 = scalar_lea.hbm %s1, %s200
          %s202 = sshll.u32 [#allocation6], 4
          %s203 = int_to_ptr.vmem [resolvable:$true] %s202
          %208 = dma.hbm_to_vmem [thread:$0]  %s201, 4096, %s203, [#allocation7], 64, 64, 4
        $region16: #{tpu_custom_call.1} parent=11 // pred_fallthru
          _
        // Predicated region
        $region17: #{tpu_custom_call.1} parent=11 // pred_check
          %p209 = pneg %p131
        $region18: #{tpu_custom_call.1} parent=11 // pred_check_branch
          %211 = sbr.rel (%p209) target = $region20
        $region19: #{tpu_custom_call.1} parent=11 // pred_region
          %s213 = ssub.s32 4096, 4096
          %214 = vsyncadd [#allocation7], %s213
          %s215 = sshll.u32 [#allocation9], 4
          %s216 = int_to_ptr.vmem [resolvable:$true] %s215
          %221 = dma.hbm_to_vmem [thread:$0]  %s3, 4096, %s216, [#allocation7], 64, 64, 4
        $region20: #{tpu_custom_call.1} parent=11 // pred_fallthru
          _
        // Predicated region
        $region21: #{tpu_custom_call.1} parent=11 // pred_check
          %p222 = pneg %p152
        $region22: #{tpu_custom_call.1} parent=11 // pred_check_branch
          %224 = sbr.rel (%p222) target = $region24
        $region23: #{tpu_custom_call.1} parent=11 // pred_region
          _
        $region24: #{tpu_custom_call.1} parent=11 // pred_fallthru
          _
      $region12: #{tpu_custom_call.1} parent=5 // pred_fallthru
        _
      %p225 = scmp.lt.s32.totalorder %s18, 2
      // Predicated region
      $region25: #{tpu_custom_call.1} parent=5 // pred_check
        %p226 = pneg %p225
      $region26: #{tpu_custom_call.1} parent=5 // pred_check_branch
        %228 = sbr.rel (%p226) target = $region28
      $region27: #{tpu_custom_call.1} parent=5 // pred_region
        // Predicated region
        $region29: #{tpu_custom_call.1} parent=27 // pred_check
          %p229 = pneg %p52
        $region30: #{tpu_custom_call.1} parent=27 // pred_check_branch
          %231 = sbr.rel (%p229) target = $region32
        $region31: #{tpu_custom_call.1} parent=27 // pred_region
          %s232 = sand.u32 %s18, 1
          %s233 = scalar_lea.sflag [#allocation4], %s232
          %s234 = sand.u32 %s42, 1
          %s235 = smul.addr %s234, 512
          %s236 = scalar_lea.vmem [#allocation3], %s235
          %s237 = smul.u32 32, %s25
          %s238 = smul.u32 4, %s26
          %s240 = ssub.s32 8192, 8192
          %241 = vsyncadd %s233, %s240
          %s242 = smul.addr %s237, 4
          %s243 = sadd.s32 %s238, %s242
          %s244 = smul.addr %s243, 64
          %s245 = scalar_lea.hbm %s0, %s244
          %s246 = sshll.u32 %s236, 4
          %s247 = int_to_ptr.vmem [resolvable:$true] %s246
          %252 = dma.hbm_to_vmem [thread:$0]  %s245, 8192, %s247, %s233, 256, 256, 16
        $region32: #{tpu_custom_call.1} parent=27 // pred_fallthru
          _
        // Predicated region
        $region33: #{tpu_custom_call.1} parent=27 // pred_check
          %p253 = pneg %p104
        $region34: #{tpu_custom_call.1} parent=27 // pred_check_branch
          %255 = sbr.rel (%p253) target = $region36
        $region35: #{tpu_custom_call.1} parent=27 // pred_region
          %s256 = sand.u32 %s18, 1
          %s257 = scalar_lea.sflag [#allocation4], %s256
          %s258 = sand.u32 %s94, 1
          %s259 = smul.addr %s258, 256
          %s260 = scalar_lea.vmem [#allocation8], %s259
          %s261 = smul.u32 32, %s25
          %s263 = ssub.s32 4096, 4096
          %264 = vsyncadd %s257, %s263
          %s265 = smul.addr %s261, 128
          %s266 = scalar_lea.hbm %s2, %s265
          %s267 = sshll.u32 %s260, 4
          %s268 = int_to_ptr.vmem [resolvable:$true] %s267
          %273 = dma.hbm_to_vmem [thread:$0]  %s266, 4096, %s268, %s257, 128, 128, 8
        $region36: #{tpu_custom_call.1} parent=27 // pred_fallthru
          _
      $region28: #{tpu_custom_call.1} parent=5 // pred_fallthru
        _
      %p274 = scmp.le.s32.totalorder 1, %s18
      %p275 = scmp.lt.s32.totalorder %s18, 3
      %p276 = pnand %p274, %p275
      %p277 = pneg %p276
      // Predicated region
      $region37: #{tpu_custom_call.1} parent=5 // pred_check
        _
      $region38: #{tpu_custom_call.1} parent=5 // pred_check_branch
        %279 = sbr.rel (%p276) target = $region40
      $region39: #{tpu_custom_call.1} parent=5 // pred_region
        %s280 = ssub.s32 %s18, 1
        %s281 = sand.u32 %s23, 1
        %s282 = scalar_lea.sflag [#allocation4], %s281
        %s283 = sand.u32 %s45, 1
        %s284 = smul.addr %s283, 512
        %s285 = scalar_lea.vmem [#allocation3], %s284
        // Predicated region
        $region41: #{tpu_custom_call.1} parent=39 // pred_check
          %p286 = pneg %p58
        $region42: #{tpu_custom_call.1} parent=39 // pred_check_branch
          %288 = sbr.rel (%p286) target = $region44
        $region43: #{tpu_custom_call.1} parent=39 // pred_region
          %289 = dma.done %s282, 8192
        $region44: #{tpu_custom_call.1} parent=39 // pred_fallthru
          _
        // Predicated region
        $region45: #{tpu_custom_call.1} parent=39 // pred_check
          %p290 = pneg %p84
        $region46: #{tpu_custom_call.1} parent=39 // pred_check_branch
          %292 = sbr.rel (%p290) target = $region48
        $region47: #{tpu_custom_call.1} parent=39 // pred_region
          %293 = dma.done [#allocation7], 4096
        $region48: #{tpu_custom_call.1} parent=39 // pred_fallthru
          _
        %s294 = sand.u32 %s23, 1
        %s295 = scalar_lea.sflag [#allocation4], %s294
        %s296 = sand.u32 %s97, 1
        %s297 = smul.addr %s296, 256
        %s298 = scalar_lea.vmem [#allocation8], %s297
        // Predicated region
        $region49: #{tpu_custom_call.1} parent=39 // pred_check
          %p299 = pneg %p110
        $region50: #{tpu_custom_call.1} parent=39 // pred_check_branch
          %301 = sbr.rel (%p299) target = $region52
        $region51: #{tpu_custom_call.1} parent=39 // pred_region
          %302 = dma.done %s295, 4096
        $region52: #{tpu_custom_call.1} parent=39 // pred_fallthru
          _
        // Predicated region
        $region53: #{tpu_custom_call.1} parent=39 // pred_check
          %p303 = pneg %p131
        $region54: #{tpu_custom_call.1} parent=39 // pred_check_branch
          %305 = sbr.rel (%p303) target = $region56
        $region55: #{tpu_custom_call.1} parent=39 // pred_region
          %306 = dma.done [#allocation7], 4096
        $region56: #{tpu_custom_call.1} parent=39 // pred_fallthru
          _
        %s307 = sand.u32 %s23, 1
        %s308 = scalar_lea.sflag [#allocation4], %s307
        %s309 = sand.u32 %s45, 1
        %s310 = smul.addr %s309, 512
        %s311 = scalar_lea.vmem [#allocation3], %s310
        %p312 = pneg %p58
        %p313 = pneg %p55
        %p314 = pneg %p84
        %p315 = pneg %p81
        %s316 = sand.u32 %s23, 1
        %s317 = scalar_lea.sflag [#allocation4], %s316
        %s318 = sand.u32 %s97, 1
        %s319 = smul.addr %s318, 256
        %s320 = scalar_lea.vmem [#allocation8], %s319
        %p321 = pneg %p110
        %p322 = pneg %p107
        %p323 = pneg %p131
        %p324 = pneg %p128
        %p325 = pneg %p152
        %p326 = pneg %p149
        %p327 = pneg %p178
        %p328 = pneg %p175
        %s329 = sand.u32 %s165, 1
        %s330 = scalar_lea.sflag [#allocation5], %s329
        %s331 = sand.u32 %s165, 1
        %s332 = smul.addr %s331, 256
        %s333 = scalar_lea.vmem [#allocation10], %s332
        %s334 = smul.u32 32, %s27
        %s335 = smul.u32 4, %s28
        %s336 = smul.u32 64, %s28
        %s337 = smul.u32 32, %s27
        %s338 = smul.u32 32, %s27
        %p340 = scmp.eq.s32.totalorder %s28, 0
        // Predicated region
        $region57: #{tpu_custom_call.1} parent=39 // pred_check
          %p341 = pneg %p340
        $region58: #{tpu_custom_call.1} parent=39 // pred_check_branch
          %343 = sbr.rel (%p341) target = $region60
        $region59: #{tpu_custom_call.1} parent=39 // pred_region
          %344 = vst [vmem:[#allocation2] sm:$0xff] 0.0
          %345 = vst [vmem:[#allocation2 + $0x8] sm:$0xff] 0.0
          %346 = vst [vmem:[#allocation2 + $0x10] sm:$0xff] 0.0
          %347 = vst [vmem:[#allocation2 + $0x18] sm:$0xff] 0.0
          %348 = vst [vmem:[#allocation2 + $0x20] sm:$0xff] 0.0
          %349 = vst [vmem:[#allocation2 + $0x28] sm:$0xff] 0.0
          %350 = vst [vmem:[#allocation2 + $0x30] sm:$0xff] 0.0
          %351 = vst [vmem:[#allocation2 + $0x38] sm:$0xff] 0.0
          %352 = vst [vmem:[#allocation2 + $0x40] sm:$0xff] 0.0
          %353 = vst [vmem:[#allocation2 + $0x48] sm:$0xff] 0.0
          %354 = vst [vmem:[#allocation2 + $0x50] sm:$0xff] 0.0
          %355 = vst [vmem:[#allocation2 + $0x58] sm:$0xff] 0.0
          %356 = vst [vmem:[#allocation2 + $0x60] sm:$0xff] 0.0
          %357 = vst [vmem:[#allocation2 + $0x68] sm:$0xff] 0.0
          %358 = vst [vmem:[#allocation2 + $0x70] sm:$0xff] 0.0
          %359 = vst [vmem:[#allocation2 + $0x78] sm:$0xff] 0.0
          %360 = vst [vmem:[#allocation2 + $0x80] sm:$0xff] 0.0
          %361 = vst [vmem:[#allocation2 + $0x88] sm:$0xff] 0.0
          %362 = vst [vmem:[#allocation2 + $0x90] sm:$0xff] 0.0
          %363 = vst [vmem:[#allocation2 + $0x98] sm:$0xff] 0.0
          %364 = vst [vmem:[#allocation2 + $0xa0] sm:$0xff] 0.0
          %365 = vst [vmem:[#allocation2 + $0xa8] sm:$0xff] 0.0
          %366 = vst [vmem:[#allocation2 + $0xb0] sm:$0xff] 0.0
          %367 = vst [vmem:[#allocation2 + $0xb8] sm:$0xff] 0.0
          %368 = vst [vmem:[#allocation2 + $0xc0] sm:$0xff] 0.0
          %369 = vst [vmem:[#allocation2 + $0xc8] sm:$0xff] 0.0
          %370 = vst [vmem:[#allocation2 + $0xd0] sm:$0xff] 0.0
          %371 = vst [vmem:[#allocation2 + $0xd8] sm:$0xff] 0.0
          %372 = vst [vmem:[#allocation2 + $0xe0] sm:$0xff] 0.0
          %373 = vst [vmem:[#allocation2 + $0xe8] sm:$0xff] 0.0
          %374 = vst [vmem:[#allocation2 + $0xf0] sm:$0xff] 0.0
          %375 = vst [vmem:[#allocation2 + $0xf8] sm:$0xff] 0.0
        $region60: #{tpu_custom_call.1} parent=39 // pred_fallthru
          _
        %v376 = vld [vmem:[#allocation6] sm:$0xf]
        %v377 = vld [vmem:[#allocation6 + $0x4] sm:$0xf]
        %v378 = vld [vmem:[#allocation6 + $0x8] sm:$0xf]
        %v379 = vld [vmem:[#allocation6 + $0xc] sm:$0xf]
        %v380 = vld [vmem:[#allocation6 + $0x10] sm:$0xf]
        %v381 = vld [vmem:[#allocation6 + $0x14] sm:$0xf]
        %v382 = vld [vmem:[#allocation6 + $0x18] sm:$0xf]
        %v383 = vld [vmem:[#allocation6 + $0x1c] sm:$0xf]
        %v384 = vld [vmem:[#allocation6 + $0x20] sm:$0xf]
        %v385 = vld [vmem:[#allocation6 + $0x24] sm:$0xf]
        %v386 = vld [vmem:[#allocation6 + $0x28] sm:$0xf]
        %v387 = vld [vmem:[#allocation6 + $0x2c] sm:$0xf]
        %v388 = vld [vmem:[#allocation6 + $0x30] sm:$0xf]
        %v389 = vld [vmem:[#allocation6 + $0x34] sm:$0xf]
        %v390 = vld [vmem:[#allocation6 + $0x38] sm:$0xf]
        %v391 = vld [vmem:[#allocation6 + $0x3c] sm:$0xf]
        %v392 = vld [vmem:[#allocation6 + $0x40] sm:$0xf]
        %v393 = vld [vmem:[#allocation6 + $0x44] sm:$0xf]
        %v394 = vld [vmem:[#allocation6 + $0x48] sm:$0xf]
        %v395 = vld [vmem:[#allocation6 + $0x4c] sm:$0xf]
        %v396 = vld [vmem:[#allocation6 + $0x50] sm:$0xf]
        %v397 = vld [vmem:[#allocation6 + $0x54] sm:$0xf]
        %v398 = vld [vmem:[#allocation6 + $0x58] sm:$0xf]
        %v399 = vld [vmem:[#allocation6 + $0x5c] sm:$0xf]
        %v400 = vld [vmem:[#allocation6 + $0x60] sm:$0xf]
        %v401 = vld [vmem:[#allocation6 + $0x64] sm:$0xf]
        %v402 = vld [vmem:[#allocation6 + $0x68] sm:$0xf]
        %v403 = vld [vmem:[#allocation6 + $0x6c] sm:$0xf]
        %v404 = vld [vmem:[#allocation6 + $0x70] sm:$0xf]
        %v405 = vld [vmem:[#allocation6 + $0x74] sm:$0xf]
        %v406 = vld [vmem:[#allocation6 + $0x78] sm:$0xf]
        %v407 = vld [vmem:[#allocation6 + $0x7c] sm:$0xf]
        %v408 = vld [vmem:[#allocation6 + $0x80] sm:$0xf]
        %v409 = vld [vmem:[#allocation6 + $0x84] sm:$0xf]
        %v410 = vld [vmem:[#allocation6 + $0x88] sm:$0xf]
        %v411 = vld [vmem:[#allocation6 + $0x8c] sm:$0xf]
        %v412 = vld [vmem:[#allocation6 + $0x90] sm:$0xf]
        %v413 = vld [vmem:[#allocation6 + $0x94] sm:$0xf]
        %v414 = vld [vmem:[#allocation6 + $0x98] sm:$0xf]
        %v415 = vld [vmem:[#allocation6 + $0x9c] sm:$0xf]
        %v416 = vld [vmem:[#allocation6 + $0xa0] sm:$0xf]
        %v417 = vld [vmem:[#allocation6 + $0xa4] sm:$0xf]
        %v418 = vld [vmem:[#allocation6 + $0xa8] sm:$0xf]
        %v419 = vld [vmem:[#allocation6 + $0xac] sm:$0xf]
        %v420 = vld [vmem:[#allocation6 + $0xb0] sm:$0xf]
        %v421 = vld [vmem:[#allocation6 + $0xb4] sm:$0xf]
        %v422 = vld [vmem:[#allocation6 + $0xb8] sm:$0xf]
        %v423 = vld [vmem:[#allocation6 + $0xbc] sm:$0xf]
        %v424 = vld [vmem:[#allocation6 + $0xc0] sm:$0xf]
        %v425 = vld [vmem:[#allocation6 + $0xc4] sm:$0xf]
        %v426 = vld [vmem:[#allocation6 + $0xc8] sm:$0xf]
        %v427 = vld [vmem:[#allocation6 + $0xcc] sm:$0xf]
        %v428 = vld [vmem:[#allocation6 + $0xd0] sm:$0xf]
        %v429 = vld [vmem:[#allocation6 + $0xd4] sm:$0xf]
        %v430 = vld [vmem:[#allocation6 + $0xd8] sm:$0xf]
        %v431 = vld [vmem:[#allocation6 + $0xdc] sm:$0xf]
        %v432 = vld [vmem:[#allocation6 + $0xe0] sm:$0xf]
        %v433 = vld [vmem:[#allocation6 + $0xe4] sm:$0xf]
        %v434 = vld [vmem:[#allocation6 + $0xe8] sm:$0xf]
        %v435 = vld [vmem:[#allocation6 + $0xec] sm:$0xf]
        %v436 = vld [vmem:[#allocation6 + $0xf0] sm:$0xf]
        %v437 = vld [vmem:[#allocation6 + $0xf4] sm:$0xf]
        %v438 = vld [vmem:[#allocation6 + $0xf8] sm:$0xf]
        %v439 = vld [vmem:[#allocation6 + $0xfc] sm:$0xf]
        %v440 = vld [vmem:[#allocation2] sm:$0xff]
        %v441 = vld [vmem:[#allocation2 + $0x8] sm:$0xff]
        %v442 = vld [vmem:[#allocation2 + $0x10] sm:$0xff]
        %v443 = vld [vmem:[#allocation2 + $0x18] sm:$0xff]
        %v444 = vld [vmem:[#allocation2 + $0x20] sm:$0xff]
        %v445 = vld [vmem:[#allocation2 + $0x28] sm:$0xff]
        %v446 = vld [vmem:[#allocation2 + $0x30] sm:$0xff]
        %v447 = vld [vmem:[#allocation2 + $0x38] sm:$0xff]
        %v448 = vld [vmem:[#allocation2 + $0x40] sm:$0xff]
        %v449 = vld [vmem:[#allocation2 + $0x48] sm:$0xff]
        %v450 = vld [vmem:[#allocation2 + $0x50] sm:$0xff]
        %v451 = vld [vmem:[#allocation2 + $0x58] sm:$0xff]
        %v452 = vld [vmem:[#allocation2 + $0x60] sm:$0xff]
        %v453 = vld [vmem:[#allocation2 + $0x68] sm:$0xff]
        %v454 = vld [vmem:[#allocation2 + $0x70] sm:$0xff]
        %v455 = vld [vmem:[#allocation2 + $0x78] sm:$0xff]
        %v456 = vld [vmem:[#allocation2 + $0x80] sm:$0xff]
        %v457 = vld [vmem:[#allocation2 + $0x88] sm:$0xff]
        %v458 = vld [vmem:[#allocation2 + $0x90] sm:$0xff]
        %v459 = vld [vmem:[#allocation2 + $0x98] sm:$0xff]
        %v460 = vld [vmem:[#allocation2 + $0xa0] sm:$0xff]
        %v461 = vld [vmem:[#allocation2 + $0xa8] sm:$0xff]
        %v462 = vld [vmem:[#allocation2 + $0xb0] sm:$0xff]
        %v463 = vld [vmem:[#allocation2 + $0xb8] sm:$0xff]
        %v464 = vld [vmem:[#allocation2 + $0xc0] sm:$0xff]
        %v465 = vld [vmem:[#allocation2 + $0xc8] sm:$0xff]
        %v466 = vld [vmem:[#allocation2 + $0xd0] sm:$0xff]
        %v467 = vld [vmem:[#allocation2 + $0xd8] sm:$0xff]
        %v468 = vld [vmem:[#allocation2 + $0xe0] sm:$0xff]
        %v469 = vld [vmem:[#allocation2 + $0xe8] sm:$0xff]
        %v470 = vld [vmem:[#allocation2 + $0xf0] sm:$0xff]
        %v471 = vld [vmem:[#allocation2 + $0xf8] sm:$0xff]
        %v472 = vld [vmem:[%s285] sm:$0xff]
        %v473 = vld [vmem:[%s285 + $0x8] sm:$0xff]
        %v474 = vld [vmem:[%s285 + $0x10] sm:$0xff]
        %v475 = vld [vmem:[%s285 + $0x18] sm:$0xff]
        %v476 = vld [vmem:[%s285 + $0x20] sm:$0xff]
        %v477 = vld [vmem:[%s285 + $0x28] sm:$0xff]
        %v478 = vld [vmem:[%s285 + $0x30] sm:$0xff]
        %v479 = vld [vmem:[%s285 + $0x38] sm:$0xff]
        %v480 = vld [vmem:[%s285 + $0x40] sm:$0xff]
        %v481 = vld [vmem:[%s285 + $0x48] sm:$0xff]
        %v482 = vld [vmem:[%s285 + $0x50] sm:$0xff]
        %v483 = vld [vmem:[%s285 + $0x58] sm:$0xff]
        %v484 = vld [vmem:[%s285 + $0x60] sm:$0xff]
        %v485 = vld [vmem:[%s285 + $0x68] sm:$0xff]
        %v486 = vld [vmem:[%s285 + $0x70] sm:$0xff]
        %v487 = vld [vmem:[%s285 + $0x78] sm:$0xff]
        %v488 = vld [vmem:[%s285 + $0x80] sm:$0xff]
        %v489 = vld [vmem:[%s285 + $0x88] sm:$0xff]
        %v490 = vld [vmem:[%s285 + $0x90] sm:$0xff]
        %v491 = vld [vmem:[%s285 + $0x98] sm:$0xff]
        %v492 = vld [vmem:[%s285 + $0xa0] sm:$0xff]
        %v493 = vld [vmem:[%s285 + $0xa8] sm:$0xff]
        %v494 = vld [vmem:[%s285 + $0xb0] sm:$0xff]
        %v495 = vld [vmem:[%s285 + $0xb8] sm:$0xff]
        %v496 = vld [vmem:[%s285 + $0xc0] sm:$0xff]
        %v497 = vld [vmem:[%s285 + $0xc8] sm:$0xff]
        %v498 = vld [vmem:[%s285 + $0xd0] sm:$0xff]
        %v499 = vld [vmem:[%s285 + $0xd8] sm:$0xff]
        %v500 = vld [vmem:[%s285 + $0xe0] sm:$0xff]
        %v501 = vld [vmem:[%s285 + $0xe8] sm:$0xff]
        %v502 = vld [vmem:[%s285 + $0xf0] sm:$0xff]
        %v503 = vld [vmem:[%s285 + $0xf8] sm:$0xff]
        %v504 = vld [vmem:[%s285 + $0x100] sm:$0xff]
        %v505 = vld [vmem:[%s285 + $0x108] sm:$0xff]
        %v506 = vld [vmem:[%s285 + $0x110] sm:$0xff]
        %v507 = vld [vmem:[%s285 + $0x118] sm:$0xff]
        %v508 = vld [vmem:[%s285 + $0x120] sm:$0xff]
        %v509 = vld [vmem:[%s285 + $0x128] sm:$0xff]
        %v510 = vld [vmem:[%s285 + $0x130] sm:$0xff]
        %v511 = vld [vmem:[%s285 + $0x138] sm:$0xff]
        %v512 = vld [vmem:[%s285 + $0x140] sm:$0xff]
        %v513 = vld [vmem:[%s285 + $0x148] sm:$0xff]
        %v514 = vld [vmem:[%s285 + $0x150] sm:$0xff]
        %v515 = vld [vmem:[%s285 + $0x158] sm:$0xff]
        %v516 = vld [vmem:[%s285 + $0x160] sm:$0xff]
        %v517 = vld [vmem:[%s285 + $0x168] sm:$0xff]
        %v518 = vld [vmem:[%s285 + $0x170] sm:$0xff]
        %v519 = vld [vmem:[%s285 + $0x178] sm:$0xff]
        %v520 = vld [vmem:[%s285 + $0x180] sm:$0xff]
        %v521 = vld [vmem:[%s285 + $0x188] sm:$0xff]
        %v522 = vld [vmem:[%s285 + $0x190] sm:$0xff]
        %v523 = vld [vmem:[%s285 + $0x198] sm:$0xff]
        %v524 = vld [vmem:[%s285 + $0x1a0] sm:$0xff]
        %v525 = vld [vmem:[%s285 + $0x1a8] sm:$0xff]
        %v526 = vld [vmem:[%s285 + $0x1b0] sm:$0xff]
        %v527 = vld [vmem:[%s285 + $0x1b8] sm:$0xff]
        %v528 = vld [vmem:[%s285 + $0x1c0] sm:$0xff]
        %v529 = vld [vmem:[%s285 + $0x1c8] sm:$0xff]
        %v530 = vld [vmem:[%s285 + $0x1d0] sm:$0xff]
        %v531 = vld [vmem:[%s285 + $0x1d8] sm:$0xff]
        %v532 = vld [vmem:[%s285 + $0x1e0] sm:$0xff]
        %v533 = vld [vmem:[%s285 + $0x1e8] sm:$0xff]
        %v534 = vld [vmem:[%s285 + $0x1f0] sm:$0xff]
        %v535 = vld [vmem:[%s285 + $0x1f8] sm:$0xff]
        %v600 = vunpack.c.l.b16 %v472
        %v601 = vunpack.c.h.b16 %v472
        %v602 = vunpack.c.l.b16 %v473
        %v603 = vunpack.c.h.b16 %v473
        %v604 = vunpack.c.l.b16 %v474
        %v605 = vunpack.c.h.b16 %v474
        %v606 = vunpack.c.l.b16 %v475
        %v607 = vunpack.c.h.b16 %v475
        %v608 = vunpack.c.l.b16 %v476
        %v609 = vunpack.c.h.b16 %v476
        %v610 = vunpack.c.l.b16 %v477
        %v611 = vunpack.c.h.b16 %v477
        %v612 = vunpack.c.l.b16 %v478
        %v613 = vunpack.c.h.b16 %v478
        %v614 = vunpack.c.l.b16 %v479
        %v615 = vunpack.c.h.b16 %v479
        %v616 = vunpack.c.l.b16 %v480
        %v617 = vunpack.c.h.b16 %v480
        %v618 = vunpack.c.l.b16 %v481
        %v619 = vunpack.c.h.b16 %v481
        %v620 = vunpack.c.l.b16 %v482
        %v621 = vunpack.c.h.b16 %v482
        %v622 = vunpack.c.l.b16 %v483
        %v623 = vunpack.c.h.b16 %v483
        %v624 = vunpack.c.l.b16 %v484
        %v625 = vunpack.c.h.b16 %v484
        %v626 = vunpack.c.l.b16 %v485
        %v627 = vunpack.c.h.b16 %v485
        %v628 = vunpack.c.l.b16 %v486
        %v629 = vunpack.c.h.b16 %v486
        %v630 = vunpack.c.l.b16 %v487
        %v631 = vunpack.c.h.b16 %v487
        %v632 = vunpack.c.l.b16 %v488
        %v633 = vunpack.c.h.b16 %v488
        %v634 = vunpack.c.l.b16 %v489
        %v635 = vunpack.c.h.b16 %v489
        %v636 = vunpack.c.l.b16 %v490
        %v637 = vunpack.c.h.b16 %v490
        %v638 = vunpack.c.l.b16 %v491
        %v639 = vunpack.c.h.b16 %v491
        %v640 = vunpack.c.l.b16 %v492
        %v641 = vunpack.c.h.b16 %v492
        %v642 = vunpack.c.l.b16 %v493
        %v643 = vunpack.c.h.b16 %v493
        %v644 = vunpack.c.l.b16 %v494
        %v645 = vunpack.c.h.b16 %v494
        %v646 = vunpack.c.l.b16 %v495
        %v647 = vunpack.c.h.b16 %v495
        %v648 = vunpack.c.l.b16 %v496
        %v649 = vunpack.c.h.b16 %v496
        %v650 = vunpack.c.l.b16 %v497
        %v651 = vunpack.c.h.b16 %v497
        %v652 = vunpack.c.l.b16 %v498
        %v653 = vunpack.c.h.b16 %v498
        %v654 = vunpack.c.l.b16 %v499
        %v655 = vunpack.c.h.b16 %v499
        %v656 = vunpack.c.l.b16 %v500
        %v657 = vunpack.c.h.b16 %v500
        %v658 = vunpack.c.l.b16 %v501
        %v659 = vunpack.c.h.b16 %v501
        %v660 = vunpack.c.l.b16 %v502
        %v661 = vunpack.c.h.b16 %v502
        %v662 = vunpack.c.l.b16 %v503
        %v663 = vunpack.c.h.b16 %v503
        %v664 = vunpack.c.l.b16 %v504
        %v665 = vunpack.c.h.b16 %v504
        %v666 = vunpack.c.l.b16 %v505
        %v667 = vunpack.c.h.b16 %v505
        %v668 = vunpack.c.l.b16 %v506
        %v669 = vunpack.c.h.b16 %v506
        %v670 = vunpack.c.l.b16 %v507
        %v671 = vunpack.c.h.b16 %v507
        %v672 = vunpack.c.l.b16 %v508
        %v673 = vunpack.c.h.b16 %v508
        %v674 = vunpack.c.l.b16 %v509
        %v675 = vunpack.c.h.b16 %v509
        %v676 = vunpack.c.l.b16 %v510
        %v677 = vunpack.c.h.b16 %v510
        %v678 = vunpack.c.l.b16 %v511
        %v679 = vunpack.c.h.b16 %v511
        %v680 = vunpack.c.l.b16 %v512
        %v681 = vunpack.c.h.b16 %v512
        %v682 = vunpack.c.l.b16 %v513
        %v683 = vunpack.c.h.b16 %v513
        %v684 = vunpack.c.l.b16 %v514
        %v685 = vunpack.c.h.b16 %v514
        %v686 = vunpack.c.l.b16 %v515
        %v687 = vunpack.c.h.b16 %v515
        %v688 = vunpack.c.l.b16 %v516
        %v689 = vunpack.c.h.b16 %v516
        %v690 = vunpack.c.l.b16 %v517
        %v691 = vunpack.c.h.b16 %v517
        %v692 = vunpack.c.l.b16 %v518
        %v693 = vunpack.c.h.b16 %v518
        %v694 = vunpack.c.l.b16 %v519
        %v695 = vunpack.c.h.b16 %v519
        %v696 = vunpack.c.l.b16 %v520
        %v697 = vunpack.c.h.b16 %v520
        %v698 = vunpack.c.l.b16 %v521
        %v699 = vunpack.c.h.b16 %v521
        %v700 = vunpack.c.l.b16 %v522
        %v701 = vunpack.c.h.b16 %v522
        %v702 = vunpack.c.l.b16 %v523
        %v703 = vunpack.c.h.b16 %v523
        %v704 = vunpack.c.l.b16 %v524
        %v705 = vunpack.c.h.b16 %v524
        %v706 = vunpack.c.l.b16 %v525
        %v707 = vunpack.c.h.b16 %v525
        %v708 = vunpack.c.l.b16 %v526
        %v709 = vunpack.c.h.b16 %v526
        %v710 = vunpack.c.l.b16 %v527
        %v711 = vunpack.c.h.b16 %v527
        %v712 = vunpack.c.l.b16 %v528
        %v713 = vunpack.c.h.b16 %v528
        %v714 = vunpack.c.l.b16 %v529
        %v715 = vunpack.c.h.b16 %v529
        %v716 = vunpack.c.l.b16 %v530
        %v717 = vunpack.c.h.b16 %v530
        %v718 = vunpack.c.l.b16 %v531
        %v719 = vunpack.c.h.b16 %v531
        %v720 = vunpack.c.l.b16 %v532
        %v721 = vunpack.c.h.b16 %v532
        %v722 = vunpack.c.l.b16 %v533
        %v723 = vunpack.c.h.b16 %v533
        %v724 = vunpack.c.l.b16 %v534
        %v725 = vunpack.c.h.b16 %v534
        %v726 = vunpack.c.l.b16 %v535
        %v727 = vunpack.c.h.b16 %v535
        %v728 = vpack.c.b16 %v604, %v600
        %v729 = vpack.c.b16 %v605, %v601
        %v730 = vpack.c.b16 %v606, %v602
        %v731 = vpack.c.b16 %v607, %v603
        %v732 = vpack.c.b16 %v612, %v608
        %v733 = vpack.c.b16 %v613, %v609
        %v734 = vpack.c.b16 %v614, %v610
        %v735 = vpack.c.b16 %v615, %v611
        %v736 = vpack.c.b16 %v620, %v616
        %v737 = vpack.c.b16 %v621, %v617
        %v738 = vpack.c.b16 %v622, %v618
        %v739 = vpack.c.b16 %v623, %v619
        %v740 = vpack.c.b16 %v628, %v624
        %v741 = vpack.c.b16 %v629, %v625
        %v742 = vpack.c.b16 %v630, %v626
        %v743 = vpack.c.b16 %v631, %v627
        %v744 = vpack.c.b16 %v636, %v632
        %v745 = vpack.c.b16 %v637, %v633
        %v746 = vpack.c.b16 %v638, %v634
        %v747 = vpack.c.b16 %v639, %v635
        %v748 = vpack.c.b16 %v644, %v640
        %v749 = vpack.c.b16 %v645, %v641
        %v750 = vpack.c.b16 %v646, %v642
        %v751 = vpack.c.b16 %v647, %v643
        %v752 = vpack.c.b16 %v652, %v648
        %v753 = vpack.c.b16 %v653, %v649
        %v754 = vpack.c.b16 %v654, %v650
        %v755 = vpack.c.b16 %v655, %v651
        %v756 = vpack.c.b16 %v660, %v656
        %v757 = vpack.c.b16 %v661, %v657
        %v758 = vpack.c.b16 %v662, %v658
        %v759 = vpack.c.b16 %v663, %v659
        %v760 = vpack.c.b16 %v668, %v664
        %v761 = vpack.c.b16 %v669, %v665
        %v762 = vpack.c.b16 %v670, %v666
        %v763 = vpack.c.b16 %v671, %v667
        %v764 = vpack.c.b16 %v676, %v672
        %v765 = vpack.c.b16 %v677, %v673
        %v766 = vpack.c.b16 %v678, %v674
        %v767 = vpack.c.b16 %v679, %v675
        %v768 = vpack.c.b16 %v684, %v680
        %v769 = vpack.c.b16 %v685, %v681
        %v770 = vpack.c.b16 %v686, %v682
        %v771 = vpack.c.b16 %v687, %v683
        %v772 = vpack.c.b16 %v692, %v688
        %v773 = vpack.c.b16 %v693, %v689
        %v774 = vpack.c.b16 %v694, %v690
        %v775 = vpack.c.b16 %v695, %v691
        %v776 = vpack.c.b16 %v700, %v696
        %v777 = vpack.c.b16 %v701, %v697
        %v778 = vpack.c.b16 %v702, %v698
        %v779 = vpack.c.b16 %v703, %v699
        %v780 = vpack.c.b16 %v708, %v704
        %v781 = vpack.c.b16 %v709, %v705
        %v782 = vpack.c.b16 %v710, %v706
        %v783 = vpack.c.b16 %v711, %v707
        %v784 = vpack.c.b16 %v716, %v712
        %v785 = vpack.c.b16 %v717, %v713
        %v786 = vpack.c.b16 %v718, %v714
        %v787 = vpack.c.b16 %v719, %v715
        %v788 = vpack.c.b16 %v724, %v720
        %v789 = vpack.c.b16 %v725, %v721
        %v790 = vpack.c.b16 %v726, %v722
        %v791 = vpack.c.b16 %v727, %v723
        %v920 = vunpack.c.l.b16 %v376
        %v921 = vunpack.c.l.b16 %v377
        %v922 = vunpack.c.l.b16 %v378
        %v923 = vunpack.c.l.b16 %v379
        %v924 = vunpack.c.l.b16 %v380
        %v925 = vunpack.c.l.b16 %v381
        %v926 = vunpack.c.l.b16 %v382
        %v927 = vunpack.c.l.b16 %v383
        %v928 = vunpack.c.l.b16 %v384
        %v929 = vunpack.c.l.b16 %v385
        %v930 = vunpack.c.l.b16 %v386
        %v931 = vunpack.c.l.b16 %v387
        %v932 = vunpack.c.l.b16 %v388
        %v933 = vunpack.c.l.b16 %v389
        %v934 = vunpack.c.l.b16 %v390
        %v935 = vunpack.c.l.b16 %v391
        %v936 = vunpack.c.l.b16 %v392
        %v937 = vunpack.c.l.b16 %v393
        %v938 = vunpack.c.l.b16 %v394
        %v939 = vunpack.c.l.b16 %v395
        %v940 = vunpack.c.l.b16 %v396
        %v941 = vunpack.c.l.b16 %v397
        %v942 = vunpack.c.l.b16 %v398
        %v943 = vunpack.c.l.b16 %v399
        %v944 = vunpack.c.l.b16 %v400
        %v945 = vunpack.c.l.b16 %v401
        %v946 = vunpack.c.l.b16 %v402
        %v947 = vunpack.c.l.b16 %v403
        %v948 = vunpack.c.l.b16 %v404
        %v949 = vunpack.c.l.b16 %v405
        %v950 = vunpack.c.l.b16 %v406
        %v951 = vunpack.c.l.b16 %v407
        %v952 = vunpack.c.l.b16 %v408
        %v953 = vunpack.c.l.b16 %v409
        %v954 = vunpack.c.l.b16 %v410
        %v955 = vunpack.c.l.b16 %v411
        %v956 = vunpack.c.l.b16 %v412
        %v957 = vunpack.c.l.b16 %v413
        %v958 = vunpack.c.l.b16 %v414
        %v959 = vunpack.c.l.b16 %v415
        %v960 = vunpack.c.l.b16 %v416
        %v961 = vunpack.c.l.b16 %v417
        %v962 = vunpack.c.l.b16 %v418
        %v963 = vunpack.c.l.b16 %v419
        %v964 = vunpack.c.l.b16 %v420
        %v965 = vunpack.c.l.b16 %v421
        %v966 = vunpack.c.l.b16 %v422
        %v967 = vunpack.c.l.b16 %v423
        %v968 = vunpack.c.l.b16 %v424
        %v969 = vunpack.c.l.b16 %v425
        %v970 = vunpack.c.l.b16 %v426
        %v971 = vunpack.c.l.b16 %v427
        %v972 = vunpack.c.l.b16 %v428
        %v973 = vunpack.c.l.b16 %v429
        %v974 = vunpack.c.l.b16 %v430
        %v975 = vunpack.c.l.b16 %v431
        %v976 = vunpack.c.l.b16 %v432
        %v977 = vunpack.c.l.b16 %v433
        %v978 = vunpack.c.l.b16 %v434
        %v979 = vunpack.c.l.b16 %v435
        %v980 = vunpack.c.l.b16 %v436
        %v981 = vunpack.c.l.b16 %v437
        %v982 = vunpack.c.l.b16 %v438
        %v983 = vunpack.c.l.b16 %v439
        %v984 = vpack.c.b16 %v921, %v920
        %v985 = vpack.c.b16 %v923, %v922
        %v986 = vpack.c.b16 %v925, %v924
        %v987 = vpack.c.b16 %v927, %v926
        %v988 = vpack.c.b16 %v929, %v928
        %v989 = vpack.c.b16 %v931, %v930
        %v990 = vpack.c.b16 %v933, %v932
        %v991 = vpack.c.b16 %v935, %v934
        %v992 = vpack.c.b16 %v937, %v936
        %v993 = vpack.c.b16 %v939, %v938
        %v994 = vpack.c.b16 %v941, %v940
        %v995 = vpack.c.b16 %v943, %v942
        %v996 = vpack.c.b16 %v945, %v944
        %v997 = vpack.c.b16 %v947, %v946
        %v998 = vpack.c.b16 %v949, %v948
        %v999 = vpack.c.b16 %v951, %v950
        %v1000 = vpack.c.b16 %v953, %v952
        %v1001 = vpack.c.b16 %v955, %v954
        %v1002 = vpack.c.b16 %v957, %v956
        %v1003 = vpack.c.b16 %v959, %v958
        %v1004 = vpack.c.b16 %v961, %v960
        %v1005 = vpack.c.b16 %v963, %v962
        %v1006 = vpack.c.b16 %v965, %v964
        %v1007 = vpack.c.b16 %v967, %v966
        %v1008 = vpack.c.b16 %v969, %v968
        %v1009 = vpack.c.b16 %v971, %v970
        %v1010 = vpack.c.b16 %v973, %v972
        %v1011 = vpack.c.b16 %v975, %v974
        %v1012 = vpack.c.b16 %v977, %v976
        %v1013 = vpack.c.b16 %v979, %v978
        %v1014 = vpack.c.b16 %v981, %v980
        %v1015 = vpack.c.b16 %v983, %v982
        %1048 = vmatprep.subr.bf16.mxu0 0
        %1049 = vmatpush1.bf16.msra.mxu0 %v984
        %1050 = vmatprep.subr.bf16.mxu0 0
        %1051 = vmatpush1.bf16.msra.mxu0 %v985
        %1052 = vmatprep.subr.bf16.mxu0 0
        %1053 = vmatpush1.bf16.msra.mxu0 %v986
        %1054 = vmatprep.subr.bf16.mxu0 0
        %1055 = vmatpush1.bf16.msra.mxu0 %v987
        %1056 = vmatprep.subr.bf16.mxu0 0
        %1057 = vmatpush1.bf16.msra.mxu0 %v988
        %1058 = vmatprep.subr.bf16.mxu0 0
        %1059 = vmatpush1.bf16.msra.mxu0 %v989
        %1060 = vmatprep.subr.bf16.mxu0 0
        %1061 = vmatpush1.bf16.msra.mxu0 %v990
        %1062 = vmatprep.subr.bf16.mxu0 0
        %1063 = vmatpush1.bf16.msra.mxu0 %v991
        %1064 = vmatprep.subr.bf16.mxu0 0
        %1065 = vmatpush1.bf16.msra.mxu0 %v992
        %1066 = vmatprep.subr.bf16.mxu0 0
        %1067 = vmatpush1.bf16.msra.mxu0 %v993
        %1068 = vmatprep.subr.bf16.mxu0 0
        %1069 = vmatpush1.bf16.msra.mxu0 %v994
        %1070 = vmatprep.subr.bf16.mxu0 0
        %1071 = vmatpush1.bf16.msra.mxu0 %v995
        %1072 = vmatprep.subr.bf16.mxu0 0
        %1073 = vmatpush1.bf16.msra.mxu0 %v996
        %1074 = vmatprep.subr.bf16.mxu0 0
        %1075 = vmatpush1.bf16.msra.mxu0 %v997
        %1076 = vmatprep.subr.bf16.mxu0 0
        %1077 = vmatpush1.bf16.msra.mxu0 %v998
        %1078 = vmatprep.subr.bf16.mxu0 0
        %1079 = vmatpush1.bf16.msra.mxu0 %v999
        %1080 = vmatprep.mubr.bf16.mxu0 %v729
        %1081 = vmatmul.mubr.bf16.gmra.mrb[0].mxu0 %v728
        %v1082 = vpop.f32.mrb[0].mxu0
        %v1083 = vadd.f32 0.0, %v1082
        %v1084 = vpop.f32.mrb[0].mxu0
        %v1085 = vpop.f32.mrb[0].mxu0
        %v1086 = vadd.f32 0.0, %v1085
        %v1087 = vpop.f32.mrb[0].mxu0
        %1088 = vmatprep.mubr.bf16.mxu0 %v733
        %1089 = vmatmul.mubr.bf16.gmra.mrb[0].mxu0 %v732
        %v1090 = vpop.f32.mrb[0].mxu0
        %v1091 = vadd.f32 0.0, %v1090
        %v1092 = vpop.f32.mrb[0].mxu0
        %v1093 = vpop.f32.mrb[0].mxu0
        %v1094 = vadd.f32 0.0, %v1093
        %v1095 = vpop.f32.mrb[0].mxu0
        %1096 = vmatprep.mubr.bf16.mxu0 %v737
        %1097 = vmatmul.mubr.bf16.gmra.mrb[0].mxu0 %v736
        %v1098 = vpop.f32.mrb[0].mxu0
        %v1099 = vadd.f32 0.0, %v1098
        %v1100 = vpop.f32.mrb[0].mxu0
        %v1101 = vpop.f32.mrb[0].mxu0
        %v1102 = vadd.f32 0.0, %v1101
        %v1103 = vpop.f32.mrb[0].mxu0
        %1104 = vmatprep.mubr.bf16.mxu0 %v741
        %1105 = vmatmul.mubr.bf16.gmra.mrb[0].mxu0 %v740
        %v1106 = vpop.f32.mrb[0].mxu0
        %v1107 = vadd.f32 0.0, %v1106
        %v1108 = vpop.f32.mrb[0].mxu0
        %v1109 = vpop.f32.mrb[0].mxu0
        %v1110 = vadd.f32 0.0, %v1109
        %v1111 = vpop.f32.mrb[0].mxu0
        %1112 = vmatprep.mubr.bf16.mxu0 %v745
        %1113 = vmatmul.mubr.bf16.gmra.mrb[0].mxu0 %v744
        %v1114 = vpop.f32.mrb[0].mxu0
        %v1115 = vadd.f32 0.0, %v1114
        %v1116 = vpop.f32.mrb[0].mxu0
        %v1117 = vpop.f32.mrb[0].mxu0
        %v1118 = vadd.f32 0.0, %v1117
        %v1119 = vpop.f32.mrb[0].mxu0
        %1120 = vmatprep.mubr.bf16.mxu0 %v749
        %1121 = vmatmul.mubr.bf16.gmra.mrb[0].mxu0 %v748
        %v1122 = vpop.f32.mrb[0].mxu0
        %v1123 = vadd.f32 0.0, %v1122
        %v1124 = vpop.f32.mrb[0].mxu0
        %v1125 = vpop.f32.mrb[0].mxu0
        %v1126 = vadd.f32 0.0, %v1125
        %v1127 = vpop.f32.mrb[0].mxu0
        %1128 = vmatprep.mubr.bf16.mxu0 %v753
        %1129 = vmatmul.mubr.bf16.gmra.mrb[0].mxu0 %v752
        %v1130 = vpop.f32.mrb[0].mxu0
        %v1131 = vadd.f32 0.0, %v1130
        %v1132 = vpop.f32.mrb[0].mxu0
        %v1133 = vpop.f32.mrb[0].mxu0
        %v1134 = vadd.f32 0.0, %v1133
        %v1135 = vpop.f32.mrb[0].mxu0
        %1136 = vmatprep.mubr.bf16.mxu0 %v757
        %1137 = vmatmul.mubr.bf16.gmra.mrb[0].mxu0 %v756
        %v1138 = vpop.f32.mrb[0].mxu0
        %v1139 = vadd.f32 0.0, %v1138
        %v1140 = vpop.f32.mrb[0].mxu0
        %v1141 = vpop.f32.mrb[0].mxu0
        %v1142 = vadd.f32 0.0, %v1141
        %v1143 = vpop.f32.mrb[0].mxu0
        %1144 = vmatprep.mubr.bf16.mxu0 %v761
        %1145 = vmatmul.mubr.bf16.gmra.mrb[0].mxu0 %v760
        %v1146 = vpop.f32.mrb[0].mxu0
        %v1147 = vadd.f32 0.0, %v1146
        %v1148 = vpop.f32.mrb[0].mxu0
        %v1149 = vpop.f32.mrb[0].mxu0
        %v1150 = vadd.f32 0.0, %v1149
        %v1151 = vpop.f32.mrb[0].mxu0
        %1152 = vmatprep.mubr.bf16.mxu0 %v765
        %1153 = vmatmul.mubr.bf16.gmra.mrb[0].mxu0 %v764
        %v1154 = vpop.f32.mrb[0].mxu0
        %v1155 = vadd.f32 0.0, %v1154
        %v1156 = vpop.f32.mrb[0].mxu0
        %v1157 = vpop.f32.mrb[0].mxu0
        %v1158 = vadd.f32 0.0, %v1157
        %v1159 = vpop.f32.mrb[0].mxu0
        %1160 = vmatprep.mubr.bf16.mxu0 %v769
        %1161 = vmatmul.mubr.bf16.gmra.mrb[0].mxu0 %v768
        %v1162 = vpop.f32.mrb[0].mxu0
        %v1163 = vadd.f32 0.0, %v1162
        %v1164 = vpop.f32.mrb[0].mxu0
        %v1165 = vpop.f32.mrb[0].mxu0
        %v1166 = vadd.f32 0.0, %v1165
        %v1167 = vpop.f32.mrb[0].mxu0
        %1168 = vmatprep.mubr.bf16.mxu0 %v773
        %1169 = vmatmul.mubr.bf16.gmra.mrb[0].mxu0 %v772
        %v1170 = vpop.f32.mrb[0].mxu0
        %v1171 = vadd.f32 0.0, %v1170
        %v1172 = vpop.f32.mrb[0].mxu0
        %v1173 = vpop.f32.mrb[0].mxu0
        %v1174 = vadd.f32 0.0, %v1173
        %v1175 = vpop.f32.mrb[0].mxu0
        %1176 = vmatprep.mubr.bf16.mxu0 %v777
        %1177 = vmatmul.mubr.bf16.gmra.mrb[0].mxu0 %v776
        %v1178 = vpop.f32.mrb[0].mxu0
        %v1179 = vadd.f32 0.0, %v1178
        %v1180 = vpop.f32.mrb[0].mxu0
        %v1181 = vpop.f32.mrb[0].mxu0
        %v1182 = vadd.f32 0.0, %v1181
        %v1183 = vpop.f32.mrb[0].mxu0
        %1184 = vmatprep.mubr.bf16.mxu0 %v781
        %1185 = vmatmul.mubr.bf16.gmra.mrb[0].mxu0 %v780
        %v1186 = vpop.f32.mrb[0].mxu0
        %v1187 = vadd.f32 0.0, %v1186
        %v1188 = vpop.f32.mrb[0].mxu0
        %v1189 = vpop.f32.mrb[0].mxu0
        %v1190 = vadd.f32 0.0, %v1189
        %v1191 = vpop.f32.mrb[0].mxu0
        %1192 = vmatprep.mubr.bf16.mxu0 %v785
        %1193 = vmatmul.mubr.bf16.gmra.mrb[0].mxu0 %v784
        %v1194 = vpop.f32.mrb[0].mxu0
        %v1195 = vadd.f32 0.0, %v1194
        %v1196 = vpop.f32.mrb[0].mxu0
        %v1197 = vpop.f32.mrb[0].mxu0
        %v1198 = vadd.f32 0.0, %v1197
        %v1199 = vpop.f32.mrb[0].mxu0
        %1200 = vmatprep.mubr.bf16.mxu0 %v789
        %1201 = vmatmul.mubr.bf16.gmra.mrb[0].mxu0 %v788
        %v1202 = vpop.f32.mrb[0].mxu0
        %v1203 = vadd.f32 0.0, %v1202
        %v1204 = vpop.f32.mrb[0].mxu0
        %v1205 = vpop.f32.mrb[0].mxu0
        %v1206 = vadd.f32 0.0, %v1205
        %v1207 = vpop.f32.mrb[0].mxu0
        %1208 = vdwg.mxu0
        %1209 = vmatprep.subr.bf16.mxu0 0
        %1210 = vmatpush1.bf16.msra.mxu0 %v1000
        %1211 = vmatprep.subr.bf16.mxu0 0
        %1212 = vmatpush1.bf16.msra.mxu0 %v1001
        %1213 = vmatprep.subr.bf16.mxu0 0
        %1214 = vmatpush1.bf16.msra.mxu0 %v1002
        %1215 = vmatprep.subr.bf16.mxu0 0
        %1216 = vmatpush1.bf16.msra.mxu0 %v1003
        %1217 = vmatprep.subr.bf16.mxu0 0
        %1218 = vmatpush1.bf16.msra.mxu0 %v1004
        %1219 = vmatprep.subr.bf16.mxu0 0
        %1220 = vmatpush1.bf16.msra.mxu0 %v1005
        %1221 = vmatprep.subr.bf16.mxu0 0
        %1222 = vmatpush1.bf16.msra.mxu0 %v1006
        %1223 = vmatprep.subr.bf16.mxu0 0
        %1224 = vmatpush1.bf16.msra.mxu0 %v1007
        %1225 = vmatprep.subr.bf16.mxu0 0
        %1226 = vmatpush1.bf16.msra.mxu0 %v1008
        %1227 = vmatprep.subr.bf16.mxu0 0
        %1228 = vmatpush1.bf16.msra.mxu0 %v1009
        %1229 = vmatprep.subr.bf16.mxu0 0
        %1230 = vmatpush1.bf16.msra.mxu0 %v1010
        %1231 = vmatprep.subr.bf16.mxu0 0
        %1232 = vmatpush1.bf16.msra.mxu0 %v1011
        %1233 = vmatprep.subr.bf16.mxu0 0
        %1234 = vmatpush1.bf16.msra.mxu0 %v1012
        %1235 = vmatprep.subr.bf16.mxu0 0
        %1236 = vmatpush1.bf16.msra.mxu0 %v1013
        %1237 = vmatprep.subr.bf16.mxu0 0
        %1238 = vmatpush1.bf16.msra.mxu0 %v1014
        %1239 = vmatprep.subr.bf16.mxu0 0
        %1240 = vmatpush1.bf16.msra.mxu0 %v1015
        %1241 = vmatprep.mubr.bf16.mxu0 %v731
        %1242 = vmatmul.mubr.bf16.gmra.mrb[0].mxu0 %v730
        %v1243 = vpop.f32.mrb[0].mxu0
        %v1244 = vadd.f32 %v1083, %v1243
        %v1245 = vpop.f32.mrb[0].mxu0
        %v1246 = vpop.f32.mrb[0].mxu0
        %v1247 = vadd.f32 %v1086, %v1246
        %v1248 = vpop.f32.mrb[0].mxu0
        %1249 = vmatprep.mubr.bf16.mxu0 %v735
        %1250 = vmatmul.mubr.bf16.gmra.mrb[0].mxu0 %v734
        %v1251 = vpop.f32.mrb[0].mxu0
        %v1252 = vadd.f32 %v1091, %v1251
        %v1253 = vpop.f32.mrb[0].mxu0
        %v1254 = vpop.f32.mrb[0].mxu0
        %v1255 = vadd.f32 %v1094, %v1254
        %v1256 = vpop.f32.mrb[0].mxu0
        %1257 = vmatprep.mubr.bf16.mxu0 %v739
        %1258 = vmatmul.mubr.bf16.gmra.mrb[0].mxu0 %v738
        %v1259 = vpop.f32.mrb[0].mxu0
        %v1260 = vadd.f32 %v1099, %v1259
        %v1261 = vpop.f32.mrb[0].mxu0
        %v1262 = vpop.f32.mrb[0].mxu0
        %v1263 = vadd.f32 %v1102, %v1262
        %v1264 = vpop.f32.mrb[0].mxu0
        %1265 = vmatprep.mubr.bf16.mxu0 %v743
        %1266 = vmatmul.mubr.bf16.gmra.mrb[0].mxu0 %v742
        %v1267 = vpop.f32.mrb[0].mxu0
        %v1268 = vadd.f32 %v1107, %v1267
        %v1269 = vpop.f32.mrb[0].mxu0
        %v1270 = vpop.f32.mrb[0].mxu0
        %v1271 = vadd.f32 %v1110, %v1270
        %v1272 = vpop.f32.mrb[0].mxu0
        %1273 = vmatprep.mubr.bf16.mxu0 %v747
        %1274 = vmatmul.mubr.bf16.gmra.mrb[0].mxu0 %v746
        %v1275 = vpop.f32.mrb[0].mxu0
        %v1276 = vadd.f32 %v1115, %v1275
        %v1277 = vpop.f32.mrb[0].mxu0
        %v1278 = vpop.f32.mrb[0].mxu0
        %v1279 = vadd.f32 %v1118, %v1278
        %v1280 = vpop.f32.mrb[0].mxu0
        %1281 = vmatprep.mubr.bf16.mxu0 %v751
        %1282 = vmatmul.mubr.bf16.gmra.mrb[0].mxu0 %v750
        %v1283 = vpop.f32.mrb[0].mxu0
        %v1284 = vadd.f32 %v1123, %v1283
        %v1285 = vpop.f32.mrb[0].mxu0
        %v1286 = vpop.f32.mrb[0].mxu0
        %v1287 = vadd.f32 %v1126, %v1286
        %v1288 = vpop.f32.mrb[0].mxu0
        %1289 = vmatprep.mubr.bf16.mxu0 %v755
        %1290 = vmatmul.mubr.bf16.gmra.mrb[0].mxu0 %v754
        %v1291 = vpop.f32.mrb[0].mxu0
        %v1292 = vadd.f32 %v1131, %v1291
        %v1293 = vpop.f32.mrb[0].mxu0
        %v1294 = vpop.f32.mrb[0].mxu0
        %v1295 = vadd.f32 %v1134, %v1294
        %v1296 = vpop.f32.mrb[0].mxu0
        %1297 = vmatprep.mubr.bf16.mxu0 %v759
        %1298 = vmatmul.mubr.bf16.gmra.mrb[0].mxu0 %v758
        %v1299 = vpop.f32.mrb[0].mxu0
        %v1300 = vadd.f32 %v1139, %v1299
        %v1301 = vpop.f32.mrb[0].mxu0
        %v1302 = vpop.f32.mrb[0].mxu0
        %v1303 = vadd.f32 %v1142, %v1302
        %v1304 = vpop.f32.mrb[0].mxu0
        %1305 = vmatprep.mubr.bf16.mxu0 %v763
        %1306 = vmatmul.mubr.bf16.gmra.mrb[0].mxu0 %v762
        %v1307 = vpop.f32.mrb[0].mxu0
        %v1308 = vadd.f32 %v1147, %v1307
        %v1309 = vpop.f32.mrb[0].mxu0
        %v1310 = vpop.f32.mrb[0].mxu0
        %v1311 = vadd.f32 %v1150, %v1310
        %v1312 = vpop.f32.mrb[0].mxu0
        %1313 = vmatprep.mubr.bf16.mxu0 %v767
        %1314 = vmatmul.mubr.bf16.gmra.mrb[0].mxu0 %v766
        %v1315 = vpop.f32.mrb[0].mxu0
        %v1316 = vadd.f32 %v1155, %v1315
        %v1317 = vpop.f32.mrb[0].mxu0
        %v1318 = vpop.f32.mrb[0].mxu0
        %v1319 = vadd.f32 %v1158, %v1318
        %v1320 = vpop.f32.mrb[0].mxu0
        %1321 = vmatprep.mubr.bf16.mxu0 %v771
        %1322 = vmatmul.mubr.bf16.gmra.mrb[0].mxu0 %v770
        %v1323 = vpop.f32.mrb[0].mxu0
        %v1324 = vadd.f32 %v1163, %v1323
        %v1325 = vpop.f32.mrb[0].mxu0
        %v1326 = vpop.f32.mrb[0].mxu0
        %v1327 = vadd.f32 %v1166, %v1326
        %v1328 = vpop.f32.mrb[0].mxu0
        %1329 = vmatprep.mubr.bf16.mxu0 %v775
        %1330 = vmatmul.mubr.bf16.gmra.mrb[0].mxu0 %v774
        %v1331 = vpop.f32.mrb[0].mxu0
        %v1332 = vadd.f32 %v1171, %v1331
        %v1333 = vpop.f32.mrb[0].mxu0
        %v1334 = vpop.f32.mrb[0].mxu0
        %v1335 = vadd.f32 %v1174, %v1334
        %v1336 = vpop.f32.mrb[0].mxu0
        %1337 = vmatprep.mubr.bf16.mxu0 %v779
        %1338 = vmatmul.mubr.bf16.gmra.mrb[0].mxu0 %v778
        %v1339 = vpop.f32.mrb[0].mxu0
        %v1340 = vadd.f32 %v1179, %v1339
        %v1341 = vpop.f32.mrb[0].mxu0
        %v1342 = vpop.f32.mrb[0].mxu0
        %v1343 = vadd.f32 %v1182, %v1342
        %v1344 = vpop.f32.mrb[0].mxu0
        %1345 = vmatprep.mubr.bf16.mxu0 %v783
        %1346 = vmatmul.mubr.bf16.gmra.mrb[0].mxu0 %v782
        %v1347 = vpop.f32.mrb[0].mxu0
        %v1348 = vadd.f32 %v1187, %v1347
        %v1349 = vpop.f32.mrb[0].mxu0
        %v1350 = vpop.f32.mrb[0].mxu0
        %v1351 = vadd.f32 %v1190, %v1350
        %v1352 = vpop.f32.mrb[0].mxu0
        %1353 = vmatprep.mubr.bf16.mxu0 %v787
        %1354 = vmatmul.mubr.bf16.gmra.mrb[0].mxu0 %v786
        %v1355 = vpop.f32.mrb[0].mxu0
        %v1356 = vadd.f32 %v1195, %v1355
        %v1357 = vpop.f32.mrb[0].mxu0
        %v1358 = vpop.f32.mrb[0].mxu0
        %v1359 = vadd.f32 %v1198, %v1358
        %v1360 = vpop.f32.mrb[0].mxu0
        %1361 = vmatprep.mubr.bf16.mxu0 %v791
        %1362 = vmatmul.mubr.bf16.gmra.mrb[0].mxu0 %v790
        %v1363 = vpop.f32.mrb[0].mxu0
        %v1364 = vadd.f32 %v1203, %v1363
        %v1365 = vpop.f32.mrb[0].mxu0
        %v1366 = vpop.f32.mrb[0].mxu0
        %v1367 = vadd.f32 %v1206, %v1366
        %v1368 = vpop.f32.mrb[0].mxu0
        %1369 = vdwg.mxu0
        %v1370 = vadd.f32 %v440, %v1244
        %v1371 = vadd.f32 %v441, %v1247
        %v1372 = vadd.f32 %v442, %v1252
        %v1373 = vadd.f32 %v443, %v1255
        %v1374 = vadd.f32 %v444, %v1260
        %v1375 = vadd.f32 %v445, %v1263
        %v1376 = vadd.f32 %v446, %v1268
        %v1377 = vadd.f32 %v447, %v1271
        %v1378 = vadd.f32 %v448, %v1276
        %v1379 = vadd.f32 %v449, %v1279
        %v1380 = vadd.f32 %v450, %v1284
        %v1381 = vadd.f32 %v451, %v1287
        %v1382 = vadd.f32 %v452, %v1292
        %v1383 = vadd.f32 %v453, %v1295
        %v1384 = vadd.f32 %v454, %v1300
        %v1385 = vadd.f32 %v455, %v1303
        %v1386 = vadd.f32 %v456, %v1308
        %v1387 = vadd.f32 %v457, %v1311
        %v1388 = vadd.f32 %v458, %v1316
        %v1389 = vadd.f32 %v459, %v1319
        %v1390 = vadd.f32 %v460, %v1324
        %v1391 = vadd.f32 %v461, %v1327
        %v1392 = vadd.f32 %v462, %v1332
        %v1393 = vadd.f32 %v463, %v1335
        %v1394 = vadd.f32 %v464, %v1340
        %v1395 = vadd.f32 %v465, %v1343
        %v1396 = vadd.f32 %v466, %v1348
        %v1397 = vadd.f32 %v467, %v1351
        %v1398 = vadd.f32 %v468, %v1356
        %v1399 = vadd.f32 %v469, %v1359
        %v1400 = vadd.f32 %v470, %v1364
        %v1401 = vadd.f32 %v471, %v1367
        %1402 = vst [vmem:[#allocation2] sm:$0xff] %v1370
        %1403 = vst [vmem:[#allocation2 + $0x8] sm:$0xff] %v1371
        %1404 = vst [vmem:[#allocation2 + $0x10] sm:$0xff] %v1372
        %1405 = vst [vmem:[#allocation2 + $0x18] sm:$0xff] %v1373
        %1406 = vst [vmem:[#allocation2 + $0x20] sm:$0xff] %v1374
        %1407 = vst [vmem:[#allocation2 + $0x28] sm:$0xff] %v1375
        %1408 = vst [vmem:[#allocation2 + $0x30] sm:$0xff] %v1376
        %1409 = vst [vmem:[#allocation2 + $0x38] sm:$0xff] %v1377
        %1410 = vst [vmem:[#allocation2 + $0x40] sm:$0xff] %v1378
        %1411 = vst [vmem:[#allocation2 + $0x48] sm:$0xff] %v1379
        %1412 = vst [vmem:[#allocation2 + $0x50] sm:$0xff] %v1380
        %1413 = vst [vmem:[#allocation2 + $0x58] sm:$0xff] %v1381
        %1414 = vst [vmem:[#allocation2 + $0x60] sm:$0xff] %v1382
        %1415 = vst [vmem:[#allocation2 + $0x68] sm:$0xff] %v1383
        %1416 = vst [vmem:[#allocation2 + $0x70] sm:$0xff] %v1384
        %1417 = vst [vmem:[#allocation2 + $0x78] sm:$0xff] %v1385
        %1418 = vst [vmem:[#allocation2 + $0x80] sm:$0xff] %v1386
        %1419 = vst [vmem:[#allocation2 + $0x88] sm:$0xff] %v1387
        %1420 = vst [vmem:[#allocation2 + $0x90] sm:$0xff] %v1388
        %1421 = vst [vmem:[#allocation2 + $0x98] sm:$0xff] %v1389
        %1422 = vst [vmem:[#allocation2 + $0xa0] sm:$0xff] %v1390
        %1423 = vst [vmem:[#allocation2 + $0xa8] sm:$0xff] %v1391
        %1424 = vst [vmem:[#allocation2 + $0xb0] sm:$0xff] %v1392
        %1425 = vst [vmem:[#allocation2 + $0xb8] sm:$0xff] %v1393
        %1426 = vst [vmem:[#allocation2 + $0xc0] sm:$0xff] %v1394
        %1427 = vst [vmem:[#allocation2 + $0xc8] sm:$0xff] %v1395
        %1428 = vst [vmem:[#allocation2 + $0xd0] sm:$0xff] %v1396
        %1429 = vst [vmem:[#allocation2 + $0xd8] sm:$0xff] %v1397
        %1430 = vst [vmem:[#allocation2 + $0xe0] sm:$0xff] %v1398
        %1431 = vst [vmem:[#allocation2 + $0xe8] sm:$0xff] %v1399
        %1432 = vst [vmem:[#allocation2 + $0xf0] sm:$0xff] %v1400
        %1433 = vst [vmem:[#allocation2 + $0xf8] sm:$0xff] %v1401
        // Predicated region
        $region61: #{tpu_custom_call.1} parent=39 // pred_check
          %p1434 = pneg %p340
        $region62: #{tpu_custom_call.1} parent=39 // pred_check_branch
          %1436 = sbr.rel (%p1434) target = $region64
        $region63: #{tpu_custom_call.1} parent=39 // pred_region
          %v1437 = vld [vmem:[%s298] sm:$0xff]
          %v1438 = vld [vmem:[%s298 + $0x8] sm:$0xff]
          %v1439 = vld [vmem:[%s298 + $0x10] sm:$0xff]
          %v1440 = vld [vmem:[%s298 + $0x18] sm:$0xff]
          %v1441 = vld [vmem:[%s298 + $0x20] sm:$0xff]
          %v1442 = vld [vmem:[%s298 + $0x28] sm:$0xff]
          %v1443 = vld [vmem:[%s298 + $0x30] sm:$0xff]
          %v1444 = vld [vmem:[%s298 + $0x38] sm:$0xff]
          %v1445 = vld [vmem:[%s298 + $0x40] sm:$0xff]
          %v1446 = vld [vmem:[%s298 + $0x48] sm:$0xff]
          %v1447 = vld [vmem:[%s298 + $0x50] sm:$0xff]
          %v1448 = vld [vmem:[%s298 + $0x58] sm:$0xff]
          %v1449 = vld [vmem:[%s298 + $0x60] sm:$0xff]
          %v1450 = vld [vmem:[%s298 + $0x68] sm:$0xff]
          %v1451 = vld [vmem:[%s298 + $0x70] sm:$0xff]
          %v1452 = vld [vmem:[%s298 + $0x78] sm:$0xff]
          %v1453 = vld [vmem:[%s298 + $0x80] sm:$0xff]
          %v1454 = vld [vmem:[%s298 + $0x88] sm:$0xff]
          %v1455 = vld [vmem:[%s298 + $0x90] sm:$0xff]
          %v1456 = vld [vmem:[%s298 + $0x98] sm:$0xff]
          %v1457 = vld [vmem:[%s298 + $0xa0] sm:$0xff]
          %v1458 = vld [vmem:[%s298 + $0xa8] sm:$0xff]
          %v1459 = vld [vmem:[%s298 + $0xb0] sm:$0xff]
          %v1460 = vld [vmem:[%s298 + $0xb8] sm:$0xff]
          %v1461 = vld [vmem:[%s298 + $0xc0] sm:$0xff]
          %v1462 = vld [vmem:[%s298 + $0xc8] sm:$0xff]
          %v1463 = vld [vmem:[%s298 + $0xd0] sm:$0xff]
          %v1464 = vld [vmem:[%s298 + $0xd8] sm:$0xff]
          %v1465 = vld [vmem:[%s298 + $0xe0] sm:$0xff]
          %v1466 = vld [vmem:[%s298 + $0xe8] sm:$0xff]
          %v1467 = vld [vmem:[%s298 + $0xf0] sm:$0xff]
          %v1468 = vld [vmem:[%s298 + $0xf8] sm:$0xff]
          %v1469 = vld [vmem:[#allocation2] sm:$0xff]
          %v1470 = vld [vmem:[#allocation2 + $0x8] sm:$0xff]
          %v1471 = vld [vmem:[#allocation2 + $0x10] sm:$0xff]
          %v1472 = vld [vmem:[#allocation2 + $0x18] sm:$0xff]
          %v1473 = vld [vmem:[#allocation2 + $0x20] sm:$0xff]
          %v1474 = vld [vmem:[#allocation2 + $0x28] sm:$0xff]
          %v1475 = vld [vmem:[#allocation2 + $0x30] sm:$0xff]
          %v1476 = vld [vmem:[#allocation2 + $0x38] sm:$0xff]
          %v1477 = vld [vmem:[#allocation2 + $0x40] sm:$0xff]
          %v1478 = vld [vmem:[#allocation2 + $0x48] sm:$0xff]
          %v1479 = vld [vmem:[#allocation2 + $0x50] sm:$0xff]
          %v1480 = vld [vmem:[#allocation2 + $0x58] sm:$0xff]
          %v1481 = vld [vmem:[#allocation2 + $0x60] sm:$0xff]
          %v1482 = vld [vmem:[#allocation2 + $0x68] sm:$0xff]
          %v1483 = vld [vmem:[#allocation2 + $0x70] sm:$0xff]
          %v1484 = vld [vmem:[#allocation2 + $0x78] sm:$0xff]
          %v1485 = vld [vmem:[#allocation2 + $0x80] sm:$0xff]
          %v1486 = vld [vmem:[#allocation2 + $0x88] sm:$0xff]
          %v1487 = vld [vmem:[#allocation2 + $0x90] sm:$0xff]
          %v1488 = vld [vmem:[#allocation2 + $0x98] sm:$0xff]
          %v1489 = vld [vmem:[#allocation2 + $0xa0] sm:$0xff]
          %v1490 = vld [vmem:[#allocation2 + $0xa8] sm:$0xff]
          %v1491 = vld [vmem:[#allocation2 + $0xb0] sm:$0xff]
          %v1492 = vld [vmem:[#allocation2 + $0xb8] sm:$0xff]
          %v1493 = vld [vmem:[#allocation2 + $0xc0] sm:$0xff]
          %v1494 = vld [vmem:[#allocation2 + $0xc8] sm:$0xff]
          %v1495 = vld [vmem:[#allocation2 + $0xd0] sm:$0xff]
          %v1496 = vld [vmem:[#allocation2 + $0xd8] sm:$0xff]
          %v1497 = vld [vmem:[#allocation2 + $0xe0] sm:$0xff]
          %v1498 = vld [vmem:[#allocation2 + $0xe8] sm:$0xff]
          %v1499 = vld [vmem:[#allocation2 + $0xf0] sm:$0xff]
          %v1500 = vld [vmem:[#allocation2 + $0xf8] sm:$0xff]
          %v1501 = vmul.f32 %v1469, %v1437
          %v1502 = vmul.f32 %v1470, %v1438
          %v1503 = vmul.f32 %v1471, %v1439
          %v1504 = vmul.f32 %v1472, %v1440
          %v1505 = vmul.f32 %v1473, %v1441
          %v1506 = vmul.f32 %v1474, %v1442
          %v1507 = vmul.f32 %v1475, %v1443
          %v1508 = vmul.f32 %v1476, %v1444
          %v1509 = vmul.f32 %v1477, %v1445
          %v1510 = vmul.f32 %v1478, %v1446
          %v1511 = vmul.f32 %v1479, %v1447
          %v1512 = vmul.f32 %v1480, %v1448
          %v1513 = vmul.f32 %v1481, %v1449
          %v1514 = vmul.f32 %v1482, %v1450
          %v1515 = vmul.f32 %v1483, %v1451
          %v1516 = vmul.f32 %v1484, %v1452
          %v1517 = vmul.f32 %v1485, %v1453
          %v1518 = vmul.f32 %v1486, %v1454
          %v1519 = vmul.f32 %v1487, %v1455
          %v1520 = vmul.f32 %v1488, %v1456
          %v1521 = vmul.f32 %v1489, %v1457
          %v1522 = vmul.f32 %v1490, %v1458
          %v1523 = vmul.f32 %v1491, %v1459
          %v1524 = vmul.f32 %v1492, %v1460
          %v1525 = vmul.f32 %v1493, %v1461
          %v1526 = vmul.f32 %v1494, %v1462
          %v1527 = vmul.f32 %v1495, %v1463
          %v1528 = vmul.f32 %v1496, %v1464
          %v1529 = vmul.f32 %v1497, %v1465
          %v1530 = vmul.f32 %v1498, %v1466
          %v1531 = vmul.f32 %v1499, %v1467
          %v1532 = vmul.f32 %v1500, %v1468
          %v1533 = vand.u32 2147483647, %v1501
          %vm1534 = vcmp.le.f32.partialorder %v1533, 0.7853982
          %vm1535 = vcmp.lt.s32.totalorder %v1501, 0
          %v1536 = vand.u32 %v1501, 2139095040
          %v1537 = vshrl.u32 %v1536, 23
          %v1538 = vsub.s32 %v1537, 127
          %v1539 = vand.u32 2147483647, %v1501
          %v1540 = vand.u32 %v1539, 8388607
          %v1541 = vor.u32 %v1540, 8388608
          %v1542 = vsub.s32 0, %v1541
          %v1543 = vadd.s32 %v1538, 1
          %vm1544 = vcmp.gt.s32.totalorder %v1543, 0
          %v1545 = vsel %vm1544, %v1543, 0
          %v1546 = vshrl.u32 %v1545, 5
          %v1547 = vand.u32 %v1545, 31
          %v1548 = vsub.s32 32, %v1547
          %v1549 = vshrl.u32 683565275, %v1548
          %v1550 = vshll.u32 683565275, %v1547
          %v1551 = vshrl.u32 2475754826, %v1548
          %v1552 = vor.u32 %v1550, %v1551
          %v1553 = vshll.u32 2475754826, %v1547
          %v1554 = vshrl.u32 2131351028, %v1548
          %v1555 = vor.u32 %v1553, %v1554
          %v1556 = vshll.u32 2131351028, %v1547
          %v1557 = vshrl.u32 2102212464, %v1548
          %v1558 = vor.u32 %v1556, %v1557
          %v1559 = vshll.u32 2102212464, %v1547
          %v1560 = vshrl.u32 920167782, %v1548
          %v1561 = vor.u32 %v1559, %v1560
          %v1562 = vshll.u32 920167782, %v1547
          %v1563 = vshrl.u32 1326507024, %v1548
          %v1564 = vor.u32 %v1562, %v1563
          %vm1565 = vcmp.lt.s32.totalorder %v1546, 1
          %vm1566 = vcmp.lt.s32.totalorder %v1546, 2
          %vm1567 = vcmp.lt.s32.totalorder %v1546, 3
          %vm1568 = vcmp.lt.s32.totalorder %v1546, 4
          %v1569 = vsel %vm1565, %v1549, %v1552
          %v1570 = vsel %vm1568, %v1558, 2102212464
          %v1571 = vsel %vm1567, %v1555, %v1570
          %v1572 = vsel %vm1566, %v1569, %v1571
          %v1573 = vsel %vm1565, %v1552, %v1555
          %v1574 = vsel %vm1568, %v1561, 920167782
          %v1575 = vsel %vm1567, %v1558, %v1574
          %v1576 = vsel %vm1566, %v1573, %v1575
          %v1577 = vsel %vm1565, %v1555, %v1558
          %v1578 = vsel %vm1568, %v1564, 1326507024
          %v1579 = vsel %vm1567, %v1561, %v1578
          %v1580 = vsel %vm1566, %v1577, %v1579
          %v1581 = vshll.u32 %v1541, 8
          %v1582 = vmul.u32.u64.compose %v1581, %v1580
          %v1583 = vextract.low.u32 %v1582
          %v1584 = vextract.high.u32 %v1582
          %v1585 = vmul.u32.u64.compose %v1581, %v1576
          %v1586 = vextract.low.u32 %v1585
          %v1587 = vextract.high.u32 %v1585
          %v1588 = vmul.u32 %v1581, %v1572
          %v1589 = vadd.s32 %v1584, %v1586
          %vm1590 = vc.u32 %v1584, %v1586
          %v1591 = vadd.s32 %v1587, 1
          %v1592 = vsel %vm1590, %v1591, %v1587
          %v1593 = vadd.s32 %v1588, %v1592
          %v1594 = vadd.s32 %v1593, 536870912
          %v1595 = vshrl.u32 %v1594, 30
          %v1596 = vshll.u32 %v1595, 30
          %v1597 = vsub.s32 %v1593, %v1596
          %vm1598 = vcmp.lt.s32.totalorder %v1597, 0
          %v1599 = vsub.s32 0, %v1597
          %v1600 = vsel %vm1598, %v1599, %v1597
          %v1601 = vclz %v1600
          %v1602 = vsub.s32 %v1601, 2
          %vm1603 = vcmp.gt.s32.totalorder 0, %v1602
          %v1604 = vsel %vm1603, 0, %v1602
          %v1605 = vsub.s32 32, %v1604
          %v1606 = vshll.u32 %v1597, %v1604
          %v1607 = vshrl.u32 %v1589, %v1605
          %v1608 = vor.u32 %v1606, %v1607
          %v1609 = vsub.s32 4294967266, %v1604
          %v1610 = vadd.s32 %v1609, 127
          %v1611 = vshll.u32 %v1610, 23
          %v1612 = vor.u32 4788187, %v1611
          %v1613 = vand.u32 2147483647, %v1612
          %v1615 = vcvt.s32.f32 %v1608
          %v1616 = vmul.f32 %v1615, %v1613
          %v1617 = vxor.u32 %v1616, 2147483648
          %v1618 = vsel %vm1535, %v1617, %v1616
          %v1619 = vsub.s32 4, %v1595
          %v1620 = vsel %vm1535, %v1619, %v1595
          %v1621 = vsel %vm1534, %v1501, %v1618
          %v1622 = vsel %vm1534, 0, %v1620
          %v1623 = vcosq.f32.pop %v1621
          %v1624 = vsinq.f32.pop %v1621
          %vm1625 = vweird.f32 %v1501
          %v1626 = vand.u32 %v1622, 3
          %vm1627 = vcmp.lt.s32.totalorder %v1626, 2
          %vm1628 = vcmp.eq.s32.totalorder %v1626, 0
          %v1629 = vxor.u32 %v1624, 2147483648
          %v1630 = vsel %vm1628, %v1623, %v1629
          %vm1631 = vcmp.eq.s32.totalorder %v1626, 2
          %v1632 = vxor.u32 %v1623, 2147483648
          %v1633 = vsel %vm1631, %v1632, %v1624
          %v1634 = vsel %vm1627, %v1630, %v1633
          %v1635 = vsel %vm1625, nan, %v1634
          %v1636 = vand.u32 2147483647, %v1502
          %vm1637 = vcmp.le.f32.partialorder %v1636, 0.7853982
          %vm1638 = vcmp.lt.s32.totalorder %v1502, 0
          %v1639 = vand.u32 %v1502, 2139095040
          %v1640 = vshrl.u32 %v1639, 23
          %v1641 = vsub.s32 %v1640, 127
          %v1642 = vand.u32 2147483647, %v1502
          %v1643 = vand.u32 %v1642, 8388607
          %v1644 = vor.u32 %v1643, 8388608
          %v1645 = vsub.s32 0, %v1644
          %v1646 = vadd.s32 %v1641, 1
          %vm1647 = vcmp.gt.s32.totalorder %v1646, 0
          %v1648 = vsel %vm1647, %v1646, 0
          %v1649 = vshrl.u32 %v1648, 5
          %v1650 = vand.u32 %v1648, 31
          %v1651 = vsub.s32 32, %v1650
          %v1652 = vshrl.u32 683565275, %v1651
          %v1653 = vshll.u32 683565275, %v1650
          %v1654 = vshrl.u32 2475754826, %v1651
          %v1655 = vor.u32 %v1653, %v1654
          %v1656 = vshll.u32 2475754826, %v1650
          %v1657 = vshrl.u32 2131351028, %v1651
          %v1658 = vor.u32 %v1656, %v1657
          %v1659 = vshll.u32 2131351028, %v1650
          %v1660 = vshrl.u32 2102212464, %v1651
          %v1661 = vor.u32 %v1659, %v1660
          %v1662 = vshll.u32 2102212464, %v1650
          %v1663 = vshrl.u32 920167782, %v1651
          %v1664 = vor.u32 %v1662, %v1663
          %v1665 = vshll.u32 920167782, %v1650
          %v1666 = vshrl.u32 1326507024, %v1651
          %v1667 = vor.u32 %v1665, %v1666
          %vm1668 = vcmp.lt.s32.totalorder %v1649, 1
          %vm1669 = vcmp.lt.s32.totalorder %v1649, 2
          %vm1670 = vcmp.lt.s32.totalorder %v1649, 3
          %vm1671 = vcmp.lt.s32.totalorder %v1649, 4
          %v1672 = vsel %vm1668, %v1652, %v1655
          %v1673 = vsel %vm1671, %v1661, 2102212464
          %v1674 = vsel %vm1670, %v1658, %v1673
          %v1675 = vsel %vm1669, %v1672, %v1674
          %v1676 = vsel %vm1668, %v1655, %v1658
          %v1677 = vsel %vm1671, %v1664, 920167782
          %v1678 = vsel %vm1670, %v1661, %v1677
          %v1679 = vsel %vm1669, %v1676, %v1678
          %v1680 = vsel %vm1668, %v1658, %v1661
          %v1681 = vsel %vm1671, %v1667, 1326507024
          %v1682 = vsel %vm1670, %v1664, %v1681
          %v1683 = vsel %vm1669, %v1680, %v1682
          %v1684 = vshll.u32 %v1644, 8
          %v1685 = vmul.u32.u64.compose %v1684, %v1683
          %v1686 = vextract.low.u32 %v1685
          %v1687 = vextract.high.u32 %v1685
          %v1688 = vmul.u32.u64.compose %v1684, %v1679
          %v1689 = vextract.low.u32 %v1688
          %v1690 = vextract.high.u32 %v1688
          %v1691 = vmul.u32 %v1684, %v1675
          %v1692 = vadd.s32 %v1687, %v1689
          %vm1693 = vc.u32 %v1687, %v1689
          %v1694 = vadd.s32 %v1690, 1
          %v1695 = vsel %vm1693, %v1694, %v1690
          %v1696 = vadd.s32 %v1691, %v1695
          %v1697 = vadd.s32 %v1696, 536870912
          %v1698 = vshrl.u32 %v1697, 30
          %v1699 = vshll.u32 %v1698, 30
          %v1700 = vsub.s32 %v1696, %v1699
          %vm1701 = vcmp.lt.s32.totalorder %v1700, 0
          %v1702 = vsub.s32 0, %v1700
          %v1703 = vsel %vm1701, %v1702, %v1700
          %v1704 = vclz %v1703
          %v1705 = vsub.s32 %v1704, 2
          %vm1706 = vcmp.gt.s32.totalorder 0, %v1705
          %v1707 = vsel %vm1706, 0, %v1705
          %v1708 = vsub.s32 32, %v1707
          %v1709 = vshll.u32 %v1700, %v1707
          %v1710 = vshrl.u32 %v1692, %v1708
          %v1711 = vor.u32 %v1709, %v1710
          %v1712 = vsub.s32 4294967266, %v1707
          %v1713 = vadd.s32 %v1712, 127
          %v1714 = vshll.u32 %v1713, 23
          %v1715 = vor.u32 4788187, %v1714
          %v1716 = vand.u32 2147483647, %v1715
          %v1718 = vcvt.s32.f32 %v1711
          %v1719 = vmul.f32 %v1718, %v1716
          %v1720 = vxor.u32 %v1719, 2147483648
          %v1721 = vsel %vm1638, %v1720, %v1719
          %v1722 = vsub.s32 4, %v1698
          %v1723 = vsel %vm1638, %v1722, %v1698
          %v1724 = vsel %vm1637, %v1502, %v1721
          %v1725 = vsel %vm1637, 0, %v1723
          %v1726 = vcosq.f32.pop %v1724
          %v1727 = vsinq.f32.pop %v1724
          %vm1728 = vweird.f32 %v1502
          %v1729 = vand.u32 %v1725, 3
          %vm1730 = vcmp.lt.s32.totalorder %v1729, 2
          %vm1731 = vcmp.eq.s32.totalorder %v1729, 0
          %v1732 = vxor.u32 %v1727, 2147483648
          %v1733 = vsel %vm1731, %v1726, %v1732
          %vm1734 = vcmp.eq.s32.totalorder %v1729, 2
          %v1735 = vxor.u32 %v1726, 2147483648
          %v1736 = vsel %vm1734, %v1735, %v1727
          %v1737 = vsel %vm1730, %v1733, %v1736
          %v1738 = vsel %vm1728, nan, %v1737
          %v1739 = vand.u32 2147483647, %v1503
          %vm1740 = vcmp.le.f32.partialorder %v1739, 0.7853982
          %vm1741 = vcmp.lt.s32.totalorder %v1503, 0
          %v1742 = vand.u32 %v1503, 2139095040
          %v1743 = vshrl.u32 %v1742, 23
          %v1744 = vsub.s32 %v1743, 127
          %v1745 = vand.u32 2147483647, %v1503
          %v1746 = vand.u32 %v1745, 8388607
          %v1747 = vor.u32 %v1746, 8388608
          %v1748 = vsub.s32 0, %v1747
          %v1749 = vadd.s32 %v1744, 1
          %vm1750 = vcmp.gt.s32.totalorder %v1749, 0
          %v1751 = vsel %vm1750, %v1749, 0
          %v1752 = vshrl.u32 %v1751, 5
          %v1753 = vand.u32 %v1751, 31
          %v1754 = vsub.s32 32, %v1753
          %v1755 = vshrl.u32 683565275, %v1754
          %v1756 = vshll.u32 683565275, %v1753
          %v1757 = vshrl.u32 2475754826, %v1754
          %v1758 = vor.u32 %v1756, %v1757
          %v1759 = vshll.u32 2475754826, %v1753
          %v1760 = vshrl.u32 2131351028, %v1754
          %v1761 = vor.u32 %v1759, %v1760
          %v1762 = vshll.u32 2131351028, %v1753
          %v1763 = vshrl.u32 2102212464, %v1754
          %v1764 = vor.u32 %v1762, %v1763
          %v1765 = vshll.u32 2102212464, %v1753
          %v1766 = vshrl.u32 920167782, %v1754
          %v1767 = vor.u32 %v1765, %v1766
          %v1768 = vshll.u32 920167782, %v1753
          %v1769 = vshrl.u32 1326507024, %v1754
          %v1770 = vor.u32 %v1768, %v1769
          %vm1771 = vcmp.lt.s32.totalorder %v1752, 1
          %vm1772 = vcmp.lt.s32.totalorder %v1752, 2
          %vm1773 = vcmp.lt.s32.totalorder %v1752, 3
          %vm1774 = vcmp.lt.s32.totalorder %v1752, 4
          %v1775 = vsel %vm1771, %v1755, %v1758
          %v1776 = vsel %vm1774, %v1764, 2102212464
          %v1777 = vsel %vm1773, %v1761, %v1776
          %v1778 = vsel %vm1772, %v1775, %v1777
          %v1779 = vsel %vm1771, %v1758, %v1761
          %v1780 = vsel %vm1774, %v1767, 920167782
          %v1781 = vsel %vm1773, %v1764, %v1780
          %v1782 = vsel %vm1772, %v1779, %v1781
          %v1783 = vsel %vm1771, %v1761, %v1764
          %v1784 = vsel %vm1774, %v1770, 1326507024
          %v1785 = vsel %vm1773, %v1767, %v1784
          %v1786 = vsel %vm1772, %v1783, %v1785
          %v1787 = vshll.u32 %v1747, 8
          %v1788 = vmul.u32.u64.compose %v1787, %v1786
          %v1789 = vextract.low.u32 %v1788
          %v1790 = vextract.high.u32 %v1788
          %v1791 = vmul.u32.u64.compose %v1787, %v1782
          %v1792 = vextract.low.u32 %v1791
          %v1793 = vextract.high.u32 %v1791
          %v1794 = vmul.u32 %v1787, %v1778
          %v1795 = vadd.s32 %v1790, %v1792
          %vm1796 = vc.u32 %v1790, %v1792
          %v1797 = vadd.s32 %v1793, 1
          %v1798 = vsel %vm1796, %v1797, %v1793
          %v1799 = vadd.s32 %v1794, %v1798
          %v1800 = vadd.s32 %v1799, 536870912
          %v1801 = vshrl.u32 %v1800, 30
          %v1802 = vshll.u32 %v1801, 30
          %v1803 = vsub.s32 %v1799, %v1802
          %vm1804 = vcmp.lt.s32.totalorder %v1803, 0
          %v1805 = vsub.s32 0, %v1803
          %v1806 = vsel %vm1804, %v1805, %v1803
          %v1807 = vclz %v1806
          %v1808 = vsub.s32 %v1807, 2
          %vm1809 = vcmp.gt.s32.totalorder 0, %v1808
          %v1810 = vsel %vm1809, 0, %v1808
          %v1811 = vsub.s32 32, %v1810
          %v1812 = vshll.u32 %v1803, %v1810
          %v1813 = vshrl.u32 %v1795, %v1811
          %v1814 = vor.u32 %v1812, %v1813
          %v1815 = vsub.s32 4294967266, %v1810
          %v1816 = vadd.s32 %v1815, 127
          %v1817 = vshll.u32 %v1816, 23
          %v1818 = vor.u32 4788187, %v1817
          %v1819 = vand.u32 2147483647, %v1818
          %v1821 = vcvt.s32.f32 %v1814
          %v1822 = vmul.f32 %v1821, %v1819
          %v1823 = vxor.u32 %v1822, 2147483648
          %v1824 = vsel %vm1741, %v1823, %v1822
          %v1825 = vsub.s32 4, %v1801
          %v1826 = vsel %vm1741, %v1825, %v1801
          %v1827 = vsel %vm1740, %v1503, %v1824
          %v1828 = vsel %vm1740, 0, %v1826
          %v1829 = vcosq.f32.pop %v1827
          %v1830 = vsinq.f32.pop %v1827
          %vm1831 = vweird.f32 %v1503
          %v1832 = vand.u32 %v1828, 3
          %vm1833 = vcmp.lt.s32.totalorder %v1832, 2
          %vm1834 = vcmp.eq.s32.totalorder %v1832, 0
          %v1835 = vxor.u32 %v1830, 2147483648
          %v1836 = vsel %vm1834, %v1829, %v1835
          %vm1837 = vcmp.eq.s32.totalorder %v1832, 2
          %v1838 = vxor.u32 %v1829, 2147483648
          %v1839 = vsel %vm1837, %v1838, %v1830
          %v1840 = vsel %vm1833, %v1836, %v1839
          %v1841 = vsel %vm1831, nan, %v1840
          %v1842 = vand.u32 2147483647, %v1504
          %vm1843 = vcmp.le.f32.partialorder %v1842, 0.7853982
          %vm1844 = vcmp.lt.s32.totalorder %v1504, 0
          %v1845 = vand.u32 %v1504, 2139095040
          %v1846 = vshrl.u32 %v1845, 23
          %v1847 = vsub.s32 %v1846, 127
          %v1848 = vand.u32 2147483647, %v1504
          %v1849 = vand.u32 %v1848, 8388607
          %v1850 = vor.u32 %v1849, 8388608
          %v1851 = vsub.s32 0, %v1850
          %v1852 = vadd.s32 %v1847, 1
          %vm1853 = vcmp.gt.s32.totalorder %v1852, 0
          %v1854 = vsel %vm1853, %v1852, 0
          %v1855 = vshrl.u32 %v1854, 5
          %v1856 = vand.u32 %v1854, 31
          %v1857 = vsub.s32 32, %v1856
          %v1858 = vshrl.u32 683565275, %v1857
          %v1859 = vshll.u32 683565275, %v1856
          %v1860 = vshrl.u32 2475754826, %v1857
          %v1861 = vor.u32 %v1859, %v1860
          %v1862 = vshll.u32 2475754826, %v1856
          %v1863 = vshrl.u32 2131351028, %v1857
          %v1864 = vor.u32 %v1862, %v1863
          %v1865 = vshll.u32 2131351028, %v1856
          %v1866 = vshrl.u32 2102212464, %v1857
          %v1867 = vor.u32 %v1865, %v1866
          %v1868 = vshll.u32 2102212464, %v1856
          %v1869 = vshrl.u32 920167782, %v1857
          %v1870 = vor.u32 %v1868, %v1869
          %v1871 = vshll.u32 920167782, %v1856
          %v1872 = vshrl.u32 1326507024, %v1857
          %v1873 = vor.u32 %v1871, %v1872
          %vm1874 = vcmp.lt.s32.totalorder %v1855, 1
          %vm1875 = vcmp.lt.s32.totalorder %v1855, 2
          %vm1876 = vcmp.lt.s32.totalorder %v1855, 3
          %vm1877 = vcmp.lt.s32.totalorder %v1855, 4
          %v1878 = vsel %vm1874, %v1858, %v1861
          %v1879 = vsel %vm1877, %v1867, 2102212464
          %v1880 = vsel %vm1876, %v1864, %v1879
          %v1881 = vsel %vm1875, %v1878, %v1880
          %v1882 = vsel %vm1874, %v1861, %v1864
          %v1883 = vsel %vm1877, %v1870, 920167782
          %v1884 = vsel %vm1876, %v1867, %v1883
          %v1885 = vsel %vm1875, %v1882, %v1884
          %v1886 = vsel %vm1874, %v1864, %v1867
          %v1887 = vsel %vm1877, %v1873, 1326507024
          %v1888 = vsel %vm1876, %v1870, %v1887
          %v1889 = vsel %vm1875, %v1886, %v1888
          %v1890 = vshll.u32 %v1850, 8
          %v1891 = vmul.u32.u64.compose %v1890, %v1889
          %v1892 = vextract.low.u32 %v1891
          %v1893 = vextract.high.u32 %v1891
          %v1894 = vmul.u32.u64.compose %v1890, %v1885
          %v1895 = vextract.low.u32 %v1894
          %v1896 = vextract.high.u32 %v1894
          %v1897 = vmul.u32 %v1890, %v1881
          %v1898 = vadd.s32 %v1893, %v1895
          %vm1899 = vc.u32 %v1893, %v1895
          %v1900 = vadd.s32 %v1896, 1
          %v1901 = vsel %vm1899, %v1900, %v1896
          %v1902 = vadd.s32 %v1897, %v1901
          %v1903 = vadd.s32 %v1902, 536870912
          %v1904 = vshrl.u32 %v1903, 30
          %v1905 = vshll.u32 %v1904, 30
          %v1906 = vsub.s32 %v1902, %v1905
          %vm1907 = vcmp.lt.s32.totalorder %v1906, 0
          %v1908 = vsub.s32 0, %v1906
          %v1909 = vsel %vm1907, %v1908, %v1906
          %v1910 = vclz %v1909
          %v1911 = vsub.s32 %v1910, 2
          %vm1912 = vcmp.gt.s32.totalorder 0, %v1911
          %v1913 = vsel %vm1912, 0, %v1911
          %v1914 = vsub.s32 32, %v1913
          %v1915 = vshll.u32 %v1906, %v1913
          %v1916 = vshrl.u32 %v1898, %v1914
          %v1917 = vor.u32 %v1915, %v1916
          %v1918 = vsub.s32 4294967266, %v1913
          %v1919 = vadd.s32 %v1918, 127
          %v1920 = vshll.u32 %v1919, 23
          %v1921 = vor.u32 4788187, %v1920
          %v1922 = vand.u32 2147483647, %v1921
          %v1924 = vcvt.s32.f32 %v1917
          %v1925 = vmul.f32 %v1924, %v1922
          %v1926 = vxor.u32 %v1925, 2147483648
          %v1927 = vsel %vm1844, %v1926, %v1925
          %v1928 = vsub.s32 4, %v1904
          %v1929 = vsel %vm1844, %v1928, %v1904
          %v1930 = vsel %vm1843, %v1504, %v1927
          %v1931 = vsel %vm1843, 0, %v1929
          %v1932 = vcosq.f32.pop %v1930
          %v1933 = vsinq.f32.pop %v1930
          %vm1934 = vweird.f32 %v1504
          %v1935 = vand.u32 %v1931, 3
          %vm1936 = vcmp.lt.s32.totalorder %v1935, 2
          %vm1937 = vcmp.eq.s32.totalorder %v1935, 0
          %v1938 = vxor.u32 %v1933, 2147483648
          %v1939 = vsel %vm1937, %v1932, %v1938
          %vm1940 = vcmp.eq.s32.totalorder %v1935, 2
          %v1941 = vxor.u32 %v1932, 2147483648
          %v1942 = vsel %vm1940, %v1941, %v1933
          %v1943 = vsel %vm1936, %v1939, %v1942
          %v1944 = vsel %vm1934, nan, %v1943
          %v1945 = vand.u32 2147483647, %v1505
          %vm1946 = vcmp.le.f32.partialorder %v1945, 0.7853982
          %vm1947 = vcmp.lt.s32.totalorder %v1505, 0
          %v1948 = vand.u32 %v1505, 2139095040
          %v1949 = vshrl.u32 %v1948, 23
          %v1950 = vsub.s32 %v1949, 127
          %v1951 = vand.u32 2147483647, %v1505
          %v1952 = vand.u32 %v1951, 8388607
          %v1953 = vor.u32 %v1952, 8388608
          %v1954 = vsub.s32 0, %v1953
          %v1955 = vadd.s32 %v1950, 1
          %vm1956 = vcmp.gt.s32.totalorder %v1955, 0
          %v1957 = vsel %vm1956, %v1955, 0
          %v1958 = vshrl.u32 %v1957, 5
          %v1959 = vand.u32 %v1957, 31
          %v1960 = vsub.s32 32, %v1959
          %v1961 = vshrl.u32 683565275, %v1960
          %v1962 = vshll.u32 683565275, %v1959
          %v1963 = vshrl.u32 2475754826, %v1960
          %v1964 = vor.u32 %v1962, %v1963
          %v1965 = vshll.u32 2475754826, %v1959
          %v1966 = vshrl.u32 2131351028, %v1960
          %v1967 = vor.u32 %v1965, %v1966
          %v1968 = vshll.u32 2131351028, %v1959
          %v1969 = vshrl.u32 2102212464, %v1960
          %v1970 = vor.u32 %v1968, %v1969
          %v1971 = vshll.u32 2102212464, %v1959
          %v1972 = vshrl.u32 920167782, %v1960
          %v1973 = vor.u32 %v1971, %v1972
          %v1974 = vshll.u32 920167782, %v1959
          %v1975 = vshrl.u32 1326507024, %v1960
          %v1976 = vor.u32 %v1974, %v1975
          %vm1977 = vcmp.lt.s32.totalorder %v1958, 1
          %vm1978 = vcmp.lt.s32.totalorder %v1958, 2
          %vm1979 = vcmp.lt.s32.totalorder %v1958, 3
          %vm1980 = vcmp.lt.s32.totalorder %v1958, 4
          %v1981 = vsel %vm1977, %v1961, %v1964
          %v1982 = vsel %vm1980, %v1970, 2102212464
          %v1983 = vsel %vm1979, %v1967, %v1982
          %v1984 = vsel %vm1978, %v1981, %v1983
          %v1985 = vsel %vm1977, %v1964, %v1967
          %v1986 = vsel %vm1980, %v1973, 920167782
          %v1987 = vsel %vm1979, %v1970, %v1986
          %v1988 = vsel %vm1978, %v1985, %v1987
          %v1989 = vsel %vm1977, %v1967, %v1970
          %v1990 = vsel %vm1980, %v1976, 1326507024
          %v1991 = vsel %vm1979, %v1973, %v1990
          %v1992 = vsel %vm1978, %v1989, %v1991
          %v1993 = vshll.u32 %v1953, 8
          %v1994 = vmul.u32.u64.compose %v1993, %v1992
          %v1995 = vextract.low.u32 %v1994
          %v1996 = vextract.high.u32 %v1994
          %v1997 = vmul.u32.u64.compose %v1993, %v1988
          %v1998 = vextract.low.u32 %v1997
          %v1999 = vextract.high.u32 %v1997
          %v2000 = vmul.u32 %v1993, %v1984
          %v2001 = vadd.s32 %v1996, %v1998
          %vm2002 = vc.u32 %v1996, %v1998
          %v2003 = vadd.s32 %v1999, 1
          %v2004 = vsel %vm2002, %v2003, %v1999
          %v2005 = vadd.s32 %v2000, %v2004
          %v2006 = vadd.s32 %v2005, 536870912
          %v2007 = vshrl.u32 %v2006, 30
          %v2008 = vshll.u32 %v2007, 30
          %v2009 = vsub.s32 %v2005, %v2008
          %vm2010 = vcmp.lt.s32.totalorder %v2009, 0
          %v2011 = vsub.s32 0, %v2009
          %v2012 = vsel %vm2010, %v2011, %v2009
          %v2013 = vclz %v2012
          %v2014 = vsub.s32 %v2013, 2
          %vm2015 = vcmp.gt.s32.totalorder 0, %v2014
          %v2016 = vsel %vm2015, 0, %v2014
          %v2017 = vsub.s32 32, %v2016
          %v2018 = vshll.u32 %v2009, %v2016
          %v2019 = vshrl.u32 %v2001, %v2017
          %v2020 = vor.u32 %v2018, %v2019
          %v2021 = vsub.s32 4294967266, %v2016
          %v2022 = vadd.s32 %v2021, 127
          %v2023 = vshll.u32 %v2022, 23
          %v2024 = vor.u32 4788187, %v2023
          %v2025 = vand.u32 2147483647, %v2024
          %v2027 = vcvt.s32.f32 %v2020
          %v2028 = vmul.f32 %v2027, %v2025
          %v2029 = vxor.u32 %v2028, 2147483648
          %v2030 = vsel %vm1947, %v2029, %v2028
          %v2031 = vsub.s32 4, %v2007
          %v2032 = vsel %vm1947, %v2031, %v2007
          %v2033 = vsel %vm1946, %v1505, %v2030
          %v2034 = vsel %vm1946, 0, %v2032
          %v2035 = vcosq.f32.pop %v2033
          %v2036 = vsinq.f32.pop %v2033
          %vm2037 = vweird.f32 %v1505
          %v2038 = vand.u32 %v2034, 3
          %vm2039 = vcmp.lt.s32.totalorder %v2038, 2
          %vm2040 = vcmp.eq.s32.totalorder %v2038, 0
          %v2041 = vxor.u32 %v2036, 2147483648
          %v2042 = vsel %vm2040, %v2035, %v2041
          %vm2043 = vcmp.eq.s32.totalorder %v2038, 2
          %v2044 = vxor.u32 %v2035, 2147483648
          %v2045 = vsel %vm2043, %v2044, %v2036
          %v2046 = vsel %vm2039, %v2042, %v2045
          %v2047 = vsel %vm2037, nan, %v2046
          %v2048 = vand.u32 2147483647, %v1506
          %vm2049 = vcmp.le.f32.partialorder %v2048, 0.7853982
          %vm2050 = vcmp.lt.s32.totalorder %v1506, 0
          %v2051 = vand.u32 %v1506, 2139095040
          %v2052 = vshrl.u32 %v2051, 23
          %v2053 = vsub.s32 %v2052, 127
          %v2054 = vand.u32 2147483647, %v1506
          %v2055 = vand.u32 %v2054, 8388607
          %v2056 = vor.u32 %v2055, 8388608
          %v2057 = vsub.s32 0, %v2056
          %v2058 = vadd.s32 %v2053, 1
          %vm2059 = vcmp.gt.s32.totalorder %v2058, 0
          %v2060 = vsel %vm2059, %v2058, 0
          %v2061 = vshrl.u32 %v2060, 5
          %v2062 = vand.u32 %v2060, 31
          %v2063 = vsub.s32 32, %v2062
          %v2064 = vshrl.u32 683565275, %v2063
          %v2065 = vshll.u32 683565275, %v2062
          %v2066 = vshrl.u32 2475754826, %v2063
          %v2067 = vor.u32 %v2065, %v2066
          %v2068 = vshll.u32 2475754826, %v2062
          %v2069 = vshrl.u32 2131351028, %v2063
          %v2070 = vor.u32 %v2068, %v2069
          %v2071 = vshll.u32 2131351028, %v2062
          %v2072 = vshrl.u32 2102212464, %v2063
          %v2073 = vor.u32 %v2071, %v2072
          %v2074 = vshll.u32 2102212464, %v2062
          %v2075 = vshrl.u32 920167782, %v2063
          %v2076 = vor.u32 %v2074, %v2075
          %v2077 = vshll.u32 920167782, %v2062
          %v2078 = vshrl.u32 1326507024, %v2063
          %v2079 = vor.u32 %v2077, %v2078
          %vm2080 = vcmp.lt.s32.totalorder %v2061, 1
          %vm2081 = vcmp.lt.s32.totalorder %v2061, 2
          %vm2082 = vcmp.lt.s32.totalorder %v2061, 3
          %vm2083 = vcmp.lt.s32.totalorder %v2061, 4
          %v2084 = vsel %vm2080, %v2064, %v2067
          %v2085 = vsel %vm2083, %v2073, 2102212464
          %v2086 = vsel %vm2082, %v2070, %v2085
          %v2087 = vsel %vm2081, %v2084, %v2086
          %v2088 = vsel %vm2080, %v2067, %v2070
          %v2089 = vsel %vm2083, %v2076, 920167782
          %v2090 = vsel %vm2082, %v2073, %v2089
          %v2091 = vsel %vm2081, %v2088, %v2090
          %v2092 = vsel %vm2080, %v2070, %v2073
          %v2093 = vsel %vm2083, %v2079, 1326507024
          %v2094 = vsel %vm2082, %v2076, %v2093
          %v2095 = vsel %vm2081, %v2092, %v2094
          %v2096 = vshll.u32 %v2056, 8
          %v2097 = vmul.u32.u64.compose %v2096, %v2095
          %v2098 = vextract.low.u32 %v2097
          %v2099 = vextract.high.u32 %v2097
          %v2100 = vmul.u32.u64.compose %v2096, %v2091
          %v2101 = vextract.low.u32 %v2100
          %v2102 = vextract.high.u32 %v2100
          %v2103 = vmul.u32 %v2096, %v2087
          %v2104 = vadd.s32 %v2099, %v2101
          %vm2105 = vc.u32 %v2099, %v2101
          %v2106 = vadd.s32 %v2102, 1
          %v2107 = vsel %vm2105, %v2106, %v2102
          %v2108 = vadd.s32 %v2103, %v2107
          %v2109 = vadd.s32 %v2108, 536870912
          %v2110 = vshrl.u32 %v2109, 30
          %v2111 = vshll.u32 %v2110, 30
          %v2112 = vsub.s32 %v2108, %v2111
          %vm2113 = vcmp.lt.s32.totalorder %v2112, 0
          %v2114 = vsub.s32 0, %v2112
          %v2115 = vsel %vm2113, %v2114, %v2112
          %v2116 = vclz %v2115
          %v2117 = vsub.s32 %v2116, 2
          %vm2118 = vcmp.gt.s32.totalorder 0, %v2117
          %v2119 = vsel %vm2118, 0, %v2117
          %v2120 = vsub.s32 32, %v2119
          %v2121 = vshll.u32 %v2112, %v2119
          %v2122 = vshrl.u32 %v2104, %v2120
          %v2123 = vor.u32 %v2121, %v2122
          %v2124 = vsub.s32 4294967266, %v2119
          %v2125 = vadd.s32 %v2124, 127
          %v2126 = vshll.u32 %v2125, 23
          %v2127 = vor.u32 4788187, %v2126
          %v2128 = vand.u32 2147483647, %v2127
          %v2130 = vcvt.s32.f32 %v2123
          %v2131 = vmul.f32 %v2130, %v2128
          %v2132 = vxor.u32 %v2131, 2147483648
          %v2133 = vsel %vm2050, %v2132, %v2131
          %v2134 = vsub.s32 4, %v2110
          %v2135 = vsel %vm2050, %v2134, %v2110
          %v2136 = vsel %vm2049, %v1506, %v2133
          %v2137 = vsel %vm2049, 0, %v2135
          %v2138 = vcosq.f32.pop %v2136
          %v2139 = vsinq.f32.pop %v2136
          %vm2140 = vweird.f32 %v1506
          %v2141 = vand.u32 %v2137, 3
          %vm2142 = vcmp.lt.s32.totalorder %v2141, 2
          %vm2143 = vcmp.eq.s32.totalorder %v2141, 0
          %v2144 = vxor.u32 %v2139, 2147483648
          %v2145 = vsel %vm2143, %v2138, %v2144
          %vm2146 = vcmp.eq.s32.totalorder %v2141, 2
          %v2147 = vxor.u32 %v2138, 2147483648
          %v2148 = vsel %vm2146, %v2147, %v2139
          %v2149 = vsel %vm2142, %v2145, %v2148
          %v2150 = vsel %vm2140, nan, %v2149
          %v2151 = vand.u32 2147483647, %v1507
          %vm2152 = vcmp.le.f32.partialorder %v2151, 0.7853982
          %vm2153 = vcmp.lt.s32.totalorder %v1507, 0
          %v2154 = vand.u32 %v1507, 2139095040
          %v2155 = vshrl.u32 %v2154, 23
          %v2156 = vsub.s32 %v2155, 127
          %v2157 = vand.u32 2147483647, %v1507
          %v2158 = vand.u32 %v2157, 8388607
          %v2159 = vor.u32 %v2158, 8388608
          %v2160 = vsub.s32 0, %v2159
          %v2161 = vadd.s32 %v2156, 1
          %vm2162 = vcmp.gt.s32.totalorder %v2161, 0
          %v2163 = vsel %vm2162, %v2161, 0
          %v2164 = vshrl.u32 %v2163, 5
          %v2165 = vand.u32 %v2163, 31
          %v2166 = vsub.s32 32, %v2165
          %v2167 = vshrl.u32 683565275, %v2166
          %v2168 = vshll.u32 683565275, %v2165
          %v2169 = vshrl.u32 2475754826, %v2166
          %v2170 = vor.u32 %v2168, %v2169
          %v2171 = vshll.u32 2475754826, %v2165
          %v2172 = vshrl.u32 2131351028, %v2166
          %v2173 = vor.u32 %v2171, %v2172
          %v2174 = vshll.u32 2131351028, %v2165
          %v2175 = vshrl.u32 2102212464, %v2166
          %v2176 = vor.u32 %v2174, %v2175
          %v2177 = vshll.u32 2102212464, %v2165
          %v2178 = vshrl.u32 920167782, %v2166
          %v2179 = vor.u32 %v2177, %v2178
          %v2180 = vshll.u32 920167782, %v2165
          %v2181 = vshrl.u32 1326507024, %v2166
          %v2182 = vor.u32 %v2180, %v2181
          %vm2183 = vcmp.lt.s32.totalorder %v2164, 1
          %vm2184 = vcmp.lt.s32.totalorder %v2164, 2
          %vm2185 = vcmp.lt.s32.totalorder %v2164, 3
          %vm2186 = vcmp.lt.s32.totalorder %v2164, 4
          %v2187 = vsel %vm2183, %v2167, %v2170
          %v2188 = vsel %vm2186, %v2176, 2102212464
          %v2189 = vsel %vm2185, %v2173, %v2188
          %v2190 = vsel %vm2184, %v2187, %v2189
          %v2191 = vsel %vm2183, %v2170, %v2173
          %v2192 = vsel %vm2186, %v2179, 920167782
          %v2193 = vsel %vm2185, %v2176, %v2192
          %v2194 = vsel %vm2184, %v2191, %v2193
          %v2195 = vsel %vm2183, %v2173, %v2176
          %v2196 = vsel %vm2186, %v2182, 1326507024
          %v2197 = vsel %vm2185, %v2179, %v2196
          %v2198 = vsel %vm2184, %v2195, %v2197
          %v2199 = vshll.u32 %v2159, 8
          %v2200 = vmul.u32.u64.compose %v2199, %v2198
          %v2201 = vextract.low.u32 %v2200
          %v2202 = vextract.high.u32 %v2200
          %v2203 = vmul.u32.u64.compose %v2199, %v2194
          %v2204 = vextract.low.u32 %v2203
          %v2205 = vextract.high.u32 %v2203
          %v2206 = vmul.u32 %v2199, %v2190
          %v2207 = vadd.s32 %v2202, %v2204
          %vm2208 = vc.u32 %v2202, %v2204
          %v2209 = vadd.s32 %v2205, 1
          %v2210 = vsel %vm2208, %v2209, %v2205
          %v2211 = vadd.s32 %v2206, %v2210
          %v2212 = vadd.s32 %v2211, 536870912
          %v2213 = vshrl.u32 %v2212, 30
          %v2214 = vshll.u32 %v2213, 30
          %v2215 = vsub.s32 %v2211, %v2214
          %vm2216 = vcmp.lt.s32.totalorder %v2215, 0
          %v2217 = vsub.s32 0, %v2215
          %v2218 = vsel %vm2216, %v2217, %v2215
          %v2219 = vclz %v2218
          %v2220 = vsub.s32 %v2219, 2
          %vm2221 = vcmp.gt.s32.totalorder 0, %v2220
          %v2222 = vsel %vm2221, 0, %v2220
          %v2223 = vsub.s32 32, %v2222
          %v2224 = vshll.u32 %v2215, %v2222
          %v2225 = vshrl.u32 %v2207, %v2223
          %v2226 = vor.u32 %v2224, %v2225
          %v2227 = vsub.s32 4294967266, %v2222
          %v2228 = vadd.s32 %v2227, 127
          %v2229 = vshll.u32 %v2228, 23
          %v2230 = vor.u32 4788187, %v2229
          %v2231 = vand.u32 2147483647, %v2230
          %v2233 = vcvt.s32.f32 %v2226
          %v2234 = vmul.f32 %v2233, %v2231
          %v2235 = vxor.u32 %v2234, 2147483648
          %v2236 = vsel %vm2153, %v2235, %v2234
          %v2237 = vsub.s32 4, %v2213
          %v2238 = vsel %vm2153, %v2237, %v2213
          %v2239 = vsel %vm2152, %v1507, %v2236
          %v2240 = vsel %vm2152, 0, %v2238
          %v2241 = vcosq.f32.pop %v2239
          %v2242 = vsinq.f32.pop %v2239
          %vm2243 = vweird.f32 %v1507
          %v2244 = vand.u32 %v2240, 3
          %vm2245 = vcmp.lt.s32.totalorder %v2244, 2
          %vm2246 = vcmp.eq.s32.totalorder %v2244, 0
          %v2247 = vxor.u32 %v2242, 2147483648
          %v2248 = vsel %vm2246, %v2241, %v2247
          %vm2249 = vcmp.eq.s32.totalorder %v2244, 2
          %v2250 = vxor.u32 %v2241, 2147483648
          %v2251 = vsel %vm2249, %v2250, %v2242
          %v2252 = vsel %vm2245, %v2248, %v2251
          %v2253 = vsel %vm2243, nan, %v2252
          %v2254 = vand.u32 2147483647, %v1508
          %vm2255 = vcmp.le.f32.partialorder %v2254, 0.7853982
          %vm2256 = vcmp.lt.s32.totalorder %v1508, 0
          %v2257 = vand.u32 %v1508, 2139095040
          %v2258 = vshrl.u32 %v2257, 23
          %v2259 = vsub.s32 %v2258, 127
          %v2260 = vand.u32 2147483647, %v1508
          %v2261 = vand.u32 %v2260, 8388607
          %v2262 = vor.u32 %v2261, 8388608
          %v2263 = vsub.s32 0, %v2262
          %v2264 = vadd.s32 %v2259, 1
          %vm2265 = vcmp.gt.s32.totalorder %v2264, 0
          %v2266 = vsel %vm2265, %v2264, 0
          %v2267 = vshrl.u32 %v2266, 5
          %v2268 = vand.u32 %v2266, 31
          %v2269 = vsub.s32 32, %v2268
          %v2270 = vshrl.u32 683565275, %v2269
          %v2271 = vshll.u32 683565275, %v2268
          %v2272 = vshrl.u32 2475754826, %v2269
          %v2273 = vor.u32 %v2271, %v2272
          %v2274 = vshll.u32 2475754826, %v2268
          %v2275 = vshrl.u32 2131351028, %v2269
          %v2276 = vor.u32 %v2274, %v2275
          %v2277 = vshll.u32 2131351028, %v2268
          %v2278 = vshrl.u32 2102212464, %v2269
          %v2279 = vor.u32 %v2277, %v2278
          %v2280 = vshll.u32 2102212464, %v2268
          %v2281 = vshrl.u32 920167782, %v2269
          %v2282 = vor.u32 %v2280, %v2281
          %v2283 = vshll.u32 920167782, %v2268
          %v2284 = vshrl.u32 1326507024, %v2269
          %v2285 = vor.u32 %v2283, %v2284
          %vm2286 = vcmp.lt.s32.totalorder %v2267, 1
          %vm2287 = vcmp.lt.s32.totalorder %v2267, 2
          %vm2288 = vcmp.lt.s32.totalorder %v2267, 3
          %vm2289 = vcmp.lt.s32.totalorder %v2267, 4
          %v2290 = vsel %vm2286, %v2270, %v2273
          %v2291 = vsel %vm2289, %v2279, 2102212464
          %v2292 = vsel %vm2288, %v2276, %v2291
          %v2293 = vsel %vm2287, %v2290, %v2292
          %v2294 = vsel %vm2286, %v2273, %v2276
          %v2295 = vsel %vm2289, %v2282, 920167782
          %v2296 = vsel %vm2288, %v2279, %v2295
          %v2297 = vsel %vm2287, %v2294, %v2296
          %v2298 = vsel %vm2286, %v2276, %v2279
          %v2299 = vsel %vm2289, %v2285, 1326507024
          %v2300 = vsel %vm2288, %v2282, %v2299
          %v2301 = vsel %vm2287, %v2298, %v2300
          %v2302 = vshll.u32 %v2262, 8
          %v2303 = vmul.u32.u64.compose %v2302, %v2301
          %v2304 = vextract.low.u32 %v2303
          %v2305 = vextract.high.u32 %v2303
          %v2306 = vmul.u32.u64.compose %v2302, %v2297
          %v2307 = vextract.low.u32 %v2306
          %v2308 = vextract.high.u32 %v2306
          %v2309 = vmul.u32 %v2302, %v2293
          %v2310 = vadd.s32 %v2305, %v2307
          %vm2311 = vc.u32 %v2305, %v2307
          %v2312 = vadd.s32 %v2308, 1
          %v2313 = vsel %vm2311, %v2312, %v2308
          %v2314 = vadd.s32 %v2309, %v2313
          %v2315 = vadd.s32 %v2314, 536870912
          %v2316 = vshrl.u32 %v2315, 30
          %v2317 = vshll.u32 %v2316, 30
          %v2318 = vsub.s32 %v2314, %v2317
          %vm2319 = vcmp.lt.s32.totalorder %v2318, 0
          %v2320 = vsub.s32 0, %v2318
          %v2321 = vsel %vm2319, %v2320, %v2318
          %v2322 = vclz %v2321
          %v2323 = vsub.s32 %v2322, 2
          %vm2324 = vcmp.gt.s32.totalorder 0, %v2323
          %v2325 = vsel %vm2324, 0, %v2323
          %v2326 = vsub.s32 32, %v2325
          %v2327 = vshll.u32 %v2318, %v2325
          %v2328 = vshrl.u32 %v2310, %v2326
          %v2329 = vor.u32 %v2327, %v2328
          %v2330 = vsub.s32 4294967266, %v2325
          %v2331 = vadd.s32 %v2330, 127
          %v2332 = vshll.u32 %v2331, 23
          %v2333 = vor.u32 4788187, %v2332
          %v2334 = vand.u32 2147483647, %v2333
          %v2336 = vcvt.s32.f32 %v2329
          %v2337 = vmul.f32 %v2336, %v2334
          %v2338 = vxor.u32 %v2337, 2147483648
          %v2339 = vsel %vm2256, %v2338, %v2337
          %v2340 = vsub.s32 4, %v2316
          %v2341 = vsel %vm2256, %v2340, %v2316
          %v2342 = vsel %vm2255, %v1508, %v2339
          %v2343 = vsel %vm2255, 0, %v2341
          %v2344 = vcosq.f32.pop %v2342
          %v2345 = vsinq.f32.pop %v2342
          %vm2346 = vweird.f32 %v1508
          %v2347 = vand.u32 %v2343, 3
          %vm2348 = vcmp.lt.s32.totalorder %v2347, 2
          %vm2349 = vcmp.eq.s32.totalorder %v2347, 0
          %v2350 = vxor.u32 %v2345, 2147483648
          %v2351 = vsel %vm2349, %v2344, %v2350
          %vm2352 = vcmp.eq.s32.totalorder %v2347, 2
          %v2353 = vxor.u32 %v2344, 2147483648
          %v2354 = vsel %vm2352, %v2353, %v2345
          %v2355 = vsel %vm2348, %v2351, %v2354
          %v2356 = vsel %vm2346, nan, %v2355
          %v2357 = vand.u32 2147483647, %v1509
          %vm2358 = vcmp.le.f32.partialorder %v2357, 0.7853982
          %vm2359 = vcmp.lt.s32.totalorder %v1509, 0
          %v2360 = vand.u32 %v1509, 2139095040
          %v2361 = vshrl.u32 %v2360, 23
          %v2362 = vsub.s32 %v2361, 127
          %v2363 = vand.u32 2147483647, %v1509
          %v2364 = vand.u32 %v2363, 8388607
          %v2365 = vor.u32 %v2364, 8388608
          %v2366 = vsub.s32 0, %v2365
          %v2367 = vadd.s32 %v2362, 1
          %vm2368 = vcmp.gt.s32.totalorder %v2367, 0
          %v2369 = vsel %vm2368, %v2367, 0
          %v2370 = vshrl.u32 %v2369, 5
          %v2371 = vand.u32 %v2369, 31
          %v2372 = vsub.s32 32, %v2371
          %v2373 = vshrl.u32 683565275, %v2372
          %v2374 = vshll.u32 683565275, %v2371
          %v2375 = vshrl.u32 2475754826, %v2372
          %v2376 = vor.u32 %v2374, %v2375
          %v2377 = vshll.u32 2475754826, %v2371
          %v2378 = vshrl.u32 2131351028, %v2372
          %v2379 = vor.u32 %v2377, %v2378
          %v2380 = vshll.u32 2131351028, %v2371
          %v2381 = vshrl.u32 2102212464, %v2372
          %v2382 = vor.u32 %v2380, %v2381
          %v2383 = vshll.u32 2102212464, %v2371
          %v2384 = vshrl.u32 920167782, %v2372
          %v2385 = vor.u32 %v2383, %v2384
          %v2386 = vshll.u32 920167782, %v2371
          %v2387 = vshrl.u32 1326507024, %v2372
          %v2388 = vor.u32 %v2386, %v2387
          %vm2389 = vcmp.lt.s32.totalorder %v2370, 1
          %vm2390 = vcmp.lt.s32.totalorder %v2370, 2
          %vm2391 = vcmp.lt.s32.totalorder %v2370, 3
          %vm2392 = vcmp.lt.s32.totalorder %v2370, 4
          %v2393 = vsel %vm2389, %v2373, %v2376
          %v2394 = vsel %vm2392, %v2382, 2102212464
          %v2395 = vsel %vm2391, %v2379, %v2394
          %v2396 = vsel %vm2390, %v2393, %v2395
          %v2397 = vsel %vm2389, %v2376, %v2379
          %v2398 = vsel %vm2392, %v2385, 920167782
          %v2399 = vsel %vm2391, %v2382, %v2398
          %v2400 = vsel %vm2390, %v2397, %v2399
          %v2401 = vsel %vm2389, %v2379, %v2382
          %v2402 = vsel %vm2392, %v2388, 1326507024
          %v2403 = vsel %vm2391, %v2385, %v2402
          %v2404 = vsel %vm2390, %v2401, %v2403
          %v2405 = vshll.u32 %v2365, 8
          %v2406 = vmul.u32.u64.compose %v2405, %v2404
          %v2407 = vextract.low.u32 %v2406
          %v2408 = vextract.high.u32 %v2406
          %v2409 = vmul.u32.u64.compose %v2405, %v2400
          %v2410 = vextract.low.u32 %v2409
          %v2411 = vextract.high.u32 %v2409
          %v2412 = vmul.u32 %v2405, %v2396
          %v2413 = vadd.s32 %v2408, %v2410
          %vm2414 = vc.u32 %v2408, %v2410
          %v2415 = vadd.s32 %v2411, 1
          %v2416 = vsel %vm2414, %v2415, %v2411
          %v2417 = vadd.s32 %v2412, %v2416
          %v2418 = vadd.s32 %v2417, 536870912
          %v2419 = vshrl.u32 %v2418, 30
          %v2420 = vshll.u32 %v2419, 30
          %v2421 = vsub.s32 %v2417, %v2420
          %vm2422 = vcmp.lt.s32.totalorder %v2421, 0
          %v2423 = vsub.s32 0, %v2421
          %v2424 = vsel %vm2422, %v2423, %v2421
          %v2425 = vclz %v2424
          %v2426 = vsub.s32 %v2425, 2
          %vm2427 = vcmp.gt.s32.totalorder 0, %v2426
          %v2428 = vsel %vm2427, 0, %v2426
          %v2429 = vsub.s32 32, %v2428
          %v2430 = vshll.u32 %v2421, %v2428
          %v2431 = vshrl.u32 %v2413, %v2429
          %v2432 = vor.u32 %v2430, %v2431
          %v2433 = vsub.s32 4294967266, %v2428
          %v2434 = vadd.s32 %v2433, 127
          %v2435 = vshll.u32 %v2434, 23
          %v2436 = vor.u32 4788187, %v2435
          %v2437 = vand.u32 2147483647, %v2436
          %v2439 = vcvt.s32.f32 %v2432
          %v2440 = vmul.f32 %v2439, %v2437
          %v2441 = vxor.u32 %v2440, 2147483648
          %v2442 = vsel %vm2359, %v2441, %v2440
          %v2443 = vsub.s32 4, %v2419
          %v2444 = vsel %vm2359, %v2443, %v2419
          %v2445 = vsel %vm2358, %v1509, %v2442
          %v2446 = vsel %vm2358, 0, %v2444
          %v2447 = vcosq.f32.pop %v2445
          %v2448 = vsinq.f32.pop %v2445
          %vm2449 = vweird.f32 %v1509
          %v2450 = vand.u32 %v2446, 3
          %vm2451 = vcmp.lt.s32.totalorder %v2450, 2
          %vm2452 = vcmp.eq.s32.totalorder %v2450, 0
          %v2453 = vxor.u32 %v2448, 2147483648
          %v2454 = vsel %vm2452, %v2447, %v2453
          %vm2455 = vcmp.eq.s32.totalorder %v2450, 2
          %v2456 = vxor.u32 %v2447, 2147483648
          %v2457 = vsel %vm2455, %v2456, %v2448
          %v2458 = vsel %vm2451, %v2454, %v2457
          %v2459 = vsel %vm2449, nan, %v2458
          %v2460 = vand.u32 2147483647, %v1510
          %vm2461 = vcmp.le.f32.partialorder %v2460, 0.7853982
          %vm2462 = vcmp.lt.s32.totalorder %v1510, 0
          %v2463 = vand.u32 %v1510, 2139095040
          %v2464 = vshrl.u32 %v2463, 23
          %v2465 = vsub.s32 %v2464, 127
          %v2466 = vand.u32 2147483647, %v1510
          %v2467 = vand.u32 %v2466, 8388607
          %v2468 = vor.u32 %v2467, 8388608
          %v2469 = vsub.s32 0, %v2468
          %v2470 = vadd.s32 %v2465, 1
          %vm2471 = vcmp.gt.s32.totalorder %v2470, 0
          %v2472 = vsel %vm2471, %v2470, 0
          %v2473 = vshrl.u32 %v2472, 5
          %v2474 = vand.u32 %v2472, 31
          %v2475 = vsub.s32 32, %v2474
          %v2476 = vshrl.u32 683565275, %v2475
          %v2477 = vshll.u32 683565275, %v2474
          %v2478 = vshrl.u32 2475754826, %v2475
          %v2479 = vor.u32 %v2477, %v2478
          %v2480 = vshll.u32 2475754826, %v2474
          %v2481 = vshrl.u32 2131351028, %v2475
          %v2482 = vor.u32 %v2480, %v2481
          %v2483 = vshll.u32 2131351028, %v2474
          %v2484 = vshrl.u32 2102212464, %v2475
          %v2485 = vor.u32 %v2483, %v2484
          %v2486 = vshll.u32 2102212464, %v2474
          %v2487 = vshrl.u32 920167782, %v2475
          %v2488 = vor.u32 %v2486, %v2487
          %v2489 = vshll.u32 920167782, %v2474
          %v2490 = vshrl.u32 1326507024, %v2475
          %v2491 = vor.u32 %v2489, %v2490
          %vm2492 = vcmp.lt.s32.totalorder %v2473, 1
          %vm2493 = vcmp.lt.s32.totalorder %v2473, 2
          %vm2494 = vcmp.lt.s32.totalorder %v2473, 3
          %vm2495 = vcmp.lt.s32.totalorder %v2473, 4
          %v2496 = vsel %vm2492, %v2476, %v2479
          %v2497 = vsel %vm2495, %v2485, 2102212464
          %v2498 = vsel %vm2494, %v2482, %v2497
          %v2499 = vsel %vm2493, %v2496, %v2498
          %v2500 = vsel %vm2492, %v2479, %v2482
          %v2501 = vsel %vm2495, %v2488, 920167782
          %v2502 = vsel %vm2494, %v2485, %v2501
          %v2503 = vsel %vm2493, %v2500, %v2502
          %v2504 = vsel %vm2492, %v2482, %v2485
          %v2505 = vsel %vm2495, %v2491, 1326507024
          %v2506 = vsel %vm2494, %v2488, %v2505
          %v2507 = vsel %vm2493, %v2504, %v2506
          %v2508 = vshll.u32 %v2468, 8
          %v2509 = vmul.u32.u64.compose %v2508, %v2507
          %v2510 = vextract.low.u32 %v2509
          %v2511 = vextract.high.u32 %v2509
          %v2512 = vmul.u32.u64.compose %v2508, %v2503
          %v2513 = vextract.low.u32 %v2512
          %v2514 = vextract.high.u32 %v2512
          %v2515 = vmul.u32 %v2508, %v2499
          %v2516 = vadd.s32 %v2511, %v2513
          %vm2517 = vc.u32 %v2511, %v2513
          %v2518 = vadd.s32 %v2514, 1
          %v2519 = vsel %vm2517, %v2518, %v2514
          %v2520 = vadd.s32 %v2515, %v2519
          %v2521 = vadd.s32 %v2520, 536870912
          %v2522 = vshrl.u32 %v2521, 30
          %v2523 = vshll.u32 %v2522, 30
          %v2524 = vsub.s32 %v2520, %v2523
          %vm2525 = vcmp.lt.s32.totalorder %v2524, 0
          %v2526 = vsub.s32 0, %v2524
          %v2527 = vsel %vm2525, %v2526, %v2524
          %v2528 = vclz %v2527
          %v2529 = vsub.s32 %v2528, 2
          %vm2530 = vcmp.gt.s32.totalorder 0, %v2529
          %v2531 = vsel %vm2530, 0, %v2529
          %v2532 = vsub.s32 32, %v2531
          %v2533 = vshll.u32 %v2524, %v2531
          %v2534 = vshrl.u32 %v2516, %v2532
          %v2535 = vor.u32 %v2533, %v2534
          %v2536 = vsub.s32 4294967266, %v2531
          %v2537 = vadd.s32 %v2536, 127
          %v2538 = vshll.u32 %v2537, 23
          %v2539 = vor.u32 4788187, %v2538
          %v2540 = vand.u32 2147483647, %v2539
          %v2542 = vcvt.s32.f32 %v2535
          %v2543 = vmul.f32 %v2542, %v2540
          %v2544 = vxor.u32 %v2543, 2147483648
          %v2545 = vsel %vm2462, %v2544, %v2543
          %v2546 = vsub.s32 4, %v2522
          %v2547 = vsel %vm2462, %v2546, %v2522
          %v2548 = vsel %vm2461, %v1510, %v2545
          %v2549 = vsel %vm2461, 0, %v2547
          %v2550 = vcosq.f32.pop %v2548
          %v2551 = vsinq.f32.pop %v2548
          %vm2552 = vweird.f32 %v1510
          %v2553 = vand.u32 %v2549, 3
          %vm2554 = vcmp.lt.s32.totalorder %v2553, 2
          %vm2555 = vcmp.eq.s32.totalorder %v2553, 0
          %v2556 = vxor.u32 %v2551, 2147483648
          %v2557 = vsel %vm2555, %v2550, %v2556
          %vm2558 = vcmp.eq.s32.totalorder %v2553, 2
          %v2559 = vxor.u32 %v2550, 2147483648
          %v2560 = vsel %vm2558, %v2559, %v2551
          %v2561 = vsel %vm2554, %v2557, %v2560
          %v2562 = vsel %vm2552, nan, %v2561
          %v2563 = vand.u32 2147483647, %v1511
          %vm2564 = vcmp.le.f32.partialorder %v2563, 0.7853982
          %vm2565 = vcmp.lt.s32.totalorder %v1511, 0
          %v2566 = vand.u32 %v1511, 2139095040
          %v2567 = vshrl.u32 %v2566, 23
          %v2568 = vsub.s32 %v2567, 127
          %v2569 = vand.u32 2147483647, %v1511
          %v2570 = vand.u32 %v2569, 8388607
          %v2571 = vor.u32 %v2570, 8388608
          %v2572 = vsub.s32 0, %v2571
          %v2573 = vadd.s32 %v2568, 1
          %vm2574 = vcmp.gt.s32.totalorder %v2573, 0
          %v2575 = vsel %vm2574, %v2573, 0
          %v2576 = vshrl.u32 %v2575, 5
          %v2577 = vand.u32 %v2575, 31
          %v2578 = vsub.s32 32, %v2577
          %v2579 = vshrl.u32 683565275, %v2578
          %v2580 = vshll.u32 683565275, %v2577
          %v2581 = vshrl.u32 2475754826, %v2578
          %v2582 = vor.u32 %v2580, %v2581
          %v2583 = vshll.u32 2475754826, %v2577
          %v2584 = vshrl.u32 2131351028, %v2578
          %v2585 = vor.u32 %v2583, %v2584
          %v2586 = vshll.u32 2131351028, %v2577
          %v2587 = vshrl.u32 2102212464, %v2578
          %v2588 = vor.u32 %v2586, %v2587
          %v2589 = vshll.u32 2102212464, %v2577
          %v2590 = vshrl.u32 920167782, %v2578
          %v2591 = vor.u32 %v2589, %v2590
          %v2592 = vshll.u32 920167782, %v2577
          %v2593 = vshrl.u32 1326507024, %v2578
          %v2594 = vor.u32 %v2592, %v2593
          %vm2595 = vcmp.lt.s32.totalorder %v2576, 1
          %vm2596 = vcmp.lt.s32.totalorder %v2576, 2
          %vm2597 = vcmp.lt.s32.totalorder %v2576, 3
          %vm2598 = vcmp.lt.s32.totalorder %v2576, 4
          %v2599 = vsel %vm2595, %v2579, %v2582
          %v2600 = vsel %vm2598, %v2588, 2102212464
          %v2601 = vsel %vm2597, %v2585, %v2600
          %v2602 = vsel %vm2596, %v2599, %v2601
          %v2603 = vsel %vm2595, %v2582, %v2585
          %v2604 = vsel %vm2598, %v2591, 920167782
          %v2605 = vsel %vm2597, %v2588, %v2604
          %v2606 = vsel %vm2596, %v2603, %v2605
          %v2607 = vsel %vm2595, %v2585, %v2588
          %v2608 = vsel %vm2598, %v2594, 1326507024
          %v2609 = vsel %vm2597, %v2591, %v2608
          %v2610 = vsel %vm2596, %v2607, %v2609
          %v2611 = vshll.u32 %v2571, 8
          %v2612 = vmul.u32.u64.compose %v2611, %v2610
          %v2613 = vextract.low.u32 %v2612
          %v2614 = vextract.high.u32 %v2612
          %v2615 = vmul.u32.u64.compose %v2611, %v2606
          %v2616 = vextract.low.u32 %v2615
          %v2617 = vextract.high.u32 %v2615
          %v2618 = vmul.u32 %v2611, %v2602
          %v2619 = vadd.s32 %v2614, %v2616
          %vm2620 = vc.u32 %v2614, %v2616
          %v2621 = vadd.s32 %v2617, 1
          %v2622 = vsel %vm2620, %v2621, %v2617
          %v2623 = vadd.s32 %v2618, %v2622
          %v2624 = vadd.s32 %v2623, 536870912
          %v2625 = vshrl.u32 %v2624, 30
          %v2626 = vshll.u32 %v2625, 30
          %v2627 = vsub.s32 %v2623, %v2626
          %vm2628 = vcmp.lt.s32.totalorder %v2627, 0
          %v2629 = vsub.s32 0, %v2627
          %v2630 = vsel %vm2628, %v2629, %v2627
          %v2631 = vclz %v2630
          %v2632 = vsub.s32 %v2631, 2
          %vm2633 = vcmp.gt.s32.totalorder 0, %v2632
          %v2634 = vsel %vm2633, 0, %v2632
          %v2635 = vsub.s32 32, %v2634
          %v2636 = vshll.u32 %v2627, %v2634
          %v2637 = vshrl.u32 %v2619, %v2635
          %v2638 = vor.u32 %v2636, %v2637
          %v2639 = vsub.s32 4294967266, %v2634
          %v2640 = vadd.s32 %v2639, 127
          %v2641 = vshll.u32 %v2640, 23
          %v2642 = vor.u32 4788187, %v2641
          %v2643 = vand.u32 2147483647, %v2642
          %v2645 = vcvt.s32.f32 %v2638
          %v2646 = vmul.f32 %v2645, %v2643
          %v2647 = vxor.u32 %v2646, 2147483648
          %v2648 = vsel %vm2565, %v2647, %v2646
          %v2649 = vsub.s32 4, %v2625
          %v2650 = vsel %vm2565, %v2649, %v2625
          %v2651 = vsel %vm2564, %v1511, %v2648
          %v2652 = vsel %vm2564, 0, %v2650
          %v2653 = vcosq.f32.pop %v2651
          %v2654 = vsinq.f32.pop %v2651
          %vm2655 = vweird.f32 %v1511
          %v2656 = vand.u32 %v2652, 3
          %vm2657 = vcmp.lt.s32.totalorder %v2656, 2
          %vm2658 = vcmp.eq.s32.totalorder %v2656, 0
          %v2659 = vxor.u32 %v2654, 2147483648
          %v2660 = vsel %vm2658, %v2653, %v2659
          %vm2661 = vcmp.eq.s32.totalorder %v2656, 2
          %v2662 = vxor.u32 %v2653, 2147483648
          %v2663 = vsel %vm2661, %v2662, %v2654
          %v2664 = vsel %vm2657, %v2660, %v2663
          %v2665 = vsel %vm2655, nan, %v2664
          %v2666 = vand.u32 2147483647, %v1512
          %vm2667 = vcmp.le.f32.partialorder %v2666, 0.7853982
          %vm2668 = vcmp.lt.s32.totalorder %v1512, 0
          %v2669 = vand.u32 %v1512, 2139095040
          %v2670 = vshrl.u32 %v2669, 23
          %v2671 = vsub.s32 %v2670, 127
          %v2672 = vand.u32 2147483647, %v1512
          %v2673 = vand.u32 %v2672, 8388607
          %v2674 = vor.u32 %v2673, 8388608
          %v2675 = vsub.s32 0, %v2674
          %v2676 = vadd.s32 %v2671, 1
          %vm2677 = vcmp.gt.s32.totalorder %v2676, 0
          %v2678 = vsel %vm2677, %v2676, 0
          %v2679 = vshrl.u32 %v2678, 5
          %v2680 = vand.u32 %v2678, 31
          %v2681 = vsub.s32 32, %v2680
          %v2682 = vshrl.u32 683565275, %v2681
          %v2683 = vshll.u32 683565275, %v2680
          %v2684 = vshrl.u32 2475754826, %v2681
          %v2685 = vor.u32 %v2683, %v2684
          %v2686 = vshll.u32 2475754826, %v2680
          %v2687 = vshrl.u32 2131351028, %v2681
          %v2688 = vor.u32 %v2686, %v2687
          %v2689 = vshll.u32 2131351028, %v2680
          %v2690 = vshrl.u32 2102212464, %v2681
          %v2691 = vor.u32 %v2689, %v2690
          %v2692 = vshll.u32 2102212464, %v2680
          %v2693 = vshrl.u32 920167782, %v2681
          %v2694 = vor.u32 %v2692, %v2693
          %v2695 = vshll.u32 920167782, %v2680
          %v2696 = vshrl.u32 1326507024, %v2681
          %v2697 = vor.u32 %v2695, %v2696
          %vm2698 = vcmp.lt.s32.totalorder %v2679, 1
          %vm2699 = vcmp.lt.s32.totalorder %v2679, 2
          %vm2700 = vcmp.lt.s32.totalorder %v2679, 3
          %vm2701 = vcmp.lt.s32.totalorder %v2679, 4
          %v2702 = vsel %vm2698, %v2682, %v2685
          %v2703 = vsel %vm2701, %v2691, 2102212464
          %v2704 = vsel %vm2700, %v2688, %v2703
          %v2705 = vsel %vm2699, %v2702, %v2704
          %v2706 = vsel %vm2698, %v2685, %v2688
          %v2707 = vsel %vm2701, %v2694, 920167782
          %v2708 = vsel %vm2700, %v2691, %v2707
          %v2709 = vsel %vm2699, %v2706, %v2708
          %v2710 = vsel %vm2698, %v2688, %v2691
          %v2711 = vsel %vm2701, %v2697, 1326507024
          %v2712 = vsel %vm2700, %v2694, %v2711
          %v2713 = vsel %vm2699, %v2710, %v2712
          %v2714 = vshll.u32 %v2674, 8
          %v2715 = vmul.u32.u64.compose %v2714, %v2713
          %v2716 = vextract.low.u32 %v2715
          %v2717 = vextract.high.u32 %v2715
          %v2718 = vmul.u32.u64.compose %v2714, %v2709
          %v2719 = vextract.low.u32 %v2718
          %v2720 = vextract.high.u32 %v2718
          %v2721 = vmul.u32 %v2714, %v2705
          %v2722 = vadd.s32 %v2717, %v2719
          %vm2723 = vc.u32 %v2717, %v2719
          %v2724 = vadd.s32 %v2720, 1
          %v2725 = vsel %vm2723, %v2724, %v2720
          %v2726 = vadd.s32 %v2721, %v2725
          %v2727 = vadd.s32 %v2726, 536870912
          %v2728 = vshrl.u32 %v2727, 30
          %v2729 = vshll.u32 %v2728, 30
          %v2730 = vsub.s32 %v2726, %v2729
          %vm2731 = vcmp.lt.s32.totalorder %v2730, 0
          %v2732 = vsub.s32 0, %v2730
          %v2733 = vsel %vm2731, %v2732, %v2730
          %v2734 = vclz %v2733
          %v2735 = vsub.s32 %v2734, 2
          %vm2736 = vcmp.gt.s32.totalorder 0, %v2735
          %v2737 = vsel %vm2736, 0, %v2735
          %v2738 = vsub.s32 32, %v2737
          %v2739 = vshll.u32 %v2730, %v2737
          %v2740 = vshrl.u32 %v2722, %v2738
          %v2741 = vor.u32 %v2739, %v2740
          %v2742 = vsub.s32 4294967266, %v2737
          %v2743 = vadd.s32 %v2742, 127
          %v2744 = vshll.u32 %v2743, 23
          %v2745 = vor.u32 4788187, %v2744
          %v2746 = vand.u32 2147483647, %v2745
          %v2748 = vcvt.s32.f32 %v2741
          %v2749 = vmul.f32 %v2748, %v2746
          %v2750 = vxor.u32 %v2749, 2147483648
          %v2751 = vsel %vm2668, %v2750, %v2749
          %v2752 = vsub.s32 4, %v2728
          %v2753 = vsel %vm2668, %v2752, %v2728
          %v2754 = vsel %vm2667, %v1512, %v2751
          %v2755 = vsel %vm2667, 0, %v2753
          %v2756 = vcosq.f32.pop %v2754
          %v2757 = vsinq.f32.pop %v2754
          %vm2758 = vweird.f32 %v1512
          %v2759 = vand.u32 %v2755, 3
          %vm2760 = vcmp.lt.s32.totalorder %v2759, 2
          %vm2761 = vcmp.eq.s32.totalorder %v2759, 0
          %v2762 = vxor.u32 %v2757, 2147483648
          %v2763 = vsel %vm2761, %v2756, %v2762
          %vm2764 = vcmp.eq.s32.totalorder %v2759, 2
          %v2765 = vxor.u32 %v2756, 2147483648
          %v2766 = vsel %vm2764, %v2765, %v2757
          %v2767 = vsel %vm2760, %v2763, %v2766
          %v2768 = vsel %vm2758, nan, %v2767
          %v2769 = vand.u32 2147483647, %v1513
          %vm2770 = vcmp.le.f32.partialorder %v2769, 0.7853982
          %vm2771 = vcmp.lt.s32.totalorder %v1513, 0
          %v2772 = vand.u32 %v1513, 2139095040
          %v2773 = vshrl.u32 %v2772, 23
          %v2774 = vsub.s32 %v2773, 127
          %v2775 = vand.u32 2147483647, %v1513
          %v2776 = vand.u32 %v2775, 8388607
          %v2777 = vor.u32 %v2776, 8388608
          %v2778 = vsub.s32 0, %v2777
          %v2779 = vadd.s32 %v2774, 1
          %vm2780 = vcmp.gt.s32.totalorder %v2779, 0
          %v2781 = vsel %vm2780, %v2779, 0
          %v2782 = vshrl.u32 %v2781, 5
          %v2783 = vand.u32 %v2781, 31
          %v2784 = vsub.s32 32, %v2783
          %v2785 = vshrl.u32 683565275, %v2784
          %v2786 = vshll.u32 683565275, %v2783
          %v2787 = vshrl.u32 2475754826, %v2784
          %v2788 = vor.u32 %v2786, %v2787
          %v2789 = vshll.u32 2475754826, %v2783
          %v2790 = vshrl.u32 2131351028, %v2784
          %v2791 = vor.u32 %v2789, %v2790
          %v2792 = vshll.u32 2131351028, %v2783
          %v2793 = vshrl.u32 2102212464, %v2784
          %v2794 = vor.u32 %v2792, %v2793
          %v2795 = vshll.u32 2102212464, %v2783
          %v2796 = vshrl.u32 920167782, %v2784
          %v2797 = vor.u32 %v2795, %v2796
          %v2798 = vshll.u32 920167782, %v2783
          %v2799 = vshrl.u32 1326507024, %v2784
          %v2800 = vor.u32 %v2798, %v2799
          %vm2801 = vcmp.lt.s32.totalorder %v2782, 1
          %vm2802 = vcmp.lt.s32.totalorder %v2782, 2
          %vm2803 = vcmp.lt.s32.totalorder %v2782, 3
          %vm2804 = vcmp.lt.s32.totalorder %v2782, 4
          %v2805 = vsel %vm2801, %v2785, %v2788
          %v2806 = vsel %vm2804, %v2794, 2102212464
          %v2807 = vsel %vm2803, %v2791, %v2806
          %v2808 = vsel %vm2802, %v2805, %v2807
          %v2809 = vsel %vm2801, %v2788, %v2791
          %v2810 = vsel %vm2804, %v2797, 920167782
          %v2811 = vsel %vm2803, %v2794, %v2810
          %v2812 = vsel %vm2802, %v2809, %v2811
          %v2813 = vsel %vm2801, %v2791, %v2794
          %v2814 = vsel %vm2804, %v2800, 1326507024
          %v2815 = vsel %vm2803, %v2797, %v2814
          %v2816 = vsel %vm2802, %v2813, %v2815
          %v2817 = vshll.u32 %v2777, 8
          %v2818 = vmul.u32.u64.compose %v2817, %v2816
          %v2819 = vextract.low.u32 %v2818
          %v2820 = vextract.high.u32 %v2818
          %v2821 = vmul.u32.u64.compose %v2817, %v2812
          %v2822 = vextract.low.u32 %v2821
          %v2823 = vextract.high.u32 %v2821
          %v2824 = vmul.u32 %v2817, %v2808
          %v2825 = vadd.s32 %v2820, %v2822
          %vm2826 = vc.u32 %v2820, %v2822
          %v2827 = vadd.s32 %v2823, 1
          %v2828 = vsel %vm2826, %v2827, %v2823
          %v2829 = vadd.s32 %v2824, %v2828
          %v2830 = vadd.s32 %v2829, 536870912
          %v2831 = vshrl.u32 %v2830, 30
          %v2832 = vshll.u32 %v2831, 30
          %v2833 = vsub.s32 %v2829, %v2832
          %vm2834 = vcmp.lt.s32.totalorder %v2833, 0
          %v2835 = vsub.s32 0, %v2833
          %v2836 = vsel %vm2834, %v2835, %v2833
          %v2837 = vclz %v2836
          %v2838 = vsub.s32 %v2837, 2
          %vm2839 = vcmp.gt.s32.totalorder 0, %v2838
          %v2840 = vsel %vm2839, 0, %v2838
          %v2841 = vsub.s32 32, %v2840
          %v2842 = vshll.u32 %v2833, %v2840
          %v2843 = vshrl.u32 %v2825, %v2841
          %v2844 = vor.u32 %v2842, %v2843
          %v2845 = vsub.s32 4294967266, %v2840
          %v2846 = vadd.s32 %v2845, 127
          %v2847 = vshll.u32 %v2846, 23
          %v2848 = vor.u32 4788187, %v2847
          %v2849 = vand.u32 2147483647, %v2848
          %v2851 = vcvt.s32.f32 %v2844
          %v2852 = vmul.f32 %v2851, %v2849
          %v2853 = vxor.u32 %v2852, 2147483648
          %v2854 = vsel %vm2771, %v2853, %v2852
          %v2855 = vsub.s32 4, %v2831
          %v2856 = vsel %vm2771, %v2855, %v2831
          %v2857 = vsel %vm2770, %v1513, %v2854
          %v2858 = vsel %vm2770, 0, %v2856
          %v2859 = vcosq.f32.pop %v2857
          %v2860 = vsinq.f32.pop %v2857
          %vm2861 = vweird.f32 %v1513
          %v2862 = vand.u32 %v2858, 3
          %vm2863 = vcmp.lt.s32.totalorder %v2862, 2
          %vm2864 = vcmp.eq.s32.totalorder %v2862, 0
          %v2865 = vxor.u32 %v2860, 2147483648
          %v2866 = vsel %vm2864, %v2859, %v2865
          %vm2867 = vcmp.eq.s32.totalorder %v2862, 2
          %v2868 = vxor.u32 %v2859, 2147483648
          %v2869 = vsel %vm2867, %v2868, %v2860
          %v2870 = vsel %vm2863, %v2866, %v2869
          %v2871 = vsel %vm2861, nan, %v2870
          %v2872 = vand.u32 2147483647, %v1514
          %vm2873 = vcmp.le.f32.partialorder %v2872, 0.7853982
          %vm2874 = vcmp.lt.s32.totalorder %v1514, 0
          %v2875 = vand.u32 %v1514, 2139095040
          %v2876 = vshrl.u32 %v2875, 23
          %v2877 = vsub.s32 %v2876, 127
          %v2878 = vand.u32 2147483647, %v1514
          %v2879 = vand.u32 %v2878, 8388607
          %v2880 = vor.u32 %v2879, 8388608
          %v2881 = vsub.s32 0, %v2880
          %v2882 = vadd.s32 %v2877, 1
          %vm2883 = vcmp.gt.s32.totalorder %v2882, 0
          %v2884 = vsel %vm2883, %v2882, 0
          %v2885 = vshrl.u32 %v2884, 5
          %v2886 = vand.u32 %v2884, 31
          %v2887 = vsub.s32 32, %v2886
          %v2888 = vshrl.u32 683565275, %v2887
          %v2889 = vshll.u32 683565275, %v2886
          %v2890 = vshrl.u32 2475754826, %v2887
          %v2891 = vor.u32 %v2889, %v2890
          %v2892 = vshll.u32 2475754826, %v2886
          %v2893 = vshrl.u32 2131351028, %v2887
          %v2894 = vor.u32 %v2892, %v2893
          %v2895 = vshll.u32 2131351028, %v2886
          %v2896 = vshrl.u32 2102212464, %v2887
          %v2897 = vor.u32 %v2895, %v2896
          %v2898 = vshll.u32 2102212464, %v2886
          %v2899 = vshrl.u32 920167782, %v2887
          %v2900 = vor.u32 %v2898, %v2899
          %v2901 = vshll.u32 920167782, %v2886
          %v2902 = vshrl.u32 1326507024, %v2887
          %v2903 = vor.u32 %v2901, %v2902
          %vm2904 = vcmp.lt.s32.totalorder %v2885, 1
          %vm2905 = vcmp.lt.s32.totalorder %v2885, 2
          %vm2906 = vcmp.lt.s32.totalorder %v2885, 3
          %vm2907 = vcmp.lt.s32.totalorder %v2885, 4
          %v2908 = vsel %vm2904, %v2888, %v2891
          %v2909 = vsel %vm2907, %v2897, 2102212464
          %v2910 = vsel %vm2906, %v2894, %v2909
          %v2911 = vsel %vm2905, %v2908, %v2910
          %v2912 = vsel %vm2904, %v2891, %v2894
          %v2913 = vsel %vm2907, %v2900, 920167782
          %v2914 = vsel %vm2906, %v2897, %v2913
          %v2915 = vsel %vm2905, %v2912, %v2914
          %v2916 = vsel %vm2904, %v2894, %v2897
          %v2917 = vsel %vm2907, %v2903, 1326507024
          %v2918 = vsel %vm2906, %v2900, %v2917
          %v2919 = vsel %vm2905, %v2916, %v2918
          %v2920 = vshll.u32 %v2880, 8
          %v2921 = vmul.u32.u64.compose %v2920, %v2919
          %v2922 = vextract.low.u32 %v2921
          %v2923 = vextract.high.u32 %v2921
          %v2924 = vmul.u32.u64.compose %v2920, %v2915
          %v2925 = vextract.low.u32 %v2924
          %v2926 = vextract.high.u32 %v2924
          %v2927 = vmul.u32 %v2920, %v2911
          %v2928 = vadd.s32 %v2923, %v2925
          %vm2929 = vc.u32 %v2923, %v2925
          %v2930 = vadd.s32 %v2926, 1
          %v2931 = vsel %vm2929, %v2930, %v2926
          %v2932 = vadd.s32 %v2927, %v2931
          %v2933 = vadd.s32 %v2932, 536870912
          %v2934 = vshrl.u32 %v2933, 30
          %v2935 = vshll.u32 %v2934, 30
          %v2936 = vsub.s32 %v2932, %v2935
          %vm2937 = vcmp.lt.s32.totalorder %v2936, 0
          %v2938 = vsub.s32 0, %v2936
          %v2939 = vsel %vm2937, %v2938, %v2936
          %v2940 = vclz %v2939
          %v2941 = vsub.s32 %v2940, 2
          %vm2942 = vcmp.gt.s32.totalorder 0, %v2941
          %v2943 = vsel %vm2942, 0, %v2941
          %v2944 = vsub.s32 32, %v2943
          %v2945 = vshll.u32 %v2936, %v2943
          %v2946 = vshrl.u32 %v2928, %v2944
          %v2947 = vor.u32 %v2945, %v2946
          %v2948 = vsub.s32 4294967266, %v2943
          %v2949 = vadd.s32 %v2948, 127
          %v2950 = vshll.u32 %v2949, 23
          %v2951 = vor.u32 4788187, %v2950
          %v2952 = vand.u32 2147483647, %v2951
          %v2954 = vcvt.s32.f32 %v2947
          %v2955 = vmul.f32 %v2954, %v2952
          %v2956 = vxor.u32 %v2955, 2147483648
          %v2957 = vsel %vm2874, %v2956, %v2955
          %v2958 = vsub.s32 4, %v2934
          %v2959 = vsel %vm2874, %v2958, %v2934
          %v2960 = vsel %vm2873, %v1514, %v2957
          %v2961 = vsel %vm2873, 0, %v2959
          %v2962 = vcosq.f32.pop %v2960
          %v2963 = vsinq.f32.pop %v2960
          %vm2964 = vweird.f32 %v1514
          %v2965 = vand.u32 %v2961, 3
          %vm2966 = vcmp.lt.s32.totalorder %v2965, 2
          %vm2967 = vcmp.eq.s32.totalorder %v2965, 0
          %v2968 = vxor.u32 %v2963, 2147483648
          %v2969 = vsel %vm2967, %v2962, %v2968
          %vm2970 = vcmp.eq.s32.totalorder %v2965, 2
          %v2971 = vxor.u32 %v2962, 2147483648
          %v2972 = vsel %vm2970, %v2971, %v2963
          %v2973 = vsel %vm2966, %v2969, %v2972
          %v2974 = vsel %vm2964, nan, %v2973
          %v2975 = vand.u32 2147483647, %v1515
          %vm2976 = vcmp.le.f32.partialorder %v2975, 0.7853982
          %vm2977 = vcmp.lt.s32.totalorder %v1515, 0
          %v2978 = vand.u32 %v1515, 2139095040
          %v2979 = vshrl.u32 %v2978, 23
          %v2980 = vsub.s32 %v2979, 127
          %v2981 = vand.u32 2147483647, %v1515
          %v2982 = vand.u32 %v2981, 8388607
          %v2983 = vor.u32 %v2982, 8388608
          %v2984 = vsub.s32 0, %v2983
          %v2985 = vadd.s32 %v2980, 1
          %vm2986 = vcmp.gt.s32.totalorder %v2985, 0
          %v2987 = vsel %vm2986, %v2985, 0
          %v2988 = vshrl.u32 %v2987, 5
          %v2989 = vand.u32 %v2987, 31
          %v2990 = vsub.s32 32, %v2989
          %v2991 = vshrl.u32 683565275, %v2990
          %v2992 = vshll.u32 683565275, %v2989
          %v2993 = vshrl.u32 2475754826, %v2990
          %v2994 = vor.u32 %v2992, %v2993
          %v2995 = vshll.u32 2475754826, %v2989
          %v2996 = vshrl.u32 2131351028, %v2990
          %v2997 = vor.u32 %v2995, %v2996
          %v2998 = vshll.u32 2131351028, %v2989
          %v2999 = vshrl.u32 2102212464, %v2990
          %v3000 = vor.u32 %v2998, %v2999
          %v3001 = vshll.u32 2102212464, %v2989
          %v3002 = vshrl.u32 920167782, %v2990
          %v3003 = vor.u32 %v3001, %v3002
          %v3004 = vshll.u32 920167782, %v2989
          %v3005 = vshrl.u32 1326507024, %v2990
          %v3006 = vor.u32 %v3004, %v3005
          %vm3007 = vcmp.lt.s32.totalorder %v2988, 1
          %vm3008 = vcmp.lt.s32.totalorder %v2988, 2
          %vm3009 = vcmp.lt.s32.totalorder %v2988, 3
          %vm3010 = vcmp.lt.s32.totalorder %v2988, 4
          %v3011 = vsel %vm3007, %v2991, %v2994
          %v3012 = vsel %vm3010, %v3000, 2102212464
          %v3013 = vsel %vm3009, %v2997, %v3012
          %v3014 = vsel %vm3008, %v3011, %v3013
          %v3015 = vsel %vm3007, %v2994, %v2997
          %v3016 = vsel %vm3010, %v3003, 920167782
          %v3017 = vsel %vm3009, %v3000, %v3016
          %v3018 = vsel %vm3008, %v3015, %v3017
          %v3019 = vsel %vm3007, %v2997, %v3000
          %v3020 = vsel %vm3010, %v3006, 1326507024
          %v3021 = vsel %vm3009, %v3003, %v3020
          %v3022 = vsel %vm3008, %v3019, %v3021
          %v3023 = vshll.u32 %v2983, 8
          %v3024 = vmul.u32.u64.compose %v3023, %v3022
          %v3025 = vextract.low.u32 %v3024
          %v3026 = vextract.high.u32 %v3024
          %v3027 = vmul.u32.u64.compose %v3023, %v3018
          %v3028 = vextract.low.u32 %v3027
          %v3029 = vextract.high.u32 %v3027
          %v3030 = vmul.u32 %v3023, %v3014
          %v3031 = vadd.s32 %v3026, %v3028
          %vm3032 = vc.u32 %v3026, %v3028
          %v3033 = vadd.s32 %v3029, 1
          %v3034 = vsel %vm3032, %v3033, %v3029
          %v3035 = vadd.s32 %v3030, %v3034
          %v3036 = vadd.s32 %v3035, 536870912
          %v3037 = vshrl.u32 %v3036, 30
          %v3038 = vshll.u32 %v3037, 30
          %v3039 = vsub.s32 %v3035, %v3038
          %vm3040 = vcmp.lt.s32.totalorder %v3039, 0
          %v3041 = vsub.s32 0, %v3039
          %v3042 = vsel %vm3040, %v3041, %v3039
          %v3043 = vclz %v3042
          %v3044 = vsub.s32 %v3043, 2
          %vm3045 = vcmp.gt.s32.totalorder 0, %v3044
          %v3046 = vsel %vm3045, 0, %v3044
          %v3047 = vsub.s32 32, %v3046
          %v3048 = vshll.u32 %v3039, %v3046
          %v3049 = vshrl.u32 %v3031, %v3047
          %v3050 = vor.u32 %v3048, %v3049
          %v3051 = vsub.s32 4294967266, %v3046
          %v3052 = vadd.s32 %v3051, 127
          %v3053 = vshll.u32 %v3052, 23
          %v3054 = vor.u32 4788187, %v3053
          %v3055 = vand.u32 2147483647, %v3054
          %v3057 = vcvt.s32.f32 %v3050
          %v3058 = vmul.f32 %v3057, %v3055
          %v3059 = vxor.u32 %v3058, 2147483648
          %v3060 = vsel %vm2977, %v3059, %v3058
          %v3061 = vsub.s32 4, %v3037
          %v3062 = vsel %vm2977, %v3061, %v3037
          %v3063 = vsel %vm2976, %v1515, %v3060
          %v3064 = vsel %vm2976, 0, %v3062
          %v3065 = vcosq.f32.pop %v3063
          %v3066 = vsinq.f32.pop %v3063
          %vm3067 = vweird.f32 %v1515
          %v3068 = vand.u32 %v3064, 3
          %vm3069 = vcmp.lt.s32.totalorder %v3068, 2
          %vm3070 = vcmp.eq.s32.totalorder %v3068, 0
          %v3071 = vxor.u32 %v3066, 2147483648
          %v3072 = vsel %vm3070, %v3065, %v3071
          %vm3073 = vcmp.eq.s32.totalorder %v3068, 2
          %v3074 = vxor.u32 %v3065, 2147483648
          %v3075 = vsel %vm3073, %v3074, %v3066
          %v3076 = vsel %vm3069, %v3072, %v3075
          %v3077 = vsel %vm3067, nan, %v3076
          %v3078 = vand.u32 2147483647, %v1516
          %vm3079 = vcmp.le.f32.partialorder %v3078, 0.7853982
          %vm3080 = vcmp.lt.s32.totalorder %v1516, 0
          %v3081 = vand.u32 %v1516, 2139095040
          %v3082 = vshrl.u32 %v3081, 23
          %v3083 = vsub.s32 %v3082, 127
          %v3084 = vand.u32 2147483647, %v1516
          %v3085 = vand.u32 %v3084, 8388607
          %v3086 = vor.u32 %v3085, 8388608
          %v3087 = vsub.s32 0, %v3086
          %v3088 = vadd.s32 %v3083, 1
          %vm3089 = vcmp.gt.s32.totalorder %v3088, 0
          %v3090 = vsel %vm3089, %v3088, 0
          %v3091 = vshrl.u32 %v3090, 5
          %v3092 = vand.u32 %v3090, 31
          %v3093 = vsub.s32 32, %v3092
          %v3094 = vshrl.u32 683565275, %v3093
          %v3095 = vshll.u32 683565275, %v3092
          %v3096 = vshrl.u32 2475754826, %v3093
          %v3097 = vor.u32 %v3095, %v3096
          %v3098 = vshll.u32 2475754826, %v3092
          %v3099 = vshrl.u32 2131351028, %v3093
          %v3100 = vor.u32 %v3098, %v3099
          %v3101 = vshll.u32 2131351028, %v3092
          %v3102 = vshrl.u32 2102212464, %v3093
          %v3103 = vor.u32 %v3101, %v3102
          %v3104 = vshll.u32 2102212464, %v3092
          %v3105 = vshrl.u32 920167782, %v3093
          %v3106 = vor.u32 %v3104, %v3105
          %v3107 = vshll.u32 920167782, %v3092
          %v3108 = vshrl.u32 1326507024, %v3093
          %v3109 = vor.u32 %v3107, %v3108
          %vm3110 = vcmp.lt.s32.totalorder %v3091, 1
          %vm3111 = vcmp.lt.s32.totalorder %v3091, 2
          %vm3112 = vcmp.lt.s32.totalorder %v3091, 3
          %vm3113 = vcmp.lt.s32.totalorder %v3091, 4
          %v3114 = vsel %vm3110, %v3094, %v3097
          %v3115 = vsel %vm3113, %v3103, 2102212464
          %v3116 = vsel %vm3112, %v3100, %v3115
          %v3117 = vsel %vm3111, %v3114, %v3116
          %v3118 = vsel %vm3110, %v3097, %v3100
          %v3119 = vsel %vm3113, %v3106, 920167782
          %v3120 = vsel %vm3112, %v3103, %v3119
          %v3121 = vsel %vm3111, %v3118, %v3120
          %v3122 = vsel %vm3110, %v3100, %v3103
          %v3123 = vsel %vm3113, %v3109, 1326507024
          %v3124 = vsel %vm3112, %v3106, %v3123
          %v3125 = vsel %vm3111, %v3122, %v3124
          %v3126 = vshll.u32 %v3086, 8
          %v3127 = vmul.u32.u64.compose %v3126, %v3125
          %v3128 = vextract.low.u32 %v3127
          %v3129 = vextract.high.u32 %v3127
          %v3130 = vmul.u32.u64.compose %v3126, %v3121
          %v3131 = vextract.low.u32 %v3130
          %v3132 = vextract.high.u32 %v3130
          %v3133 = vmul.u32 %v3126, %v3117
          %v3134 = vadd.s32 %v3129, %v3131
          %vm3135 = vc.u32 %v3129, %v3131
          %v3136 = vadd.s32 %v3132, 1
          %v3137 = vsel %vm3135, %v3136, %v3132
          %v3138 = vadd.s32 %v3133, %v3137
          %v3139 = vadd.s32 %v3138, 536870912
          %v3140 = vshrl.u32 %v3139, 30
          %v3141 = vshll.u32 %v3140, 30
          %v3142 = vsub.s32 %v3138, %v3141
          %vm3143 = vcmp.lt.s32.totalorder %v3142, 0
          %v3144 = vsub.s32 0, %v3142
          %v3145 = vsel %vm3143, %v3144, %v3142
          %v3146 = vclz %v3145
          %v3147 = vsub.s32 %v3146, 2
          %vm3148 = vcmp.gt.s32.totalorder 0, %v3147
          %v3149 = vsel %vm3148, 0, %v3147
          %v3150 = vsub.s32 32, %v3149
          %v3151 = vshll.u32 %v3142, %v3149
          %v3152 = vshrl.u32 %v3134, %v3150
          %v3153 = vor.u32 %v3151, %v3152
          %v3154 = vsub.s32 4294967266, %v3149
          %v3155 = vadd.s32 %v3154, 127
          %v3156 = vshll.u32 %v3155, 23
          %v3157 = vor.u32 4788187, %v3156
          %v3158 = vand.u32 2147483647, %v3157
          %v3160 = vcvt.s32.f32 %v3153
          %v3161 = vmul.f32 %v3160, %v3158
          %v3162 = vxor.u32 %v3161, 2147483648
          %v3163 = vsel %vm3080, %v3162, %v3161
          %v3164 = vsub.s32 4, %v3140
          %v3165 = vsel %vm3080, %v3164, %v3140
          %v3166 = vsel %vm3079, %v1516, %v3163
          %v3167 = vsel %vm3079, 0, %v3165
          %v3168 = vcosq.f32.pop %v3166
          %v3169 = vsinq.f32.pop %v3166
          %vm3170 = vweird.f32 %v1516
          %v3171 = vand.u32 %v3167, 3
          %vm3172 = vcmp.lt.s32.totalorder %v3171, 2
          %vm3173 = vcmp.eq.s32.totalorder %v3171, 0
          %v3174 = vxor.u32 %v3169, 2147483648
          %v3175 = vsel %vm3173, %v3168, %v3174
          %vm3176 = vcmp.eq.s32.totalorder %v3171, 2
          %v3177 = vxor.u32 %v3168, 2147483648
          %v3178 = vsel %vm3176, %v3177, %v3169
          %v3179 = vsel %vm3172, %v3175, %v3178
          %v3180 = vsel %vm3170, nan, %v3179
          %v3181 = vand.u32 2147483647, %v1517
          %vm3182 = vcmp.le.f32.partialorder %v3181, 0.7853982
          %vm3183 = vcmp.lt.s32.totalorder %v1517, 0
          %v3184 = vand.u32 %v1517, 2139095040
          %v3185 = vshrl.u32 %v3184, 23
          %v3186 = vsub.s32 %v3185, 127
          %v3187 = vand.u32 2147483647, %v1517
          %v3188 = vand.u32 %v3187, 8388607
          %v3189 = vor.u32 %v3188, 8388608
          %v3190 = vsub.s32 0, %v3189
          %v3191 = vadd.s32 %v3186, 1
          %vm3192 = vcmp.gt.s32.totalorder %v3191, 0
          %v3193 = vsel %vm3192, %v3191, 0
          %v3194 = vshrl.u32 %v3193, 5
          %v3195 = vand.u32 %v3193, 31
          %v3196 = vsub.s32 32, %v3195
          %v3197 = vshrl.u32 683565275, %v3196
          %v3198 = vshll.u32 683565275, %v3195
          %v3199 = vshrl.u32 2475754826, %v3196
          %v3200 = vor.u32 %v3198, %v3199
          %v3201 = vshll.u32 2475754826, %v3195
          %v3202 = vshrl.u32 2131351028, %v3196
          %v3203 = vor.u32 %v3201, %v3202
          %v3204 = vshll.u32 2131351028, %v3195
          %v3205 = vshrl.u32 2102212464, %v3196
          %v3206 = vor.u32 %v3204, %v3205
          %v3207 = vshll.u32 2102212464, %v3195
          %v3208 = vshrl.u32 920167782, %v3196
          %v3209 = vor.u32 %v3207, %v3208
          %v3210 = vshll.u32 920167782, %v3195
          %v3211 = vshrl.u32 1326507024, %v3196
          %v3212 = vor.u32 %v3210, %v3211
          %vm3213 = vcmp.lt.s32.totalorder %v3194, 1
          %vm3214 = vcmp.lt.s32.totalorder %v3194, 2
          %vm3215 = vcmp.lt.s32.totalorder %v3194, 3
          %vm3216 = vcmp.lt.s32.totalorder %v3194, 4
          %v3217 = vsel %vm3213, %v3197, %v3200
          %v3218 = vsel %vm3216, %v3206, 2102212464
          %v3219 = vsel %vm3215, %v3203, %v3218
          %v3220 = vsel %vm3214, %v3217, %v3219
          %v3221 = vsel %vm3213, %v3200, %v3203
          %v3222 = vsel %vm3216, %v3209, 920167782
          %v3223 = vsel %vm3215, %v3206, %v3222
          %v3224 = vsel %vm3214, %v3221, %v3223
          %v3225 = vsel %vm3213, %v3203, %v3206
          %v3226 = vsel %vm3216, %v3212, 1326507024
          %v3227 = vsel %vm3215, %v3209, %v3226
          %v3228 = vsel %vm3214, %v3225, %v3227
          %v3229 = vshll.u32 %v3189, 8
          %v3230 = vmul.u32.u64.compose %v3229, %v3228
          %v3231 = vextract.low.u32 %v3230
          %v3232 = vextract.high.u32 %v3230
          %v3233 = vmul.u32.u64.compose %v3229, %v3224
          %v3234 = vextract.low.u32 %v3233
          %v3235 = vextract.high.u32 %v3233
          %v3236 = vmul.u32 %v3229, %v3220
          %v3237 = vadd.s32 %v3232, %v3234
          %vm3238 = vc.u32 %v3232, %v3234
          %v3239 = vadd.s32 %v3235, 1
          %v3240 = vsel %vm3238, %v3239, %v3235
          %v3241 = vadd.s32 %v3236, %v3240
          %v3242 = vadd.s32 %v3241, 536870912
          %v3243 = vshrl.u32 %v3242, 30
          %v3244 = vshll.u32 %v3243, 30
          %v3245 = vsub.s32 %v3241, %v3244
          %vm3246 = vcmp.lt.s32.totalorder %v3245, 0
          %v3247 = vsub.s32 0, %v3245
          %v3248 = vsel %vm3246, %v3247, %v3245
          %v3249 = vclz %v3248
          %v3250 = vsub.s32 %v3249, 2
          %vm3251 = vcmp.gt.s32.totalorder 0, %v3250
          %v3252 = vsel %vm3251, 0, %v3250
          %v3253 = vsub.s32 32, %v3252
          %v3254 = vshll.u32 %v3245, %v3252
          %v3255 = vshrl.u32 %v3237, %v3253
          %v3256 = vor.u32 %v3254, %v3255
          %v3257 = vsub.s32 4294967266, %v3252
          %v3258 = vadd.s32 %v3257, 127
          %v3259 = vshll.u32 %v3258, 23
          %v3260 = vor.u32 4788187, %v3259
          %v3261 = vand.u32 2147483647, %v3260
          %v3263 = vcvt.s32.f32 %v3256
          %v3264 = vmul.f32 %v3263, %v3261
          %v3265 = vxor.u32 %v3264, 2147483648
          %v3266 = vsel %vm3183, %v3265, %v3264
          %v3267 = vsub.s32 4, %v3243
          %v3268 = vsel %vm3183, %v3267, %v3243
          %v3269 = vsel %vm3182, %v1517, %v3266
          %v3270 = vsel %vm3182, 0, %v3268
          %v3271 = vcosq.f32.pop %v3269
          %v3272 = vsinq.f32.pop %v3269
          %vm3273 = vweird.f32 %v1517
          %v3274 = vand.u32 %v3270, 3
          %vm3275 = vcmp.lt.s32.totalorder %v3274, 2
          %vm3276 = vcmp.eq.s32.totalorder %v3274, 0
          %v3277 = vxor.u32 %v3272, 2147483648
          %v3278 = vsel %vm3276, %v3271, %v3277
          %vm3279 = vcmp.eq.s32.totalorder %v3274, 2
          %v3280 = vxor.u32 %v3271, 2147483648
          %v3281 = vsel %vm3279, %v3280, %v3272
          %v3282 = vsel %vm3275, %v3278, %v3281
          %v3283 = vsel %vm3273, nan, %v3282
          %v3284 = vand.u32 2147483647, %v1518
          %vm3285 = vcmp.le.f32.partialorder %v3284, 0.7853982
          %vm3286 = vcmp.lt.s32.totalorder %v1518, 0
          %v3287 = vand.u32 %v1518, 2139095040
          %v3288 = vshrl.u32 %v3287, 23
          %v3289 = vsub.s32 %v3288, 127
          %v3290 = vand.u32 2147483647, %v1518
          %v3291 = vand.u32 %v3290, 8388607
          %v3292 = vor.u32 %v3291, 8388608
          %v3293 = vsub.s32 0, %v3292
          %v3294 = vadd.s32 %v3289, 1
          %vm3295 = vcmp.gt.s32.totalorder %v3294, 0
          %v3296 = vsel %vm3295, %v3294, 0
          %v3297 = vshrl.u32 %v3296, 5
          %v3298 = vand.u32 %v3296, 31
          %v3299 = vsub.s32 32, %v3298
          %v3300 = vshrl.u32 683565275, %v3299
          %v3301 = vshll.u32 683565275, %v3298
          %v3302 = vshrl.u32 2475754826, %v3299
          %v3303 = vor.u32 %v3301, %v3302
          %v3304 = vshll.u32 2475754826, %v3298
          %v3305 = vshrl.u32 2131351028, %v3299
          %v3306 = vor.u32 %v3304, %v3305
          %v3307 = vshll.u32 2131351028, %v3298
          %v3308 = vshrl.u32 2102212464, %v3299
          %v3309 = vor.u32 %v3307, %v3308
          %v3310 = vshll.u32 2102212464, %v3298
          %v3311 = vshrl.u32 920167782, %v3299
          %v3312 = vor.u32 %v3310, %v3311
          %v3313 = vshll.u32 920167782, %v3298
          %v3314 = vshrl.u32 1326507024, %v3299
          %v3315 = vor.u32 %v3313, %v3314
          %vm3316 = vcmp.lt.s32.totalorder %v3297, 1
          %vm3317 = vcmp.lt.s32.totalorder %v3297, 2
          %vm3318 = vcmp.lt.s32.totalorder %v3297, 3
          %vm3319 = vcmp.lt.s32.totalorder %v3297, 4
          %v3320 = vsel %vm3316, %v3300, %v3303
          %v3321 = vsel %vm3319, %v3309, 2102212464
          %v3322 = vsel %vm3318, %v3306, %v3321
          %v3323 = vsel %vm3317, %v3320, %v3322
          %v3324 = vsel %vm3316, %v3303, %v3306
          %v3325 = vsel %vm3319, %v3312, 920167782
          %v3326 = vsel %vm3318, %v3309, %v3325
          %v3327 = vsel %vm3317, %v3324, %v3326
          %v3328 = vsel %vm3316, %v3306, %v3309
          %v3329 = vsel %vm3319, %v3315, 1326507024
          %v3330 = vsel %vm3318, %v3312, %v3329
          %v3331 = vsel %vm3317, %v3328, %v3330
          %v3332 = vshll.u32 %v3292, 8
          %v3333 = vmul.u32.u64.compose %v3332, %v3331
          %v3334 = vextract.low.u32 %v3333
          %v3335 = vextract.high.u32 %v3333
          %v3336 = vmul.u32.u64.compose %v3332, %v3327
          %v3337 = vextract.low.u32 %v3336
          %v3338 = vextract.high.u32 %v3336
          %v3339 = vmul.u32 %v3332, %v3323
          %v3340 = vadd.s32 %v3335, %v3337
          %vm3341 = vc.u32 %v3335, %v3337
          %v3342 = vadd.s32 %v3338, 1
          %v3343 = vsel %vm3341, %v3342, %v3338
          %v3344 = vadd.s32 %v3339, %v3343
          %v3345 = vadd.s32 %v3344, 536870912
          %v3346 = vshrl.u32 %v3345, 30
          %v3347 = vshll.u32 %v3346, 30
          %v3348 = vsub.s32 %v3344, %v3347
          %vm3349 = vcmp.lt.s32.totalorder %v3348, 0
          %v3350 = vsub.s32 0, %v3348
          %v3351 = vsel %vm3349, %v3350, %v3348
          %v3352 = vclz %v3351
          %v3353 = vsub.s32 %v3352, 2
          %vm3354 = vcmp.gt.s32.totalorder 0, %v3353
          %v3355 = vsel %vm3354, 0, %v3353
          %v3356 = vsub.s32 32, %v3355
          %v3357 = vshll.u32 %v3348, %v3355
          %v3358 = vshrl.u32 %v3340, %v3356
          %v3359 = vor.u32 %v3357, %v3358
          %v3360 = vsub.s32 4294967266, %v3355
          %v3361 = vadd.s32 %v3360, 127
          %v3362 = vshll.u32 %v3361, 23
          %v3363 = vor.u32 4788187, %v3362
          %v3364 = vand.u32 2147483647, %v3363
          %v3366 = vcvt.s32.f32 %v3359
          %v3367 = vmul.f32 %v3366, %v3364
          %v3368 = vxor.u32 %v3367, 2147483648
          %v3369 = vsel %vm3286, %v3368, %v3367
          %v3370 = vsub.s32 4, %v3346
          %v3371 = vsel %vm3286, %v3370, %v3346
          %v3372 = vsel %vm3285, %v1518, %v3369
          %v3373 = vsel %vm3285, 0, %v3371
          %v3374 = vcosq.f32.pop %v3372
          %v3375 = vsinq.f32.pop %v3372
          %vm3376 = vweird.f32 %v1518
          %v3377 = vand.u32 %v3373, 3
          %vm3378 = vcmp.lt.s32.totalorder %v3377, 2
          %vm3379 = vcmp.eq.s32.totalorder %v3377, 0
          %v3380 = vxor.u32 %v3375, 2147483648
          %v3381 = vsel %vm3379, %v3374, %v3380
          %vm3382 = vcmp.eq.s32.totalorder %v3377, 2
          %v3383 = vxor.u32 %v3374, 2147483648
          %v3384 = vsel %vm3382, %v3383, %v3375
          %v3385 = vsel %vm3378, %v3381, %v3384
          %v3386 = vsel %vm3376, nan, %v3385
          %v3387 = vand.u32 2147483647, %v1519
          %vm3388 = vcmp.le.f32.partialorder %v3387, 0.7853982
          %vm3389 = vcmp.lt.s32.totalorder %v1519, 0
          %v3390 = vand.u32 %v1519, 2139095040
          %v3391 = vshrl.u32 %v3390, 23
          %v3392 = vsub.s32 %v3391, 127
          %v3393 = vand.u32 2147483647, %v1519
          %v3394 = vand.u32 %v3393, 8388607
          %v3395 = vor.u32 %v3394, 8388608
          %v3396 = vsub.s32 0, %v3395
          %v3397 = vadd.s32 %v3392, 1
          %vm3398 = vcmp.gt.s32.totalorder %v3397, 0
          %v3399 = vsel %vm3398, %v3397, 0
          %v3400 = vshrl.u32 %v3399, 5
          %v3401 = vand.u32 %v3399, 31
          %v3402 = vsub.s32 32, %v3401
          %v3403 = vshrl.u32 683565275, %v3402
          %v3404 = vshll.u32 683565275, %v3401
          %v3405 = vshrl.u32 2475754826, %v3402
          %v3406 = vor.u32 %v3404, %v3405
          %v3407 = vshll.u32 2475754826, %v3401
          %v3408 = vshrl.u32 2131351028, %v3402
          %v3409 = vor.u32 %v3407, %v3408
          %v3410 = vshll.u32 2131351028, %v3401
          %v3411 = vshrl.u32 2102212464, %v3402
          %v3412 = vor.u32 %v3410, %v3411
          %v3413 = vshll.u32 2102212464, %v3401
          %v3414 = vshrl.u32 920167782, %v3402
          %v3415 = vor.u32 %v3413, %v3414
          %v3416 = vshll.u32 920167782, %v3401
          %v3417 = vshrl.u32 1326507024, %v3402
          %v3418 = vor.u32 %v3416, %v3417
          %vm3419 = vcmp.lt.s32.totalorder %v3400, 1
          %vm3420 = vcmp.lt.s32.totalorder %v3400, 2
          %vm3421 = vcmp.lt.s32.totalorder %v3400, 3
          %vm3422 = vcmp.lt.s32.totalorder %v3400, 4
          %v3423 = vsel %vm3419, %v3403, %v3406
          %v3424 = vsel %vm3422, %v3412, 2102212464
          %v3425 = vsel %vm3421, %v3409, %v3424
          %v3426 = vsel %vm3420, %v3423, %v3425
          %v3427 = vsel %vm3419, %v3406, %v3409
          %v3428 = vsel %vm3422, %v3415, 920167782
          %v3429 = vsel %vm3421, %v3412, %v3428
          %v3430 = vsel %vm3420, %v3427, %v3429
          %v3431 = vsel %vm3419, %v3409, %v3412
          %v3432 = vsel %vm3422, %v3418, 1326507024
          %v3433 = vsel %vm3421, %v3415, %v3432
          %v3434 = vsel %vm3420, %v3431, %v3433
          %v3435 = vshll.u32 %v3395, 8
          %v3436 = vmul.u32.u64.compose %v3435, %v3434
          %v3437 = vextract.low.u32 %v3436
          %v3438 = vextract.high.u32 %v3436
          %v3439 = vmul.u32.u64.compose %v3435, %v3430
          %v3440 = vextract.low.u32 %v3439
          %v3441 = vextract.high.u32 %v3439
          %v3442 = vmul.u32 %v3435, %v3426
          %v3443 = vadd.s32 %v3438, %v3440
          %vm3444 = vc.u32 %v3438, %v3440
          %v3445 = vadd.s32 %v3441, 1
          %v3446 = vsel %vm3444, %v3445, %v3441
          %v3447 = vadd.s32 %v3442, %v3446
          %v3448 = vadd.s32 %v3447, 536870912
          %v3449 = vshrl.u32 %v3448, 30
          %v3450 = vshll.u32 %v3449, 30
          %v3451 = vsub.s32 %v3447, %v3450
          %vm3452 = vcmp.lt.s32.totalorder %v3451, 0
          %v3453 = vsub.s32 0, %v3451
          %v3454 = vsel %vm3452, %v3453, %v3451
          %v3455 = vclz %v3454
          %v3456 = vsub.s32 %v3455, 2
          %vm3457 = vcmp.gt.s32.totalorder 0, %v3456
          %v3458 = vsel %vm3457, 0, %v3456
          %v3459 = vsub.s32 32, %v3458
          %v3460 = vshll.u32 %v3451, %v3458
          %v3461 = vshrl.u32 %v3443, %v3459
          %v3462 = vor.u32 %v3460, %v3461
          %v3463 = vsub.s32 4294967266, %v3458
          %v3464 = vadd.s32 %v3463, 127
          %v3465 = vshll.u32 %v3464, 23
          %v3466 = vor.u32 4788187, %v3465
          %v3467 = vand.u32 2147483647, %v3466
          %v3469 = vcvt.s32.f32 %v3462
          %v3470 = vmul.f32 %v3469, %v3467
          %v3471 = vxor.u32 %v3470, 2147483648
          %v3472 = vsel %vm3389, %v3471, %v3470
          %v3473 = vsub.s32 4, %v3449
          %v3474 = vsel %vm3389, %v3473, %v3449
          %v3475 = vsel %vm3388, %v1519, %v3472
          %v3476 = vsel %vm3388, 0, %v3474
          %v3477 = vcosq.f32.pop %v3475
          %v3478 = vsinq.f32.pop %v3475
          %vm3479 = vweird.f32 %v1519
          %v3480 = vand.u32 %v3476, 3
          %vm3481 = vcmp.lt.s32.totalorder %v3480, 2
          %vm3482 = vcmp.eq.s32.totalorder %v3480, 0
          %v3483 = vxor.u32 %v3478, 2147483648
          %v3484 = vsel %vm3482, %v3477, %v3483
          %vm3485 = vcmp.eq.s32.totalorder %v3480, 2
          %v3486 = vxor.u32 %v3477, 2147483648
          %v3487 = vsel %vm3485, %v3486, %v3478
          %v3488 = vsel %vm3481, %v3484, %v3487
          %v3489 = vsel %vm3479, nan, %v3488
          %v3490 = vand.u32 2147483647, %v1520
          %vm3491 = vcmp.le.f32.partialorder %v3490, 0.7853982
          %vm3492 = vcmp.lt.s32.totalorder %v1520, 0
          %v3493 = vand.u32 %v1520, 2139095040
          %v3494 = vshrl.u32 %v3493, 23
          %v3495 = vsub.s32 %v3494, 127
          %v3496 = vand.u32 2147483647, %v1520
          %v3497 = vand.u32 %v3496, 8388607
          %v3498 = vor.u32 %v3497, 8388608
          %v3499 = vsub.s32 0, %v3498
          %v3500 = vadd.s32 %v3495, 1
          %vm3501 = vcmp.gt.s32.totalorder %v3500, 0
          %v3502 = vsel %vm3501, %v3500, 0
          %v3503 = vshrl.u32 %v3502, 5
          %v3504 = vand.u32 %v3502, 31
          %v3505 = vsub.s32 32, %v3504
          %v3506 = vshrl.u32 683565275, %v3505
          %v3507 = vshll.u32 683565275, %v3504
          %v3508 = vshrl.u32 2475754826, %v3505
          %v3509 = vor.u32 %v3507, %v3508
          %v3510 = vshll.u32 2475754826, %v3504
          %v3511 = vshrl.u32 2131351028, %v3505
          %v3512 = vor.u32 %v3510, %v3511
          %v3513 = vshll.u32 2131351028, %v3504
          %v3514 = vshrl.u32 2102212464, %v3505
          %v3515 = vor.u32 %v3513, %v3514
          %v3516 = vshll.u32 2102212464, %v3504
          %v3517 = vshrl.u32 920167782, %v3505
          %v3518 = vor.u32 %v3516, %v3517
          %v3519 = vshll.u32 920167782, %v3504
          %v3520 = vshrl.u32 1326507024, %v3505
          %v3521 = vor.u32 %v3519, %v3520
          %vm3522 = vcmp.lt.s32.totalorder %v3503, 1
          %vm3523 = vcmp.lt.s32.totalorder %v3503, 2
          %vm3524 = vcmp.lt.s32.totalorder %v3503, 3
          %vm3525 = vcmp.lt.s32.totalorder %v3503, 4
          %v3526 = vsel %vm3522, %v3506, %v3509
          %v3527 = vsel %vm3525, %v3515, 2102212464
          %v3528 = vsel %vm3524, %v3512, %v3527
          %v3529 = vsel %vm3523, %v3526, %v3528
          %v3530 = vsel %vm3522, %v3509, %v3512
          %v3531 = vsel %vm3525, %v3518, 920167782
          %v3532 = vsel %vm3524, %v3515, %v3531
          %v3533 = vsel %vm3523, %v3530, %v3532
          %v3534 = vsel %vm3522, %v3512, %v3515
          %v3535 = vsel %vm3525, %v3521, 1326507024
          %v3536 = vsel %vm3524, %v3518, %v3535
          %v3537 = vsel %vm3523, %v3534, %v3536
          %v3538 = vshll.u32 %v3498, 8
          %v3539 = vmul.u32.u64.compose %v3538, %v3537
          %v3540 = vextract.low.u32 %v3539
          %v3541 = vextract.high.u32 %v3539
          %v3542 = vmul.u32.u64.compose %v3538, %v3533
          %v3543 = vextract.low.u32 %v3542
          %v3544 = vextract.high.u32 %v3542
          %v3545 = vmul.u32 %v3538, %v3529
          %v3546 = vadd.s32 %v3541, %v3543
          %vm3547 = vc.u32 %v3541, %v3543
          %v3548 = vadd.s32 %v3544, 1
          %v3549 = vsel %vm3547, %v3548, %v3544
          %v3550 = vadd.s32 %v3545, %v3549
          %v3551 = vadd.s32 %v3550, 536870912
          %v3552 = vshrl.u32 %v3551, 30
          %v3553 = vshll.u32 %v3552, 30
          %v3554 = vsub.s32 %v3550, %v3553
          %vm3555 = vcmp.lt.s32.totalorder %v3554, 0
          %v3556 = vsub.s32 0, %v3554
          %v3557 = vsel %vm3555, %v3556, %v3554
          %v3558 = vclz %v3557
          %v3559 = vsub.s32 %v3558, 2
          %vm3560 = vcmp.gt.s32.totalorder 0, %v3559
          %v3561 = vsel %vm3560, 0, %v3559
          %v3562 = vsub.s32 32, %v3561
          %v3563 = vshll.u32 %v3554, %v3561
          %v3564 = vshrl.u32 %v3546, %v3562
          %v3565 = vor.u32 %v3563, %v3564
          %v3566 = vsub.s32 4294967266, %v3561
          %v3567 = vadd.s32 %v3566, 127
          %v3568 = vshll.u32 %v3567, 23
          %v3569 = vor.u32 4788187, %v3568
          %v3570 = vand.u32 2147483647, %v3569
          %v3572 = vcvt.s32.f32 %v3565
          %v3573 = vmul.f32 %v3572, %v3570
          %v3574 = vxor.u32 %v3573, 2147483648
          %v3575 = vsel %vm3492, %v3574, %v3573
          %v3576 = vsub.s32 4, %v3552
          %v3577 = vsel %vm3492, %v3576, %v3552
          %v3578 = vsel %vm3491, %v1520, %v3575
          %v3579 = vsel %vm3491, 0, %v3577
          %v3580 = vcosq.f32.pop %v3578
          %v3581 = vsinq.f32.pop %v3578
          %vm3582 = vweird.f32 %v1520
          %v3583 = vand.u32 %v3579, 3
          %vm3584 = vcmp.lt.s32.totalorder %v3583, 2
          %vm3585 = vcmp.eq.s32.totalorder %v3583, 0
          %v3586 = vxor.u32 %v3581, 2147483648
          %v3587 = vsel %vm3585, %v3580, %v3586
          %vm3588 = vcmp.eq.s32.totalorder %v3583, 2
          %v3589 = vxor.u32 %v3580, 2147483648
          %v3590 = vsel %vm3588, %v3589, %v3581
          %v3591 = vsel %vm3584, %v3587, %v3590
          %v3592 = vsel %vm3582, nan, %v3591
          %v3593 = vand.u32 2147483647, %v1521
          %vm3594 = vcmp.le.f32.partialorder %v3593, 0.7853982
          %vm3595 = vcmp.lt.s32.totalorder %v1521, 0
          %v3596 = vand.u32 %v1521, 2139095040
          %v3597 = vshrl.u32 %v3596, 23
          %v3598 = vsub.s32 %v3597, 127
          %v3599 = vand.u32 2147483647, %v1521
          %v3600 = vand.u32 %v3599, 8388607
          %v3601 = vor.u32 %v3600, 8388608
          %v3602 = vsub.s32 0, %v3601
          %v3603 = vadd.s32 %v3598, 1
          %vm3604 = vcmp.gt.s32.totalorder %v3603, 0
          %v3605 = vsel %vm3604, %v3603, 0
          %v3606 = vshrl.u32 %v3605, 5
          %v3607 = vand.u32 %v3605, 31
          %v3608 = vsub.s32 32, %v3607
          %v3609 = vshrl.u32 683565275, %v3608
          %v3610 = vshll.u32 683565275, %v3607
          %v3611 = vshrl.u32 2475754826, %v3608
          %v3612 = vor.u32 %v3610, %v3611
          %v3613 = vshll.u32 2475754826, %v3607
          %v3614 = vshrl.u32 2131351028, %v3608
          %v3615 = vor.u32 %v3613, %v3614
          %v3616 = vshll.u32 2131351028, %v3607
          %v3617 = vshrl.u32 2102212464, %v3608
          %v3618 = vor.u32 %v3616, %v3617
          %v3619 = vshll.u32 2102212464, %v3607
          %v3620 = vshrl.u32 920167782, %v3608
          %v3621 = vor.u32 %v3619, %v3620
          %v3622 = vshll.u32 920167782, %v3607
          %v3623 = vshrl.u32 1326507024, %v3608
          %v3624 = vor.u32 %v3622, %v3623
          %vm3625 = vcmp.lt.s32.totalorder %v3606, 1
          %vm3626 = vcmp.lt.s32.totalorder %v3606, 2
          %vm3627 = vcmp.lt.s32.totalorder %v3606, 3
          %vm3628 = vcmp.lt.s32.totalorder %v3606, 4
          %v3629 = vsel %vm3625, %v3609, %v3612
          %v3630 = vsel %vm3628, %v3618, 2102212464
          %v3631 = vsel %vm3627, %v3615, %v3630
          %v3632 = vsel %vm3626, %v3629, %v3631
          %v3633 = vsel %vm3625, %v3612, %v3615
          %v3634 = vsel %vm3628, %v3621, 920167782
          %v3635 = vsel %vm3627, %v3618, %v3634
          %v3636 = vsel %vm3626, %v3633, %v3635
          %v3637 = vsel %vm3625, %v3615, %v3618
          %v3638 = vsel %vm3628, %v3624, 1326507024
          %v3639 = vsel %vm3627, %v3621, %v3638
          %v3640 = vsel %vm3626, %v3637, %v3639
          %v3641 = vshll.u32 %v3601, 8
          %v3642 = vmul.u32.u64.compose %v3641, %v3640
          %v3643 = vextract.low.u32 %v3642
          %v3644 = vextract.high.u32 %v3642
          %v3645 = vmul.u32.u64.compose %v3641, %v3636
          %v3646 = vextract.low.u32 %v3645
          %v3647 = vextract.high.u32 %v3645
          %v3648 = vmul.u32 %v3641, %v3632
          %v3649 = vadd.s32 %v3644, %v3646
          %vm3650 = vc.u32 %v3644, %v3646
          %v3651 = vadd.s32 %v3647, 1
          %v3652 = vsel %vm3650, %v3651, %v3647
          %v3653 = vadd.s32 %v3648, %v3652
          %v3654 = vadd.s32 %v3653, 536870912
          %v3655 = vshrl.u32 %v3654, 30
          %v3656 = vshll.u32 %v3655, 30
          %v3657 = vsub.s32 %v3653, %v3656
          %vm3658 = vcmp.lt.s32.totalorder %v3657, 0
          %v3659 = vsub.s32 0, %v3657
          %v3660 = vsel %vm3658, %v3659, %v3657
          %v3661 = vclz %v3660
          %v3662 = vsub.s32 %v3661, 2
          %vm3663 = vcmp.gt.s32.totalorder 0, %v3662
          %v3664 = vsel %vm3663, 0, %v3662
          %v3665 = vsub.s32 32, %v3664
          %v3666 = vshll.u32 %v3657, %v3664
          %v3667 = vshrl.u32 %v3649, %v3665
          %v3668 = vor.u32 %v3666, %v3667
          %v3669 = vsub.s32 4294967266, %v3664
          %v3670 = vadd.s32 %v3669, 127
          %v3671 = vshll.u32 %v3670, 23
          %v3672 = vor.u32 4788187, %v3671
          %v3673 = vand.u32 2147483647, %v3672
          %v3675 = vcvt.s32.f32 %v3668
          %v3676 = vmul.f32 %v3675, %v3673
          %v3677 = vxor.u32 %v3676, 2147483648
          %v3678 = vsel %vm3595, %v3677, %v3676
          %v3679 = vsub.s32 4, %v3655
          %v3680 = vsel %vm3595, %v3679, %v3655
          %v3681 = vsel %vm3594, %v1521, %v3678
          %v3682 = vsel %vm3594, 0, %v3680
          %v3683 = vcosq.f32.pop %v3681
          %v3684 = vsinq.f32.pop %v3681
          %vm3685 = vweird.f32 %v1521
          %v3686 = vand.u32 %v3682, 3
          %vm3687 = vcmp.lt.s32.totalorder %v3686, 2
          %vm3688 = vcmp.eq.s32.totalorder %v3686, 0
          %v3689 = vxor.u32 %v3684, 2147483648
          %v3690 = vsel %vm3688, %v3683, %v3689
          %vm3691 = vcmp.eq.s32.totalorder %v3686, 2
          %v3692 = vxor.u32 %v3683, 2147483648
          %v3693 = vsel %vm3691, %v3692, %v3684
          %v3694 = vsel %vm3687, %v3690, %v3693
          %v3695 = vsel %vm3685, nan, %v3694
          %v3696 = vand.u32 2147483647, %v1522
          %vm3697 = vcmp.le.f32.partialorder %v3696, 0.7853982
          %vm3698 = vcmp.lt.s32.totalorder %v1522, 0
          %v3699 = vand.u32 %v1522, 2139095040
          %v3700 = vshrl.u32 %v3699, 23
          %v3701 = vsub.s32 %v3700, 127
          %v3702 = vand.u32 2147483647, %v1522
          %v3703 = vand.u32 %v3702, 8388607
          %v3704 = vor.u32 %v3703, 8388608
          %v3705 = vsub.s32 0, %v3704
          %v3706 = vadd.s32 %v3701, 1
          %vm3707 = vcmp.gt.s32.totalorder %v3706, 0
          %v3708 = vsel %vm3707, %v3706, 0
          %v3709 = vshrl.u32 %v3708, 5
          %v3710 = vand.u32 %v3708, 31
          %v3711 = vsub.s32 32, %v3710
          %v3712 = vshrl.u32 683565275, %v3711
          %v3713 = vshll.u32 683565275, %v3710
          %v3714 = vshrl.u32 2475754826, %v3711
          %v3715 = vor.u32 %v3713, %v3714
          %v3716 = vshll.u32 2475754826, %v3710
          %v3717 = vshrl.u32 2131351028, %v3711
          %v3718 = vor.u32 %v3716, %v3717
          %v3719 = vshll.u32 2131351028, %v3710
          %v3720 = vshrl.u32 2102212464, %v3711
          %v3721 = vor.u32 %v3719, %v3720
          %v3722 = vshll.u32 2102212464, %v3710
          %v3723 = vshrl.u32 920167782, %v3711
          %v3724 = vor.u32 %v3722, %v3723
          %v3725 = vshll.u32 920167782, %v3710
          %v3726 = vshrl.u32 1326507024, %v3711
          %v3727 = vor.u32 %v3725, %v3726
          %vm3728 = vcmp.lt.s32.totalorder %v3709, 1
          %vm3729 = vcmp.lt.s32.totalorder %v3709, 2
          %vm3730 = vcmp.lt.s32.totalorder %v3709, 3
          %vm3731 = vcmp.lt.s32.totalorder %v3709, 4
          %v3732 = vsel %vm3728, %v3712, %v3715
          %v3733 = vsel %vm3731, %v3721, 2102212464
          %v3734 = vsel %vm3730, %v3718, %v3733
          %v3735 = vsel %vm3729, %v3732, %v3734
          %v3736 = vsel %vm3728, %v3715, %v3718
          %v3737 = vsel %vm3731, %v3724, 920167782
          %v3738 = vsel %vm3730, %v3721, %v3737
          %v3739 = vsel %vm3729, %v3736, %v3738
          %v3740 = vsel %vm3728, %v3718, %v3721
          %v3741 = vsel %vm3731, %v3727, 1326507024
          %v3742 = vsel %vm3730, %v3724, %v3741
          %v3743 = vsel %vm3729, %v3740, %v3742
          %v3744 = vshll.u32 %v3704, 8
          %v3745 = vmul.u32.u64.compose %v3744, %v3743
          %v3746 = vextract.low.u32 %v3745
          %v3747 = vextract.high.u32 %v3745
          %v3748 = vmul.u32.u64.compose %v3744, %v3739
          %v3749 = vextract.low.u32 %v3748
          %v3750 = vextract.high.u32 %v3748
          %v3751 = vmul.u32 %v3744, %v3735
          %v3752 = vadd.s32 %v3747, %v3749
          %vm3753 = vc.u32 %v3747, %v3749
          %v3754 = vadd.s32 %v3750, 1
          %v3755 = vsel %vm3753, %v3754, %v3750
          %v3756 = vadd.s32 %v3751, %v3755
          %v3757 = vadd.s32 %v3756, 536870912
          %v3758 = vshrl.u32 %v3757, 30
          %v3759 = vshll.u32 %v3758, 30
          %v3760 = vsub.s32 %v3756, %v3759
          %vm3761 = vcmp.lt.s32.totalorder %v3760, 0
          %v3762 = vsub.s32 0, %v3760
          %v3763 = vsel %vm3761, %v3762, %v3760
          %v3764 = vclz %v3763
          %v3765 = vsub.s32 %v3764, 2
          %vm3766 = vcmp.gt.s32.totalorder 0, %v3765
          %v3767 = vsel %vm3766, 0, %v3765
          %v3768 = vsub.s32 32, %v3767
          %v3769 = vshll.u32 %v3760, %v3767
          %v3770 = vshrl.u32 %v3752, %v3768
          %v3771 = vor.u32 %v3769, %v3770
          %v3772 = vsub.s32 4294967266, %v3767
          %v3773 = vadd.s32 %v3772, 127
          %v3774 = vshll.u32 %v3773, 23
          %v3775 = vor.u32 4788187, %v3774
          %v3776 = vand.u32 2147483647, %v3775
          %v3778 = vcvt.s32.f32 %v3771
          %v3779 = vmul.f32 %v3778, %v3776
          %v3780 = vxor.u32 %v3779, 2147483648
          %v3781 = vsel %vm3698, %v3780, %v3779
          %v3782 = vsub.s32 4, %v3758
          %v3783 = vsel %vm3698, %v3782, %v3758
          %v3784 = vsel %vm3697, %v1522, %v3781
          %v3785 = vsel %vm3697, 0, %v3783
          %v3786 = vcosq.f32.pop %v3784
          %v3787 = vsinq.f32.pop %v3784
          %vm3788 = vweird.f32 %v1522
          %v3789 = vand.u32 %v3785, 3
          %vm3790 = vcmp.lt.s32.totalorder %v3789, 2
          %vm3791 = vcmp.eq.s32.totalorder %v3789, 0
          %v3792 = vxor.u32 %v3787, 2147483648
          %v3793 = vsel %vm3791, %v3786, %v3792
          %vm3794 = vcmp.eq.s32.totalorder %v3789, 2
          %v3795 = vxor.u32 %v3786, 2147483648
          %v3796 = vsel %vm3794, %v3795, %v3787
          %v3797 = vsel %vm3790, %v3793, %v3796
          %v3798 = vsel %vm3788, nan, %v3797
          %v3799 = vand.u32 2147483647, %v1523
          %vm3800 = vcmp.le.f32.partialorder %v3799, 0.7853982
          %vm3801 = vcmp.lt.s32.totalorder %v1523, 0
          %v3802 = vand.u32 %v1523, 2139095040
          %v3803 = vshrl.u32 %v3802, 23
          %v3804 = vsub.s32 %v3803, 127
          %v3805 = vand.u32 2147483647, %v1523
          %v3806 = vand.u32 %v3805, 8388607
          %v3807 = vor.u32 %v3806, 8388608
          %v3808 = vsub.s32 0, %v3807
          %v3809 = vadd.s32 %v3804, 1
          %vm3810 = vcmp.gt.s32.totalorder %v3809, 0
          %v3811 = vsel %vm3810, %v3809, 0
          %v3812 = vshrl.u32 %v3811, 5
          %v3813 = vand.u32 %v3811, 31
          %v3814 = vsub.s32 32, %v3813
          %v3815 = vshrl.u32 683565275, %v3814
          %v3816 = vshll.u32 683565275, %v3813
          %v3817 = vshrl.u32 2475754826, %v3814
          %v3818 = vor.u32 %v3816, %v3817
          %v3819 = vshll.u32 2475754826, %v3813
          %v3820 = vshrl.u32 2131351028, %v3814
          %v3821 = vor.u32 %v3819, %v3820
          %v3822 = vshll.u32 2131351028, %v3813
          %v3823 = vshrl.u32 2102212464, %v3814
          %v3824 = vor.u32 %v3822, %v3823
          %v3825 = vshll.u32 2102212464, %v3813
          %v3826 = vshrl.u32 920167782, %v3814
          %v3827 = vor.u32 %v3825, %v3826
          %v3828 = vshll.u32 920167782, %v3813
          %v3829 = vshrl.u32 1326507024, %v3814
          %v3830 = vor.u32 %v3828, %v3829
          %vm3831 = vcmp.lt.s32.totalorder %v3812, 1
          %vm3832 = vcmp.lt.s32.totalorder %v3812, 2
          %vm3833 = vcmp.lt.s32.totalorder %v3812, 3
          %vm3834 = vcmp.lt.s32.totalorder %v3812, 4
          %v3835 = vsel %vm3831, %v3815, %v3818
          %v3836 = vsel %vm3834, %v3824, 2102212464
          %v3837 = vsel %vm3833, %v3821, %v3836
          %v3838 = vsel %vm3832, %v3835, %v3837
          %v3839 = vsel %vm3831, %v3818, %v3821
          %v3840 = vsel %vm3834, %v3827, 920167782
          %v3841 = vsel %vm3833, %v3824, %v3840
          %v3842 = vsel %vm3832, %v3839, %v3841
          %v3843 = vsel %vm3831, %v3821, %v3824
          %v3844 = vsel %vm3834, %v3830, 1326507024
          %v3845 = vsel %vm3833, %v3827, %v3844
          %v3846 = vsel %vm3832, %v3843, %v3845
          %v3847 = vshll.u32 %v3807, 8
          %v3848 = vmul.u32.u64.compose %v3847, %v3846
          %v3849 = vextract.low.u32 %v3848
          %v3850 = vextract.high.u32 %v3848
          %v3851 = vmul.u32.u64.compose %v3847, %v3842
          %v3852 = vextract.low.u32 %v3851
          %v3853 = vextract.high.u32 %v3851
          %v3854 = vmul.u32 %v3847, %v3838
          %v3855 = vadd.s32 %v3850, %v3852
          %vm3856 = vc.u32 %v3850, %v3852
          %v3857 = vadd.s32 %v3853, 1
          %v3858 = vsel %vm3856, %v3857, %v3853
          %v3859 = vadd.s32 %v3854, %v3858
          %v3860 = vadd.s32 %v3859, 536870912
          %v3861 = vshrl.u32 %v3860, 30
          %v3862 = vshll.u32 %v3861, 30
          %v3863 = vsub.s32 %v3859, %v3862
          %vm3864 = vcmp.lt.s32.totalorder %v3863, 0
          %v3865 = vsub.s32 0, %v3863
          %v3866 = vsel %vm3864, %v3865, %v3863
          %v3867 = vclz %v3866
          %v3868 = vsub.s32 %v3867, 2
          %vm3869 = vcmp.gt.s32.totalorder 0, %v3868
          %v3870 = vsel %vm3869, 0, %v3868
          %v3871 = vsub.s32 32, %v3870
          %v3872 = vshll.u32 %v3863, %v3870
          %v3873 = vshrl.u32 %v3855, %v3871
          %v3874 = vor.u32 %v3872, %v3873
          %v3875 = vsub.s32 4294967266, %v3870
          %v3876 = vadd.s32 %v3875, 127
          %v3877 = vshll.u32 %v3876, 23
          %v3878 = vor.u32 4788187, %v3877
          %v3879 = vand.u32 2147483647, %v3878
          %v3881 = vcvt.s32.f32 %v3874
          %v3882 = vmul.f32 %v3881, %v3879
          %v3883 = vxor.u32 %v3882, 2147483648
          %v3884 = vsel %vm3801, %v3883, %v3882
          %v3885 = vsub.s32 4, %v3861
          %v3886 = vsel %vm3801, %v3885, %v3861
          %v3887 = vsel %vm3800, %v1523, %v3884
          %v3888 = vsel %vm3800, 0, %v3886
          %v3889 = vcosq.f32.pop %v3887
          %v3890 = vsinq.f32.pop %v3887
          %vm3891 = vweird.f32 %v1523
          %v3892 = vand.u32 %v3888, 3
          %vm3893 = vcmp.lt.s32.totalorder %v3892, 2
          %vm3894 = vcmp.eq.s32.totalorder %v3892, 0
          %v3895 = vxor.u32 %v3890, 2147483648
          %v3896 = vsel %vm3894, %v3889, %v3895
          %vm3897 = vcmp.eq.s32.totalorder %v3892, 2
          %v3898 = vxor.u32 %v3889, 2147483648
          %v3899 = vsel %vm3897, %v3898, %v3890
          %v3900 = vsel %vm3893, %v3896, %v3899
          %v3901 = vsel %vm3891, nan, %v3900
          %v3902 = vand.u32 2147483647, %v1524
          %vm3903 = vcmp.le.f32.partialorder %v3902, 0.7853982
          %vm3904 = vcmp.lt.s32.totalorder %v1524, 0
          %v3905 = vand.u32 %v1524, 2139095040
          %v3906 = vshrl.u32 %v3905, 23
          %v3907 = vsub.s32 %v3906, 127
          %v3908 = vand.u32 2147483647, %v1524
          %v3909 = vand.u32 %v3908, 8388607
          %v3910 = vor.u32 %v3909, 8388608
          %v3911 = vsub.s32 0, %v3910
          %v3912 = vadd.s32 %v3907, 1
          %vm3913 = vcmp.gt.s32.totalorder %v3912, 0
          %v3914 = vsel %vm3913, %v3912, 0
          %v3915 = vshrl.u32 %v3914, 5
          %v3916 = vand.u32 %v3914, 31
          %v3917 = vsub.s32 32, %v3916
          %v3918 = vshrl.u32 683565275, %v3917
          %v3919 = vshll.u32 683565275, %v3916
          %v3920 = vshrl.u32 2475754826, %v3917
          %v3921 = vor.u32 %v3919, %v3920
          %v3922 = vshll.u32 2475754826, %v3916
          %v3923 = vshrl.u32 2131351028, %v3917
          %v3924 = vor.u32 %v3922, %v3923
          %v3925 = vshll.u32 2131351028, %v3916
          %v3926 = vshrl.u32 2102212464, %v3917
          %v3927 = vor.u32 %v3925, %v3926
          %v3928 = vshll.u32 2102212464, %v3916
          %v3929 = vshrl.u32 920167782, %v3917
          %v3930 = vor.u32 %v3928, %v3929
          %v3931 = vshll.u32 920167782, %v3916
          %v3932 = vshrl.u32 1326507024, %v3917
          %v3933 = vor.u32 %v3931, %v3932
          %vm3934 = vcmp.lt.s32.totalorder %v3915, 1
          %vm3935 = vcmp.lt.s32.totalorder %v3915, 2
          %vm3936 = vcmp.lt.s32.totalorder %v3915, 3
          %vm3937 = vcmp.lt.s32.totalorder %v3915, 4
          %v3938 = vsel %vm3934, %v3918, %v3921
          %v3939 = vsel %vm3937, %v3927, 2102212464
          %v3940 = vsel %vm3936, %v3924, %v3939
          %v3941 = vsel %vm3935, %v3938, %v3940
          %v3942 = vsel %vm3934, %v3921, %v3924
          %v3943 = vsel %vm3937, %v3930, 920167782
          %v3944 = vsel %vm3936, %v3927, %v3943
          %v3945 = vsel %vm3935, %v3942, %v3944
          %v3946 = vsel %vm3934, %v3924, %v3927
          %v3947 = vsel %vm3937, %v3933, 1326507024
          %v3948 = vsel %vm3936, %v3930, %v3947
          %v3949 = vsel %vm3935, %v3946, %v3948
          %v3950 = vshll.u32 %v3910, 8
          %v3951 = vmul.u32.u64.compose %v3950, %v3949
          %v3952 = vextract.low.u32 %v3951
          %v3953 = vextract.high.u32 %v3951
          %v3954 = vmul.u32.u64.compose %v3950, %v3945
          %v3955 = vextract.low.u32 %v3954
          %v3956 = vextract.high.u32 %v3954
          %v3957 = vmul.u32 %v3950, %v3941
          %v3958 = vadd.s32 %v3953, %v3955
          %vm3959 = vc.u32 %v3953, %v3955
          %v3960 = vadd.s32 %v3956, 1
          %v3961 = vsel %vm3959, %v3960, %v3956
          %v3962 = vadd.s32 %v3957, %v3961
          %v3963 = vadd.s32 %v3962, 536870912
          %v3964 = vshrl.u32 %v3963, 30
          %v3965 = vshll.u32 %v3964, 30
          %v3966 = vsub.s32 %v3962, %v3965
          %vm3967 = vcmp.lt.s32.totalorder %v3966, 0
          %v3968 = vsub.s32 0, %v3966
          %v3969 = vsel %vm3967, %v3968, %v3966
          %v3970 = vclz %v3969
          %v3971 = vsub.s32 %v3970, 2
          %vm3972 = vcmp.gt.s32.totalorder 0, %v3971
          %v3973 = vsel %vm3972, 0, %v3971
          %v3974 = vsub.s32 32, %v3973
          %v3975 = vshll.u32 %v3966, %v3973
          %v3976 = vshrl.u32 %v3958, %v3974
          %v3977 = vor.u32 %v3975, %v3976
          %v3978 = vsub.s32 4294967266, %v3973
          %v3979 = vadd.s32 %v3978, 127
          %v3980 = vshll.u32 %v3979, 23
          %v3981 = vor.u32 4788187, %v3980
          %v3982 = vand.u32 2147483647, %v3981
          %v3984 = vcvt.s32.f32 %v3977
          %v3985 = vmul.f32 %v3984, %v3982
          %v3986 = vxor.u32 %v3985, 2147483648
          %v3987 = vsel %vm3904, %v3986, %v3985
          %v3988 = vsub.s32 4, %v3964
          %v3989 = vsel %vm3904, %v3988, %v3964
          %v3990 = vsel %vm3903, %v1524, %v3987
          %v3991 = vsel %vm3903, 0, %v3989
          %v3992 = vcosq.f32.pop %v3990
          %v3993 = vsinq.f32.pop %v3990
          %vm3994 = vweird.f32 %v1524
          %v3995 = vand.u32 %v3991, 3
          %vm3996 = vcmp.lt.s32.totalorder %v3995, 2
          %vm3997 = vcmp.eq.s32.totalorder %v3995, 0
          %v3998 = vxor.u32 %v3993, 2147483648
          %v3999 = vsel %vm3997, %v3992, %v3998
          %vm4000 = vcmp.eq.s32.totalorder %v3995, 2
          %v4001 = vxor.u32 %v3992, 2147483648
          %v4002 = vsel %vm4000, %v4001, %v3993
          %v4003 = vsel %vm3996, %v3999, %v4002
          %v4004 = vsel %vm3994, nan, %v4003
          %v4005 = vand.u32 2147483647, %v1525
          %vm4006 = vcmp.le.f32.partialorder %v4005, 0.7853982
          %vm4007 = vcmp.lt.s32.totalorder %v1525, 0
          %v4008 = vand.u32 %v1525, 2139095040
          %v4009 = vshrl.u32 %v4008, 23
          %v4010 = vsub.s32 %v4009, 127
          %v4011 = vand.u32 2147483647, %v1525
          %v4012 = vand.u32 %v4011, 8388607
          %v4013 = vor.u32 %v4012, 8388608
          %v4014 = vsub.s32 0, %v4013
          %v4015 = vadd.s32 %v4010, 1
          %vm4016 = vcmp.gt.s32.totalorder %v4015, 0
          %v4017 = vsel %vm4016, %v4015, 0
          %v4018 = vshrl.u32 %v4017, 5
          %v4019 = vand.u32 %v4017, 31
          %v4020 = vsub.s32 32, %v4019
          %v4021 = vshrl.u32 683565275, %v4020
          %v4022 = vshll.u32 683565275, %v4019
          %v4023 = vshrl.u32 2475754826, %v4020
          %v4024 = vor.u32 %v4022, %v4023
          %v4025 = vshll.u32 2475754826, %v4019
          %v4026 = vshrl.u32 2131351028, %v4020
          %v4027 = vor.u32 %v4025, %v4026
          %v4028 = vshll.u32 2131351028, %v4019
          %v4029 = vshrl.u32 2102212464, %v4020
          %v4030 = vor.u32 %v4028, %v4029
          %v4031 = vshll.u32 2102212464, %v4019
          %v4032 = vshrl.u32 920167782, %v4020
          %v4033 = vor.u32 %v4031, %v4032
          %v4034 = vshll.u32 920167782, %v4019
          %v4035 = vshrl.u32 1326507024, %v4020
          %v4036 = vor.u32 %v4034, %v4035
          %vm4037 = vcmp.lt.s32.totalorder %v4018, 1
          %vm4038 = vcmp.lt.s32.totalorder %v4018, 2
          %vm4039 = vcmp.lt.s32.totalorder %v4018, 3
          %vm4040 = vcmp.lt.s32.totalorder %v4018, 4
          %v4041 = vsel %vm4037, %v4021, %v4024
          %v4042 = vsel %vm4040, %v4030, 2102212464
          %v4043 = vsel %vm4039, %v4027, %v4042
          %v4044 = vsel %vm4038, %v4041, %v4043
          %v4045 = vsel %vm4037, %v4024, %v4027
          %v4046 = vsel %vm4040, %v4033, 920167782
          %v4047 = vsel %vm4039, %v4030, %v4046
          %v4048 = vsel %vm4038, %v4045, %v4047
          %v4049 = vsel %vm4037, %v4027, %v4030
          %v4050 = vsel %vm4040, %v4036, 1326507024
          %v4051 = vsel %vm4039, %v4033, %v4050
          %v4052 = vsel %vm4038, %v4049, %v4051
          %v4053 = vshll.u32 %v4013, 8
          %v4054 = vmul.u32.u64.compose %v4053, %v4052
          %v4055 = vextract.low.u32 %v4054
          %v4056 = vextract.high.u32 %v4054
          %v4057 = vmul.u32.u64.compose %v4053, %v4048
          %v4058 = vextract.low.u32 %v4057
          %v4059 = vextract.high.u32 %v4057
          %v4060 = vmul.u32 %v4053, %v4044
          %v4061 = vadd.s32 %v4056, %v4058
          %vm4062 = vc.u32 %v4056, %v4058
          %v4063 = vadd.s32 %v4059, 1
          %v4064 = vsel %vm4062, %v4063, %v4059
          %v4065 = vadd.s32 %v4060, %v4064
          %v4066 = vadd.s32 %v4065, 536870912
          %v4067 = vshrl.u32 %v4066, 30
          %v4068 = vshll.u32 %v4067, 30
          %v4069 = vsub.s32 %v4065, %v4068
          %vm4070 = vcmp.lt.s32.totalorder %v4069, 0
          %v4071 = vsub.s32 0, %v4069
          %v4072 = vsel %vm4070, %v4071, %v4069
          %v4073 = vclz %v4072
          %v4074 = vsub.s32 %v4073, 2
          %vm4075 = vcmp.gt.s32.totalorder 0, %v4074
          %v4076 = vsel %vm4075, 0, %v4074
          %v4077 = vsub.s32 32, %v4076
          %v4078 = vshll.u32 %v4069, %v4076
          %v4079 = vshrl.u32 %v4061, %v4077
          %v4080 = vor.u32 %v4078, %v4079
          %v4081 = vsub.s32 4294967266, %v4076
          %v4082 = vadd.s32 %v4081, 127
          %v4083 = vshll.u32 %v4082, 23
          %v4084 = vor.u32 4788187, %v4083
          %v4085 = vand.u32 2147483647, %v4084
          %v4087 = vcvt.s32.f32 %v4080
          %v4088 = vmul.f32 %v4087, %v4085
          %v4089 = vxor.u32 %v4088, 2147483648
          %v4090 = vsel %vm4007, %v4089, %v4088
          %v4091 = vsub.s32 4, %v4067
          %v4092 = vsel %vm4007, %v4091, %v4067
          %v4093 = vsel %vm4006, %v1525, %v4090
          %v4094 = vsel %vm4006, 0, %v4092
          %v4095 = vcosq.f32.pop %v4093
          %v4096 = vsinq.f32.pop %v4093
          %vm4097 = vweird.f32 %v1525
          %v4098 = vand.u32 %v4094, 3
          %vm4099 = vcmp.lt.s32.totalorder %v4098, 2
          %vm4100 = vcmp.eq.s32.totalorder %v4098, 0
          %v4101 = vxor.u32 %v4096, 2147483648
          %v4102 = vsel %vm4100, %v4095, %v4101
          %vm4103 = vcmp.eq.s32.totalorder %v4098, 2
          %v4104 = vxor.u32 %v4095, 2147483648
          %v4105 = vsel %vm4103, %v4104, %v4096
          %v4106 = vsel %vm4099, %v4102, %v4105
          %v4107 = vsel %vm4097, nan, %v4106
          %v4108 = vand.u32 2147483647, %v1526
          %vm4109 = vcmp.le.f32.partialorder %v4108, 0.7853982
          %vm4110 = vcmp.lt.s32.totalorder %v1526, 0
          %v4111 = vand.u32 %v1526, 2139095040
          %v4112 = vshrl.u32 %v4111, 23
          %v4113 = vsub.s32 %v4112, 127
          %v4114 = vand.u32 2147483647, %v1526
          %v4115 = vand.u32 %v4114, 8388607
          %v4116 = vor.u32 %v4115, 8388608
          %v4117 = vsub.s32 0, %v4116
          %v4118 = vadd.s32 %v4113, 1
          %vm4119 = vcmp.gt.s32.totalorder %v4118, 0
          %v4120 = vsel %vm4119, %v4118, 0
          %v4121 = vshrl.u32 %v4120, 5
          %v4122 = vand.u32 %v4120, 31
          %v4123 = vsub.s32 32, %v4122
          %v4124 = vshrl.u32 683565275, %v4123
          %v4125 = vshll.u32 683565275, %v4122
          %v4126 = vshrl.u32 2475754826, %v4123
          %v4127 = vor.u32 %v4125, %v4126
          %v4128 = vshll.u32 2475754826, %v4122
          %v4129 = vshrl.u32 2131351028, %v4123
          %v4130 = vor.u32 %v4128, %v4129
          %v4131 = vshll.u32 2131351028, %v4122
          %v4132 = vshrl.u32 2102212464, %v4123
          %v4133 = vor.u32 %v4131, %v4132
          %v4134 = vshll.u32 2102212464, %v4122
          %v4135 = vshrl.u32 920167782, %v4123
          %v4136 = vor.u32 %v4134, %v4135
          %v4137 = vshll.u32 920167782, %v4122
          %v4138 = vshrl.u32 1326507024, %v4123
          %v4139 = vor.u32 %v4137, %v4138
          %vm4140 = vcmp.lt.s32.totalorder %v4121, 1
          %vm4141 = vcmp.lt.s32.totalorder %v4121, 2
          %vm4142 = vcmp.lt.s32.totalorder %v4121, 3
          %vm4143 = vcmp.lt.s32.totalorder %v4121, 4
          %v4144 = vsel %vm4140, %v4124, %v4127
          %v4145 = vsel %vm4143, %v4133, 2102212464
          %v4146 = vsel %vm4142, %v4130, %v4145
          %v4147 = vsel %vm4141, %v4144, %v4146
          %v4148 = vsel %vm4140, %v4127, %v4130
          %v4149 = vsel %vm4143, %v4136, 920167782
          %v4150 = vsel %vm4142, %v4133, %v4149
          %v4151 = vsel %vm4141, %v4148, %v4150
          %v4152 = vsel %vm4140, %v4130, %v4133
          %v4153 = vsel %vm4143, %v4139, 1326507024
          %v4154 = vsel %vm4142, %v4136, %v4153
          %v4155 = vsel %vm4141, %v4152, %v4154
          %v4156 = vshll.u32 %v4116, 8
          %v4157 = vmul.u32.u64.compose %v4156, %v4155
          %v4158 = vextract.low.u32 %v4157
          %v4159 = vextract.high.u32 %v4157
          %v4160 = vmul.u32.u64.compose %v4156, %v4151
          %v4161 = vextract.low.u32 %v4160
          %v4162 = vextract.high.u32 %v4160
          %v4163 = vmul.u32 %v4156, %v4147
          %v4164 = vadd.s32 %v4159, %v4161
          %vm4165 = vc.u32 %v4159, %v4161
          %v4166 = vadd.s32 %v4162, 1
          %v4167 = vsel %vm4165, %v4166, %v4162
          %v4168 = vadd.s32 %v4163, %v4167
          %v4169 = vadd.s32 %v4168, 536870912
          %v4170 = vshrl.u32 %v4169, 30
          %v4171 = vshll.u32 %v4170, 30
          %v4172 = vsub.s32 %v4168, %v4171
          %vm4173 = vcmp.lt.s32.totalorder %v4172, 0
          %v4174 = vsub.s32 0, %v4172
          %v4175 = vsel %vm4173, %v4174, %v4172
          %v4176 = vclz %v4175
          %v4177 = vsub.s32 %v4176, 2
          %vm4178 = vcmp.gt.s32.totalorder 0, %v4177
          %v4179 = vsel %vm4178, 0, %v4177
          %v4180 = vsub.s32 32, %v4179
          %v4181 = vshll.u32 %v4172, %v4179
          %v4182 = vshrl.u32 %v4164, %v4180
          %v4183 = vor.u32 %v4181, %v4182
          %v4184 = vsub.s32 4294967266, %v4179
          %v4185 = vadd.s32 %v4184, 127
          %v4186 = vshll.u32 %v4185, 23
          %v4187 = vor.u32 4788187, %v4186
          %v4188 = vand.u32 2147483647, %v4187
          %v4190 = vcvt.s32.f32 %v4183
          %v4191 = vmul.f32 %v4190, %v4188
          %v4192 = vxor.u32 %v4191, 2147483648
          %v4193 = vsel %vm4110, %v4192, %v4191
          %v4194 = vsub.s32 4, %v4170
          %v4195 = vsel %vm4110, %v4194, %v4170
          %v4196 = vsel %vm4109, %v1526, %v4193
          %v4197 = vsel %vm4109, 0, %v4195
          %v4198 = vcosq.f32.pop %v4196
          %v4199 = vsinq.f32.pop %v4196
          %vm4200 = vweird.f32 %v1526
          %v4201 = vand.u32 %v4197, 3
          %vm4202 = vcmp.lt.s32.totalorder %v4201, 2
          %vm4203 = vcmp.eq.s32.totalorder %v4201, 0
          %v4204 = vxor.u32 %v4199, 2147483648
          %v4205 = vsel %vm4203, %v4198, %v4204
          %vm4206 = vcmp.eq.s32.totalorder %v4201, 2
          %v4207 = vxor.u32 %v4198, 2147483648
          %v4208 = vsel %vm4206, %v4207, %v4199
          %v4209 = vsel %vm4202, %v4205, %v4208
          %v4210 = vsel %vm4200, nan, %v4209
          %v4211 = vand.u32 2147483647, %v1527
          %vm4212 = vcmp.le.f32.partialorder %v4211, 0.7853982
          %vm4213 = vcmp.lt.s32.totalorder %v1527, 0
          %v4214 = vand.u32 %v1527, 2139095040
          %v4215 = vshrl.u32 %v4214, 23
          %v4216 = vsub.s32 %v4215, 127
          %v4217 = vand.u32 2147483647, %v1527
          %v4218 = vand.u32 %v4217, 8388607
          %v4219 = vor.u32 %v4218, 8388608
          %v4220 = vsub.s32 0, %v4219
          %v4221 = vadd.s32 %v4216, 1
          %vm4222 = vcmp.gt.s32.totalorder %v4221, 0
          %v4223 = vsel %vm4222, %v4221, 0
          %v4224 = vshrl.u32 %v4223, 5
          %v4225 = vand.u32 %v4223, 31
          %v4226 = vsub.s32 32, %v4225
          %v4227 = vshrl.u32 683565275, %v4226
          %v4228 = vshll.u32 683565275, %v4225
          %v4229 = vshrl.u32 2475754826, %v4226
          %v4230 = vor.u32 %v4228, %v4229
          %v4231 = vshll.u32 2475754826, %v4225
          %v4232 = vshrl.u32 2131351028, %v4226
          %v4233 = vor.u32 %v4231, %v4232
          %v4234 = vshll.u32 2131351028, %v4225
          %v4235 = vshrl.u32 2102212464, %v4226
          %v4236 = vor.u32 %v4234, %v4235
          %v4237 = vshll.u32 2102212464, %v4225
          %v4238 = vshrl.u32 920167782, %v4226
          %v4239 = vor.u32 %v4237, %v4238
          %v4240 = vshll.u32 920167782, %v4225
          %v4241 = vshrl.u32 1326507024, %v4226
          %v4242 = vor.u32 %v4240, %v4241
          %vm4243 = vcmp.lt.s32.totalorder %v4224, 1
          %vm4244 = vcmp.lt.s32.totalorder %v4224, 2
          %vm4245 = vcmp.lt.s32.totalorder %v4224, 3
          %vm4246 = vcmp.lt.s32.totalorder %v4224, 4
          %v4247 = vsel %vm4243, %v4227, %v4230
          %v4248 = vsel %vm4246, %v4236, 2102212464
          %v4249 = vsel %vm4245, %v4233, %v4248
          %v4250 = vsel %vm4244, %v4247, %v4249
          %v4251 = vsel %vm4243, %v4230, %v4233
          %v4252 = vsel %vm4246, %v4239, 920167782
          %v4253 = vsel %vm4245, %v4236, %v4252
          %v4254 = vsel %vm4244, %v4251, %v4253
          %v4255 = vsel %vm4243, %v4233, %v4236
          %v4256 = vsel %vm4246, %v4242, 1326507024
          %v4257 = vsel %vm4245, %v4239, %v4256
          %v4258 = vsel %vm4244, %v4255, %v4257
          %v4259 = vshll.u32 %v4219, 8
          %v4260 = vmul.u32.u64.compose %v4259, %v4258
          %v4261 = vextract.low.u32 %v4260
          %v4262 = vextract.high.u32 %v4260
          %v4263 = vmul.u32.u64.compose %v4259, %v4254
          %v4264 = vextract.low.u32 %v4263
          %v4265 = vextract.high.u32 %v4263
          %v4266 = vmul.u32 %v4259, %v4250
          %v4267 = vadd.s32 %v4262, %v4264
          %vm4268 = vc.u32 %v4262, %v4264
          %v4269 = vadd.s32 %v4265, 1
          %v4270 = vsel %vm4268, %v4269, %v4265
          %v4271 = vadd.s32 %v4266, %v4270
          %v4272 = vadd.s32 %v4271, 536870912
          %v4273 = vshrl.u32 %v4272, 30
          %v4274 = vshll.u32 %v4273, 30
          %v4275 = vsub.s32 %v4271, %v4274
          %vm4276 = vcmp.lt.s32.totalorder %v4275, 0
          %v4277 = vsub.s32 0, %v4275
          %v4278 = vsel %vm4276, %v4277, %v4275
          %v4279 = vclz %v4278
          %v4280 = vsub.s32 %v4279, 2
          %vm4281 = vcmp.gt.s32.totalorder 0, %v4280
          %v4282 = vsel %vm4281, 0, %v4280
          %v4283 = vsub.s32 32, %v4282
          %v4284 = vshll.u32 %v4275, %v4282
          %v4285 = vshrl.u32 %v4267, %v4283
          %v4286 = vor.u32 %v4284, %v4285
          %v4287 = vsub.s32 4294967266, %v4282
          %v4288 = vadd.s32 %v4287, 127
          %v4289 = vshll.u32 %v4288, 23
          %v4290 = vor.u32 4788187, %v4289
          %v4291 = vand.u32 2147483647, %v4290
          %v4293 = vcvt.s32.f32 %v4286
          %v4294 = vmul.f32 %v4293, %v4291
          %v4295 = vxor.u32 %v4294, 2147483648
          %v4296 = vsel %vm4213, %v4295, %v4294
          %v4297 = vsub.s32 4, %v4273
          %v4298 = vsel %vm4213, %v4297, %v4273
          %v4299 = vsel %vm4212, %v1527, %v4296
          %v4300 = vsel %vm4212, 0, %v4298
          %v4301 = vcosq.f32.pop %v4299
          %v4302 = vsinq.f32.pop %v4299
          %vm4303 = vweird.f32 %v1527
          %v4304 = vand.u32 %v4300, 3
          %vm4305 = vcmp.lt.s32.totalorder %v4304, 2
          %vm4306 = vcmp.eq.s32.totalorder %v4304, 0
          %v4307 = vxor.u32 %v4302, 2147483648
          %v4308 = vsel %vm4306, %v4301, %v4307
          %vm4309 = vcmp.eq.s32.totalorder %v4304, 2
          %v4310 = vxor.u32 %v4301, 2147483648
          %v4311 = vsel %vm4309, %v4310, %v4302
          %v4312 = vsel %vm4305, %v4308, %v4311
          %v4313 = vsel %vm4303, nan, %v4312
          %v4314 = vand.u32 2147483647, %v1528
          %vm4315 = vcmp.le.f32.partialorder %v4314, 0.7853982
          %vm4316 = vcmp.lt.s32.totalorder %v1528, 0
          %v4317 = vand.u32 %v1528, 2139095040
          %v4318 = vshrl.u32 %v4317, 23
          %v4319 = vsub.s32 %v4318, 127
          %v4320 = vand.u32 2147483647, %v1528
          %v4321 = vand.u32 %v4320, 8388607
          %v4322 = vor.u32 %v4321, 8388608
          %v4323 = vsub.s32 0, %v4322
          %v4324 = vadd.s32 %v4319, 1
          %vm4325 = vcmp.gt.s32.totalorder %v4324, 0
          %v4326 = vsel %vm4325, %v4324, 0
          %v4327 = vshrl.u32 %v4326, 5
          %v4328 = vand.u32 %v4326, 31
          %v4329 = vsub.s32 32, %v4328
          %v4330 = vshrl.u32 683565275, %v4329
          %v4331 = vshll.u32 683565275, %v4328
          %v4332 = vshrl.u32 2475754826, %v4329
          %v4333 = vor.u32 %v4331, %v4332
          %v4334 = vshll.u32 2475754826, %v4328
          %v4335 = vshrl.u32 2131351028, %v4329
          %v4336 = vor.u32 %v4334, %v4335
          %v4337 = vshll.u32 2131351028, %v4328
          %v4338 = vshrl.u32 2102212464, %v4329
          %v4339 = vor.u32 %v4337, %v4338
          %v4340 = vshll.u32 2102212464, %v4328
          %v4341 = vshrl.u32 920167782, %v4329
          %v4342 = vor.u32 %v4340, %v4341
          %v4343 = vshll.u32 920167782, %v4328
          %v4344 = vshrl.u32 1326507024, %v4329
          %v4345 = vor.u32 %v4343, %v4344
          %vm4346 = vcmp.lt.s32.totalorder %v4327, 1
          %vm4347 = vcmp.lt.s32.totalorder %v4327, 2
          %vm4348 = vcmp.lt.s32.totalorder %v4327, 3
          %vm4349 = vcmp.lt.s32.totalorder %v4327, 4
          %v4350 = vsel %vm4346, %v4330, %v4333
          %v4351 = vsel %vm4349, %v4339, 2102212464
          %v4352 = vsel %vm4348, %v4336, %v4351
          %v4353 = vsel %vm4347, %v4350, %v4352
          %v4354 = vsel %vm4346, %v4333, %v4336
          %v4355 = vsel %vm4349, %v4342, 920167782
          %v4356 = vsel %vm4348, %v4339, %v4355
          %v4357 = vsel %vm4347, %v4354, %v4356
          %v4358 = vsel %vm4346, %v4336, %v4339
          %v4359 = vsel %vm4349, %v4345, 1326507024
          %v4360 = vsel %vm4348, %v4342, %v4359
          %v4361 = vsel %vm4347, %v4358, %v4360
          %v4362 = vshll.u32 %v4322, 8
          %v4363 = vmul.u32.u64.compose %v4362, %v4361
          %v4364 = vextract.low.u32 %v4363
          %v4365 = vextract.high.u32 %v4363
          %v4366 = vmul.u32.u64.compose %v4362, %v4357
          %v4367 = vextract.low.u32 %v4366
          %v4368 = vextract.high.u32 %v4366
          %v4369 = vmul.u32 %v4362, %v4353
          %v4370 = vadd.s32 %v4365, %v4367
          %vm4371 = vc.u32 %v4365, %v4367
          %v4372 = vadd.s32 %v4368, 1
          %v4373 = vsel %vm4371, %v4372, %v4368
          %v4374 = vadd.s32 %v4369, %v4373
          %v4375 = vadd.s32 %v4374, 536870912
          %v4376 = vshrl.u32 %v4375, 30
          %v4377 = vshll.u32 %v4376, 30
          %v4378 = vsub.s32 %v4374, %v4377
          %vm4379 = vcmp.lt.s32.totalorder %v4378, 0
          %v4380 = vsub.s32 0, %v4378
          %v4381 = vsel %vm4379, %v4380, %v4378
          %v4382 = vclz %v4381
          %v4383 = vsub.s32 %v4382, 2
          %vm4384 = vcmp.gt.s32.totalorder 0, %v4383
          %v4385 = vsel %vm4384, 0, %v4383
          %v4386 = vsub.s32 32, %v4385
          %v4387 = vshll.u32 %v4378, %v4385
          %v4388 = vshrl.u32 %v4370, %v4386
          %v4389 = vor.u32 %v4387, %v4388
          %v4390 = vsub.s32 4294967266, %v4385
          %v4391 = vadd.s32 %v4390, 127
          %v4392 = vshll.u32 %v4391, 23
          %v4393 = vor.u32 4788187, %v4392
          %v4394 = vand.u32 2147483647, %v4393
          %v4396 = vcvt.s32.f32 %v4389
          %v4397 = vmul.f32 %v4396, %v4394
          %v4398 = vxor.u32 %v4397, 2147483648
          %v4399 = vsel %vm4316, %v4398, %v4397
          %v4400 = vsub.s32 4, %v4376
          %v4401 = vsel %vm4316, %v4400, %v4376
          %v4402 = vsel %vm4315, %v1528, %v4399
          %v4403 = vsel %vm4315, 0, %v4401
          %v4404 = vcosq.f32.pop %v4402
          %v4405 = vsinq.f32.pop %v4402
          %vm4406 = vweird.f32 %v1528
          %v4407 = vand.u32 %v4403, 3
          %vm4408 = vcmp.lt.s32.totalorder %v4407, 2
          %vm4409 = vcmp.eq.s32.totalorder %v4407, 0
          %v4410 = vxor.u32 %v4405, 2147483648
          %v4411 = vsel %vm4409, %v4404, %v4410
          %vm4412 = vcmp.eq.s32.totalorder %v4407, 2
          %v4413 = vxor.u32 %v4404, 2147483648
          %v4414 = vsel %vm4412, %v4413, %v4405
          %v4415 = vsel %vm4408, %v4411, %v4414
          %v4416 = vsel %vm4406, nan, %v4415
          %v4417 = vand.u32 2147483647, %v1529
          %vm4418 = vcmp.le.f32.partialorder %v4417, 0.7853982
          %vm4419 = vcmp.lt.s32.totalorder %v1529, 0
          %v4420 = vand.u32 %v1529, 2139095040
          %v4421 = vshrl.u32 %v4420, 23
          %v4422 = vsub.s32 %v4421, 127
          %v4423 = vand.u32 2147483647, %v1529
          %v4424 = vand.u32 %v4423, 8388607
          %v4425 = vor.u32 %v4424, 8388608
          %v4426 = vsub.s32 0, %v4425
          %v4427 = vadd.s32 %v4422, 1
          %vm4428 = vcmp.gt.s32.totalorder %v4427, 0
          %v4429 = vsel %vm4428, %v4427, 0
          %v4430 = vshrl.u32 %v4429, 5
          %v4431 = vand.u32 %v4429, 31
          %v4432 = vsub.s32 32, %v4431
          %v4433 = vshrl.u32 683565275, %v4432
          %v4434 = vshll.u32 683565275, %v4431
          %v4435 = vshrl.u32 2475754826, %v4432
          %v4436 = vor.u32 %v4434, %v4435
          %v4437 = vshll.u32 2475754826, %v4431
          %v4438 = vshrl.u32 2131351028, %v4432
          %v4439 = vor.u32 %v4437, %v4438
          %v4440 = vshll.u32 2131351028, %v4431
          %v4441 = vshrl.u32 2102212464, %v4432
          %v4442 = vor.u32 %v4440, %v4441
          %v4443 = vshll.u32 2102212464, %v4431
          %v4444 = vshrl.u32 920167782, %v4432
          %v4445 = vor.u32 %v4443, %v4444
          %v4446 = vshll.u32 920167782, %v4431
          %v4447 = vshrl.u32 1326507024, %v4432
          %v4448 = vor.u32 %v4446, %v4447
          %vm4449 = vcmp.lt.s32.totalorder %v4430, 1
          %vm4450 = vcmp.lt.s32.totalorder %v4430, 2
          %vm4451 = vcmp.lt.s32.totalorder %v4430, 3
          %vm4452 = vcmp.lt.s32.totalorder %v4430, 4
          %v4453 = vsel %vm4449, %v4433, %v4436
          %v4454 = vsel %vm4452, %v4442, 2102212464
          %v4455 = vsel %vm4451, %v4439, %v4454
          %v4456 = vsel %vm4450, %v4453, %v4455
          %v4457 = vsel %vm4449, %v4436, %v4439
          %v4458 = vsel %vm4452, %v4445, 920167782
          %v4459 = vsel %vm4451, %v4442, %v4458
          %v4460 = vsel %vm4450, %v4457, %v4459
          %v4461 = vsel %vm4449, %v4439, %v4442
          %v4462 = vsel %vm4452, %v4448, 1326507024
          %v4463 = vsel %vm4451, %v4445, %v4462
          %v4464 = vsel %vm4450, %v4461, %v4463
          %v4465 = vshll.u32 %v4425, 8
          %v4466 = vmul.u32.u64.compose %v4465, %v4464
          %v4467 = vextract.low.u32 %v4466
          %v4468 = vextract.high.u32 %v4466
          %v4469 = vmul.u32.u64.compose %v4465, %v4460
          %v4470 = vextract.low.u32 %v4469
          %v4471 = vextract.high.u32 %v4469
          %v4472 = vmul.u32 %v4465, %v4456
          %v4473 = vadd.s32 %v4468, %v4470
          %vm4474 = vc.u32 %v4468, %v4470
          %v4475 = vadd.s32 %v4471, 1
          %v4476 = vsel %vm4474, %v4475, %v4471
          %v4477 = vadd.s32 %v4472, %v4476
          %v4478 = vadd.s32 %v4477, 536870912
          %v4479 = vshrl.u32 %v4478, 30
          %v4480 = vshll.u32 %v4479, 30
          %v4481 = vsub.s32 %v4477, %v4480
          %vm4482 = vcmp.lt.s32.totalorder %v4481, 0
          %v4483 = vsub.s32 0, %v4481
          %v4484 = vsel %vm4482, %v4483, %v4481
          %v4485 = vclz %v4484
          %v4486 = vsub.s32 %v4485, 2
          %vm4487 = vcmp.gt.s32.totalorder 0, %v4486
          %v4488 = vsel %vm4487, 0, %v4486
          %v4489 = vsub.s32 32, %v4488
          %v4490 = vshll.u32 %v4481, %v4488
          %v4491 = vshrl.u32 %v4473, %v4489
          %v4492 = vor.u32 %v4490, %v4491
          %v4493 = vsub.s32 4294967266, %v4488
          %v4494 = vadd.s32 %v4493, 127
          %v4495 = vshll.u32 %v4494, 23
          %v4496 = vor.u32 4788187, %v4495
          %v4497 = vand.u32 2147483647, %v4496
          %v4499 = vcvt.s32.f32 %v4492
          %v4500 = vmul.f32 %v4499, %v4497
          %v4501 = vxor.u32 %v4500, 2147483648
          %v4502 = vsel %vm4419, %v4501, %v4500
          %v4503 = vsub.s32 4, %v4479
          %v4504 = vsel %vm4419, %v4503, %v4479
          %v4505 = vsel %vm4418, %v1529, %v4502
          %v4506 = vsel %vm4418, 0, %v4504
          %v4507 = vcosq.f32.pop %v4505
          %v4508 = vsinq.f32.pop %v4505
          %vm4509 = vweird.f32 %v1529
          %v4510 = vand.u32 %v4506, 3
          %vm4511 = vcmp.lt.s32.totalorder %v4510, 2
          %vm4512 = vcmp.eq.s32.totalorder %v4510, 0
          %v4513 = vxor.u32 %v4508, 2147483648
          %v4514 = vsel %vm4512, %v4507, %v4513
          %vm4515 = vcmp.eq.s32.totalorder %v4510, 2
          %v4516 = vxor.u32 %v4507, 2147483648
          %v4517 = vsel %vm4515, %v4516, %v4508
          %v4518 = vsel %vm4511, %v4514, %v4517
          %v4519 = vsel %vm4509, nan, %v4518
          %v4520 = vand.u32 2147483647, %v1530
          %vm4521 = vcmp.le.f32.partialorder %v4520, 0.7853982
          %vm4522 = vcmp.lt.s32.totalorder %v1530, 0
          %v4523 = vand.u32 %v1530, 2139095040
          %v4524 = vshrl.u32 %v4523, 23
          %v4525 = vsub.s32 %v4524, 127
          %v4526 = vand.u32 2147483647, %v1530
          %v4527 = vand.u32 %v4526, 8388607
          %v4528 = vor.u32 %v4527, 8388608
          %v4529 = vsub.s32 0, %v4528
          %v4530 = vadd.s32 %v4525, 1
          %vm4531 = vcmp.gt.s32.totalorder %v4530, 0
          %v4532 = vsel %vm4531, %v4530, 0
          %v4533 = vshrl.u32 %v4532, 5
          %v4534 = vand.u32 %v4532, 31
          %v4535 = vsub.s32 32, %v4534
          %v4536 = vshrl.u32 683565275, %v4535
          %v4537 = vshll.u32 683565275, %v4534
          %v4538 = vshrl.u32 2475754826, %v4535
          %v4539 = vor.u32 %v4537, %v4538
          %v4540 = vshll.u32 2475754826, %v4534
          %v4541 = vshrl.u32 2131351028, %v4535
          %v4542 = vor.u32 %v4540, %v4541
          %v4543 = vshll.u32 2131351028, %v4534
          %v4544 = vshrl.u32 2102212464, %v4535
          %v4545 = vor.u32 %v4543, %v4544
          %v4546 = vshll.u32 2102212464, %v4534
          %v4547 = vshrl.u32 920167782, %v4535
          %v4548 = vor.u32 %v4546, %v4547
          %v4549 = vshll.u32 920167782, %v4534
          %v4550 = vshrl.u32 1326507024, %v4535
          %v4551 = vor.u32 %v4549, %v4550
          %vm4552 = vcmp.lt.s32.totalorder %v4533, 1
          %vm4553 = vcmp.lt.s32.totalorder %v4533, 2
          %vm4554 = vcmp.lt.s32.totalorder %v4533, 3
          %vm4555 = vcmp.lt.s32.totalorder %v4533, 4
          %v4556 = vsel %vm4552, %v4536, %v4539
          %v4557 = vsel %vm4555, %v4545, 2102212464
          %v4558 = vsel %vm4554, %v4542, %v4557
          %v4559 = vsel %vm4553, %v4556, %v4558
          %v4560 = vsel %vm4552, %v4539, %v4542
          %v4561 = vsel %vm4555, %v4548, 920167782
          %v4562 = vsel %vm4554, %v4545, %v4561
          %v4563 = vsel %vm4553, %v4560, %v4562
          %v4564 = vsel %vm4552, %v4542, %v4545
          %v4565 = vsel %vm4555, %v4551, 1326507024
          %v4566 = vsel %vm4554, %v4548, %v4565
          %v4567 = vsel %vm4553, %v4564, %v4566
          %v4568 = vshll.u32 %v4528, 8
          %v4569 = vmul.u32.u64.compose %v4568, %v4567
          %v4570 = vextract.low.u32 %v4569
          %v4571 = vextract.high.u32 %v4569
          %v4572 = vmul.u32.u64.compose %v4568, %v4563
          %v4573 = vextract.low.u32 %v4572
          %v4574 = vextract.high.u32 %v4572
          %v4575 = vmul.u32 %v4568, %v4559
          %v4576 = vadd.s32 %v4571, %v4573
          %vm4577 = vc.u32 %v4571, %v4573
          %v4578 = vadd.s32 %v4574, 1
          %v4579 = vsel %vm4577, %v4578, %v4574
          %v4580 = vadd.s32 %v4575, %v4579
          %v4581 = vadd.s32 %v4580, 536870912
          %v4582 = vshrl.u32 %v4581, 30
          %v4583 = vshll.u32 %v4582, 30
          %v4584 = vsub.s32 %v4580, %v4583
          %vm4585 = vcmp.lt.s32.totalorder %v4584, 0
          %v4586 = vsub.s32 0, %v4584
          %v4587 = vsel %vm4585, %v4586, %v4584
          %v4588 = vclz %v4587
          %v4589 = vsub.s32 %v4588, 2
          %vm4590 = vcmp.gt.s32.totalorder 0, %v4589
          %v4591 = vsel %vm4590, 0, %v4589
          %v4592 = vsub.s32 32, %v4591
          %v4593 = vshll.u32 %v4584, %v4591
          %v4594 = vshrl.u32 %v4576, %v4592
          %v4595 = vor.u32 %v4593, %v4594
          %v4596 = vsub.s32 4294967266, %v4591
          %v4597 = vadd.s32 %v4596, 127
          %v4598 = vshll.u32 %v4597, 23
          %v4599 = vor.u32 4788187, %v4598
          %v4600 = vand.u32 2147483647, %v4599
          %v4602 = vcvt.s32.f32 %v4595
          %v4603 = vmul.f32 %v4602, %v4600
          %v4604 = vxor.u32 %v4603, 2147483648
          %v4605 = vsel %vm4522, %v4604, %v4603
          %v4606 = vsub.s32 4, %v4582
          %v4607 = vsel %vm4522, %v4606, %v4582
          %v4608 = vsel %vm4521, %v1530, %v4605
          %v4609 = vsel %vm4521, 0, %v4607
          %v4610 = vcosq.f32.pop %v4608
          %v4611 = vsinq.f32.pop %v4608
          %vm4612 = vweird.f32 %v1530
          %v4613 = vand.u32 %v4609, 3
          %vm4614 = vcmp.lt.s32.totalorder %v4613, 2
          %vm4615 = vcmp.eq.s32.totalorder %v4613, 0
          %v4616 = vxor.u32 %v4611, 2147483648
          %v4617 = vsel %vm4615, %v4610, %v4616
          %vm4618 = vcmp.eq.s32.totalorder %v4613, 2
          %v4619 = vxor.u32 %v4610, 2147483648
          %v4620 = vsel %vm4618, %v4619, %v4611
          %v4621 = vsel %vm4614, %v4617, %v4620
          %v4622 = vsel %vm4612, nan, %v4621
          %v4623 = vand.u32 2147483647, %v1531
          %vm4624 = vcmp.le.f32.partialorder %v4623, 0.7853982
          %vm4625 = vcmp.lt.s32.totalorder %v1531, 0
          %v4626 = vand.u32 %v1531, 2139095040
          %v4627 = vshrl.u32 %v4626, 23
          %v4628 = vsub.s32 %v4627, 127
          %v4629 = vand.u32 2147483647, %v1531
          %v4630 = vand.u32 %v4629, 8388607
          %v4631 = vor.u32 %v4630, 8388608
          %v4632 = vsub.s32 0, %v4631
          %v4633 = vadd.s32 %v4628, 1
          %vm4634 = vcmp.gt.s32.totalorder %v4633, 0
          %v4635 = vsel %vm4634, %v4633, 0
          %v4636 = vshrl.u32 %v4635, 5
          %v4637 = vand.u32 %v4635, 31
          %v4638 = vsub.s32 32, %v4637
          %v4639 = vshrl.u32 683565275, %v4638
          %v4640 = vshll.u32 683565275, %v4637
          %v4641 = vshrl.u32 2475754826, %v4638
          %v4642 = vor.u32 %v4640, %v4641
          %v4643 = vshll.u32 2475754826, %v4637
          %v4644 = vshrl.u32 2131351028, %v4638
          %v4645 = vor.u32 %v4643, %v4644
          %v4646 = vshll.u32 2131351028, %v4637
          %v4647 = vshrl.u32 2102212464, %v4638
          %v4648 = vor.u32 %v4646, %v4647
          %v4649 = vshll.u32 2102212464, %v4637
          %v4650 = vshrl.u32 920167782, %v4638
          %v4651 = vor.u32 %v4649, %v4650
          %v4652 = vshll.u32 920167782, %v4637
          %v4653 = vshrl.u32 1326507024, %v4638
          %v4654 = vor.u32 %v4652, %v4653
          %vm4655 = vcmp.lt.s32.totalorder %v4636, 1
          %vm4656 = vcmp.lt.s32.totalorder %v4636, 2
          %vm4657 = vcmp.lt.s32.totalorder %v4636, 3
          %vm4658 = vcmp.lt.s32.totalorder %v4636, 4
          %v4659 = vsel %vm4655, %v4639, %v4642
          %v4660 = vsel %vm4658, %v4648, 2102212464
          %v4661 = vsel %vm4657, %v4645, %v4660
          %v4662 = vsel %vm4656, %v4659, %v4661
          %v4663 = vsel %vm4655, %v4642, %v4645
          %v4664 = vsel %vm4658, %v4651, 920167782
          %v4665 = vsel %vm4657, %v4648, %v4664
          %v4666 = vsel %vm4656, %v4663, %v4665
          %v4667 = vsel %vm4655, %v4645, %v4648
          %v4668 = vsel %vm4658, %v4654, 1326507024
          %v4669 = vsel %vm4657, %v4651, %v4668
          %v4670 = vsel %vm4656, %v4667, %v4669
          %v4671 = vshll.u32 %v4631, 8
          %v4672 = vmul.u32.u64.compose %v4671, %v4670
          %v4673 = vextract.low.u32 %v4672
          %v4674 = vextract.high.u32 %v4672
          %v4675 = vmul.u32.u64.compose %v4671, %v4666
          %v4676 = vextract.low.u32 %v4675
          %v4677 = vextract.high.u32 %v4675
          %v4678 = vmul.u32 %v4671, %v4662
          %v4679 = vadd.s32 %v4674, %v4676
          %vm4680 = vc.u32 %v4674, %v4676
          %v4681 = vadd.s32 %v4677, 1
          %v4682 = vsel %vm4680, %v4681, %v4677
          %v4683 = vadd.s32 %v4678, %v4682
          %v4684 = vadd.s32 %v4683, 536870912
          %v4685 = vshrl.u32 %v4684, 30
          %v4686 = vshll.u32 %v4685, 30
          %v4687 = vsub.s32 %v4683, %v4686
          %vm4688 = vcmp.lt.s32.totalorder %v4687, 0
          %v4689 = vsub.s32 0, %v4687
          %v4690 = vsel %vm4688, %v4689, %v4687
          %v4691 = vclz %v4690
          %v4692 = vsub.s32 %v4691, 2
          %vm4693 = vcmp.gt.s32.totalorder 0, %v4692
          %v4694 = vsel %vm4693, 0, %v4692
          %v4695 = vsub.s32 32, %v4694
          %v4696 = vshll.u32 %v4687, %v4694
          %v4697 = vshrl.u32 %v4679, %v4695
          %v4698 = vor.u32 %v4696, %v4697
          %v4699 = vsub.s32 4294967266, %v4694
          %v4700 = vadd.s32 %v4699, 127
          %v4701 = vshll.u32 %v4700, 23
          %v4702 = vor.u32 4788187, %v4701
          %v4703 = vand.u32 2147483647, %v4702
          %v4705 = vcvt.s32.f32 %v4698
          %v4706 = vmul.f32 %v4705, %v4703
          %v4707 = vxor.u32 %v4706, 2147483648
          %v4708 = vsel %vm4625, %v4707, %v4706
          %v4709 = vsub.s32 4, %v4685
          %v4710 = vsel %vm4625, %v4709, %v4685
          %v4711 = vsel %vm4624, %v1531, %v4708
          %v4712 = vsel %vm4624, 0, %v4710
          %v4713 = vcosq.f32.pop %v4711
          %v4714 = vsinq.f32.pop %v4711
          %vm4715 = vweird.f32 %v1531
          %v4716 = vand.u32 %v4712, 3
          %vm4717 = vcmp.lt.s32.totalorder %v4716, 2
          %vm4718 = vcmp.eq.s32.totalorder %v4716, 0
          %v4719 = vxor.u32 %v4714, 2147483648
          %v4720 = vsel %vm4718, %v4713, %v4719
          %vm4721 = vcmp.eq.s32.totalorder %v4716, 2
          %v4722 = vxor.u32 %v4713, 2147483648
          %v4723 = vsel %vm4721, %v4722, %v4714
          %v4724 = vsel %vm4717, %v4720, %v4723
          %v4725 = vsel %vm4715, nan, %v4724
          %v4726 = vand.u32 2147483647, %v1532
          %vm4727 = vcmp.le.f32.partialorder %v4726, 0.7853982
          %vm4728 = vcmp.lt.s32.totalorder %v1532, 0
          %v4729 = vand.u32 %v1532, 2139095040
          %v4730 = vshrl.u32 %v4729, 23
          %v4731 = vsub.s32 %v4730, 127
          %v4732 = vand.u32 2147483647, %v1532
          %v4733 = vand.u32 %v4732, 8388607
          %v4734 = vor.u32 %v4733, 8388608
          %v4735 = vsub.s32 0, %v4734
          %v4736 = vadd.s32 %v4731, 1
          %vm4737 = vcmp.gt.s32.totalorder %v4736, 0
          %v4738 = vsel %vm4737, %v4736, 0
          %v4739 = vshrl.u32 %v4738, 5
          %v4740 = vand.u32 %v4738, 31
          %v4741 = vsub.s32 32, %v4740
          %v4742 = vshrl.u32 683565275, %v4741
          %v4743 = vshll.u32 683565275, %v4740
          %v4744 = vshrl.u32 2475754826, %v4741
          %v4745 = vor.u32 %v4743, %v4744
          %v4746 = vshll.u32 2475754826, %v4740
          %v4747 = vshrl.u32 2131351028, %v4741
          %v4748 = vor.u32 %v4746, %v4747
          %v4749 = vshll.u32 2131351028, %v4740
          %v4750 = vshrl.u32 2102212464, %v4741
          %v4751 = vor.u32 %v4749, %v4750
          %v4752 = vshll.u32 2102212464, %v4740
          %v4753 = vshrl.u32 920167782, %v4741
          %v4754 = vor.u32 %v4752, %v4753
          %v4755 = vshll.u32 920167782, %v4740
          %v4756 = vshrl.u32 1326507024, %v4741
          %v4757 = vor.u32 %v4755, %v4756
          %vm4758 = vcmp.lt.s32.totalorder %v4739, 1
          %vm4759 = vcmp.lt.s32.totalorder %v4739, 2
          %vm4760 = vcmp.lt.s32.totalorder %v4739, 3
          %vm4761 = vcmp.lt.s32.totalorder %v4739, 4
          %v4762 = vsel %vm4758, %v4742, %v4745
          %v4763 = vsel %vm4761, %v4751, 2102212464
          %v4764 = vsel %vm4760, %v4748, %v4763
          %v4765 = vsel %vm4759, %v4762, %v4764
          %v4766 = vsel %vm4758, %v4745, %v4748
          %v4767 = vsel %vm4761, %v4754, 920167782
          %v4768 = vsel %vm4760, %v4751, %v4767
          %v4769 = vsel %vm4759, %v4766, %v4768
          %v4770 = vsel %vm4758, %v4748, %v4751
          %v4771 = vsel %vm4761, %v4757, 1326507024
          %v4772 = vsel %vm4760, %v4754, %v4771
          %v4773 = vsel %vm4759, %v4770, %v4772
          %v4774 = vshll.u32 %v4734, 8
          %v4775 = vmul.u32.u64.compose %v4774, %v4773
          %v4776 = vextract.low.u32 %v4775
          %v4777 = vextract.high.u32 %v4775
          %v4778 = vmul.u32.u64.compose %v4774, %v4769
          %v4779 = vextract.low.u32 %v4778
          %v4780 = vextract.high.u32 %v4778
          %v4781 = vmul.u32 %v4774, %v4765
          %v4782 = vadd.s32 %v4777, %v4779
          %vm4783 = vc.u32 %v4777, %v4779
          %v4784 = vadd.s32 %v4780, 1
          %v4785 = vsel %vm4783, %v4784, %v4780
          %v4786 = vadd.s32 %v4781, %v4785
          %v4787 = vadd.s32 %v4786, 536870912
          %v4788 = vshrl.u32 %v4787, 30
          %v4789 = vshll.u32 %v4788, 30
          %v4790 = vsub.s32 %v4786, %v4789
          %vm4791 = vcmp.lt.s32.totalorder %v4790, 0
          %v4792 = vsub.s32 0, %v4790
          %v4793 = vsel %vm4791, %v4792, %v4790
          %v4794 = vclz %v4793
          %v4795 = vsub.s32 %v4794, 2
          %vm4796 = vcmp.gt.s32.totalorder 0, %v4795
          %v4797 = vsel %vm4796, 0, %v4795
          %v4798 = vsub.s32 32, %v4797
          %v4799 = vshll.u32 %v4790, %v4797
          %v4800 = vshrl.u32 %v4782, %v4798
          %v4801 = vor.u32 %v4799, %v4800
          %v4802 = vsub.s32 4294967266, %v4797
          %v4803 = vadd.s32 %v4802, 127
          %v4804 = vshll.u32 %v4803, 23
          %v4805 = vor.u32 4788187, %v4804
          %v4806 = vand.u32 2147483647, %v4805
          %v4808 = vcvt.s32.f32 %v4801
          %v4809 = vmul.f32 %v4808, %v4806
          %v4810 = vxor.u32 %v4809, 2147483648
          %v4811 = vsel %vm4728, %v4810, %v4809
          %v4812 = vsub.s32 4, %v4788
          %v4813 = vsel %vm4728, %v4812, %v4788
          %v4814 = vsel %vm4727, %v1532, %v4811
          %v4815 = vsel %vm4727, 0, %v4813
          %v4816 = vcosq.f32.pop %v4814
          %v4817 = vsinq.f32.pop %v4814
          %vm4818 = vweird.f32 %v1532
          %v4819 = vand.u32 %v4815, 3
          %vm4820 = vcmp.lt.s32.totalorder %v4819, 2
          %vm4821 = vcmp.eq.s32.totalorder %v4819, 0
          %v4822 = vxor.u32 %v4817, 2147483648
          %v4823 = vsel %vm4821, %v4816, %v4822
          %vm4824 = vcmp.eq.s32.totalorder %v4819, 2
          %v4825 = vxor.u32 %v4816, 2147483648
          %v4826 = vsel %vm4824, %v4825, %v4817
          %v4827 = vsel %vm4820, %v4823, %v4826
          %v4828 = vsel %vm4818, nan, %v4827
          %v4829 = vand.u32 2147483647, %v1501
          %vm4830 = vcmp.le.f32.partialorder %v4829, 0.7853982
          %vm4831 = vcmp.lt.s32.totalorder %v1501, 0
          %v4832 = vand.u32 %v1501, 2139095040
          %v4833 = vshrl.u32 %v4832, 23
          %v4834 = vsub.s32 %v4833, 127
          %v4835 = vand.u32 2147483647, %v1501
          %v4836 = vand.u32 %v4835, 8388607
          %v4837 = vor.u32 %v4836, 8388608
          %v4838 = vsub.s32 0, %v4837
          %v4839 = vadd.s32 %v4834, 1
          %vm4840 = vcmp.gt.s32.totalorder %v4839, 0
          %v4841 = vsel %vm4840, %v4839, 0
          %v4842 = vshrl.u32 %v4841, 5
          %v4843 = vand.u32 %v4841, 31
          %v4844 = vsub.s32 32, %v4843
          %v4845 = vshrl.u32 683565275, %v4844
          %v4846 = vshll.u32 683565275, %v4843
          %v4847 = vshrl.u32 2475754826, %v4844
          %v4848 = vor.u32 %v4846, %v4847
          %v4849 = vshll.u32 2475754826, %v4843
          %v4850 = vshrl.u32 2131351028, %v4844
          %v4851 = vor.u32 %v4849, %v4850
          %v4852 = vshll.u32 2131351028, %v4843
          %v4853 = vshrl.u32 2102212464, %v4844
          %v4854 = vor.u32 %v4852, %v4853
          %v4855 = vshll.u32 2102212464, %v4843
          %v4856 = vshrl.u32 920167782, %v4844
          %v4857 = vor.u32 %v4855, %v4856
          %v4858 = vshll.u32 920167782, %v4843
          %v4859 = vshrl.u32 1326507024, %v4844
          %v4860 = vor.u32 %v4858, %v4859
          %vm4861 = vcmp.lt.s32.totalorder %v4842, 1
          %vm4862 = vcmp.lt.s32.totalorder %v4842, 2
          %vm4863 = vcmp.lt.s32.totalorder %v4842, 3
          %vm4864 = vcmp.lt.s32.totalorder %v4842, 4
          %v4865 = vsel %vm4861, %v4845, %v4848
          %v4866 = vsel %vm4864, %v4854, 2102212464
          %v4867 = vsel %vm4863, %v4851, %v4866
          %v4868 = vsel %vm4862, %v4865, %v4867
          %v4869 = vsel %vm4861, %v4848, %v4851
          %v4870 = vsel %vm4864, %v4857, 920167782
          %v4871 = vsel %vm4863, %v4854, %v4870
          %v4872 = vsel %vm4862, %v4869, %v4871
          %v4873 = vsel %vm4861, %v4851, %v4854
          %v4874 = vsel %vm4864, %v4860, 1326507024
          %v4875 = vsel %vm4863, %v4857, %v4874
          %v4876 = vsel %vm4862, %v4873, %v4875
          %v4877 = vshll.u32 %v4837, 8
          %v4878 = vmul.u32.u64.compose %v4877, %v4876
          %v4879 = vextract.low.u32 %v4878
          %v4880 = vextract.high.u32 %v4878
          %v4881 = vmul.u32.u64.compose %v4877, %v4872
          %v4882 = vextract.low.u32 %v4881
          %v4883 = vextract.high.u32 %v4881
          %v4884 = vmul.u32 %v4877, %v4868
          %v4885 = vadd.s32 %v4880, %v4882
          %vm4886 = vc.u32 %v4880, %v4882
          %v4887 = vadd.s32 %v4883, 1
          %v4888 = vsel %vm4886, %v4887, %v4883
          %v4889 = vadd.s32 %v4884, %v4888
          %v4890 = vadd.s32 %v4889, 536870912
          %v4891 = vshrl.u32 %v4890, 30
          %v4892 = vshll.u32 %v4891, 30
          %v4893 = vsub.s32 %v4889, %v4892
          %vm4894 = vcmp.lt.s32.totalorder %v4893, 0
          %v4895 = vsub.s32 0, %v4893
          %v4896 = vsel %vm4894, %v4895, %v4893
          %v4897 = vclz %v4896
          %v4898 = vsub.s32 %v4897, 2
          %vm4899 = vcmp.gt.s32.totalorder 0, %v4898
          %v4900 = vsel %vm4899, 0, %v4898
          %v4901 = vsub.s32 32, %v4900
          %v4902 = vshll.u32 %v4893, %v4900
          %v4903 = vshrl.u32 %v4885, %v4901
          %v4904 = vor.u32 %v4902, %v4903
          %v4905 = vsub.s32 4294967266, %v4900
          %v4906 = vadd.s32 %v4905, 127
          %v4907 = vshll.u32 %v4906, 23
          %v4908 = vor.u32 4788187, %v4907
          %v4909 = vand.u32 2147483647, %v4908
          %v4911 = vcvt.s32.f32 %v4904
          %v4912 = vmul.f32 %v4911, %v4909
          %v4913 = vxor.u32 %v4912, 2147483648
          %v4914 = vsel %vm4831, %v4913, %v4912
          %v4915 = vsub.s32 4, %v4891
          %v4916 = vsel %vm4831, %v4915, %v4891
          %v4917 = vsel %vm4830, %v1501, %v4914
          %v4918 = vsel %vm4830, 0, %v4916
          %v4919 = vcosq.f32.pop %v4917
          %v4920 = vsinq.f32.pop %v4917
          %vm4921 = vweird.f32 %v1501
          %v4922 = vadd.s32 %v4918, 3
          %v4923 = vand.u32 %v4922, 3
          %vm4924 = vcmp.lt.s32.totalorder %v4923, 2
          %vm4925 = vcmp.eq.s32.totalorder %v4923, 0
          %v4926 = vxor.u32 %v4920, 2147483648
          %v4927 = vsel %vm4925, %v4919, %v4926
          %vm4928 = vcmp.eq.s32.totalorder %v4923, 2
          %v4929 = vxor.u32 %v4919, 2147483648
          %v4930 = vsel %vm4928, %v4929, %v4920
          %v4931 = vsel %vm4924, %v4927, %v4930
          %v4932 = vsel %vm4921, nan, %v4931
          %v4933 = vand.u32 2147483647, %v1502
          %vm4934 = vcmp.le.f32.partialorder %v4933, 0.7853982
          %vm4935 = vcmp.lt.s32.totalorder %v1502, 0
          %v4936 = vand.u32 %v1502, 2139095040
          %v4937 = vshrl.u32 %v4936, 23
          %v4938 = vsub.s32 %v4937, 127
          %v4939 = vand.u32 2147483647, %v1502
          %v4940 = vand.u32 %v4939, 8388607
          %v4941 = vor.u32 %v4940, 8388608
          %v4942 = vsub.s32 0, %v4941
          %v4943 = vadd.s32 %v4938, 1
          %vm4944 = vcmp.gt.s32.totalorder %v4943, 0
          %v4945 = vsel %vm4944, %v4943, 0
          %v4946 = vshrl.u32 %v4945, 5
          %v4947 = vand.u32 %v4945, 31
          %v4948 = vsub.s32 32, %v4947
          %v4949 = vshrl.u32 683565275, %v4948
          %v4950 = vshll.u32 683565275, %v4947
          %v4951 = vshrl.u32 2475754826, %v4948
          %v4952 = vor.u32 %v4950, %v4951
          %v4953 = vshll.u32 2475754826, %v4947
          %v4954 = vshrl.u32 2131351028, %v4948
          %v4955 = vor.u32 %v4953, %v4954
          %v4956 = vshll.u32 2131351028, %v4947
          %v4957 = vshrl.u32 2102212464, %v4948
          %v4958 = vor.u32 %v4956, %v4957
          %v4959 = vshll.u32 2102212464, %v4947
          %v4960 = vshrl.u32 920167782, %v4948
          %v4961 = vor.u32 %v4959, %v4960
          %v4962 = vshll.u32 920167782, %v4947
          %v4963 = vshrl.u32 1326507024, %v4948
          %v4964 = vor.u32 %v4962, %v4963
          %vm4965 = vcmp.lt.s32.totalorder %v4946, 1
          %vm4966 = vcmp.lt.s32.totalorder %v4946, 2
          %vm4967 = vcmp.lt.s32.totalorder %v4946, 3
          %vm4968 = vcmp.lt.s32.totalorder %v4946, 4
          %v4969 = vsel %vm4965, %v4949, %v4952
          %v4970 = vsel %vm4968, %v4958, 2102212464
          %v4971 = vsel %vm4967, %v4955, %v4970
          %v4972 = vsel %vm4966, %v4969, %v4971
          %v4973 = vsel %vm4965, %v4952, %v4955
          %v4974 = vsel %vm4968, %v4961, 920167782
          %v4975 = vsel %vm4967, %v4958, %v4974
          %v4976 = vsel %vm4966, %v4973, %v4975
          %v4977 = vsel %vm4965, %v4955, %v4958
          %v4978 = vsel %vm4968, %v4964, 1326507024
          %v4979 = vsel %vm4967, %v4961, %v4978
          %v4980 = vsel %vm4966, %v4977, %v4979
          %v4981 = vshll.u32 %v4941, 8
          %v4982 = vmul.u32.u64.compose %v4981, %v4980
          %v4983 = vextract.low.u32 %v4982
          %v4984 = vextract.high.u32 %v4982
          %v4985 = vmul.u32.u64.compose %v4981, %v4976
          %v4986 = vextract.low.u32 %v4985
          %v4987 = vextract.high.u32 %v4985
          %v4988 = vmul.u32 %v4981, %v4972
          %v4989 = vadd.s32 %v4984, %v4986
          %vm4990 = vc.u32 %v4984, %v4986
          %v4991 = vadd.s32 %v4987, 1
          %v4992 = vsel %vm4990, %v4991, %v4987
          %v4993 = vadd.s32 %v4988, %v4992
          %v4994 = vadd.s32 %v4993, 536870912
          %v4995 = vshrl.u32 %v4994, 30
          %v4996 = vshll.u32 %v4995, 30
          %v4997 = vsub.s32 %v4993, %v4996
          %vm4998 = vcmp.lt.s32.totalorder %v4997, 0
          %v4999 = vsub.s32 0, %v4997
          %v5000 = vsel %vm4998, %v4999, %v4997
          %v5001 = vclz %v5000
          %v5002 = vsub.s32 %v5001, 2
          %vm5003 = vcmp.gt.s32.totalorder 0, %v5002
          %v5004 = vsel %vm5003, 0, %v5002
          %v5005 = vsub.s32 32, %v5004
          %v5006 = vshll.u32 %v4997, %v5004
          %v5007 = vshrl.u32 %v4989, %v5005
          %v5008 = vor.u32 %v5006, %v5007
          %v5009 = vsub.s32 4294967266, %v5004
          %v5010 = vadd.s32 %v5009, 127
          %v5011 = vshll.u32 %v5010, 23
          %v5012 = vor.u32 4788187, %v5011
          %v5013 = vand.u32 2147483647, %v5012
          %v5015 = vcvt.s32.f32 %v5008
          %v5016 = vmul.f32 %v5015, %v5013
          %v5017 = vxor.u32 %v5016, 2147483648
          %v5018 = vsel %vm4935, %v5017, %v5016
          %v5019 = vsub.s32 4, %v4995
          %v5020 = vsel %vm4935, %v5019, %v4995
          %v5021 = vsel %vm4934, %v1502, %v5018
          %v5022 = vsel %vm4934, 0, %v5020
          %v5023 = vcosq.f32.pop %v5021
          %v5024 = vsinq.f32.pop %v5021
          %vm5025 = vweird.f32 %v1502
          %v5026 = vadd.s32 %v5022, 3
          %v5027 = vand.u32 %v5026, 3
          %vm5028 = vcmp.lt.s32.totalorder %v5027, 2
          %vm5029 = vcmp.eq.s32.totalorder %v5027, 0
          %v5030 = vxor.u32 %v5024, 2147483648
          %v5031 = vsel %vm5029, %v5023, %v5030
          %vm5032 = vcmp.eq.s32.totalorder %v5027, 2
          %v5033 = vxor.u32 %v5023, 2147483648
          %v5034 = vsel %vm5032, %v5033, %v5024
          %v5035 = vsel %vm5028, %v5031, %v5034
          %v5036 = vsel %vm5025, nan, %v5035
          %v5037 = vand.u32 2147483647, %v1503
          %vm5038 = vcmp.le.f32.partialorder %v5037, 0.7853982
          %vm5039 = vcmp.lt.s32.totalorder %v1503, 0
          %v5040 = vand.u32 %v1503, 2139095040
          %v5041 = vshrl.u32 %v5040, 23
          %v5042 = vsub.s32 %v5041, 127
          %v5043 = vand.u32 2147483647, %v1503
          %v5044 = vand.u32 %v5043, 8388607
          %v5045 = vor.u32 %v5044, 8388608
          %v5046 = vsub.s32 0, %v5045
          %v5047 = vadd.s32 %v5042, 1
          %vm5048 = vcmp.gt.s32.totalorder %v5047, 0
          %v5049 = vsel %vm5048, %v5047, 0
          %v5050 = vshrl.u32 %v5049, 5
          %v5051 = vand.u32 %v5049, 31
          %v5052 = vsub.s32 32, %v5051
          %v5053 = vshrl.u32 683565275, %v5052
          %v5054 = vshll.u32 683565275, %v5051
          %v5055 = vshrl.u32 2475754826, %v5052
          %v5056 = vor.u32 %v5054, %v5055
          %v5057 = vshll.u32 2475754826, %v5051
          %v5058 = vshrl.u32 2131351028, %v5052
          %v5059 = vor.u32 %v5057, %v5058
          %v5060 = vshll.u32 2131351028, %v5051
          %v5061 = vshrl.u32 2102212464, %v5052
          %v5062 = vor.u32 %v5060, %v5061
          %v5063 = vshll.u32 2102212464, %v5051
          %v5064 = vshrl.u32 920167782, %v5052
          %v5065 = vor.u32 %v5063, %v5064
          %v5066 = vshll.u32 920167782, %v5051
          %v5067 = vshrl.u32 1326507024, %v5052
          %v5068 = vor.u32 %v5066, %v5067
          %vm5069 = vcmp.lt.s32.totalorder %v5050, 1
          %vm5070 = vcmp.lt.s32.totalorder %v5050, 2
          %vm5071 = vcmp.lt.s32.totalorder %v5050, 3
          %vm5072 = vcmp.lt.s32.totalorder %v5050, 4
          %v5073 = vsel %vm5069, %v5053, %v5056
          %v5074 = vsel %vm5072, %v5062, 2102212464
          %v5075 = vsel %vm5071, %v5059, %v5074
          %v5076 = vsel %vm5070, %v5073, %v5075
          %v5077 = vsel %vm5069, %v5056, %v5059
          %v5078 = vsel %vm5072, %v5065, 920167782
          %v5079 = vsel %vm5071, %v5062, %v5078
          %v5080 = vsel %vm5070, %v5077, %v5079
          %v5081 = vsel %vm5069, %v5059, %v5062
          %v5082 = vsel %vm5072, %v5068, 1326507024
          %v5083 = vsel %vm5071, %v5065, %v5082
          %v5084 = vsel %vm5070, %v5081, %v5083
          %v5085 = vshll.u32 %v5045, 8
          %v5086 = vmul.u32.u64.compose %v5085, %v5084
          %v5087 = vextract.low.u32 %v5086
          %v5088 = vextract.high.u32 %v5086
          %v5089 = vmul.u32.u64.compose %v5085, %v5080
          %v5090 = vextract.low.u32 %v5089
          %v5091 = vextract.high.u32 %v5089
          %v5092 = vmul.u32 %v5085, %v5076
          %v5093 = vadd.s32 %v5088, %v5090
          %vm5094 = vc.u32 %v5088, %v5090
          %v5095 = vadd.s32 %v5091, 1
          %v5096 = vsel %vm5094, %v5095, %v5091
          %v5097 = vadd.s32 %v5092, %v5096
          %v5098 = vadd.s32 %v5097, 536870912
          %v5099 = vshrl.u32 %v5098, 30
          %v5100 = vshll.u32 %v5099, 30
          %v5101 = vsub.s32 %v5097, %v5100
          %vm5102 = vcmp.lt.s32.totalorder %v5101, 0
          %v5103 = vsub.s32 0, %v5101
          %v5104 = vsel %vm5102, %v5103, %v5101
          %v5105 = vclz %v5104
          %v5106 = vsub.s32 %v5105, 2
          %vm5107 = vcmp.gt.s32.totalorder 0, %v5106
          %v5108 = vsel %vm5107, 0, %v5106
          %v5109 = vsub.s32 32, %v5108
          %v5110 = vshll.u32 %v5101, %v5108
          %v5111 = vshrl.u32 %v5093, %v5109
          %v5112 = vor.u32 %v5110, %v5111
          %v5113 = vsub.s32 4294967266, %v5108
          %v5114 = vadd.s32 %v5113, 127
          %v5115 = vshll.u32 %v5114, 23
          %v5116 = vor.u32 4788187, %v5115
          %v5117 = vand.u32 2147483647, %v5116
          %v5119 = vcvt.s32.f32 %v5112
          %v5120 = vmul.f32 %v5119, %v5117
          %v5121 = vxor.u32 %v5120, 2147483648
          %v5122 = vsel %vm5039, %v5121, %v5120
          %v5123 = vsub.s32 4, %v5099
          %v5124 = vsel %vm5039, %v5123, %v5099
          %v5125 = vsel %vm5038, %v1503, %v5122
          %v5126 = vsel %vm5038, 0, %v5124
          %v5127 = vcosq.f32.pop %v5125
          %v5128 = vsinq.f32.pop %v5125
          %vm5129 = vweird.f32 %v1503
          %v5130 = vadd.s32 %v5126, 3
          %v5131 = vand.u32 %v5130, 3
          %vm5132 = vcmp.lt.s32.totalorder %v5131, 2
          %vm5133 = vcmp.eq.s32.totalorder %v5131, 0
          %v5134 = vxor.u32 %v5128, 2147483648
          %v5135 = vsel %vm5133, %v5127, %v5134
          %vm5136 = vcmp.eq.s32.totalorder %v5131, 2
          %v5137 = vxor.u32 %v5127, 2147483648
          %v5138 = vsel %vm5136, %v5137, %v5128
          %v5139 = vsel %vm5132, %v5135, %v5138
          %v5140 = vsel %vm5129, nan, %v5139
          %v5141 = vand.u32 2147483647, %v1504
          %vm5142 = vcmp.le.f32.partialorder %v5141, 0.7853982
          %vm5143 = vcmp.lt.s32.totalorder %v1504, 0
          %v5144 = vand.u32 %v1504, 2139095040
          %v5145 = vshrl.u32 %v5144, 23
          %v5146 = vsub.s32 %v5145, 127
          %v5147 = vand.u32 2147483647, %v1504
          %v5148 = vand.u32 %v5147, 8388607
          %v5149 = vor.u32 %v5148, 8388608
          %v5150 = vsub.s32 0, %v5149
          %v5151 = vadd.s32 %v5146, 1
          %vm5152 = vcmp.gt.s32.totalorder %v5151, 0
          %v5153 = vsel %vm5152, %v5151, 0
          %v5154 = vshrl.u32 %v5153, 5
          %v5155 = vand.u32 %v5153, 31
          %v5156 = vsub.s32 32, %v5155
          %v5157 = vshrl.u32 683565275, %v5156
          %v5158 = vshll.u32 683565275, %v5155
          %v5159 = vshrl.u32 2475754826, %v5156
          %v5160 = vor.u32 %v5158, %v5159
          %v5161 = vshll.u32 2475754826, %v5155
          %v5162 = vshrl.u32 2131351028, %v5156
          %v5163 = vor.u32 %v5161, %v5162
          %v5164 = vshll.u32 2131351028, %v5155
          %v5165 = vshrl.u32 2102212464, %v5156
          %v5166 = vor.u32 %v5164, %v5165
          %v5167 = vshll.u32 2102212464, %v5155
          %v5168 = vshrl.u32 920167782, %v5156
          %v5169 = vor.u32 %v5167, %v5168
          %v5170 = vshll.u32 920167782, %v5155
          %v5171 = vshrl.u32 1326507024, %v5156
          %v5172 = vor.u32 %v5170, %v5171
          %vm5173 = vcmp.lt.s32.totalorder %v5154, 1
          %vm5174 = vcmp.lt.s32.totalorder %v5154, 2
          %vm5175 = vcmp.lt.s32.totalorder %v5154, 3
          %vm5176 = vcmp.lt.s32.totalorder %v5154, 4
          %v5177 = vsel %vm5173, %v5157, %v5160
          %v5178 = vsel %vm5176, %v5166, 2102212464
          %v5179 = vsel %vm5175, %v5163, %v5178
          %v5180 = vsel %vm5174, %v5177, %v5179
          %v5181 = vsel %vm5173, %v5160, %v5163
          %v5182 = vsel %vm5176, %v5169, 920167782
          %v5183 = vsel %vm5175, %v5166, %v5182
          %v5184 = vsel %vm5174, %v5181, %v5183
          %v5185 = vsel %vm5173, %v5163, %v5166
          %v5186 = vsel %vm5176, %v5172, 1326507024
          %v5187 = vsel %vm5175, %v5169, %v5186
          %v5188 = vsel %vm5174, %v5185, %v5187
          %v5189 = vshll.u32 %v5149, 8
          %v5190 = vmul.u32.u64.compose %v5189, %v5188
          %v5191 = vextract.low.u32 %v5190
          %v5192 = vextract.high.u32 %v5190
          %v5193 = vmul.u32.u64.compose %v5189, %v5184
          %v5194 = vextract.low.u32 %v5193
          %v5195 = vextract.high.u32 %v5193
          %v5196 = vmul.u32 %v5189, %v5180
          %v5197 = vadd.s32 %v5192, %v5194
          %vm5198 = vc.u32 %v5192, %v5194
          %v5199 = vadd.s32 %v5195, 1
          %v5200 = vsel %vm5198, %v5199, %v5195
          %v5201 = vadd.s32 %v5196, %v5200
          %v5202 = vadd.s32 %v5201, 536870912
          %v5203 = vshrl.u32 %v5202, 30
          %v5204 = vshll.u32 %v5203, 30
          %v5205 = vsub.s32 %v5201, %v5204
          %vm5206 = vcmp.lt.s32.totalorder %v5205, 0
          %v5207 = vsub.s32 0, %v5205
          %v5208 = vsel %vm5206, %v5207, %v5205
          %v5209 = vclz %v5208
          %v5210 = vsub.s32 %v5209, 2
          %vm5211 = vcmp.gt.s32.totalorder 0, %v5210
          %v5212 = vsel %vm5211, 0, %v5210
          %v5213 = vsub.s32 32, %v5212
          %v5214 = vshll.u32 %v5205, %v5212
          %v5215 = vshrl.u32 %v5197, %v5213
          %v5216 = vor.u32 %v5214, %v5215
          %v5217 = vsub.s32 4294967266, %v5212
          %v5218 = vadd.s32 %v5217, 127
          %v5219 = vshll.u32 %v5218, 23
          %v5220 = vor.u32 4788187, %v5219
          %v5221 = vand.u32 2147483647, %v5220
          %v5223 = vcvt.s32.f32 %v5216
          %v5224 = vmul.f32 %v5223, %v5221
          %v5225 = vxor.u32 %v5224, 2147483648
          %v5226 = vsel %vm5143, %v5225, %v5224
          %v5227 = vsub.s32 4, %v5203
          %v5228 = vsel %vm5143, %v5227, %v5203
          %v5229 = vsel %vm5142, %v1504, %v5226
          %v5230 = vsel %vm5142, 0, %v5228
          %v5231 = vcosq.f32.pop %v5229
          %v5232 = vsinq.f32.pop %v5229
          %vm5233 = vweird.f32 %v1504
          %v5234 = vadd.s32 %v5230, 3
          %v5235 = vand.u32 %v5234, 3
          %vm5236 = vcmp.lt.s32.totalorder %v5235, 2
          %vm5237 = vcmp.eq.s32.totalorder %v5235, 0
          %v5238 = vxor.u32 %v5232, 2147483648
          %v5239 = vsel %vm5237, %v5231, %v5238
          %vm5240 = vcmp.eq.s32.totalorder %v5235, 2
          %v5241 = vxor.u32 %v5231, 2147483648
          %v5242 = vsel %vm5240, %v5241, %v5232
          %v5243 = vsel %vm5236, %v5239, %v5242
          %v5244 = vsel %vm5233, nan, %v5243
          %v5245 = vand.u32 2147483647, %v1505
          %vm5246 = vcmp.le.f32.partialorder %v5245, 0.7853982
          %vm5247 = vcmp.lt.s32.totalorder %v1505, 0
          %v5248 = vand.u32 %v1505, 2139095040
          %v5249 = vshrl.u32 %v5248, 23
          %v5250 = vsub.s32 %v5249, 127
          %v5251 = vand.u32 2147483647, %v1505
          %v5252 = vand.u32 %v5251, 8388607
          %v5253 = vor.u32 %v5252, 8388608
          %v5254 = vsub.s32 0, %v5253
          %v5255 = vadd.s32 %v5250, 1
          %vm5256 = vcmp.gt.s32.totalorder %v5255, 0
          %v5257 = vsel %vm5256, %v5255, 0
          %v5258 = vshrl.u32 %v5257, 5
          %v5259 = vand.u32 %v5257, 31
          %v5260 = vsub.s32 32, %v5259
          %v5261 = vshrl.u32 683565275, %v5260
          %v5262 = vshll.u32 683565275, %v5259
          %v5263 = vshrl.u32 2475754826, %v5260
          %v5264 = vor.u32 %v5262, %v5263
          %v5265 = vshll.u32 2475754826, %v5259
          %v5266 = vshrl.u32 2131351028, %v5260
          %v5267 = vor.u32 %v5265, %v5266
          %v5268 = vshll.u32 2131351028, %v5259
          %v5269 = vshrl.u32 2102212464, %v5260
          %v5270 = vor.u32 %v5268, %v5269
          %v5271 = vshll.u32 2102212464, %v5259
          %v5272 = vshrl.u32 920167782, %v5260
          %v5273 = vor.u32 %v5271, %v5272
          %v5274 = vshll.u32 920167782, %v5259
          %v5275 = vshrl.u32 1326507024, %v5260
          %v5276 = vor.u32 %v5274, %v5275
          %vm5277 = vcmp.lt.s32.totalorder %v5258, 1
          %vm5278 = vcmp.lt.s32.totalorder %v5258, 2
          %vm5279 = vcmp.lt.s32.totalorder %v5258, 3
          %vm5280 = vcmp.lt.s32.totalorder %v5258, 4
          %v5281 = vsel %vm5277, %v5261, %v5264
          %v5282 = vsel %vm5280, %v5270, 2102212464
          %v5283 = vsel %vm5279, %v5267, %v5282
          %v5284 = vsel %vm5278, %v5281, %v5283
          %v5285 = vsel %vm5277, %v5264, %v5267
          %v5286 = vsel %vm5280, %v5273, 920167782
          %v5287 = vsel %vm5279, %v5270, %v5286
          %v5288 = vsel %vm5278, %v5285, %v5287
          %v5289 = vsel %vm5277, %v5267, %v5270
          %v5290 = vsel %vm5280, %v5276, 1326507024
          %v5291 = vsel %vm5279, %v5273, %v5290
          %v5292 = vsel %vm5278, %v5289, %v5291
          %v5293 = vshll.u32 %v5253, 8
          %v5294 = vmul.u32.u64.compose %v5293, %v5292
          %v5295 = vextract.low.u32 %v5294
          %v5296 = vextract.high.u32 %v5294
          %v5297 = vmul.u32.u64.compose %v5293, %v5288
          %v5298 = vextract.low.u32 %v5297
          %v5299 = vextract.high.u32 %v5297
          %v5300 = vmul.u32 %v5293, %v5284
          %v5301 = vadd.s32 %v5296, %v5298
          %vm5302 = vc.u32 %v5296, %v5298
          %v5303 = vadd.s32 %v5299, 1
          %v5304 = vsel %vm5302, %v5303, %v5299
          %v5305 = vadd.s32 %v5300, %v5304
          %v5306 = vadd.s32 %v5305, 536870912
          %v5307 = vshrl.u32 %v5306, 30
          %v5308 = vshll.u32 %v5307, 30
          %v5309 = vsub.s32 %v5305, %v5308
          %vm5310 = vcmp.lt.s32.totalorder %v5309, 0
          %v5311 = vsub.s32 0, %v5309
          %v5312 = vsel %vm5310, %v5311, %v5309
          %v5313 = vclz %v5312
          %v5314 = vsub.s32 %v5313, 2
          %vm5315 = vcmp.gt.s32.totalorder 0, %v5314
          %v5316 = vsel %vm5315, 0, %v5314
          %v5317 = vsub.s32 32, %v5316
          %v5318 = vshll.u32 %v5309, %v5316
          %v5319 = vshrl.u32 %v5301, %v5317
          %v5320 = vor.u32 %v5318, %v5319
          %v5321 = vsub.s32 4294967266, %v5316
          %v5322 = vadd.s32 %v5321, 127
          %v5323 = vshll.u32 %v5322, 23
          %v5324 = vor.u32 4788187, %v5323
          %v5325 = vand.u32 2147483647, %v5324
          %v5327 = vcvt.s32.f32 %v5320
          %v5328 = vmul.f32 %v5327, %v5325
          %v5329 = vxor.u32 %v5328, 2147483648
          %v5330 = vsel %vm5247, %v5329, %v5328
          %v5331 = vsub.s32 4, %v5307
          %v5332 = vsel %vm5247, %v5331, %v5307
          %v5333 = vsel %vm5246, %v1505, %v5330
          %v5334 = vsel %vm5246, 0, %v5332
          %v5335 = vcosq.f32.pop %v5333
          %v5336 = vsinq.f32.pop %v5333
          %vm5337 = vweird.f32 %v1505
          %v5338 = vadd.s32 %v5334, 3
          %v5339 = vand.u32 %v5338, 3
          %vm5340 = vcmp.lt.s32.totalorder %v5339, 2
          %vm5341 = vcmp.eq.s32.totalorder %v5339, 0
          %v5342 = vxor.u32 %v5336, 2147483648
          %v5343 = vsel %vm5341, %v5335, %v5342
          %vm5344 = vcmp.eq.s32.totalorder %v5339, 2
          %v5345 = vxor.u32 %v5335, 2147483648
          %v5346 = vsel %vm5344, %v5345, %v5336
          %v5347 = vsel %vm5340, %v5343, %v5346
          %v5348 = vsel %vm5337, nan, %v5347
          %v5349 = vand.u32 2147483647, %v1506
          %vm5350 = vcmp.le.f32.partialorder %v5349, 0.7853982
          %vm5351 = vcmp.lt.s32.totalorder %v1506, 0
          %v5352 = vand.u32 %v1506, 2139095040
          %v5353 = vshrl.u32 %v5352, 23
          %v5354 = vsub.s32 %v5353, 127
          %v5355 = vand.u32 2147483647, %v1506
          %v5356 = vand.u32 %v5355, 8388607
          %v5357 = vor.u32 %v5356, 8388608
          %v5358 = vsub.s32 0, %v5357
          %v5359 = vadd.s32 %v5354, 1
          %vm5360 = vcmp.gt.s32.totalorder %v5359, 0
          %v5361 = vsel %vm5360, %v5359, 0
          %v5362 = vshrl.u32 %v5361, 5
          %v5363 = vand.u32 %v5361, 31
          %v5364 = vsub.s32 32, %v5363
          %v5365 = vshrl.u32 683565275, %v5364
          %v5366 = vshll.u32 683565275, %v5363
          %v5367 = vshrl.u32 2475754826, %v5364
          %v5368 = vor.u32 %v5366, %v5367
          %v5369 = vshll.u32 2475754826, %v5363
          %v5370 = vshrl.u32 2131351028, %v5364
          %v5371 = vor.u32 %v5369, %v5370
          %v5372 = vshll.u32 2131351028, %v5363
          %v5373 = vshrl.u32 2102212464, %v5364
          %v5374 = vor.u32 %v5372, %v5373
          %v5375 = vshll.u32 2102212464, %v5363
          %v5376 = vshrl.u32 920167782, %v5364
          %v5377 = vor.u32 %v5375, %v5376
          %v5378 = vshll.u32 920167782, %v5363
          %v5379 = vshrl.u32 1326507024, %v5364
          %v5380 = vor.u32 %v5378, %v5379
          %vm5381 = vcmp.lt.s32.totalorder %v5362, 1
          %vm5382 = vcmp.lt.s32.totalorder %v5362, 2
          %vm5383 = vcmp.lt.s32.totalorder %v5362, 3
          %vm5384 = vcmp.lt.s32.totalorder %v5362, 4
          %v5385 = vsel %vm5381, %v5365, %v5368
          %v5386 = vsel %vm5384, %v5374, 2102212464
          %v5387 = vsel %vm5383, %v5371, %v5386
          %v5388 = vsel %vm5382, %v5385, %v5387
          %v5389 = vsel %vm5381, %v5368, %v5371
          %v5390 = vsel %vm5384, %v5377, 920167782
          %v5391 = vsel %vm5383, %v5374, %v5390
          %v5392 = vsel %vm5382, %v5389, %v5391
          %v5393 = vsel %vm5381, %v5371, %v5374
          %v5394 = vsel %vm5384, %v5380, 1326507024
          %v5395 = vsel %vm5383, %v5377, %v5394
          %v5396 = vsel %vm5382, %v5393, %v5395
          %v5397 = vshll.u32 %v5357, 8
          %v5398 = vmul.u32.u64.compose %v5397, %v5396
          %v5399 = vextract.low.u32 %v5398
          %v5400 = vextract.high.u32 %v5398
          %v5401 = vmul.u32.u64.compose %v5397, %v5392
          %v5402 = vextract.low.u32 %v5401
          %v5403 = vextract.high.u32 %v5401
          %v5404 = vmul.u32 %v5397, %v5388
          %v5405 = vadd.s32 %v5400, %v5402
          %vm5406 = vc.u32 %v5400, %v5402
          %v5407 = vadd.s32 %v5403, 1
          %v5408 = vsel %vm5406, %v5407, %v5403
          %v5409 = vadd.s32 %v5404, %v5408
          %v5410 = vadd.s32 %v5409, 536870912
          %v5411 = vshrl.u32 %v5410, 30
          %v5412 = vshll.u32 %v5411, 30
          %v5413 = vsub.s32 %v5409, %v5412
          %vm5414 = vcmp.lt.s32.totalorder %v5413, 0
          %v5415 = vsub.s32 0, %v5413
          %v5416 = vsel %vm5414, %v5415, %v5413
          %v5417 = vclz %v5416
          %v5418 = vsub.s32 %v5417, 2
          %vm5419 = vcmp.gt.s32.totalorder 0, %v5418
          %v5420 = vsel %vm5419, 0, %v5418
          %v5421 = vsub.s32 32, %v5420
          %v5422 = vshll.u32 %v5413, %v5420
          %v5423 = vshrl.u32 %v5405, %v5421
          %v5424 = vor.u32 %v5422, %v5423
          %v5425 = vsub.s32 4294967266, %v5420
          %v5426 = vadd.s32 %v5425, 127
          %v5427 = vshll.u32 %v5426, 23
          %v5428 = vor.u32 4788187, %v5427
          %v5429 = vand.u32 2147483647, %v5428
          %v5431 = vcvt.s32.f32 %v5424
          %v5432 = vmul.f32 %v5431, %v5429
          %v5433 = vxor.u32 %v5432, 2147483648
          %v5434 = vsel %vm5351, %v5433, %v5432
          %v5435 = vsub.s32 4, %v5411
          %v5436 = vsel %vm5351, %v5435, %v5411
          %v5437 = vsel %vm5350, %v1506, %v5434
          %v5438 = vsel %vm5350, 0, %v5436
          %v5439 = vcosq.f32.pop %v5437
          %v5440 = vsinq.f32.pop %v5437
          %vm5441 = vweird.f32 %v1506
          %v5442 = vadd.s32 %v5438, 3
          %v5443 = vand.u32 %v5442, 3
          %vm5444 = vcmp.lt.s32.totalorder %v5443, 2
          %vm5445 = vcmp.eq.s32.totalorder %v5443, 0
          %v5446 = vxor.u32 %v5440, 2147483648
          %v5447 = vsel %vm5445, %v5439, %v5446
          %vm5448 = vcmp.eq.s32.totalorder %v5443, 2
          %v5449 = vxor.u32 %v5439, 2147483648
          %v5450 = vsel %vm5448, %v5449, %v5440
          %v5451 = vsel %vm5444, %v5447, %v5450
          %v5452 = vsel %vm5441, nan, %v5451
          %v5453 = vand.u32 2147483647, %v1507
          %vm5454 = vcmp.le.f32.partialorder %v5453, 0.7853982
          %vm5455 = vcmp.lt.s32.totalorder %v1507, 0
          %v5456 = vand.u32 %v1507, 2139095040
          %v5457 = vshrl.u32 %v5456, 23
          %v5458 = vsub.s32 %v5457, 127
          %v5459 = vand.u32 2147483647, %v1507
          %v5460 = vand.u32 %v5459, 8388607
          %v5461 = vor.u32 %v5460, 8388608
          %v5462 = vsub.s32 0, %v5461
          %v5463 = vadd.s32 %v5458, 1
          %vm5464 = vcmp.gt.s32.totalorder %v5463, 0
          %v5465 = vsel %vm5464, %v5463, 0
          %v5466 = vshrl.u32 %v5465, 5
          %v5467 = vand.u32 %v5465, 31
          %v5468 = vsub.s32 32, %v5467
          %v5469 = vshrl.u32 683565275, %v5468
          %v5470 = vshll.u32 683565275, %v5467
          %v5471 = vshrl.u32 2475754826, %v5468
          %v5472 = vor.u32 %v5470, %v5471
          %v5473 = vshll.u32 2475754826, %v5467
          %v5474 = vshrl.u32 2131351028, %v5468
          %v5475 = vor.u32 %v5473, %v5474
          %v5476 = vshll.u32 2131351028, %v5467
          %v5477 = vshrl.u32 2102212464, %v5468
          %v5478 = vor.u32 %v5476, %v5477
          %v5479 = vshll.u32 2102212464, %v5467
          %v5480 = vshrl.u32 920167782, %v5468
          %v5481 = vor.u32 %v5479, %v5480
          %v5482 = vshll.u32 920167782, %v5467
          %v5483 = vshrl.u32 1326507024, %v5468
          %v5484 = vor.u32 %v5482, %v5483
          %vm5485 = vcmp.lt.s32.totalorder %v5466, 1
          %vm5486 = vcmp.lt.s32.totalorder %v5466, 2
          %vm5487 = vcmp.lt.s32.totalorder %v5466, 3
          %vm5488 = vcmp.lt.s32.totalorder %v5466, 4
          %v5489 = vsel %vm5485, %v5469, %v5472
          %v5490 = vsel %vm5488, %v5478, 2102212464
          %v5491 = vsel %vm5487, %v5475, %v5490
          %v5492 = vsel %vm5486, %v5489, %v5491
          %v5493 = vsel %vm5485, %v5472, %v5475
          %v5494 = vsel %vm5488, %v5481, 920167782
          %v5495 = vsel %vm5487, %v5478, %v5494
          %v5496 = vsel %vm5486, %v5493, %v5495
          %v5497 = vsel %vm5485, %v5475, %v5478
          %v5498 = vsel %vm5488, %v5484, 1326507024
          %v5499 = vsel %vm5487, %v5481, %v5498
          %v5500 = vsel %vm5486, %v5497, %v5499
          %v5501 = vshll.u32 %v5461, 8
          %v5502 = vmul.u32.u64.compose %v5501, %v5500
          %v5503 = vextract.low.u32 %v5502
          %v5504 = vextract.high.u32 %v5502
          %v5505 = vmul.u32.u64.compose %v5501, %v5496
          %v5506 = vextract.low.u32 %v5505
          %v5507 = vextract.high.u32 %v5505
          %v5508 = vmul.u32 %v5501, %v5492
          %v5509 = vadd.s32 %v5504, %v5506
          %vm5510 = vc.u32 %v5504, %v5506
          %v5511 = vadd.s32 %v5507, 1
          %v5512 = vsel %vm5510, %v5511, %v5507
          %v5513 = vadd.s32 %v5508, %v5512
          %v5514 = vadd.s32 %v5513, 536870912
          %v5515 = vshrl.u32 %v5514, 30
          %v5516 = vshll.u32 %v5515, 30
          %v5517 = vsub.s32 %v5513, %v5516
          %vm5518 = vcmp.lt.s32.totalorder %v5517, 0
          %v5519 = vsub.s32 0, %v5517
          %v5520 = vsel %vm5518, %v5519, %v5517
          %v5521 = vclz %v5520
          %v5522 = vsub.s32 %v5521, 2
          %vm5523 = vcmp.gt.s32.totalorder 0, %v5522
          %v5524 = vsel %vm5523, 0, %v5522
          %v5525 = vsub.s32 32, %v5524
          %v5526 = vshll.u32 %v5517, %v5524
          %v5527 = vshrl.u32 %v5509, %v5525
          %v5528 = vor.u32 %v5526, %v5527
          %v5529 = vsub.s32 4294967266, %v5524
          %v5530 = vadd.s32 %v5529, 127
          %v5531 = vshll.u32 %v5530, 23
          %v5532 = vor.u32 4788187, %v5531
          %v5533 = vand.u32 2147483647, %v5532
          %v5535 = vcvt.s32.f32 %v5528
          %v5536 = vmul.f32 %v5535, %v5533
          %v5537 = vxor.u32 %v5536, 2147483648
          %v5538 = vsel %vm5455, %v5537, %v5536
          %v5539 = vsub.s32 4, %v5515
          %v5540 = vsel %vm5455, %v5539, %v5515
          %v5541 = vsel %vm5454, %v1507, %v5538
          %v5542 = vsel %vm5454, 0, %v5540
          %v5543 = vcosq.f32.pop %v5541
          %v5544 = vsinq.f32.pop %v5541
          %vm5545 = vweird.f32 %v1507
          %v5546 = vadd.s32 %v5542, 3
          %v5547 = vand.u32 %v5546, 3
          %vm5548 = vcmp.lt.s32.totalorder %v5547, 2
          %vm5549 = vcmp.eq.s32.totalorder %v5547, 0
          %v5550 = vxor.u32 %v5544, 2147483648
          %v5551 = vsel %vm5549, %v5543, %v5550
          %vm5552 = vcmp.eq.s32.totalorder %v5547, 2
          %v5553 = vxor.u32 %v5543, 2147483648
          %v5554 = vsel %vm5552, %v5553, %v5544
          %v5555 = vsel %vm5548, %v5551, %v5554
          %v5556 = vsel %vm5545, nan, %v5555
          %v5557 = vand.u32 2147483647, %v1508
          %vm5558 = vcmp.le.f32.partialorder %v5557, 0.7853982
          %vm5559 = vcmp.lt.s32.totalorder %v1508, 0
          %v5560 = vand.u32 %v1508, 2139095040
          %v5561 = vshrl.u32 %v5560, 23
          %v5562 = vsub.s32 %v5561, 127
          %v5563 = vand.u32 2147483647, %v1508
          %v5564 = vand.u32 %v5563, 8388607
          %v5565 = vor.u32 %v5564, 8388608
          %v5566 = vsub.s32 0, %v5565
          %v5567 = vadd.s32 %v5562, 1
          %vm5568 = vcmp.gt.s32.totalorder %v5567, 0
          %v5569 = vsel %vm5568, %v5567, 0
          %v5570 = vshrl.u32 %v5569, 5
          %v5571 = vand.u32 %v5569, 31
          %v5572 = vsub.s32 32, %v5571
          %v5573 = vshrl.u32 683565275, %v5572
          %v5574 = vshll.u32 683565275, %v5571
          %v5575 = vshrl.u32 2475754826, %v5572
          %v5576 = vor.u32 %v5574, %v5575
          %v5577 = vshll.u32 2475754826, %v5571
          %v5578 = vshrl.u32 2131351028, %v5572
          %v5579 = vor.u32 %v5577, %v5578
          %v5580 = vshll.u32 2131351028, %v5571
          %v5581 = vshrl.u32 2102212464, %v5572
          %v5582 = vor.u32 %v5580, %v5581
          %v5583 = vshll.u32 2102212464, %v5571
          %v5584 = vshrl.u32 920167782, %v5572
          %v5585 = vor.u32 %v5583, %v5584
          %v5586 = vshll.u32 920167782, %v5571
          %v5587 = vshrl.u32 1326507024, %v5572
          %v5588 = vor.u32 %v5586, %v5587
          %vm5589 = vcmp.lt.s32.totalorder %v5570, 1
          %vm5590 = vcmp.lt.s32.totalorder %v5570, 2
          %vm5591 = vcmp.lt.s32.totalorder %v5570, 3
          %vm5592 = vcmp.lt.s32.totalorder %v5570, 4
          %v5593 = vsel %vm5589, %v5573, %v5576
          %v5594 = vsel %vm5592, %v5582, 2102212464
          %v5595 = vsel %vm5591, %v5579, %v5594
          %v5596 = vsel %vm5590, %v5593, %v5595
          %v5597 = vsel %vm5589, %v5576, %v5579
          %v5598 = vsel %vm5592, %v5585, 920167782
          %v5599 = vsel %vm5591, %v5582, %v5598
          %v5600 = vsel %vm5590, %v5597, %v5599
          %v5601 = vsel %vm5589, %v5579, %v5582
          %v5602 = vsel %vm5592, %v5588, 1326507024
          %v5603 = vsel %vm5591, %v5585, %v5602
          %v5604 = vsel %vm5590, %v5601, %v5603
          %v5605 = vshll.u32 %v5565, 8
          %v5606 = vmul.u32.u64.compose %v5605, %v5604
          %v5607 = vextract.low.u32 %v5606
          %v5608 = vextract.high.u32 %v5606
          %v5609 = vmul.u32.u64.compose %v5605, %v5600
          %v5610 = vextract.low.u32 %v5609
          %v5611 = vextract.high.u32 %v5609
          %v5612 = vmul.u32 %v5605, %v5596
          %v5613 = vadd.s32 %v5608, %v5610
          %vm5614 = vc.u32 %v5608, %v5610
          %v5615 = vadd.s32 %v5611, 1
          %v5616 = vsel %vm5614, %v5615, %v5611
          %v5617 = vadd.s32 %v5612, %v5616
          %v5618 = vadd.s32 %v5617, 536870912
          %v5619 = vshrl.u32 %v5618, 30
          %v5620 = vshll.u32 %v5619, 30
          %v5621 = vsub.s32 %v5617, %v5620
          %vm5622 = vcmp.lt.s32.totalorder %v5621, 0
          %v5623 = vsub.s32 0, %v5621
          %v5624 = vsel %vm5622, %v5623, %v5621
          %v5625 = vclz %v5624
          %v5626 = vsub.s32 %v5625, 2
          %vm5627 = vcmp.gt.s32.totalorder 0, %v5626
          %v5628 = vsel %vm5627, 0, %v5626
          %v5629 = vsub.s32 32, %v5628
          %v5630 = vshll.u32 %v5621, %v5628
          %v5631 = vshrl.u32 %v5613, %v5629
          %v5632 = vor.u32 %v5630, %v5631
          %v5633 = vsub.s32 4294967266, %v5628
          %v5634 = vadd.s32 %v5633, 127
          %v5635 = vshll.u32 %v5634, 23
          %v5636 = vor.u32 4788187, %v5635
          %v5637 = vand.u32 2147483647, %v5636
          %v5639 = vcvt.s32.f32 %v5632
          %v5640 = vmul.f32 %v5639, %v5637
          %v5641 = vxor.u32 %v5640, 2147483648
          %v5642 = vsel %vm5559, %v5641, %v5640
          %v5643 = vsub.s32 4, %v5619
          %v5644 = vsel %vm5559, %v5643, %v5619
          %v5645 = vsel %vm5558, %v1508, %v5642
          %v5646 = vsel %vm5558, 0, %v5644
          %v5647 = vcosq.f32.pop %v5645
          %v5648 = vsinq.f32.pop %v5645
          %vm5649 = vweird.f32 %v1508
          %v5650 = vadd.s32 %v5646, 3
          %v5651 = vand.u32 %v5650, 3
          %vm5652 = vcmp.lt.s32.totalorder %v5651, 2
          %vm5653 = vcmp.eq.s32.totalorder %v5651, 0
          %v5654 = vxor.u32 %v5648, 2147483648
          %v5655 = vsel %vm5653, %v5647, %v5654
          %vm5656 = vcmp.eq.s32.totalorder %v5651, 2
          %v5657 = vxor.u32 %v5647, 2147483648
          %v5658 = vsel %vm5656, %v5657, %v5648
          %v5659 = vsel %vm5652, %v5655, %v5658
          %v5660 = vsel %vm5649, nan, %v5659
          %v5661 = vand.u32 2147483647, %v1509
          %vm5662 = vcmp.le.f32.partialorder %v5661, 0.7853982
          %vm5663 = vcmp.lt.s32.totalorder %v1509, 0
          %v5664 = vand.u32 %v1509, 2139095040
          %v5665 = vshrl.u32 %v5664, 23
          %v5666 = vsub.s32 %v5665, 127
          %v5667 = vand.u32 2147483647, %v1509
          %v5668 = vand.u32 %v5667, 8388607
          %v5669 = vor.u32 %v5668, 8388608
          %v5670 = vsub.s32 0, %v5669
          %v5671 = vadd.s32 %v5666, 1
          %vm5672 = vcmp.gt.s32.totalorder %v5671, 0
          %v5673 = vsel %vm5672, %v5671, 0
          %v5674 = vshrl.u32 %v5673, 5
          %v5675 = vand.u32 %v5673, 31
          %v5676 = vsub.s32 32, %v5675
          %v5677 = vshrl.u32 683565275, %v5676
          %v5678 = vshll.u32 683565275, %v5675
          %v5679 = vshrl.u32 2475754826, %v5676
          %v5680 = vor.u32 %v5678, %v5679
          %v5681 = vshll.u32 2475754826, %v5675
          %v5682 = vshrl.u32 2131351028, %v5676
          %v5683 = vor.u32 %v5681, %v5682
          %v5684 = vshll.u32 2131351028, %v5675
          %v5685 = vshrl.u32 2102212464, %v5676
          %v5686 = vor.u32 %v5684, %v5685
          %v5687 = vshll.u32 2102212464, %v5675
          %v5688 = vshrl.u32 920167782, %v5676
          %v5689 = vor.u32 %v5687, %v5688
          %v5690 = vshll.u32 920167782, %v5675
          %v5691 = vshrl.u32 1326507024, %v5676
          %v5692 = vor.u32 %v5690, %v5691
          %vm5693 = vcmp.lt.s32.totalorder %v5674, 1
          %vm5694 = vcmp.lt.s32.totalorder %v5674, 2
          %vm5695 = vcmp.lt.s32.totalorder %v5674, 3
          %vm5696 = vcmp.lt.s32.totalorder %v5674, 4
          %v5697 = vsel %vm5693, %v5677, %v5680
          %v5698 = vsel %vm5696, %v5686, 2102212464
          %v5699 = vsel %vm5695, %v5683, %v5698
          %v5700 = vsel %vm5694, %v5697, %v5699
          %v5701 = vsel %vm5693, %v5680, %v5683
          %v5702 = vsel %vm5696, %v5689, 920167782
          %v5703 = vsel %vm5695, %v5686, %v5702
          %v5704 = vsel %vm5694, %v5701, %v5703
          %v5705 = vsel %vm5693, %v5683, %v5686
          %v5706 = vsel %vm5696, %v5692, 1326507024
          %v5707 = vsel %vm5695, %v5689, %v5706
          %v5708 = vsel %vm5694, %v5705, %v5707
          %v5709 = vshll.u32 %v5669, 8
          %v5710 = vmul.u32.u64.compose %v5709, %v5708
          %v5711 = vextract.low.u32 %v5710
          %v5712 = vextract.high.u32 %v5710
          %v5713 = vmul.u32.u64.compose %v5709, %v5704
          %v5714 = vextract.low.u32 %v5713
          %v5715 = vextract.high.u32 %v5713
          %v5716 = vmul.u32 %v5709, %v5700
          %v5717 = vadd.s32 %v5712, %v5714
          %vm5718 = vc.u32 %v5712, %v5714
          %v5719 = vadd.s32 %v5715, 1
          %v5720 = vsel %vm5718, %v5719, %v5715
          %v5721 = vadd.s32 %v5716, %v5720
          %v5722 = vadd.s32 %v5721, 536870912
          %v5723 = vshrl.u32 %v5722, 30
          %v5724 = vshll.u32 %v5723, 30
          %v5725 = vsub.s32 %v5721, %v5724
          %vm5726 = vcmp.lt.s32.totalorder %v5725, 0
          %v5727 = vsub.s32 0, %v5725
          %v5728 = vsel %vm5726, %v5727, %v5725
          %v5729 = vclz %v5728
          %v5730 = vsub.s32 %v5729, 2
          %vm5731 = vcmp.gt.s32.totalorder 0, %v5730
          %v5732 = vsel %vm5731, 0, %v5730
          %v5733 = vsub.s32 32, %v5732
          %v5734 = vshll.u32 %v5725, %v5732
          %v5735 = vshrl.u32 %v5717, %v5733
          %v5736 = vor.u32 %v5734, %v5735
          %v5737 = vsub.s32 4294967266, %v5732
          %v5738 = vadd.s32 %v5737, 127
          %v5739 = vshll.u32 %v5738, 23
          %v5740 = vor.u32 4788187, %v5739
          %v5741 = vand.u32 2147483647, %v5740
          %v5743 = vcvt.s32.f32 %v5736
          %v5744 = vmul.f32 %v5743, %v5741
          %v5745 = vxor.u32 %v5744, 2147483648
          %v5746 = vsel %vm5663, %v5745, %v5744
          %v5747 = vsub.s32 4, %v5723
          %v5748 = vsel %vm5663, %v5747, %v5723
          %v5749 = vsel %vm5662, %v1509, %v5746
          %v5750 = vsel %vm5662, 0, %v5748
          %v5751 = vcosq.f32.pop %v5749
          %v5752 = vsinq.f32.pop %v5749
          %vm5753 = vweird.f32 %v1509
          %v5754 = vadd.s32 %v5750, 3
          %v5755 = vand.u32 %v5754, 3
          %vm5756 = vcmp.lt.s32.totalorder %v5755, 2
          %vm5757 = vcmp.eq.s32.totalorder %v5755, 0
          %v5758 = vxor.u32 %v5752, 2147483648
          %v5759 = vsel %vm5757, %v5751, %v5758
          %vm5760 = vcmp.eq.s32.totalorder %v5755, 2
          %v5761 = vxor.u32 %v5751, 2147483648
          %v5762 = vsel %vm5760, %v5761, %v5752
          %v5763 = vsel %vm5756, %v5759, %v5762
          %v5764 = vsel %vm5753, nan, %v5763
          %v5765 = vand.u32 2147483647, %v1510
          %vm5766 = vcmp.le.f32.partialorder %v5765, 0.7853982
          %vm5767 = vcmp.lt.s32.totalorder %v1510, 0
          %v5768 = vand.u32 %v1510, 2139095040
          %v5769 = vshrl.u32 %v5768, 23
          %v5770 = vsub.s32 %v5769, 127
          %v5771 = vand.u32 2147483647, %v1510
          %v5772 = vand.u32 %v5771, 8388607
          %v5773 = vor.u32 %v5772, 8388608
          %v5774 = vsub.s32 0, %v5773
          %v5775 = vadd.s32 %v5770, 1
          %vm5776 = vcmp.gt.s32.totalorder %v5775, 0
          %v5777 = vsel %vm5776, %v5775, 0
          %v5778 = vshrl.u32 %v5777, 5
          %v5779 = vand.u32 %v5777, 31
          %v5780 = vsub.s32 32, %v5779
          %v5781 = vshrl.u32 683565275, %v5780
          %v5782 = vshll.u32 683565275, %v5779
          %v5783 = vshrl.u32 2475754826, %v5780
          %v5784 = vor.u32 %v5782, %v5783
          %v5785 = vshll.u32 2475754826, %v5779
          %v5786 = vshrl.u32 2131351028, %v5780
          %v5787 = vor.u32 %v5785, %v5786
          %v5788 = vshll.u32 2131351028, %v5779
          %v5789 = vshrl.u32 2102212464, %v5780
          %v5790 = vor.u32 %v5788, %v5789
          %v5791 = vshll.u32 2102212464, %v5779
          %v5792 = vshrl.u32 920167782, %v5780
          %v5793 = vor.u32 %v5791, %v5792
          %v5794 = vshll.u32 920167782, %v5779
          %v5795 = vshrl.u32 1326507024, %v5780
          %v5796 = vor.u32 %v5794, %v5795
          %vm5797 = vcmp.lt.s32.totalorder %v5778, 1
          %vm5798 = vcmp.lt.s32.totalorder %v5778, 2
          %vm5799 = vcmp.lt.s32.totalorder %v5778, 3
          %vm5800 = vcmp.lt.s32.totalorder %v5778, 4
          %v5801 = vsel %vm5797, %v5781, %v5784
          %v5802 = vsel %vm5800, %v5790, 2102212464
          %v5803 = vsel %vm5799, %v5787, %v5802
          %v5804 = vsel %vm5798, %v5801, %v5803
          %v5805 = vsel %vm5797, %v5784, %v5787
          %v5806 = vsel %vm5800, %v5793, 920167782
          %v5807 = vsel %vm5799, %v5790, %v5806
          %v5808 = vsel %vm5798, %v5805, %v5807
          %v5809 = vsel %vm5797, %v5787, %v5790
          %v5810 = vsel %vm5800, %v5796, 1326507024
          %v5811 = vsel %vm5799, %v5793, %v5810
          %v5812 = vsel %vm5798, %v5809, %v5811
          %v5813 = vshll.u32 %v5773, 8
          %v5814 = vmul.u32.u64.compose %v5813, %v5812
          %v5815 = vextract.low.u32 %v5814
          %v5816 = vextract.high.u32 %v5814
          %v5817 = vmul.u32.u64.compose %v5813, %v5808
          %v5818 = vextract.low.u32 %v5817
          %v5819 = vextract.high.u32 %v5817
          %v5820 = vmul.u32 %v5813, %v5804
          %v5821 = vadd.s32 %v5816, %v5818
          %vm5822 = vc.u32 %v5816, %v5818
          %v5823 = vadd.s32 %v5819, 1
          %v5824 = vsel %vm5822, %v5823, %v5819
          %v5825 = vadd.s32 %v5820, %v5824
          %v5826 = vadd.s32 %v5825, 536870912
          %v5827 = vshrl.u32 %v5826, 30
          %v5828 = vshll.u32 %v5827, 30
          %v5829 = vsub.s32 %v5825, %v5828
          %vm5830 = vcmp.lt.s32.totalorder %v5829, 0
          %v5831 = vsub.s32 0, %v5829
          %v5832 = vsel %vm5830, %v5831, %v5829
          %v5833 = vclz %v5832
          %v5834 = vsub.s32 %v5833, 2
          %vm5835 = vcmp.gt.s32.totalorder 0, %v5834
          %v5836 = vsel %vm5835, 0, %v5834
          %v5837 = vsub.s32 32, %v5836
          %v5838 = vshll.u32 %v5829, %v5836
          %v5839 = vshrl.u32 %v5821, %v5837
          %v5840 = vor.u32 %v5838, %v5839
          %v5841 = vsub.s32 4294967266, %v5836
          %v5842 = vadd.s32 %v5841, 127
          %v5843 = vshll.u32 %v5842, 23
          %v5844 = vor.u32 4788187, %v5843
          %v5845 = vand.u32 2147483647, %v5844
          %v5847 = vcvt.s32.f32 %v5840
          %v5848 = vmul.f32 %v5847, %v5845
          %v5849 = vxor.u32 %v5848, 2147483648
          %v5850 = vsel %vm5767, %v5849, %v5848
          %v5851 = vsub.s32 4, %v5827
          %v5852 = vsel %vm5767, %v5851, %v5827
          %v5853 = vsel %vm5766, %v1510, %v5850
          %v5854 = vsel %vm5766, 0, %v5852
          %v5855 = vcosq.f32.pop %v5853
          %v5856 = vsinq.f32.pop %v5853
          %vm5857 = vweird.f32 %v1510
          %v5858 = vadd.s32 %v5854, 3
          %v5859 = vand.u32 %v5858, 3
          %vm5860 = vcmp.lt.s32.totalorder %v5859, 2
          %vm5861 = vcmp.eq.s32.totalorder %v5859, 0
          %v5862 = vxor.u32 %v5856, 2147483648
          %v5863 = vsel %vm5861, %v5855, %v5862
          %vm5864 = vcmp.eq.s32.totalorder %v5859, 2
          %v5865 = vxor.u32 %v5855, 2147483648
          %v5866 = vsel %vm5864, %v5865, %v5856
          %v5867 = vsel %vm5860, %v5863, %v5866
          %v5868 = vsel %vm5857, nan, %v5867
          %v5869 = vand.u32 2147483647, %v1511
          %vm5870 = vcmp.le.f32.partialorder %v5869, 0.7853982
          %vm5871 = vcmp.lt.s32.totalorder %v1511, 0
          %v5872 = vand.u32 %v1511, 2139095040
          %v5873 = vshrl.u32 %v5872, 23
          %v5874 = vsub.s32 %v5873, 127
          %v5875 = vand.u32 2147483647, %v1511
          %v5876 = vand.u32 %v5875, 8388607
          %v5877 = vor.u32 %v5876, 8388608
          %v5878 = vsub.s32 0, %v5877
          %v5879 = vadd.s32 %v5874, 1
          %vm5880 = vcmp.gt.s32.totalorder %v5879, 0
          %v5881 = vsel %vm5880, %v5879, 0
          %v5882 = vshrl.u32 %v5881, 5
          %v5883 = vand.u32 %v5881, 31
          %v5884 = vsub.s32 32, %v5883
          %v5885 = vshrl.u32 683565275, %v5884
          %v5886 = vshll.u32 683565275, %v5883
          %v5887 = vshrl.u32 2475754826, %v5884
          %v5888 = vor.u32 %v5886, %v5887
          %v5889 = vshll.u32 2475754826, %v5883
          %v5890 = vshrl.u32 2131351028, %v5884
          %v5891 = vor.u32 %v5889, %v5890
          %v5892 = vshll.u32 2131351028, %v5883
          %v5893 = vshrl.u32 2102212464, %v5884
          %v5894 = vor.u32 %v5892, %v5893
          %v5895 = vshll.u32 2102212464, %v5883
          %v5896 = vshrl.u32 920167782, %v5884
          %v5897 = vor.u32 %v5895, %v5896
          %v5898 = vshll.u32 920167782, %v5883
          %v5899 = vshrl.u32 1326507024, %v5884
          %v5900 = vor.u32 %v5898, %v5899
          %vm5901 = vcmp.lt.s32.totalorder %v5882, 1
          %vm5902 = vcmp.lt.s32.totalorder %v5882, 2
          %vm5903 = vcmp.lt.s32.totalorder %v5882, 3
          %vm5904 = vcmp.lt.s32.totalorder %v5882, 4
          %v5905 = vsel %vm5901, %v5885, %v5888
          %v5906 = vsel %vm5904, %v5894, 2102212464
          %v5907 = vsel %vm5903, %v5891, %v5906
          %v5908 = vsel %vm5902, %v5905, %v5907
          %v5909 = vsel %vm5901, %v5888, %v5891
          %v5910 = vsel %vm5904, %v5897, 920167782
          %v5911 = vsel %vm5903, %v5894, %v5910
          %v5912 = vsel %vm5902, %v5909, %v5911
          %v5913 = vsel %vm5901, %v5891, %v5894
          %v5914 = vsel %vm5904, %v5900, 1326507024
          %v5915 = vsel %vm5903, %v5897, %v5914
          %v5916 = vsel %vm5902, %v5913, %v5915
          %v5917 = vshll.u32 %v5877, 8
          %v5918 = vmul.u32.u64.compose %v5917, %v5916
          %v5919 = vextract.low.u32 %v5918
          %v5920 = vextract.high.u32 %v5918
          %v5921 = vmul.u32.u64.compose %v5917, %v5912
          %v5922 = vextract.low.u32 %v5921
          %v5923 = vextract.high.u32 %v5921
          %v5924 = vmul.u32 %v5917, %v5908
          %v5925 = vadd.s32 %v5920, %v5922
          %vm5926 = vc.u32 %v5920, %v5922
          %v5927 = vadd.s32 %v5923, 1
          %v5928 = vsel %vm5926, %v5927, %v5923
          %v5929 = vadd.s32 %v5924, %v5928
          %v5930 = vadd.s32 %v5929, 536870912
          %v5931 = vshrl.u32 %v5930, 30
          %v5932 = vshll.u32 %v5931, 30
          %v5933 = vsub.s32 %v5929, %v5932
          %vm5934 = vcmp.lt.s32.totalorder %v5933, 0
          %v5935 = vsub.s32 0, %v5933
          %v5936 = vsel %vm5934, %v5935, %v5933
          %v5937 = vclz %v5936
          %v5938 = vsub.s32 %v5937, 2
          %vm5939 = vcmp.gt.s32.totalorder 0, %v5938
          %v5940 = vsel %vm5939, 0, %v5938
          %v5941 = vsub.s32 32, %v5940
          %v5942 = vshll.u32 %v5933, %v5940
          %v5943 = vshrl.u32 %v5925, %v5941
          %v5944 = vor.u32 %v5942, %v5943
          %v5945 = vsub.s32 4294967266, %v5940
          %v5946 = vadd.s32 %v5945, 127
          %v5947 = vshll.u32 %v5946, 23
          %v5948 = vor.u32 4788187, %v5947
          %v5949 = vand.u32 2147483647, %v5948
          %v5951 = vcvt.s32.f32 %v5944
          %v5952 = vmul.f32 %v5951, %v5949
          %v5953 = vxor.u32 %v5952, 2147483648
          %v5954 = vsel %vm5871, %v5953, %v5952
          %v5955 = vsub.s32 4, %v5931
          %v5956 = vsel %vm5871, %v5955, %v5931
          %v5957 = vsel %vm5870, %v1511, %v5954
          %v5958 = vsel %vm5870, 0, %v5956
          %v5959 = vcosq.f32.pop %v5957
          %v5960 = vsinq.f32.pop %v5957
          %vm5961 = vweird.f32 %v1511
          %v5962 = vadd.s32 %v5958, 3
          %v5963 = vand.u32 %v5962, 3
          %vm5964 = vcmp.lt.s32.totalorder %v5963, 2
          %vm5965 = vcmp.eq.s32.totalorder %v5963, 0
          %v5966 = vxor.u32 %v5960, 2147483648
          %v5967 = vsel %vm5965, %v5959, %v5966
          %vm5968 = vcmp.eq.s32.totalorder %v5963, 2
          %v5969 = vxor.u32 %v5959, 2147483648
          %v5970 = vsel %vm5968, %v5969, %v5960
          %v5971 = vsel %vm5964, %v5967, %v5970
          %v5972 = vsel %vm5961, nan, %v5971
          %v5973 = vand.u32 2147483647, %v1512
          %vm5974 = vcmp.le.f32.partialorder %v5973, 0.7853982
          %vm5975 = vcmp.lt.s32.totalorder %v1512, 0
          %v5976 = vand.u32 %v1512, 2139095040
          %v5977 = vshrl.u32 %v5976, 23
          %v5978 = vsub.s32 %v5977, 127
          %v5979 = vand.u32 2147483647, %v1512
          %v5980 = vand.u32 %v5979, 8388607
          %v5981 = vor.u32 %v5980, 8388608
          %v5982 = vsub.s32 0, %v5981
          %v5983 = vadd.s32 %v5978, 1
          %vm5984 = vcmp.gt.s32.totalorder %v5983, 0
          %v5985 = vsel %vm5984, %v5983, 0
          %v5986 = vshrl.u32 %v5985, 5
          %v5987 = vand.u32 %v5985, 31
          %v5988 = vsub.s32 32, %v5987
          %v5989 = vshrl.u32 683565275, %v5988
          %v5990 = vshll.u32 683565275, %v5987
          %v5991 = vshrl.u32 2475754826, %v5988
          %v5992 = vor.u32 %v5990, %v5991
          %v5993 = vshll.u32 2475754826, %v5987
          %v5994 = vshrl.u32 2131351028, %v5988
          %v5995 = vor.u32 %v5993, %v5994
          %v5996 = vshll.u32 2131351028, %v5987
          %v5997 = vshrl.u32 2102212464, %v5988
          %v5998 = vor.u32 %v5996, %v5997
          %v5999 = vshll.u32 2102212464, %v5987
          %v6000 = vshrl.u32 920167782, %v5988
          %v6001 = vor.u32 %v5999, %v6000
          %v6002 = vshll.u32 920167782, %v5987
          %v6003 = vshrl.u32 1326507024, %v5988
          %v6004 = vor.u32 %v6002, %v6003
          %vm6005 = vcmp.lt.s32.totalorder %v5986, 1
          %vm6006 = vcmp.lt.s32.totalorder %v5986, 2
          %vm6007 = vcmp.lt.s32.totalorder %v5986, 3
          %vm6008 = vcmp.lt.s32.totalorder %v5986, 4
          %v6009 = vsel %vm6005, %v5989, %v5992
          %v6010 = vsel %vm6008, %v5998, 2102212464
          %v6011 = vsel %vm6007, %v5995, %v6010
          %v6012 = vsel %vm6006, %v6009, %v6011
          %v6013 = vsel %vm6005, %v5992, %v5995
          %v6014 = vsel %vm6008, %v6001, 920167782
          %v6015 = vsel %vm6007, %v5998, %v6014
          %v6016 = vsel %vm6006, %v6013, %v6015
          %v6017 = vsel %vm6005, %v5995, %v5998
          %v6018 = vsel %vm6008, %v6004, 1326507024
          %v6019 = vsel %vm6007, %v6001, %v6018
          %v6020 = vsel %vm6006, %v6017, %v6019
          %v6021 = vshll.u32 %v5981, 8
          %v6022 = vmul.u32.u64.compose %v6021, %v6020
          %v6023 = vextract.low.u32 %v6022
          %v6024 = vextract.high.u32 %v6022
          %v6025 = vmul.u32.u64.compose %v6021, %v6016
          %v6026 = vextract.low.u32 %v6025
          %v6027 = vextract.high.u32 %v6025
          %v6028 = vmul.u32 %v6021, %v6012
          %v6029 = vadd.s32 %v6024, %v6026
          %vm6030 = vc.u32 %v6024, %v6026
          %v6031 = vadd.s32 %v6027, 1
          %v6032 = vsel %vm6030, %v6031, %v6027
          %v6033 = vadd.s32 %v6028, %v6032
          %v6034 = vadd.s32 %v6033, 536870912
          %v6035 = vshrl.u32 %v6034, 30
          %v6036 = vshll.u32 %v6035, 30
          %v6037 = vsub.s32 %v6033, %v6036
          %vm6038 = vcmp.lt.s32.totalorder %v6037, 0
          %v6039 = vsub.s32 0, %v6037
          %v6040 = vsel %vm6038, %v6039, %v6037
          %v6041 = vclz %v6040
          %v6042 = vsub.s32 %v6041, 2
          %vm6043 = vcmp.gt.s32.totalorder 0, %v6042
          %v6044 = vsel %vm6043, 0, %v6042
          %v6045 = vsub.s32 32, %v6044
          %v6046 = vshll.u32 %v6037, %v6044
          %v6047 = vshrl.u32 %v6029, %v6045
          %v6048 = vor.u32 %v6046, %v6047
          %v6049 = vsub.s32 4294967266, %v6044
          %v6050 = vadd.s32 %v6049, 127
          %v6051 = vshll.u32 %v6050, 23
          %v6052 = vor.u32 4788187, %v6051
          %v6053 = vand.u32 2147483647, %v6052
          %v6055 = vcvt.s32.f32 %v6048
          %v6056 = vmul.f32 %v6055, %v6053
          %v6057 = vxor.u32 %v6056, 2147483648
          %v6058 = vsel %vm5975, %v6057, %v6056
          %v6059 = vsub.s32 4, %v6035
          %v6060 = vsel %vm5975, %v6059, %v6035
          %v6061 = vsel %vm5974, %v1512, %v6058
          %v6062 = vsel %vm5974, 0, %v6060
          %v6063 = vcosq.f32.pop %v6061
          %v6064 = vsinq.f32.pop %v6061
          %vm6065 = vweird.f32 %v1512
          %v6066 = vadd.s32 %v6062, 3
          %v6067 = vand.u32 %v6066, 3
          %vm6068 = vcmp.lt.s32.totalorder %v6067, 2
          %vm6069 = vcmp.eq.s32.totalorder %v6067, 0
          %v6070 = vxor.u32 %v6064, 2147483648
          %v6071 = vsel %vm6069, %v6063, %v6070
          %vm6072 = vcmp.eq.s32.totalorder %v6067, 2
          %v6073 = vxor.u32 %v6063, 2147483648
          %v6074 = vsel %vm6072, %v6073, %v6064
          %v6075 = vsel %vm6068, %v6071, %v6074
          %v6076 = vsel %vm6065, nan, %v6075
          %v6077 = vand.u32 2147483647, %v1513
          %vm6078 = vcmp.le.f32.partialorder %v6077, 0.7853982
          %vm6079 = vcmp.lt.s32.totalorder %v1513, 0
          %v6080 = vand.u32 %v1513, 2139095040
          %v6081 = vshrl.u32 %v6080, 23
          %v6082 = vsub.s32 %v6081, 127
          %v6083 = vand.u32 2147483647, %v1513
          %v6084 = vand.u32 %v6083, 8388607
          %v6085 = vor.u32 %v6084, 8388608
          %v6086 = vsub.s32 0, %v6085
          %v6087 = vadd.s32 %v6082, 1
          %vm6088 = vcmp.gt.s32.totalorder %v6087, 0
          %v6089 = vsel %vm6088, %v6087, 0
          %v6090 = vshrl.u32 %v6089, 5
          %v6091 = vand.u32 %v6089, 31
          %v6092 = vsub.s32 32, %v6091
          %v6093 = vshrl.u32 683565275, %v6092
          %v6094 = vshll.u32 683565275, %v6091
          %v6095 = vshrl.u32 2475754826, %v6092
          %v6096 = vor.u32 %v6094, %v6095
          %v6097 = vshll.u32 2475754826, %v6091
          %v6098 = vshrl.u32 2131351028, %v6092
          %v6099 = vor.u32 %v6097, %v6098
          %v6100 = vshll.u32 2131351028, %v6091
          %v6101 = vshrl.u32 2102212464, %v6092
          %v6102 = vor.u32 %v6100, %v6101
          %v6103 = vshll.u32 2102212464, %v6091
          %v6104 = vshrl.u32 920167782, %v6092
          %v6105 = vor.u32 %v6103, %v6104
          %v6106 = vshll.u32 920167782, %v6091
          %v6107 = vshrl.u32 1326507024, %v6092
          %v6108 = vor.u32 %v6106, %v6107
          %vm6109 = vcmp.lt.s32.totalorder %v6090, 1
          %vm6110 = vcmp.lt.s32.totalorder %v6090, 2
          %vm6111 = vcmp.lt.s32.totalorder %v6090, 3
          %vm6112 = vcmp.lt.s32.totalorder %v6090, 4
          %v6113 = vsel %vm6109, %v6093, %v6096
          %v6114 = vsel %vm6112, %v6102, 2102212464
          %v6115 = vsel %vm6111, %v6099, %v6114
          %v6116 = vsel %vm6110, %v6113, %v6115
          %v6117 = vsel %vm6109, %v6096, %v6099
          %v6118 = vsel %vm6112, %v6105, 920167782
          %v6119 = vsel %vm6111, %v6102, %v6118
          %v6120 = vsel %vm6110, %v6117, %v6119
          %v6121 = vsel %vm6109, %v6099, %v6102
          %v6122 = vsel %vm6112, %v6108, 1326507024
          %v6123 = vsel %vm6111, %v6105, %v6122
          %v6124 = vsel %vm6110, %v6121, %v6123
          %v6125 = vshll.u32 %v6085, 8
          %v6126 = vmul.u32.u64.compose %v6125, %v6124
          %v6127 = vextract.low.u32 %v6126
          %v6128 = vextract.high.u32 %v6126
          %v6129 = vmul.u32.u64.compose %v6125, %v6120
          %v6130 = vextract.low.u32 %v6129
          %v6131 = vextract.high.u32 %v6129
          %v6132 = vmul.u32 %v6125, %v6116
          %v6133 = vadd.s32 %v6128, %v6130
          %vm6134 = vc.u32 %v6128, %v6130
          %v6135 = vadd.s32 %v6131, 1
          %v6136 = vsel %vm6134, %v6135, %v6131
          %v6137 = vadd.s32 %v6132, %v6136
          %v6138 = vadd.s32 %v6137, 536870912
          %v6139 = vshrl.u32 %v6138, 30
          %v6140 = vshll.u32 %v6139, 30
          %v6141 = vsub.s32 %v6137, %v6140
          %vm6142 = vcmp.lt.s32.totalorder %v6141, 0
          %v6143 = vsub.s32 0, %v6141
          %v6144 = vsel %vm6142, %v6143, %v6141
          %v6145 = vclz %v6144
          %v6146 = vsub.s32 %v6145, 2
          %vm6147 = vcmp.gt.s32.totalorder 0, %v6146
          %v6148 = vsel %vm6147, 0, %v6146
          %v6149 = vsub.s32 32, %v6148
          %v6150 = vshll.u32 %v6141, %v6148
          %v6151 = vshrl.u32 %v6133, %v6149
          %v6152 = vor.u32 %v6150, %v6151
          %v6153 = vsub.s32 4294967266, %v6148
          %v6154 = vadd.s32 %v6153, 127
          %v6155 = vshll.u32 %v6154, 23
          %v6156 = vor.u32 4788187, %v6155
          %v6157 = vand.u32 2147483647, %v6156
          %v6159 = vcvt.s32.f32 %v6152
          %v6160 = vmul.f32 %v6159, %v6157
          %v6161 = vxor.u32 %v6160, 2147483648
          %v6162 = vsel %vm6079, %v6161, %v6160
          %v6163 = vsub.s32 4, %v6139
          %v6164 = vsel %vm6079, %v6163, %v6139
          %v6165 = vsel %vm6078, %v1513, %v6162
          %v6166 = vsel %vm6078, 0, %v6164
          %v6167 = vcosq.f32.pop %v6165
          %v6168 = vsinq.f32.pop %v6165
          %vm6169 = vweird.f32 %v1513
          %v6170 = vadd.s32 %v6166, 3
          %v6171 = vand.u32 %v6170, 3
          %vm6172 = vcmp.lt.s32.totalorder %v6171, 2
          %vm6173 = vcmp.eq.s32.totalorder %v6171, 0
          %v6174 = vxor.u32 %v6168, 2147483648
          %v6175 = vsel %vm6173, %v6167, %v6174
          %vm6176 = vcmp.eq.s32.totalorder %v6171, 2
          %v6177 = vxor.u32 %v6167, 2147483648
          %v6178 = vsel %vm6176, %v6177, %v6168
          %v6179 = vsel %vm6172, %v6175, %v6178
          %v6180 = vsel %vm6169, nan, %v6179
          %v6181 = vand.u32 2147483647, %v1514
          %vm6182 = vcmp.le.f32.partialorder %v6181, 0.7853982
          %vm6183 = vcmp.lt.s32.totalorder %v1514, 0
          %v6184 = vand.u32 %v1514, 2139095040
          %v6185 = vshrl.u32 %v6184, 23
          %v6186 = vsub.s32 %v6185, 127
          %v6187 = vand.u32 2147483647, %v1514
          %v6188 = vand.u32 %v6187, 8388607
          %v6189 = vor.u32 %v6188, 8388608
          %v6190 = vsub.s32 0, %v6189
          %v6191 = vadd.s32 %v6186, 1
          %vm6192 = vcmp.gt.s32.totalorder %v6191, 0
          %v6193 = vsel %vm6192, %v6191, 0
          %v6194 = vshrl.u32 %v6193, 5
          %v6195 = vand.u32 %v6193, 31
          %v6196 = vsub.s32 32, %v6195
          %v6197 = vshrl.u32 683565275, %v6196
          %v6198 = vshll.u32 683565275, %v6195
          %v6199 = vshrl.u32 2475754826, %v6196
          %v6200 = vor.u32 %v6198, %v6199
          %v6201 = vshll.u32 2475754826, %v6195
          %v6202 = vshrl.u32 2131351028, %v6196
          %v6203 = vor.u32 %v6201, %v6202
          %v6204 = vshll.u32 2131351028, %v6195
          %v6205 = vshrl.u32 2102212464, %v6196
          %v6206 = vor.u32 %v6204, %v6205
          %v6207 = vshll.u32 2102212464, %v6195
          %v6208 = vshrl.u32 920167782, %v6196
          %v6209 = vor.u32 %v6207, %v6208
          %v6210 = vshll.u32 920167782, %v6195
          %v6211 = vshrl.u32 1326507024, %v6196
          %v6212 = vor.u32 %v6210, %v6211
          %vm6213 = vcmp.lt.s32.totalorder %v6194, 1
          %vm6214 = vcmp.lt.s32.totalorder %v6194, 2
          %vm6215 = vcmp.lt.s32.totalorder %v6194, 3
          %vm6216 = vcmp.lt.s32.totalorder %v6194, 4
          %v6217 = vsel %vm6213, %v6197, %v6200
          %v6218 = vsel %vm6216, %v6206, 2102212464
          %v6219 = vsel %vm6215, %v6203, %v6218
          %v6220 = vsel %vm6214, %v6217, %v6219
          %v6221 = vsel %vm6213, %v6200, %v6203
          %v6222 = vsel %vm6216, %v6209, 920167782
          %v6223 = vsel %vm6215, %v6206, %v6222
          %v6224 = vsel %vm6214, %v6221, %v6223
          %v6225 = vsel %vm6213, %v6203, %v6206
          %v6226 = vsel %vm6216, %v6212, 1326507024
          %v6227 = vsel %vm6215, %v6209, %v6226
          %v6228 = vsel %vm6214, %v6225, %v6227
          %v6229 = vshll.u32 %v6189, 8
          %v6230 = vmul.u32.u64.compose %v6229, %v6228
          %v6231 = vextract.low.u32 %v6230
          %v6232 = vextract.high.u32 %v6230
          %v6233 = vmul.u32.u64.compose %v6229, %v6224
          %v6234 = vextract.low.u32 %v6233
          %v6235 = vextract.high.u32 %v6233
          %v6236 = vmul.u32 %v6229, %v6220
          %v6237 = vadd.s32 %v6232, %v6234
          %vm6238 = vc.u32 %v6232, %v6234
          %v6239 = vadd.s32 %v6235, 1
          %v6240 = vsel %vm6238, %v6239, %v6235
          %v6241 = vadd.s32 %v6236, %v6240
          %v6242 = vadd.s32 %v6241, 536870912
          %v6243 = vshrl.u32 %v6242, 30
          %v6244 = vshll.u32 %v6243, 30
          %v6245 = vsub.s32 %v6241, %v6244
          %vm6246 = vcmp.lt.s32.totalorder %v6245, 0
          %v6247 = vsub.s32 0, %v6245
          %v6248 = vsel %vm6246, %v6247, %v6245
          %v6249 = vclz %v6248
          %v6250 = vsub.s32 %v6249, 2
          %vm6251 = vcmp.gt.s32.totalorder 0, %v6250
          %v6252 = vsel %vm6251, 0, %v6250
          %v6253 = vsub.s32 32, %v6252
          %v6254 = vshll.u32 %v6245, %v6252
          %v6255 = vshrl.u32 %v6237, %v6253
          %v6256 = vor.u32 %v6254, %v6255
          %v6257 = vsub.s32 4294967266, %v6252
          %v6258 = vadd.s32 %v6257, 127
          %v6259 = vshll.u32 %v6258, 23
          %v6260 = vor.u32 4788187, %v6259
          %v6261 = vand.u32 2147483647, %v6260
          %v6263 = vcvt.s32.f32 %v6256
          %v6264 = vmul.f32 %v6263, %v6261
          %v6265 = vxor.u32 %v6264, 2147483648
          %v6266 = vsel %vm6183, %v6265, %v6264
          %v6267 = vsub.s32 4, %v6243
          %v6268 = vsel %vm6183, %v6267, %v6243
          %v6269 = vsel %vm6182, %v1514, %v6266
          %v6270 = vsel %vm6182, 0, %v6268
          %v6271 = vcosq.f32.pop %v6269
          %v6272 = vsinq.f32.pop %v6269
          %vm6273 = vweird.f32 %v1514
          %v6274 = vadd.s32 %v6270, 3
          %v6275 = vand.u32 %v6274, 3
          %vm6276 = vcmp.lt.s32.totalorder %v6275, 2
          %vm6277 = vcmp.eq.s32.totalorder %v6275, 0
          %v6278 = vxor.u32 %v6272, 2147483648
          %v6279 = vsel %vm6277, %v6271, %v6278
          %vm6280 = vcmp.eq.s32.totalorder %v6275, 2
          %v6281 = vxor.u32 %v6271, 2147483648
          %v6282 = vsel %vm6280, %v6281, %v6272
          %v6283 = vsel %vm6276, %v6279, %v6282
          %v6284 = vsel %vm6273, nan, %v6283
          %v6285 = vand.u32 2147483647, %v1515
          %vm6286 = vcmp.le.f32.partialorder %v6285, 0.7853982
          %vm6287 = vcmp.lt.s32.totalorder %v1515, 0
          %v6288 = vand.u32 %v1515, 2139095040
          %v6289 = vshrl.u32 %v6288, 23
          %v6290 = vsub.s32 %v6289, 127
          %v6291 = vand.u32 2147483647, %v1515
          %v6292 = vand.u32 %v6291, 8388607
          %v6293 = vor.u32 %v6292, 8388608
          %v6294 = vsub.s32 0, %v6293
          %v6295 = vadd.s32 %v6290, 1
          %vm6296 = vcmp.gt.s32.totalorder %v6295, 0
          %v6297 = vsel %vm6296, %v6295, 0
          %v6298 = vshrl.u32 %v6297, 5
          %v6299 = vand.u32 %v6297, 31
          %v6300 = vsub.s32 32, %v6299
          %v6301 = vshrl.u32 683565275, %v6300
          %v6302 = vshll.u32 683565275, %v6299
          %v6303 = vshrl.u32 2475754826, %v6300
          %v6304 = vor.u32 %v6302, %v6303
          %v6305 = vshll.u32 2475754826, %v6299
          %v6306 = vshrl.u32 2131351028, %v6300
          %v6307 = vor.u32 %v6305, %v6306
          %v6308 = vshll.u32 2131351028, %v6299
          %v6309 = vshrl.u32 2102212464, %v6300
          %v6310 = vor.u32 %v6308, %v6309
          %v6311 = vshll.u32 2102212464, %v6299
          %v6312 = vshrl.u32 920167782, %v6300
          %v6313 = vor.u32 %v6311, %v6312
          %v6314 = vshll.u32 920167782, %v6299
          %v6315 = vshrl.u32 1326507024, %v6300
          %v6316 = vor.u32 %v6314, %v6315
          %vm6317 = vcmp.lt.s32.totalorder %v6298, 1
          %vm6318 = vcmp.lt.s32.totalorder %v6298, 2
          %vm6319 = vcmp.lt.s32.totalorder %v6298, 3
          %vm6320 = vcmp.lt.s32.totalorder %v6298, 4
          %v6321 = vsel %vm6317, %v6301, %v6304
          %v6322 = vsel %vm6320, %v6310, 2102212464
          %v6323 = vsel %vm6319, %v6307, %v6322
          %v6324 = vsel %vm6318, %v6321, %v6323
          %v6325 = vsel %vm6317, %v6304, %v6307
          %v6326 = vsel %vm6320, %v6313, 920167782
          %v6327 = vsel %vm6319, %v6310, %v6326
          %v6328 = vsel %vm6318, %v6325, %v6327
          %v6329 = vsel %vm6317, %v6307, %v6310
          %v6330 = vsel %vm6320, %v6316, 1326507024
          %v6331 = vsel %vm6319, %v6313, %v6330
          %v6332 = vsel %vm6318, %v6329, %v6331
          %v6333 = vshll.u32 %v6293, 8
          %v6334 = vmul.u32.u64.compose %v6333, %v6332
          %v6335 = vextract.low.u32 %v6334
          %v6336 = vextract.high.u32 %v6334
          %v6337 = vmul.u32.u64.compose %v6333, %v6328
          %v6338 = vextract.low.u32 %v6337
          %v6339 = vextract.high.u32 %v6337
          %v6340 = vmul.u32 %v6333, %v6324
          %v6341 = vadd.s32 %v6336, %v6338
          %vm6342 = vc.u32 %v6336, %v6338
          %v6343 = vadd.s32 %v6339, 1
          %v6344 = vsel %vm6342, %v6343, %v6339
          %v6345 = vadd.s32 %v6340, %v6344
          %v6346 = vadd.s32 %v6345, 536870912
          %v6347 = vshrl.u32 %v6346, 30
          %v6348 = vshll.u32 %v6347, 30
          %v6349 = vsub.s32 %v6345, %v6348
          %vm6350 = vcmp.lt.s32.totalorder %v6349, 0
          %v6351 = vsub.s32 0, %v6349
          %v6352 = vsel %vm6350, %v6351, %v6349
          %v6353 = vclz %v6352
          %v6354 = vsub.s32 %v6353, 2
          %vm6355 = vcmp.gt.s32.totalorder 0, %v6354
          %v6356 = vsel %vm6355, 0, %v6354
          %v6357 = vsub.s32 32, %v6356
          %v6358 = vshll.u32 %v6349, %v6356
          %v6359 = vshrl.u32 %v6341, %v6357
          %v6360 = vor.u32 %v6358, %v6359
          %v6361 = vsub.s32 4294967266, %v6356
          %v6362 = vadd.s32 %v6361, 127
          %v6363 = vshll.u32 %v6362, 23
          %v6364 = vor.u32 4788187, %v6363
          %v6365 = vand.u32 2147483647, %v6364
          %v6367 = vcvt.s32.f32 %v6360
          %v6368 = vmul.f32 %v6367, %v6365
          %v6369 = vxor.u32 %v6368, 2147483648
          %v6370 = vsel %vm6287, %v6369, %v6368
          %v6371 = vsub.s32 4, %v6347
          %v6372 = vsel %vm6287, %v6371, %v6347
          %v6373 = vsel %vm6286, %v1515, %v6370
          %v6374 = vsel %vm6286, 0, %v6372
          %v6375 = vcosq.f32.pop %v6373
          %v6376 = vsinq.f32.pop %v6373
          %vm6377 = vweird.f32 %v1515
          %v6378 = vadd.s32 %v6374, 3
          %v6379 = vand.u32 %v6378, 3
          %vm6380 = vcmp.lt.s32.totalorder %v6379, 2
          %vm6381 = vcmp.eq.s32.totalorder %v6379, 0
          %v6382 = vxor.u32 %v6376, 2147483648
          %v6383 = vsel %vm6381, %v6375, %v6382
          %vm6384 = vcmp.eq.s32.totalorder %v6379, 2
          %v6385 = vxor.u32 %v6375, 2147483648
          %v6386 = vsel %vm6384, %v6385, %v6376
          %v6387 = vsel %vm6380, %v6383, %v6386
          %v6388 = vsel %vm6377, nan, %v6387
          %v6389 = vand.u32 2147483647, %v1516
          %vm6390 = vcmp.le.f32.partialorder %v6389, 0.7853982
          %vm6391 = vcmp.lt.s32.totalorder %v1516, 0
          %v6392 = vand.u32 %v1516, 2139095040
          %v6393 = vshrl.u32 %v6392, 23
          %v6394 = vsub.s32 %v6393, 127
          %v6395 = vand.u32 2147483647, %v1516
          %v6396 = vand.u32 %v6395, 8388607
          %v6397 = vor.u32 %v6396, 8388608
          %v6398 = vsub.s32 0, %v6397
          %v6399 = vadd.s32 %v6394, 1
          %vm6400 = vcmp.gt.s32.totalorder %v6399, 0
          %v6401 = vsel %vm6400, %v6399, 0
          %v6402 = vshrl.u32 %v6401, 5
          %v6403 = vand.u32 %v6401, 31
          %v6404 = vsub.s32 32, %v6403
          %v6405 = vshrl.u32 683565275, %v6404
          %v6406 = vshll.u32 683565275, %v6403
          %v6407 = vshrl.u32 2475754826, %v6404
          %v6408 = vor.u32 %v6406, %v6407
          %v6409 = vshll.u32 2475754826, %v6403
          %v6410 = vshrl.u32 2131351028, %v6404
          %v6411 = vor.u32 %v6409, %v6410
          %v6412 = vshll.u32 2131351028, %v6403
          %v6413 = vshrl.u32 2102212464, %v6404
          %v6414 = vor.u32 %v6412, %v6413
          %v6415 = vshll.u32 2102212464, %v6403
          %v6416 = vshrl.u32 920167782, %v6404
          %v6417 = vor.u32 %v6415, %v6416
          %v6418 = vshll.u32 920167782, %v6403
          %v6419 = vshrl.u32 1326507024, %v6404
          %v6420 = vor.u32 %v6418, %v6419
          %vm6421 = vcmp.lt.s32.totalorder %v6402, 1
          %vm6422 = vcmp.lt.s32.totalorder %v6402, 2
          %vm6423 = vcmp.lt.s32.totalorder %v6402, 3
          %vm6424 = vcmp.lt.s32.totalorder %v6402, 4
          %v6425 = vsel %vm6421, %v6405, %v6408
          %v6426 = vsel %vm6424, %v6414, 2102212464
          %v6427 = vsel %vm6423, %v6411, %v6426
          %v6428 = vsel %vm6422, %v6425, %v6427
          %v6429 = vsel %vm6421, %v6408, %v6411
          %v6430 = vsel %vm6424, %v6417, 920167782
          %v6431 = vsel %vm6423, %v6414, %v6430
          %v6432 = vsel %vm6422, %v6429, %v6431
          %v6433 = vsel %vm6421, %v6411, %v6414
          %v6434 = vsel %vm6424, %v6420, 1326507024
          %v6435 = vsel %vm6423, %v6417, %v6434
          %v6436 = vsel %vm6422, %v6433, %v6435
          %v6437 = vshll.u32 %v6397, 8
          %v6438 = vmul.u32.u64.compose %v6437, %v6436
          %v6439 = vextract.low.u32 %v6438
          %v6440 = vextract.high.u32 %v6438
          %v6441 = vmul.u32.u64.compose %v6437, %v6432
          %v6442 = vextract.low.u32 %v6441
          %v6443 = vextract.high.u32 %v6441
          %v6444 = vmul.u32 %v6437, %v6428
          %v6445 = vadd.s32 %v6440, %v6442
          %vm6446 = vc.u32 %v6440, %v6442
          %v6447 = vadd.s32 %v6443, 1
          %v6448 = vsel %vm6446, %v6447, %v6443
          %v6449 = vadd.s32 %v6444, %v6448
          %v6450 = vadd.s32 %v6449, 536870912
          %v6451 = vshrl.u32 %v6450, 30
          %v6452 = vshll.u32 %v6451, 30
          %v6453 = vsub.s32 %v6449, %v6452
          %vm6454 = vcmp.lt.s32.totalorder %v6453, 0
          %v6455 = vsub.s32 0, %v6453
          %v6456 = vsel %vm6454, %v6455, %v6453
          %v6457 = vclz %v6456
          %v6458 = vsub.s32 %v6457, 2
          %vm6459 = vcmp.gt.s32.totalorder 0, %v6458
          %v6460 = vsel %vm6459, 0, %v6458
          %v6461 = vsub.s32 32, %v6460
          %v6462 = vshll.u32 %v6453, %v6460
          %v6463 = vshrl.u32 %v6445, %v6461
          %v6464 = vor.u32 %v6462, %v6463
          %v6465 = vsub.s32 4294967266, %v6460
          %v6466 = vadd.s32 %v6465, 127
          %v6467 = vshll.u32 %v6466, 23
          %v6468 = vor.u32 4788187, %v6467
          %v6469 = vand.u32 2147483647, %v6468
          %v6471 = vcvt.s32.f32 %v6464
          %v6472 = vmul.f32 %v6471, %v6469
          %v6473 = vxor.u32 %v6472, 2147483648
          %v6474 = vsel %vm6391, %v6473, %v6472
          %v6475 = vsub.s32 4, %v6451
          %v6476 = vsel %vm6391, %v6475, %v6451
          %v6477 = vsel %vm6390, %v1516, %v6474
          %v6478 = vsel %vm6390, 0, %v6476
          %v6479 = vcosq.f32.pop %v6477
          %v6480 = vsinq.f32.pop %v6477
          %vm6481 = vweird.f32 %v1516
          %v6482 = vadd.s32 %v6478, 3
          %v6483 = vand.u32 %v6482, 3
          %vm6484 = vcmp.lt.s32.totalorder %v6483, 2
          %vm6485 = vcmp.eq.s32.totalorder %v6483, 0
          %v6486 = vxor.u32 %v6480, 2147483648
          %v6487 = vsel %vm6485, %v6479, %v6486
          %vm6488 = vcmp.eq.s32.totalorder %v6483, 2
          %v6489 = vxor.u32 %v6479, 2147483648
          %v6490 = vsel %vm6488, %v6489, %v6480
          %v6491 = vsel %vm6484, %v6487, %v6490
          %v6492 = vsel %vm6481, nan, %v6491
          %v6493 = vand.u32 2147483647, %v1517
          %vm6494 = vcmp.le.f32.partialorder %v6493, 0.7853982
          %vm6495 = vcmp.lt.s32.totalorder %v1517, 0
          %v6496 = vand.u32 %v1517, 2139095040
          %v6497 = vshrl.u32 %v6496, 23
          %v6498 = vsub.s32 %v6497, 127
          %v6499 = vand.u32 2147483647, %v1517
          %v6500 = vand.u32 %v6499, 8388607
          %v6501 = vor.u32 %v6500, 8388608
          %v6502 = vsub.s32 0, %v6501
          %v6503 = vadd.s32 %v6498, 1
          %vm6504 = vcmp.gt.s32.totalorder %v6503, 0
          %v6505 = vsel %vm6504, %v6503, 0
          %v6506 = vshrl.u32 %v6505, 5
          %v6507 = vand.u32 %v6505, 31
          %v6508 = vsub.s32 32, %v6507
          %v6509 = vshrl.u32 683565275, %v6508
          %v6510 = vshll.u32 683565275, %v6507
          %v6511 = vshrl.u32 2475754826, %v6508
          %v6512 = vor.u32 %v6510, %v6511
          %v6513 = vshll.u32 2475754826, %v6507
          %v6514 = vshrl.u32 2131351028, %v6508
          %v6515 = vor.u32 %v6513, %v6514
          %v6516 = vshll.u32 2131351028, %v6507
          %v6517 = vshrl.u32 2102212464, %v6508
          %v6518 = vor.u32 %v6516, %v6517
          %v6519 = vshll.u32 2102212464, %v6507
          %v6520 = vshrl.u32 920167782, %v6508
          %v6521 = vor.u32 %v6519, %v6520
          %v6522 = vshll.u32 920167782, %v6507
          %v6523 = vshrl.u32 1326507024, %v6508
          %v6524 = vor.u32 %v6522, %v6523
          %vm6525 = vcmp.lt.s32.totalorder %v6506, 1
          %vm6526 = vcmp.lt.s32.totalorder %v6506, 2
          %vm6527 = vcmp.lt.s32.totalorder %v6506, 3
          %vm6528 = vcmp.lt.s32.totalorder %v6506, 4
          %v6529 = vsel %vm6525, %v6509, %v6512
          %v6530 = vsel %vm6528, %v6518, 2102212464
          %v6531 = vsel %vm6527, %v6515, %v6530
          %v6532 = vsel %vm6526, %v6529, %v6531
          %v6533 = vsel %vm6525, %v6512, %v6515
          %v6534 = vsel %vm6528, %v6521, 920167782
          %v6535 = vsel %vm6527, %v6518, %v6534
          %v6536 = vsel %vm6526, %v6533, %v6535
          %v6537 = vsel %vm6525, %v6515, %v6518
          %v6538 = vsel %vm6528, %v6524, 1326507024
          %v6539 = vsel %vm6527, %v6521, %v6538
          %v6540 = vsel %vm6526, %v6537, %v6539
          %v6541 = vshll.u32 %v6501, 8
          %v6542 = vmul.u32.u64.compose %v6541, %v6540
          %v6543 = vextract.low.u32 %v6542
          %v6544 = vextract.high.u32 %v6542
          %v6545 = vmul.u32.u64.compose %v6541, %v6536
          %v6546 = vextract.low.u32 %v6545
          %v6547 = vextract.high.u32 %v6545
          %v6548 = vmul.u32 %v6541, %v6532
          %v6549 = vadd.s32 %v6544, %v6546
          %vm6550 = vc.u32 %v6544, %v6546
          %v6551 = vadd.s32 %v6547, 1
          %v6552 = vsel %vm6550, %v6551, %v6547
          %v6553 = vadd.s32 %v6548, %v6552
          %v6554 = vadd.s32 %v6553, 536870912
          %v6555 = vshrl.u32 %v6554, 30
          %v6556 = vshll.u32 %v6555, 30
          %v6557 = vsub.s32 %v6553, %v6556
          %vm6558 = vcmp.lt.s32.totalorder %v6557, 0
          %v6559 = vsub.s32 0, %v6557
          %v6560 = vsel %vm6558, %v6559, %v6557
          %v6561 = vclz %v6560
          %v6562 = vsub.s32 %v6561, 2
          %vm6563 = vcmp.gt.s32.totalorder 0, %v6562
          %v6564 = vsel %vm6563, 0, %v6562
          %v6565 = vsub.s32 32, %v6564
          %v6566 = vshll.u32 %v6557, %v6564
          %v6567 = vshrl.u32 %v6549, %v6565
          %v6568 = vor.u32 %v6566, %v6567
          %v6569 = vsub.s32 4294967266, %v6564
          %v6570 = vadd.s32 %v6569, 127
          %v6571 = vshll.u32 %v6570, 23
          %v6572 = vor.u32 4788187, %v6571
          %v6573 = vand.u32 2147483647, %v6572
          %v6575 = vcvt.s32.f32 %v6568
          %v6576 = vmul.f32 %v6575, %v6573
          %v6577 = vxor.u32 %v6576, 2147483648
          %v6578 = vsel %vm6495, %v6577, %v6576
          %v6579 = vsub.s32 4, %v6555
          %v6580 = vsel %vm6495, %v6579, %v6555
          %v6581 = vsel %vm6494, %v1517, %v6578
          %v6582 = vsel %vm6494, 0, %v6580
          %v6583 = vcosq.f32.pop %v6581
          %v6584 = vsinq.f32.pop %v6581
          %vm6585 = vweird.f32 %v1517
          %v6586 = vadd.s32 %v6582, 3
          %v6587 = vand.u32 %v6586, 3
          %vm6588 = vcmp.lt.s32.totalorder %v6587, 2
          %vm6589 = vcmp.eq.s32.totalorder %v6587, 0
          %v6590 = vxor.u32 %v6584, 2147483648
          %v6591 = vsel %vm6589, %v6583, %v6590
          %vm6592 = vcmp.eq.s32.totalorder %v6587, 2
          %v6593 = vxor.u32 %v6583, 2147483648
          %v6594 = vsel %vm6592, %v6593, %v6584
          %v6595 = vsel %vm6588, %v6591, %v6594
          %v6596 = vsel %vm6585, nan, %v6595
          %v6597 = vand.u32 2147483647, %v1518
          %vm6598 = vcmp.le.f32.partialorder %v6597, 0.7853982
          %vm6599 = vcmp.lt.s32.totalorder %v1518, 0
          %v6600 = vand.u32 %v1518, 2139095040
          %v6601 = vshrl.u32 %v6600, 23
          %v6602 = vsub.s32 %v6601, 127
          %v6603 = vand.u32 2147483647, %v1518
          %v6604 = vand.u32 %v6603, 8388607
          %v6605 = vor.u32 %v6604, 8388608
          %v6606 = vsub.s32 0, %v6605
          %v6607 = vadd.s32 %v6602, 1
          %vm6608 = vcmp.gt.s32.totalorder %v6607, 0
          %v6609 = vsel %vm6608, %v6607, 0
          %v6610 = vshrl.u32 %v6609, 5
          %v6611 = vand.u32 %v6609, 31
          %v6612 = vsub.s32 32, %v6611
          %v6613 = vshrl.u32 683565275, %v6612
          %v6614 = vshll.u32 683565275, %v6611
          %v6615 = vshrl.u32 2475754826, %v6612
          %v6616 = vor.u32 %v6614, %v6615
          %v6617 = vshll.u32 2475754826, %v6611
          %v6618 = vshrl.u32 2131351028, %v6612
          %v6619 = vor.u32 %v6617, %v6618
          %v6620 = vshll.u32 2131351028, %v6611
          %v6621 = vshrl.u32 2102212464, %v6612
          %v6622 = vor.u32 %v6620, %v6621
          %v6623 = vshll.u32 2102212464, %v6611
          %v6624 = vshrl.u32 920167782, %v6612
          %v6625 = vor.u32 %v6623, %v6624
          %v6626 = vshll.u32 920167782, %v6611
          %v6627 = vshrl.u32 1326507024, %v6612
          %v6628 = vor.u32 %v6626, %v6627
          %vm6629 = vcmp.lt.s32.totalorder %v6610, 1
          %vm6630 = vcmp.lt.s32.totalorder %v6610, 2
          %vm6631 = vcmp.lt.s32.totalorder %v6610, 3
          %vm6632 = vcmp.lt.s32.totalorder %v6610, 4
          %v6633 = vsel %vm6629, %v6613, %v6616
          %v6634 = vsel %vm6632, %v6622, 2102212464
          %v6635 = vsel %vm6631, %v6619, %v6634
          %v6636 = vsel %vm6630, %v6633, %v6635
          %v6637 = vsel %vm6629, %v6616, %v6619
          %v6638 = vsel %vm6632, %v6625, 920167782
          %v6639 = vsel %vm6631, %v6622, %v6638
          %v6640 = vsel %vm6630, %v6637, %v6639
          %v6641 = vsel %vm6629, %v6619, %v6622
          %v6642 = vsel %vm6632, %v6628, 1326507024
          %v6643 = vsel %vm6631, %v6625, %v6642
          %v6644 = vsel %vm6630, %v6641, %v6643
          %v6645 = vshll.u32 %v6605, 8
          %v6646 = vmul.u32.u64.compose %v6645, %v6644
          %v6647 = vextract.low.u32 %v6646
          %v6648 = vextract.high.u32 %v6646
          %v6649 = vmul.u32.u64.compose %v6645, %v6640
          %v6650 = vextract.low.u32 %v6649
          %v6651 = vextract.high.u32 %v6649
          %v6652 = vmul.u32 %v6645, %v6636
          %v6653 = vadd.s32 %v6648, %v6650
          %vm6654 = vc.u32 %v6648, %v6650
          %v6655 = vadd.s32 %v6651, 1
          %v6656 = vsel %vm6654, %v6655, %v6651
          %v6657 = vadd.s32 %v6652, %v6656
          %v6658 = vadd.s32 %v6657, 536870912
          %v6659 = vshrl.u32 %v6658, 30
          %v6660 = vshll.u32 %v6659, 30
          %v6661 = vsub.s32 %v6657, %v6660
          %vm6662 = vcmp.lt.s32.totalorder %v6661, 0
          %v6663 = vsub.s32 0, %v6661
          %v6664 = vsel %vm6662, %v6663, %v6661
          %v6665 = vclz %v6664
          %v6666 = vsub.s32 %v6665, 2
          %vm6667 = vcmp.gt.s32.totalorder 0, %v6666
          %v6668 = vsel %vm6667, 0, %v6666
          %v6669 = vsub.s32 32, %v6668
          %v6670 = vshll.u32 %v6661, %v6668
          %v6671 = vshrl.u32 %v6653, %v6669
          %v6672 = vor.u32 %v6670, %v6671
          %v6673 = vsub.s32 4294967266, %v6668
          %v6674 = vadd.s32 %v6673, 127
          %v6675 = vshll.u32 %v6674, 23
          %v6676 = vor.u32 4788187, %v6675
          %v6677 = vand.u32 2147483647, %v6676
          %v6679 = vcvt.s32.f32 %v6672
          %v6680 = vmul.f32 %v6679, %v6677
          %v6681 = vxor.u32 %v6680, 2147483648
          %v6682 = vsel %vm6599, %v6681, %v6680
          %v6683 = vsub.s32 4, %v6659
          %v6684 = vsel %vm6599, %v6683, %v6659
          %v6685 = vsel %vm6598, %v1518, %v6682
          %v6686 = vsel %vm6598, 0, %v6684
          %v6687 = vcosq.f32.pop %v6685
          %v6688 = vsinq.f32.pop %v6685
          %vm6689 = vweird.f32 %v1518
          %v6690 = vadd.s32 %v6686, 3
          %v6691 = vand.u32 %v6690, 3
          %vm6692 = vcmp.lt.s32.totalorder %v6691, 2
          %vm6693 = vcmp.eq.s32.totalorder %v6691, 0
          %v6694 = vxor.u32 %v6688, 2147483648
          %v6695 = vsel %vm6693, %v6687, %v6694
          %vm6696 = vcmp.eq.s32.totalorder %v6691, 2
          %v6697 = vxor.u32 %v6687, 2147483648
          %v6698 = vsel %vm6696, %v6697, %v6688
          %v6699 = vsel %vm6692, %v6695, %v6698
          %v6700 = vsel %vm6689, nan, %v6699
          %v6701 = vand.u32 2147483647, %v1519
          %vm6702 = vcmp.le.f32.partialorder %v6701, 0.7853982
          %vm6703 = vcmp.lt.s32.totalorder %v1519, 0
          %v6704 = vand.u32 %v1519, 2139095040
          %v6705 = vshrl.u32 %v6704, 23
          %v6706 = vsub.s32 %v6705, 127
          %v6707 = vand.u32 2147483647, %v1519
          %v6708 = vand.u32 %v6707, 8388607
          %v6709 = vor.u32 %v6708, 8388608
          %v6710 = vsub.s32 0, %v6709
          %v6711 = vadd.s32 %v6706, 1
          %vm6712 = vcmp.gt.s32.totalorder %v6711, 0
          %v6713 = vsel %vm6712, %v6711, 0
          %v6714 = vshrl.u32 %v6713, 5
          %v6715 = vand.u32 %v6713, 31
          %v6716 = vsub.s32 32, %v6715
          %v6717 = vshrl.u32 683565275, %v6716
          %v6718 = vshll.u32 683565275, %v6715
          %v6719 = vshrl.u32 2475754826, %v6716
          %v6720 = vor.u32 %v6718, %v6719
          %v6721 = vshll.u32 2475754826, %v6715
          %v6722 = vshrl.u32 2131351028, %v6716
          %v6723 = vor.u32 %v6721, %v6722
          %v6724 = vshll.u32 2131351028, %v6715
          %v6725 = vshrl.u32 2102212464, %v6716
          %v6726 = vor.u32 %v6724, %v6725
          %v6727 = vshll.u32 2102212464, %v6715
          %v6728 = vshrl.u32 920167782, %v6716
          %v6729 = vor.u32 %v6727, %v6728
          %v6730 = vshll.u32 920167782, %v6715
          %v6731 = vshrl.u32 1326507024, %v6716
          %v6732 = vor.u32 %v6730, %v6731
          %vm6733 = vcmp.lt.s32.totalorder %v6714, 1
          %vm6734 = vcmp.lt.s32.totalorder %v6714, 2
          %vm6735 = vcmp.lt.s32.totalorder %v6714, 3
          %vm6736 = vcmp.lt.s32.totalorder %v6714, 4
          %v6737 = vsel %vm6733, %v6717, %v6720
          %v6738 = vsel %vm6736, %v6726, 2102212464
          %v6739 = vsel %vm6735, %v6723, %v6738
          %v6740 = vsel %vm6734, %v6737, %v6739
          %v6741 = vsel %vm6733, %v6720, %v6723
          %v6742 = vsel %vm6736, %v6729, 920167782
          %v6743 = vsel %vm6735, %v6726, %v6742
          %v6744 = vsel %vm6734, %v6741, %v6743
          %v6745 = vsel %vm6733, %v6723, %v6726
          %v6746 = vsel %vm6736, %v6732, 1326507024
          %v6747 = vsel %vm6735, %v6729, %v6746
          %v6748 = vsel %vm6734, %v6745, %v6747
          %v6749 = vshll.u32 %v6709, 8
          %v6750 = vmul.u32.u64.compose %v6749, %v6748
          %v6751 = vextract.low.u32 %v6750
          %v6752 = vextract.high.u32 %v6750
          %v6753 = vmul.u32.u64.compose %v6749, %v6744
          %v6754 = vextract.low.u32 %v6753
          %v6755 = vextract.high.u32 %v6753
          %v6756 = vmul.u32 %v6749, %v6740
          %v6757 = vadd.s32 %v6752, %v6754
          %vm6758 = vc.u32 %v6752, %v6754
          %v6759 = vadd.s32 %v6755, 1
          %v6760 = vsel %vm6758, %v6759, %v6755
          %v6761 = vadd.s32 %v6756, %v6760
          %v6762 = vadd.s32 %v6761, 536870912
          %v6763 = vshrl.u32 %v6762, 30
          %v6764 = vshll.u32 %v6763, 30
          %v6765 = vsub.s32 %v6761, %v6764
          %vm6766 = vcmp.lt.s32.totalorder %v6765, 0
          %v6767 = vsub.s32 0, %v6765
          %v6768 = vsel %vm6766, %v6767, %v6765
          %v6769 = vclz %v6768
          %v6770 = vsub.s32 %v6769, 2
          %vm6771 = vcmp.gt.s32.totalorder 0, %v6770
          %v6772 = vsel %vm6771, 0, %v6770
          %v6773 = vsub.s32 32, %v6772
          %v6774 = vshll.u32 %v6765, %v6772
          %v6775 = vshrl.u32 %v6757, %v6773
          %v6776 = vor.u32 %v6774, %v6775
          %v6777 = vsub.s32 4294967266, %v6772
          %v6778 = vadd.s32 %v6777, 127
          %v6779 = vshll.u32 %v6778, 23
          %v6780 = vor.u32 4788187, %v6779
          %v6781 = vand.u32 2147483647, %v6780
          %v6783 = vcvt.s32.f32 %v6776
          %v6784 = vmul.f32 %v6783, %v6781
          %v6785 = vxor.u32 %v6784, 2147483648
          %v6786 = vsel %vm6703, %v6785, %v6784
          %v6787 = vsub.s32 4, %v6763
          %v6788 = vsel %vm6703, %v6787, %v6763
          %v6789 = vsel %vm6702, %v1519, %v6786
          %v6790 = vsel %vm6702, 0, %v6788
          %v6791 = vcosq.f32.pop %v6789
          %v6792 = vsinq.f32.pop %v6789
          %vm6793 = vweird.f32 %v1519
          %v6794 = vadd.s32 %v6790, 3
          %v6795 = vand.u32 %v6794, 3
          %vm6796 = vcmp.lt.s32.totalorder %v6795, 2
          %vm6797 = vcmp.eq.s32.totalorder %v6795, 0
          %v6798 = vxor.u32 %v6792, 2147483648
          %v6799 = vsel %vm6797, %v6791, %v6798
          %vm6800 = vcmp.eq.s32.totalorder %v6795, 2
          %v6801 = vxor.u32 %v6791, 2147483648
          %v6802 = vsel %vm6800, %v6801, %v6792
          %v6803 = vsel %vm6796, %v6799, %v6802
          %v6804 = vsel %vm6793, nan, %v6803
          %v6805 = vand.u32 2147483647, %v1520
          %vm6806 = vcmp.le.f32.partialorder %v6805, 0.7853982
          %vm6807 = vcmp.lt.s32.totalorder %v1520, 0
          %v6808 = vand.u32 %v1520, 2139095040
          %v6809 = vshrl.u32 %v6808, 23
          %v6810 = vsub.s32 %v6809, 127
          %v6811 = vand.u32 2147483647, %v1520
          %v6812 = vand.u32 %v6811, 8388607
          %v6813 = vor.u32 %v6812, 8388608
          %v6814 = vsub.s32 0, %v6813
          %v6815 = vadd.s32 %v6810, 1
          %vm6816 = vcmp.gt.s32.totalorder %v6815, 0
          %v6817 = vsel %vm6816, %v6815, 0
          %v6818 = vshrl.u32 %v6817, 5
          %v6819 = vand.u32 %v6817, 31
          %v6820 = vsub.s32 32, %v6819
          %v6821 = vshrl.u32 683565275, %v6820
          %v6822 = vshll.u32 683565275, %v6819
          %v6823 = vshrl.u32 2475754826, %v6820
          %v6824 = vor.u32 %v6822, %v6823
          %v6825 = vshll.u32 2475754826, %v6819
          %v6826 = vshrl.u32 2131351028, %v6820
          %v6827 = vor.u32 %v6825, %v6826
          %v6828 = vshll.u32 2131351028, %v6819
          %v6829 = vshrl.u32 2102212464, %v6820
          %v6830 = vor.u32 %v6828, %v6829
          %v6831 = vshll.u32 2102212464, %v6819
          %v6832 = vshrl.u32 920167782, %v6820
          %v6833 = vor.u32 %v6831, %v6832
          %v6834 = vshll.u32 920167782, %v6819
          %v6835 = vshrl.u32 1326507024, %v6820
          %v6836 = vor.u32 %v6834, %v6835
          %vm6837 = vcmp.lt.s32.totalorder %v6818, 1
          %vm6838 = vcmp.lt.s32.totalorder %v6818, 2
          %vm6839 = vcmp.lt.s32.totalorder %v6818, 3
          %vm6840 = vcmp.lt.s32.totalorder %v6818, 4
          %v6841 = vsel %vm6837, %v6821, %v6824
          %v6842 = vsel %vm6840, %v6830, 2102212464
          %v6843 = vsel %vm6839, %v6827, %v6842
          %v6844 = vsel %vm6838, %v6841, %v6843
          %v6845 = vsel %vm6837, %v6824, %v6827
          %v6846 = vsel %vm6840, %v6833, 920167782
          %v6847 = vsel %vm6839, %v6830, %v6846
          %v6848 = vsel %vm6838, %v6845, %v6847
          %v6849 = vsel %vm6837, %v6827, %v6830
          %v6850 = vsel %vm6840, %v6836, 1326507024
          %v6851 = vsel %vm6839, %v6833, %v6850
          %v6852 = vsel %vm6838, %v6849, %v6851
          %v6853 = vshll.u32 %v6813, 8
          %v6854 = vmul.u32.u64.compose %v6853, %v6852
          %v6855 = vextract.low.u32 %v6854
          %v6856 = vextract.high.u32 %v6854
          %v6857 = vmul.u32.u64.compose %v6853, %v6848
          %v6858 = vextract.low.u32 %v6857
          %v6859 = vextract.high.u32 %v6857
          %v6860 = vmul.u32 %v6853, %v6844
          %v6861 = vadd.s32 %v6856, %v6858
          %vm6862 = vc.u32 %v6856, %v6858
          %v6863 = vadd.s32 %v6859, 1
          %v6864 = vsel %vm6862, %v6863, %v6859
          %v6865 = vadd.s32 %v6860, %v6864
          %v6866 = vadd.s32 %v6865, 536870912
          %v6867 = vshrl.u32 %v6866, 30
          %v6868 = vshll.u32 %v6867, 30
          %v6869 = vsub.s32 %v6865, %v6868
          %vm6870 = vcmp.lt.s32.totalorder %v6869, 0
          %v6871 = vsub.s32 0, %v6869
          %v6872 = vsel %vm6870, %v6871, %v6869
          %v6873 = vclz %v6872
          %v6874 = vsub.s32 %v6873, 2
          %vm6875 = vcmp.gt.s32.totalorder 0, %v6874
          %v6876 = vsel %vm6875, 0, %v6874
          %v6877 = vsub.s32 32, %v6876
          %v6878 = vshll.u32 %v6869, %v6876
          %v6879 = vshrl.u32 %v6861, %v6877
          %v6880 = vor.u32 %v6878, %v6879
          %v6881 = vsub.s32 4294967266, %v6876
          %v6882 = vadd.s32 %v6881, 127
          %v6883 = vshll.u32 %v6882, 23
          %v6884 = vor.u32 4788187, %v6883
          %v6885 = vand.u32 2147483647, %v6884
          %v6887 = vcvt.s32.f32 %v6880
          %v6888 = vmul.f32 %v6887, %v6885
          %v6889 = vxor.u32 %v6888, 2147483648
          %v6890 = vsel %vm6807, %v6889, %v6888
          %v6891 = vsub.s32 4, %v6867
          %v6892 = vsel %vm6807, %v6891, %v6867
          %v6893 = vsel %vm6806, %v1520, %v6890
          %v6894 = vsel %vm6806, 0, %v6892
          %v6895 = vcosq.f32.pop %v6893
          %v6896 = vsinq.f32.pop %v6893
          %vm6897 = vweird.f32 %v1520
          %v6898 = vadd.s32 %v6894, 3
          %v6899 = vand.u32 %v6898, 3
          %vm6900 = vcmp.lt.s32.totalorder %v6899, 2
          %vm6901 = vcmp.eq.s32.totalorder %v6899, 0
          %v6902 = vxor.u32 %v6896, 2147483648
          %v6903 = vsel %vm6901, %v6895, %v6902
          %vm6904 = vcmp.eq.s32.totalorder %v6899, 2
          %v6905 = vxor.u32 %v6895, 2147483648
          %v6906 = vsel %vm6904, %v6905, %v6896
          %v6907 = vsel %vm6900, %v6903, %v6906
          %v6908 = vsel %vm6897, nan, %v6907
          %v6909 = vand.u32 2147483647, %v1521
          %vm6910 = vcmp.le.f32.partialorder %v6909, 0.7853982
          %vm6911 = vcmp.lt.s32.totalorder %v1521, 0
          %v6912 = vand.u32 %v1521, 2139095040
          %v6913 = vshrl.u32 %v6912, 23
          %v6914 = vsub.s32 %v6913, 127
          %v6915 = vand.u32 2147483647, %v1521
          %v6916 = vand.u32 %v6915, 8388607
          %v6917 = vor.u32 %v6916, 8388608
          %v6918 = vsub.s32 0, %v6917
          %v6919 = vadd.s32 %v6914, 1
          %vm6920 = vcmp.gt.s32.totalorder %v6919, 0
          %v6921 = vsel %vm6920, %v6919, 0
          %v6922 = vshrl.u32 %v6921, 5
          %v6923 = vand.u32 %v6921, 31
          %v6924 = vsub.s32 32, %v6923
          %v6925 = vshrl.u32 683565275, %v6924
          %v6926 = vshll.u32 683565275, %v6923
          %v6927 = vshrl.u32 2475754826, %v6924
          %v6928 = vor.u32 %v6926, %v6927
          %v6929 = vshll.u32 2475754826, %v6923
          %v6930 = vshrl.u32 2131351028, %v6924
          %v6931 = vor.u32 %v6929, %v6930
          %v6932 = vshll.u32 2131351028, %v6923
          %v6933 = vshrl.u32 2102212464, %v6924
          %v6934 = vor.u32 %v6932, %v6933
          %v6935 = vshll.u32 2102212464, %v6923
          %v6936 = vshrl.u32 920167782, %v6924
          %v6937 = vor.u32 %v6935, %v6936
          %v6938 = vshll.u32 920167782, %v6923
          %v6939 = vshrl.u32 1326507024, %v6924
          %v6940 = vor.u32 %v6938, %v6939
          %vm6941 = vcmp.lt.s32.totalorder %v6922, 1
          %vm6942 = vcmp.lt.s32.totalorder %v6922, 2
          %vm6943 = vcmp.lt.s32.totalorder %v6922, 3
          %vm6944 = vcmp.lt.s32.totalorder %v6922, 4
          %v6945 = vsel %vm6941, %v6925, %v6928
          %v6946 = vsel %vm6944, %v6934, 2102212464
          %v6947 = vsel %vm6943, %v6931, %v6946
          %v6948 = vsel %vm6942, %v6945, %v6947
          %v6949 = vsel %vm6941, %v6928, %v6931
          %v6950 = vsel %vm6944, %v6937, 920167782
          %v6951 = vsel %vm6943, %v6934, %v6950
          %v6952 = vsel %vm6942, %v6949, %v6951
          %v6953 = vsel %vm6941, %v6931, %v6934
          %v6954 = vsel %vm6944, %v6940, 1326507024
          %v6955 = vsel %vm6943, %v6937, %v6954
          %v6956 = vsel %vm6942, %v6953, %v6955
          %v6957 = vshll.u32 %v6917, 8
          %v6958 = vmul.u32.u64.compose %v6957, %v6956
          %v6959 = vextract.low.u32 %v6958
          %v6960 = vextract.high.u32 %v6958
          %v6961 = vmul.u32.u64.compose %v6957, %v6952
          %v6962 = vextract.low.u32 %v6961
          %v6963 = vextract.high.u32 %v6961
          %v6964 = vmul.u32 %v6957, %v6948
          %v6965 = vadd.s32 %v6960, %v6962
          %vm6966 = vc.u32 %v6960, %v6962
          %v6967 = vadd.s32 %v6963, 1
          %v6968 = vsel %vm6966, %v6967, %v6963
          %v6969 = vadd.s32 %v6964, %v6968
          %v6970 = vadd.s32 %v6969, 536870912
          %v6971 = vshrl.u32 %v6970, 30
          %v6972 = vshll.u32 %v6971, 30
          %v6973 = vsub.s32 %v6969, %v6972
          %vm6974 = vcmp.lt.s32.totalorder %v6973, 0
          %v6975 = vsub.s32 0, %v6973
          %v6976 = vsel %vm6974, %v6975, %v6973
          %v6977 = vclz %v6976
          %v6978 = vsub.s32 %v6977, 2
          %vm6979 = vcmp.gt.s32.totalorder 0, %v6978
          %v6980 = vsel %vm6979, 0, %v6978
          %v6981 = vsub.s32 32, %v6980
          %v6982 = vshll.u32 %v6973, %v6980
          %v6983 = vshrl.u32 %v6965, %v6981
          %v6984 = vor.u32 %v6982, %v6983
          %v6985 = vsub.s32 4294967266, %v6980
          %v6986 = vadd.s32 %v6985, 127
          %v6987 = vshll.u32 %v6986, 23
          %v6988 = vor.u32 4788187, %v6987
          %v6989 = vand.u32 2147483647, %v6988
          %v6991 = vcvt.s32.f32 %v6984
          %v6992 = vmul.f32 %v6991, %v6989
          %v6993 = vxor.u32 %v6992, 2147483648
          %v6994 = vsel %vm6911, %v6993, %v6992
          %v6995 = vsub.s32 4, %v6971
          %v6996 = vsel %vm6911, %v6995, %v6971
          %v6997 = vsel %vm6910, %v1521, %v6994
          %v6998 = vsel %vm6910, 0, %v6996
          %v6999 = vcosq.f32.pop %v6997
          %v7000 = vsinq.f32.pop %v6997
          %vm7001 = vweird.f32 %v1521
          %v7002 = vadd.s32 %v6998, 3
          %v7003 = vand.u32 %v7002, 3
          %vm7004 = vcmp.lt.s32.totalorder %v7003, 2
          %vm7005 = vcmp.eq.s32.totalorder %v7003, 0
          %v7006 = vxor.u32 %v7000, 2147483648
          %v7007 = vsel %vm7005, %v6999, %v7006
          %vm7008 = vcmp.eq.s32.totalorder %v7003, 2
          %v7009 = vxor.u32 %v6999, 2147483648
          %v7010 = vsel %vm7008, %v7009, %v7000
          %v7011 = vsel %vm7004, %v7007, %v7010
          %v7012 = vsel %vm7001, nan, %v7011
          %v7013 = vand.u32 2147483647, %v1522
          %vm7014 = vcmp.le.f32.partialorder %v7013, 0.7853982
          %vm7015 = vcmp.lt.s32.totalorder %v1522, 0
          %v7016 = vand.u32 %v1522, 2139095040
          %v7017 = vshrl.u32 %v7016, 23
          %v7018 = vsub.s32 %v7017, 127
          %v7019 = vand.u32 2147483647, %v1522
          %v7020 = vand.u32 %v7019, 8388607
          %v7021 = vor.u32 %v7020, 8388608
          %v7022 = vsub.s32 0, %v7021
          %v7023 = vadd.s32 %v7018, 1
          %vm7024 = vcmp.gt.s32.totalorder %v7023, 0
          %v7025 = vsel %vm7024, %v7023, 0
          %v7026 = vshrl.u32 %v7025, 5
          %v7027 = vand.u32 %v7025, 31
          %v7028 = vsub.s32 32, %v7027
          %v7029 = vshrl.u32 683565275, %v7028
          %v7030 = vshll.u32 683565275, %v7027
          %v7031 = vshrl.u32 2475754826, %v7028
          %v7032 = vor.u32 %v7030, %v7031
          %v7033 = vshll.u32 2475754826, %v7027
          %v7034 = vshrl.u32 2131351028, %v7028
          %v7035 = vor.u32 %v7033, %v7034
          %v7036 = vshll.u32 2131351028, %v7027
          %v7037 = vshrl.u32 2102212464, %v7028
          %v7038 = vor.u32 %v7036, %v7037
          %v7039 = vshll.u32 2102212464, %v7027
          %v7040 = vshrl.u32 920167782, %v7028
          %v7041 = vor.u32 %v7039, %v7040
          %v7042 = vshll.u32 920167782, %v7027
          %v7043 = vshrl.u32 1326507024, %v7028
          %v7044 = vor.u32 %v7042, %v7043
          %vm7045 = vcmp.lt.s32.totalorder %v7026, 1
          %vm7046 = vcmp.lt.s32.totalorder %v7026, 2
          %vm7047 = vcmp.lt.s32.totalorder %v7026, 3
          %vm7048 = vcmp.lt.s32.totalorder %v7026, 4
          %v7049 = vsel %vm7045, %v7029, %v7032
          %v7050 = vsel %vm7048, %v7038, 2102212464
          %v7051 = vsel %vm7047, %v7035, %v7050
          %v7052 = vsel %vm7046, %v7049, %v7051
          %v7053 = vsel %vm7045, %v7032, %v7035
          %v7054 = vsel %vm7048, %v7041, 920167782
          %v7055 = vsel %vm7047, %v7038, %v7054
          %v7056 = vsel %vm7046, %v7053, %v7055
          %v7057 = vsel %vm7045, %v7035, %v7038
          %v7058 = vsel %vm7048, %v7044, 1326507024
          %v7059 = vsel %vm7047, %v7041, %v7058
          %v7060 = vsel %vm7046, %v7057, %v7059
          %v7061 = vshll.u32 %v7021, 8
          %v7062 = vmul.u32.u64.compose %v7061, %v7060
          %v7063 = vextract.low.u32 %v7062
          %v7064 = vextract.high.u32 %v7062
          %v7065 = vmul.u32.u64.compose %v7061, %v7056
          %v7066 = vextract.low.u32 %v7065
          %v7067 = vextract.high.u32 %v7065
          %v7068 = vmul.u32 %v7061, %v7052
          %v7069 = vadd.s32 %v7064, %v7066
          %vm7070 = vc.u32 %v7064, %v7066
          %v7071 = vadd.s32 %v7067, 1
          %v7072 = vsel %vm7070, %v7071, %v7067
          %v7073 = vadd.s32 %v7068, %v7072
          %v7074 = vadd.s32 %v7073, 536870912
          %v7075 = vshrl.u32 %v7074, 30
          %v7076 = vshll.u32 %v7075, 30
          %v7077 = vsub.s32 %v7073, %v7076
          %vm7078 = vcmp.lt.s32.totalorder %v7077, 0
          %v7079 = vsub.s32 0, %v7077
          %v7080 = vsel %vm7078, %v7079, %v7077
          %v7081 = vclz %v7080
          %v7082 = vsub.s32 %v7081, 2
          %vm7083 = vcmp.gt.s32.totalorder 0, %v7082
          %v7084 = vsel %vm7083, 0, %v7082
          %v7085 = vsub.s32 32, %v7084
          %v7086 = vshll.u32 %v7077, %v7084
          %v7087 = vshrl.u32 %v7069, %v7085
          %v7088 = vor.u32 %v7086, %v7087
          %v7089 = vsub.s32 4294967266, %v7084
          %v7090 = vadd.s32 %v7089, 127
          %v7091 = vshll.u32 %v7090, 23
          %v7092 = vor.u32 4788187, %v7091
          %v7093 = vand.u32 2147483647, %v7092
          %v7095 = vcvt.s32.f32 %v7088
          %v7096 = vmul.f32 %v7095, %v7093
          %v7097 = vxor.u32 %v7096, 2147483648
          %v7098 = vsel %vm7015, %v7097, %v7096
          %v7099 = vsub.s32 4, %v7075
          %v7100 = vsel %vm7015, %v7099, %v7075
          %v7101 = vsel %vm7014, %v1522, %v7098
          %v7102 = vsel %vm7014, 0, %v7100
          %v7103 = vcosq.f32.pop %v7101
          %v7104 = vsinq.f32.pop %v7101
          %vm7105 = vweird.f32 %v1522
          %v7106 = vadd.s32 %v7102, 3
          %v7107 = vand.u32 %v7106, 3
          %vm7108 = vcmp.lt.s32.totalorder %v7107, 2
          %vm7109 = vcmp.eq.s32.totalorder %v7107, 0
          %v7110 = vxor.u32 %v7104, 2147483648
          %v7111 = vsel %vm7109, %v7103, %v7110
          %vm7112 = vcmp.eq.s32.totalorder %v7107, 2
          %v7113 = vxor.u32 %v7103, 2147483648
          %v7114 = vsel %vm7112, %v7113, %v7104
          %v7115 = vsel %vm7108, %v7111, %v7114
          %v7116 = vsel %vm7105, nan, %v7115
          %v7117 = vand.u32 2147483647, %v1523
          %vm7118 = vcmp.le.f32.partialorder %v7117, 0.7853982
          %vm7119 = vcmp.lt.s32.totalorder %v1523, 0
          %v7120 = vand.u32 %v1523, 2139095040
          %v7121 = vshrl.u32 %v7120, 23
          %v7122 = vsub.s32 %v7121, 127
          %v7123 = vand.u32 2147483647, %v1523
          %v7124 = vand.u32 %v7123, 8388607
          %v7125 = vor.u32 %v7124, 8388608
          %v7126 = vsub.s32 0, %v7125
          %v7127 = vadd.s32 %v7122, 1
          %vm7128 = vcmp.gt.s32.totalorder %v7127, 0
          %v7129 = vsel %vm7128, %v7127, 0
          %v7130 = vshrl.u32 %v7129, 5
          %v7131 = vand.u32 %v7129, 31
          %v7132 = vsub.s32 32, %v7131
          %v7133 = vshrl.u32 683565275, %v7132
          %v7134 = vshll.u32 683565275, %v7131
          %v7135 = vshrl.u32 2475754826, %v7132
          %v7136 = vor.u32 %v7134, %v7135
          %v7137 = vshll.u32 2475754826, %v7131
          %v7138 = vshrl.u32 2131351028, %v7132
          %v7139 = vor.u32 %v7137, %v7138
          %v7140 = vshll.u32 2131351028, %v7131
          %v7141 = vshrl.u32 2102212464, %v7132
          %v7142 = vor.u32 %v7140, %v7141
          %v7143 = vshll.u32 2102212464, %v7131
          %v7144 = vshrl.u32 920167782, %v7132
          %v7145 = vor.u32 %v7143, %v7144
          %v7146 = vshll.u32 920167782, %v7131
          %v7147 = vshrl.u32 1326507024, %v7132
          %v7148 = vor.u32 %v7146, %v7147
          %vm7149 = vcmp.lt.s32.totalorder %v7130, 1
          %vm7150 = vcmp.lt.s32.totalorder %v7130, 2
          %vm7151 = vcmp.lt.s32.totalorder %v7130, 3
          %vm7152 = vcmp.lt.s32.totalorder %v7130, 4
          %v7153 = vsel %vm7149, %v7133, %v7136
          %v7154 = vsel %vm7152, %v7142, 2102212464
          %v7155 = vsel %vm7151, %v7139, %v7154
          %v7156 = vsel %vm7150, %v7153, %v7155
          %v7157 = vsel %vm7149, %v7136, %v7139
          %v7158 = vsel %vm7152, %v7145, 920167782
          %v7159 = vsel %vm7151, %v7142, %v7158
          %v7160 = vsel %vm7150, %v7157, %v7159
          %v7161 = vsel %vm7149, %v7139, %v7142
          %v7162 = vsel %vm7152, %v7148, 1326507024
          %v7163 = vsel %vm7151, %v7145, %v7162
          %v7164 = vsel %vm7150, %v7161, %v7163
          %v7165 = vshll.u32 %v7125, 8
          %v7166 = vmul.u32.u64.compose %v7165, %v7164
          %v7167 = vextract.low.u32 %v7166
          %v7168 = vextract.high.u32 %v7166
          %v7169 = vmul.u32.u64.compose %v7165, %v7160
          %v7170 = vextract.low.u32 %v7169
          %v7171 = vextract.high.u32 %v7169
          %v7172 = vmul.u32 %v7165, %v7156
          %v7173 = vadd.s32 %v7168, %v7170
          %vm7174 = vc.u32 %v7168, %v7170
          %v7175 = vadd.s32 %v7171, 1
          %v7176 = vsel %vm7174, %v7175, %v7171
          %v7177 = vadd.s32 %v7172, %v7176
          %v7178 = vadd.s32 %v7177, 536870912
          %v7179 = vshrl.u32 %v7178, 30
          %v7180 = vshll.u32 %v7179, 30
          %v7181 = vsub.s32 %v7177, %v7180
          %vm7182 = vcmp.lt.s32.totalorder %v7181, 0
          %v7183 = vsub.s32 0, %v7181
          %v7184 = vsel %vm7182, %v7183, %v7181
          %v7185 = vclz %v7184
          %v7186 = vsub.s32 %v7185, 2
          %vm7187 = vcmp.gt.s32.totalorder 0, %v7186
          %v7188 = vsel %vm7187, 0, %v7186
          %v7189 = vsub.s32 32, %v7188
          %v7190 = vshll.u32 %v7181, %v7188
          %v7191 = vshrl.u32 %v7173, %v7189
          %v7192 = vor.u32 %v7190, %v7191
          %v7193 = vsub.s32 4294967266, %v7188
          %v7194 = vadd.s32 %v7193, 127
          %v7195 = vshll.u32 %v7194, 23
          %v7196 = vor.u32 4788187, %v7195
          %v7197 = vand.u32 2147483647, %v7196
          %v7199 = vcvt.s32.f32 %v7192
          %v7200 = vmul.f32 %v7199, %v7197
          %v7201 = vxor.u32 %v7200, 2147483648
          %v7202 = vsel %vm7119, %v7201, %v7200
          %v7203 = vsub.s32 4, %v7179
          %v7204 = vsel %vm7119, %v7203, %v7179
          %v7205 = vsel %vm7118, %v1523, %v7202
          %v7206 = vsel %vm7118, 0, %v7204
          %v7207 = vcosq.f32.pop %v7205
          %v7208 = vsinq.f32.pop %v7205
          %vm7209 = vweird.f32 %v1523
          %v7210 = vadd.s32 %v7206, 3
          %v7211 = vand.u32 %v7210, 3
          %vm7212 = vcmp.lt.s32.totalorder %v7211, 2
          %vm7213 = vcmp.eq.s32.totalorder %v7211, 0
          %v7214 = vxor.u32 %v7208, 2147483648
          %v7215 = vsel %vm7213, %v7207, %v7214
          %vm7216 = vcmp.eq.s32.totalorder %v7211, 2
          %v7217 = vxor.u32 %v7207, 2147483648
          %v7218 = vsel %vm7216, %v7217, %v7208
          %v7219 = vsel %vm7212, %v7215, %v7218
          %v7220 = vsel %vm7209, nan, %v7219
          %v7221 = vand.u32 2147483647, %v1524
          %vm7222 = vcmp.le.f32.partialorder %v7221, 0.7853982
          %vm7223 = vcmp.lt.s32.totalorder %v1524, 0
          %v7224 = vand.u32 %v1524, 2139095040
          %v7225 = vshrl.u32 %v7224, 23
          %v7226 = vsub.s32 %v7225, 127
          %v7227 = vand.u32 2147483647, %v1524
          %v7228 = vand.u32 %v7227, 8388607
          %v7229 = vor.u32 %v7228, 8388608
          %v7230 = vsub.s32 0, %v7229
          %v7231 = vadd.s32 %v7226, 1
          %vm7232 = vcmp.gt.s32.totalorder %v7231, 0
          %v7233 = vsel %vm7232, %v7231, 0
          %v7234 = vshrl.u32 %v7233, 5
          %v7235 = vand.u32 %v7233, 31
          %v7236 = vsub.s32 32, %v7235
          %v7237 = vshrl.u32 683565275, %v7236
          %v7238 = vshll.u32 683565275, %v7235
          %v7239 = vshrl.u32 2475754826, %v7236
          %v7240 = vor.u32 %v7238, %v7239
          %v7241 = vshll.u32 2475754826, %v7235
          %v7242 = vshrl.u32 2131351028, %v7236
          %v7243 = vor.u32 %v7241, %v7242
          %v7244 = vshll.u32 2131351028, %v7235
          %v7245 = vshrl.u32 2102212464, %v7236
          %v7246 = vor.u32 %v7244, %v7245
          %v7247 = vshll.u32 2102212464, %v7235
          %v7248 = vshrl.u32 920167782, %v7236
          %v7249 = vor.u32 %v7247, %v7248
          %v7250 = vshll.u32 920167782, %v7235
          %v7251 = vshrl.u32 1326507024, %v7236
          %v7252 = vor.u32 %v7250, %v7251
          %vm7253 = vcmp.lt.s32.totalorder %v7234, 1
          %vm7254 = vcmp.lt.s32.totalorder %v7234, 2
          %vm7255 = vcmp.lt.s32.totalorder %v7234, 3
          %vm7256 = vcmp.lt.s32.totalorder %v7234, 4
          %v7257 = vsel %vm7253, %v7237, %v7240
          %v7258 = vsel %vm7256, %v7246, 2102212464
          %v7259 = vsel %vm7255, %v7243, %v7258
          %v7260 = vsel %vm7254, %v7257, %v7259
          %v7261 = vsel %vm7253, %v7240, %v7243
          %v7262 = vsel %vm7256, %v7249, 920167782
          %v7263 = vsel %vm7255, %v7246, %v7262
          %v7264 = vsel %vm7254, %v7261, %v7263
          %v7265 = vsel %vm7253, %v7243, %v7246
          %v7266 = vsel %vm7256, %v7252, 1326507024
          %v7267 = vsel %vm7255, %v7249, %v7266
          %v7268 = vsel %vm7254, %v7265, %v7267
          %v7269 = vshll.u32 %v7229, 8
          %v7270 = vmul.u32.u64.compose %v7269, %v7268
          %v7271 = vextract.low.u32 %v7270
          %v7272 = vextract.high.u32 %v7270
          %v7273 = vmul.u32.u64.compose %v7269, %v7264
          %v7274 = vextract.low.u32 %v7273
          %v7275 = vextract.high.u32 %v7273
          %v7276 = vmul.u32 %v7269, %v7260
          %v7277 = vadd.s32 %v7272, %v7274
          %vm7278 = vc.u32 %v7272, %v7274
          %v7279 = vadd.s32 %v7275, 1
          %v7280 = vsel %vm7278, %v7279, %v7275
          %v7281 = vadd.s32 %v7276, %v7280
          %v7282 = vadd.s32 %v7281, 536870912
          %v7283 = vshrl.u32 %v7282, 30
          %v7284 = vshll.u32 %v7283, 30
          %v7285 = vsub.s32 %v7281, %v7284
          %vm7286 = vcmp.lt.s32.totalorder %v7285, 0
          %v7287 = vsub.s32 0, %v7285
          %v7288 = vsel %vm7286, %v7287, %v7285
          %v7289 = vclz %v7288
          %v7290 = vsub.s32 %v7289, 2
          %vm7291 = vcmp.gt.s32.totalorder 0, %v7290
          %v7292 = vsel %vm7291, 0, %v7290
          %v7293 = vsub.s32 32, %v7292
          %v7294 = vshll.u32 %v7285, %v7292
          %v7295 = vshrl.u32 %v7277, %v7293
          %v7296 = vor.u32 %v7294, %v7295
          %v7297 = vsub.s32 4294967266, %v7292
          %v7298 = vadd.s32 %v7297, 127
          %v7299 = vshll.u32 %v7298, 23
          %v7300 = vor.u32 4788187, %v7299
          %v7301 = vand.u32 2147483647, %v7300
          %v7303 = vcvt.s32.f32 %v7296
          %v7304 = vmul.f32 %v7303, %v7301
          %v7305 = vxor.u32 %v7304, 2147483648
          %v7306 = vsel %vm7223, %v7305, %v7304
          %v7307 = vsub.s32 4, %v7283
          %v7308 = vsel %vm7223, %v7307, %v7283
          %v7309 = vsel %vm7222, %v1524, %v7306
          %v7310 = vsel %vm7222, 0, %v7308
          %v7311 = vcosq.f32.pop %v7309
          %v7312 = vsinq.f32.pop %v7309
          %vm7313 = vweird.f32 %v1524
          %v7314 = vadd.s32 %v7310, 3
          %v7315 = vand.u32 %v7314, 3
          %vm7316 = vcmp.lt.s32.totalorder %v7315, 2
          %vm7317 = vcmp.eq.s32.totalorder %v7315, 0
          %v7318 = vxor.u32 %v7312, 2147483648
          %v7319 = vsel %vm7317, %v7311, %v7318
          %vm7320 = vcmp.eq.s32.totalorder %v7315, 2
          %v7321 = vxor.u32 %v7311, 2147483648
          %v7322 = vsel %vm7320, %v7321, %v7312
          %v7323 = vsel %vm7316, %v7319, %v7322
          %v7324 = vsel %vm7313, nan, %v7323
          %v7325 = vand.u32 2147483647, %v1525
          %vm7326 = vcmp.le.f32.partialorder %v7325, 0.7853982
          %vm7327 = vcmp.lt.s32.totalorder %v1525, 0
          %v7328 = vand.u32 %v1525, 2139095040
          %v7329 = vshrl.u32 %v7328, 23
          %v7330 = vsub.s32 %v7329, 127
          %v7331 = vand.u32 2147483647, %v1525
          %v7332 = vand.u32 %v7331, 8388607
          %v7333 = vor.u32 %v7332, 8388608
          %v7334 = vsub.s32 0, %v7333
          %v7335 = vadd.s32 %v7330, 1
          %vm7336 = vcmp.gt.s32.totalorder %v7335, 0
          %v7337 = vsel %vm7336, %v7335, 0
          %v7338 = vshrl.u32 %v7337, 5
          %v7339 = vand.u32 %v7337, 31
          %v7340 = vsub.s32 32, %v7339
          %v7341 = vshrl.u32 683565275, %v7340
          %v7342 = vshll.u32 683565275, %v7339
          %v7343 = vshrl.u32 2475754826, %v7340
          %v7344 = vor.u32 %v7342, %v7343
          %v7345 = vshll.u32 2475754826, %v7339
          %v7346 = vshrl.u32 2131351028, %v7340
          %v7347 = vor.u32 %v7345, %v7346
          %v7348 = vshll.u32 2131351028, %v7339
          %v7349 = vshrl.u32 2102212464, %v7340
          %v7350 = vor.u32 %v7348, %v7349
          %v7351 = vshll.u32 2102212464, %v7339
          %v7352 = vshrl.u32 920167782, %v7340
          %v7353 = vor.u32 %v7351, %v7352
          %v7354 = vshll.u32 920167782, %v7339
          %v7355 = vshrl.u32 1326507024, %v7340
          %v7356 = vor.u32 %v7354, %v7355
          %vm7357 = vcmp.lt.s32.totalorder %v7338, 1
          %vm7358 = vcmp.lt.s32.totalorder %v7338, 2
          %vm7359 = vcmp.lt.s32.totalorder %v7338, 3
          %vm7360 = vcmp.lt.s32.totalorder %v7338, 4
          %v7361 = vsel %vm7357, %v7341, %v7344
          %v7362 = vsel %vm7360, %v7350, 2102212464
          %v7363 = vsel %vm7359, %v7347, %v7362
          %v7364 = vsel %vm7358, %v7361, %v7363
          %v7365 = vsel %vm7357, %v7344, %v7347
          %v7366 = vsel %vm7360, %v7353, 920167782
          %v7367 = vsel %vm7359, %v7350, %v7366
          %v7368 = vsel %vm7358, %v7365, %v7367
          %v7369 = vsel %vm7357, %v7347, %v7350
          %v7370 = vsel %vm7360, %v7356, 1326507024
          %v7371 = vsel %vm7359, %v7353, %v7370
          %v7372 = vsel %vm7358, %v7369, %v7371
          %v7373 = vshll.u32 %v7333, 8
          %v7374 = vmul.u32.u64.compose %v7373, %v7372
          %v7375 = vextract.low.u32 %v7374
          %v7376 = vextract.high.u32 %v7374
          %v7377 = vmul.u32.u64.compose %v7373, %v7368
          %v7378 = vextract.low.u32 %v7377
          %v7379 = vextract.high.u32 %v7377
          %v7380 = vmul.u32 %v7373, %v7364
          %v7381 = vadd.s32 %v7376, %v7378
          %vm7382 = vc.u32 %v7376, %v7378
          %v7383 = vadd.s32 %v7379, 1
          %v7384 = vsel %vm7382, %v7383, %v7379
          %v7385 = vadd.s32 %v7380, %v7384
          %v7386 = vadd.s32 %v7385, 536870912
          %v7387 = vshrl.u32 %v7386, 30
          %v7388 = vshll.u32 %v7387, 30
          %v7389 = vsub.s32 %v7385, %v7388
          %vm7390 = vcmp.lt.s32.totalorder %v7389, 0
          %v7391 = vsub.s32 0, %v7389
          %v7392 = vsel %vm7390, %v7391, %v7389
          %v7393 = vclz %v7392
          %v7394 = vsub.s32 %v7393, 2
          %vm7395 = vcmp.gt.s32.totalorder 0, %v7394
          %v7396 = vsel %vm7395, 0, %v7394
          %v7397 = vsub.s32 32, %v7396
          %v7398 = vshll.u32 %v7389, %v7396
          %v7399 = vshrl.u32 %v7381, %v7397
          %v7400 = vor.u32 %v7398, %v7399
          %v7401 = vsub.s32 4294967266, %v7396
          %v7402 = vadd.s32 %v7401, 127
          %v7403 = vshll.u32 %v7402, 23
          %v7404 = vor.u32 4788187, %v7403
          %v7405 = vand.u32 2147483647, %v7404
          %v7407 = vcvt.s32.f32 %v7400
          %v7408 = vmul.f32 %v7407, %v7405
          %v7409 = vxor.u32 %v7408, 2147483648
          %v7410 = vsel %vm7327, %v7409, %v7408
          %v7411 = vsub.s32 4, %v7387
          %v7412 = vsel %vm7327, %v7411, %v7387
          %v7413 = vsel %vm7326, %v1525, %v7410
          %v7414 = vsel %vm7326, 0, %v7412
          %v7415 = vcosq.f32.pop %v7413
          %v7416 = vsinq.f32.pop %v7413
          %vm7417 = vweird.f32 %v1525
          %v7418 = vadd.s32 %v7414, 3
          %v7419 = vand.u32 %v7418, 3
          %vm7420 = vcmp.lt.s32.totalorder %v7419, 2
          %vm7421 = vcmp.eq.s32.totalorder %v7419, 0
          %v7422 = vxor.u32 %v7416, 2147483648
          %v7423 = vsel %vm7421, %v7415, %v7422
          %vm7424 = vcmp.eq.s32.totalorder %v7419, 2
          %v7425 = vxor.u32 %v7415, 2147483648
          %v7426 = vsel %vm7424, %v7425, %v7416
          %v7427 = vsel %vm7420, %v7423, %v7426
          %v7428 = vsel %vm7417, nan, %v7427
          %v7429 = vand.u32 2147483647, %v1526
          %vm7430 = vcmp.le.f32.partialorder %v7429, 0.7853982
          %vm7431 = vcmp.lt.s32.totalorder %v1526, 0
          %v7432 = vand.u32 %v1526, 2139095040
          %v7433 = vshrl.u32 %v7432, 23
          %v7434 = vsub.s32 %v7433, 127
          %v7435 = vand.u32 2147483647, %v1526
          %v7436 = vand.u32 %v7435, 8388607
          %v7437 = vor.u32 %v7436, 8388608
          %v7438 = vsub.s32 0, %v7437
          %v7439 = vadd.s32 %v7434, 1
          %vm7440 = vcmp.gt.s32.totalorder %v7439, 0
          %v7441 = vsel %vm7440, %v7439, 0
          %v7442 = vshrl.u32 %v7441, 5
          %v7443 = vand.u32 %v7441, 31
          %v7444 = vsub.s32 32, %v7443
          %v7445 = vshrl.u32 683565275, %v7444
          %v7446 = vshll.u32 683565275, %v7443
          %v7447 = vshrl.u32 2475754826, %v7444
          %v7448 = vor.u32 %v7446, %v7447
          %v7449 = vshll.u32 2475754826, %v7443
          %v7450 = vshrl.u32 2131351028, %v7444
          %v7451 = vor.u32 %v7449, %v7450
          %v7452 = vshll.u32 2131351028, %v7443
          %v7453 = vshrl.u32 2102212464, %v7444
          %v7454 = vor.u32 %v7452, %v7453
          %v7455 = vshll.u32 2102212464, %v7443
          %v7456 = vshrl.u32 920167782, %v7444
          %v7457 = vor.u32 %v7455, %v7456
          %v7458 = vshll.u32 920167782, %v7443
          %v7459 = vshrl.u32 1326507024, %v7444
          %v7460 = vor.u32 %v7458, %v7459
          %vm7461 = vcmp.lt.s32.totalorder %v7442, 1
          %vm7462 = vcmp.lt.s32.totalorder %v7442, 2
          %vm7463 = vcmp.lt.s32.totalorder %v7442, 3
          %vm7464 = vcmp.lt.s32.totalorder %v7442, 4
          %v7465 = vsel %vm7461, %v7445, %v7448
          %v7466 = vsel %vm7464, %v7454, 2102212464
          %v7467 = vsel %vm7463, %v7451, %v7466
          %v7468 = vsel %vm7462, %v7465, %v7467
          %v7469 = vsel %vm7461, %v7448, %v7451
          %v7470 = vsel %vm7464, %v7457, 920167782
          %v7471 = vsel %vm7463, %v7454, %v7470
          %v7472 = vsel %vm7462, %v7469, %v7471
          %v7473 = vsel %vm7461, %v7451, %v7454
          %v7474 = vsel %vm7464, %v7460, 1326507024
          %v7475 = vsel %vm7463, %v7457, %v7474
          %v7476 = vsel %vm7462, %v7473, %v7475
          %v7477 = vshll.u32 %v7437, 8
          %v7478 = vmul.u32.u64.compose %v7477, %v7476
          %v7479 = vextract.low.u32 %v7478
          %v7480 = vextract.high.u32 %v7478
          %v7481 = vmul.u32.u64.compose %v7477, %v7472
          %v7482 = vextract.low.u32 %v7481
          %v7483 = vextract.high.u32 %v7481
          %v7484 = vmul.u32 %v7477, %v7468
          %v7485 = vadd.s32 %v7480, %v7482
          %vm7486 = vc.u32 %v7480, %v7482
          %v7487 = vadd.s32 %v7483, 1
          %v7488 = vsel %vm7486, %v7487, %v7483
          %v7489 = vadd.s32 %v7484, %v7488
          %v7490 = vadd.s32 %v7489, 536870912
          %v7491 = vshrl.u32 %v7490, 30
          %v7492 = vshll.u32 %v7491, 30
          %v7493 = vsub.s32 %v7489, %v7492
          %vm7494 = vcmp.lt.s32.totalorder %v7493, 0
          %v7495 = vsub.s32 0, %v7493
          %v7496 = vsel %vm7494, %v7495, %v7493
          %v7497 = vclz %v7496
          %v7498 = vsub.s32 %v7497, 2
          %vm7499 = vcmp.gt.s32.totalorder 0, %v7498
          %v7500 = vsel %vm7499, 0, %v7498
          %v7501 = vsub.s32 32, %v7500
          %v7502 = vshll.u32 %v7493, %v7500
          %v7503 = vshrl.u32 %v7485, %v7501
          %v7504 = vor.u32 %v7502, %v7503
          %v7505 = vsub.s32 4294967266, %v7500
          %v7506 = vadd.s32 %v7505, 127
          %v7507 = vshll.u32 %v7506, 23
          %v7508 = vor.u32 4788187, %v7507
          %v7509 = vand.u32 2147483647, %v7508
          %v7511 = vcvt.s32.f32 %v7504
          %v7512 = vmul.f32 %v7511, %v7509
          %v7513 = vxor.u32 %v7512, 2147483648
          %v7514 = vsel %vm7431, %v7513, %v7512
          %v7515 = vsub.s32 4, %v7491
          %v7516 = vsel %vm7431, %v7515, %v7491
          %v7517 = vsel %vm7430, %v1526, %v7514
          %v7518 = vsel %vm7430, 0, %v7516
          %v7519 = vcosq.f32.pop %v7517
          %v7520 = vsinq.f32.pop %v7517
          %vm7521 = vweird.f32 %v1526
          %v7522 = vadd.s32 %v7518, 3
          %v7523 = vand.u32 %v7522, 3
          %vm7524 = vcmp.lt.s32.totalorder %v7523, 2
          %vm7525 = vcmp.eq.s32.totalorder %v7523, 0
          %v7526 = vxor.u32 %v7520, 2147483648
          %v7527 = vsel %vm7525, %v7519, %v7526
          %vm7528 = vcmp.eq.s32.totalorder %v7523, 2
          %v7529 = vxor.u32 %v7519, 2147483648
          %v7530 = vsel %vm7528, %v7529, %v7520
          %v7531 = vsel %vm7524, %v7527, %v7530
          %v7532 = vsel %vm7521, nan, %v7531
          %v7533 = vand.u32 2147483647, %v1527
          %vm7534 = vcmp.le.f32.partialorder %v7533, 0.7853982
          %vm7535 = vcmp.lt.s32.totalorder %v1527, 0
          %v7536 = vand.u32 %v1527, 2139095040
          %v7537 = vshrl.u32 %v7536, 23
          %v7538 = vsub.s32 %v7537, 127
          %v7539 = vand.u32 2147483647, %v1527
          %v7540 = vand.u32 %v7539, 8388607
          %v7541 = vor.u32 %v7540, 8388608
          %v7542 = vsub.s32 0, %v7541
          %v7543 = vadd.s32 %v7538, 1
          %vm7544 = vcmp.gt.s32.totalorder %v7543, 0
          %v7545 = vsel %vm7544, %v7543, 0
          %v7546 = vshrl.u32 %v7545, 5
          %v7547 = vand.u32 %v7545, 31
          %v7548 = vsub.s32 32, %v7547
          %v7549 = vshrl.u32 683565275, %v7548
          %v7550 = vshll.u32 683565275, %v7547
          %v7551 = vshrl.u32 2475754826, %v7548
          %v7552 = vor.u32 %v7550, %v7551
          %v7553 = vshll.u32 2475754826, %v7547
          %v7554 = vshrl.u32 2131351028, %v7548
          %v7555 = vor.u32 %v7553, %v7554
          %v7556 = vshll.u32 2131351028, %v7547
          %v7557 = vshrl.u32 2102212464, %v7548
          %v7558 = vor.u32 %v7556, %v7557
          %v7559 = vshll.u32 2102212464, %v7547
          %v7560 = vshrl.u32 920167782, %v7548
          %v7561 = vor.u32 %v7559, %v7560
          %v7562 = vshll.u32 920167782, %v7547
          %v7563 = vshrl.u32 1326507024, %v7548
          %v7564 = vor.u32 %v7562, %v7563
          %vm7565 = vcmp.lt.s32.totalorder %v7546, 1
          %vm7566 = vcmp.lt.s32.totalorder %v7546, 2
          %vm7567 = vcmp.lt.s32.totalorder %v7546, 3
          %vm7568 = vcmp.lt.s32.totalorder %v7546, 4
          %v7569 = vsel %vm7565, %v7549, %v7552
          %v7570 = vsel %vm7568, %v7558, 2102212464
          %v7571 = vsel %vm7567, %v7555, %v7570
          %v7572 = vsel %vm7566, %v7569, %v7571
          %v7573 = vsel %vm7565, %v7552, %v7555
          %v7574 = vsel %vm7568, %v7561, 920167782
          %v7575 = vsel %vm7567, %v7558, %v7574
          %v7576 = vsel %vm7566, %v7573, %v7575
          %v7577 = vsel %vm7565, %v7555, %v7558
          %v7578 = vsel %vm7568, %v7564, 1326507024
          %v7579 = vsel %vm7567, %v7561, %v7578
          %v7580 = vsel %vm7566, %v7577, %v7579
          %v7581 = vshll.u32 %v7541, 8
          %v7582 = vmul.u32.u64.compose %v7581, %v7580
          %v7583 = vextract.low.u32 %v7582
          %v7584 = vextract.high.u32 %v7582
          %v7585 = vmul.u32.u64.compose %v7581, %v7576
          %v7586 = vextract.low.u32 %v7585
          %v7587 = vextract.high.u32 %v7585
          %v7588 = vmul.u32 %v7581, %v7572
          %v7589 = vadd.s32 %v7584, %v7586
          %vm7590 = vc.u32 %v7584, %v7586
          %v7591 = vadd.s32 %v7587, 1
          %v7592 = vsel %vm7590, %v7591, %v7587
          %v7593 = vadd.s32 %v7588, %v7592
          %v7594 = vadd.s32 %v7593, 536870912
          %v7595 = vshrl.u32 %v7594, 30
          %v7596 = vshll.u32 %v7595, 30
          %v7597 = vsub.s32 %v7593, %v7596
          %vm7598 = vcmp.lt.s32.totalorder %v7597, 0
          %v7599 = vsub.s32 0, %v7597
          %v7600 = vsel %vm7598, %v7599, %v7597
          %v7601 = vclz %v7600
          %v7602 = vsub.s32 %v7601, 2
          %vm7603 = vcmp.gt.s32.totalorder 0, %v7602
          %v7604 = vsel %vm7603, 0, %v7602
          %v7605 = vsub.s32 32, %v7604
          %v7606 = vshll.u32 %v7597, %v7604
          %v7607 = vshrl.u32 %v7589, %v7605
          %v7608 = vor.u32 %v7606, %v7607
          %v7609 = vsub.s32 4294967266, %v7604
          %v7610 = vadd.s32 %v7609, 127
          %v7611 = vshll.u32 %v7610, 23
          %v7612 = vor.u32 4788187, %v7611
          %v7613 = vand.u32 2147483647, %v7612
          %v7615 = vcvt.s32.f32 %v7608
          %v7616 = vmul.f32 %v7615, %v7613
          %v7617 = vxor.u32 %v7616, 2147483648
          %v7618 = vsel %vm7535, %v7617, %v7616
          %v7619 = vsub.s32 4, %v7595
          %v7620 = vsel %vm7535, %v7619, %v7595
          %v7621 = vsel %vm7534, %v1527, %v7618
          %v7622 = vsel %vm7534, 0, %v7620
          %v7623 = vcosq.f32.pop %v7621
          %v7624 = vsinq.f32.pop %v7621
          %vm7625 = vweird.f32 %v1527
          %v7626 = vadd.s32 %v7622, 3
          %v7627 = vand.u32 %v7626, 3
          %vm7628 = vcmp.lt.s32.totalorder %v7627, 2
          %vm7629 = vcmp.eq.s32.totalorder %v7627, 0
          %v7630 = vxor.u32 %v7624, 2147483648
          %v7631 = vsel %vm7629, %v7623, %v7630
          %vm7632 = vcmp.eq.s32.totalorder %v7627, 2
          %v7633 = vxor.u32 %v7623, 2147483648
          %v7634 = vsel %vm7632, %v7633, %v7624
          %v7635 = vsel %vm7628, %v7631, %v7634
          %v7636 = vsel %vm7625, nan, %v7635
          %v7637 = vand.u32 2147483647, %v1528
          %vm7638 = vcmp.le.f32.partialorder %v7637, 0.7853982
          %vm7639 = vcmp.lt.s32.totalorder %v1528, 0
          %v7640 = vand.u32 %v1528, 2139095040
          %v7641 = vshrl.u32 %v7640, 23
          %v7642 = vsub.s32 %v7641, 127
          %v7643 = vand.u32 2147483647, %v1528
          %v7644 = vand.u32 %v7643, 8388607
          %v7645 = vor.u32 %v7644, 8388608
          %v7646 = vsub.s32 0, %v7645
          %v7647 = vadd.s32 %v7642, 1
          %vm7648 = vcmp.gt.s32.totalorder %v7647, 0
          %v7649 = vsel %vm7648, %v7647, 0
          %v7650 = vshrl.u32 %v7649, 5
          %v7651 = vand.u32 %v7649, 31
          %v7652 = vsub.s32 32, %v7651
          %v7653 = vshrl.u32 683565275, %v7652
          %v7654 = vshll.u32 683565275, %v7651
          %v7655 = vshrl.u32 2475754826, %v7652
          %v7656 = vor.u32 %v7654, %v7655
          %v7657 = vshll.u32 2475754826, %v7651
          %v7658 = vshrl.u32 2131351028, %v7652
          %v7659 = vor.u32 %v7657, %v7658
          %v7660 = vshll.u32 2131351028, %v7651
          %v7661 = vshrl.u32 2102212464, %v7652
          %v7662 = vor.u32 %v7660, %v7661
          %v7663 = vshll.u32 2102212464, %v7651
          %v7664 = vshrl.u32 920167782, %v7652
          %v7665 = vor.u32 %v7663, %v7664
          %v7666 = vshll.u32 920167782, %v7651
          %v7667 = vshrl.u32 1326507024, %v7652
          %v7668 = vor.u32 %v7666, %v7667
          %vm7669 = vcmp.lt.s32.totalorder %v7650, 1
          %vm7670 = vcmp.lt.s32.totalorder %v7650, 2
          %vm7671 = vcmp.lt.s32.totalorder %v7650, 3
          %vm7672 = vcmp.lt.s32.totalorder %v7650, 4
          %v7673 = vsel %vm7669, %v7653, %v7656
          %v7674 = vsel %vm7672, %v7662, 2102212464
          %v7675 = vsel %vm7671, %v7659, %v7674
          %v7676 = vsel %vm7670, %v7673, %v7675
          %v7677 = vsel %vm7669, %v7656, %v7659
          %v7678 = vsel %vm7672, %v7665, 920167782
          %v7679 = vsel %vm7671, %v7662, %v7678
          %v7680 = vsel %vm7670, %v7677, %v7679
          %v7681 = vsel %vm7669, %v7659, %v7662
          %v7682 = vsel %vm7672, %v7668, 1326507024
          %v7683 = vsel %vm7671, %v7665, %v7682
          %v7684 = vsel %vm7670, %v7681, %v7683
          %v7685 = vshll.u32 %v7645, 8
          %v7686 = vmul.u32.u64.compose %v7685, %v7684
          %v7687 = vextract.low.u32 %v7686
          %v7688 = vextract.high.u32 %v7686
          %v7689 = vmul.u32.u64.compose %v7685, %v7680
          %v7690 = vextract.low.u32 %v7689
          %v7691 = vextract.high.u32 %v7689
          %v7692 = vmul.u32 %v7685, %v7676
          %v7693 = vadd.s32 %v7688, %v7690
          %vm7694 = vc.u32 %v7688, %v7690
          %v7695 = vadd.s32 %v7691, 1
          %v7696 = vsel %vm7694, %v7695, %v7691
          %v7697 = vadd.s32 %v7692, %v7696
          %v7698 = vadd.s32 %v7697, 536870912
          %v7699 = vshrl.u32 %v7698, 30
          %v7700 = vshll.u32 %v7699, 30
          %v7701 = vsub.s32 %v7697, %v7700
          %vm7702 = vcmp.lt.s32.totalorder %v7701, 0
          %v7703 = vsub.s32 0, %v7701
          %v7704 = vsel %vm7702, %v7703, %v7701
          %v7705 = vclz %v7704
          %v7706 = vsub.s32 %v7705, 2
          %vm7707 = vcmp.gt.s32.totalorder 0, %v7706
          %v7708 = vsel %vm7707, 0, %v7706
          %v7709 = vsub.s32 32, %v7708
          %v7710 = vshll.u32 %v7701, %v7708
          %v7711 = vshrl.u32 %v7693, %v7709
          %v7712 = vor.u32 %v7710, %v7711
          %v7713 = vsub.s32 4294967266, %v7708
          %v7714 = vadd.s32 %v7713, 127
          %v7715 = vshll.u32 %v7714, 23
          %v7716 = vor.u32 4788187, %v7715
          %v7717 = vand.u32 2147483647, %v7716
          %v7719 = vcvt.s32.f32 %v7712
          %v7720 = vmul.f32 %v7719, %v7717
          %v7721 = vxor.u32 %v7720, 2147483648
          %v7722 = vsel %vm7639, %v7721, %v7720
          %v7723 = vsub.s32 4, %v7699
          %v7724 = vsel %vm7639, %v7723, %v7699
          %v7725 = vsel %vm7638, %v1528, %v7722
          %v7726 = vsel %vm7638, 0, %v7724
          %v7727 = vcosq.f32.pop %v7725
          %v7728 = vsinq.f32.pop %v7725
          %vm7729 = vweird.f32 %v1528
          %v7730 = vadd.s32 %v7726, 3
          %v7731 = vand.u32 %v7730, 3
          %vm7732 = vcmp.lt.s32.totalorder %v7731, 2
          %vm7733 = vcmp.eq.s32.totalorder %v7731, 0
          %v7734 = vxor.u32 %v7728, 2147483648
          %v7735 = vsel %vm7733, %v7727, %v7734
          %vm7736 = vcmp.eq.s32.totalorder %v7731, 2
          %v7737 = vxor.u32 %v7727, 2147483648
          %v7738 = vsel %vm7736, %v7737, %v7728
          %v7739 = vsel %vm7732, %v7735, %v7738
          %v7740 = vsel %vm7729, nan, %v7739
          %v7741 = vand.u32 2147483647, %v1529
          %vm7742 = vcmp.le.f32.partialorder %v7741, 0.7853982
          %vm7743 = vcmp.lt.s32.totalorder %v1529, 0
          %v7744 = vand.u32 %v1529, 2139095040
          %v7745 = vshrl.u32 %v7744, 23
          %v7746 = vsub.s32 %v7745, 127
          %v7747 = vand.u32 2147483647, %v1529
          %v7748 = vand.u32 %v7747, 8388607
          %v7749 = vor.u32 %v7748, 8388608
          %v7750 = vsub.s32 0, %v7749
          %v7751 = vadd.s32 %v7746, 1
          %vm7752 = vcmp.gt.s32.totalorder %v7751, 0
          %v7753 = vsel %vm7752, %v7751, 0
          %v7754 = vshrl.u32 %v7753, 5
          %v7755 = vand.u32 %v7753, 31
          %v7756 = vsub.s32 32, %v7755
          %v7757 = vshrl.u32 683565275, %v7756
          %v7758 = vshll.u32 683565275, %v7755
          %v7759 = vshrl.u32 2475754826, %v7756
          %v7760 = vor.u32 %v7758, %v7759
          %v7761 = vshll.u32 2475754826, %v7755
          %v7762 = vshrl.u32 2131351028, %v7756
          %v7763 = vor.u32 %v7761, %v7762
          %v7764 = vshll.u32 2131351028, %v7755
          %v7765 = vshrl.u32 2102212464, %v7756
          %v7766 = vor.u32 %v7764, %v7765
          %v7767 = vshll.u32 2102212464, %v7755
          %v7768 = vshrl.u32 920167782, %v7756
          %v7769 = vor.u32 %v7767, %v7768
          %v7770 = vshll.u32 920167782, %v7755
          %v7771 = vshrl.u32 1326507024, %v7756
          %v7772 = vor.u32 %v7770, %v7771
          %vm7773 = vcmp.lt.s32.totalorder %v7754, 1
          %vm7774 = vcmp.lt.s32.totalorder %v7754, 2
          %vm7775 = vcmp.lt.s32.totalorder %v7754, 3
          %vm7776 = vcmp.lt.s32.totalorder %v7754, 4
          %v7777 = vsel %vm7773, %v7757, %v7760
          %v7778 = vsel %vm7776, %v7766, 2102212464
          %v7779 = vsel %vm7775, %v7763, %v7778
          %v7780 = vsel %vm7774, %v7777, %v7779
          %v7781 = vsel %vm7773, %v7760, %v7763
          %v7782 = vsel %vm7776, %v7769, 920167782
          %v7783 = vsel %vm7775, %v7766, %v7782
          %v7784 = vsel %vm7774, %v7781, %v7783
          %v7785 = vsel %vm7773, %v7763, %v7766
          %v7786 = vsel %vm7776, %v7772, 1326507024
          %v7787 = vsel %vm7775, %v7769, %v7786
          %v7788 = vsel %vm7774, %v7785, %v7787
          %v7789 = vshll.u32 %v7749, 8
          %v7790 = vmul.u32.u64.compose %v7789, %v7788
          %v7791 = vextract.low.u32 %v7790
          %v7792 = vextract.high.u32 %v7790
          %v7793 = vmul.u32.u64.compose %v7789, %v7784
          %v7794 = vextract.low.u32 %v7793
          %v7795 = vextract.high.u32 %v7793
          %v7796 = vmul.u32 %v7789, %v7780
          %v7797 = vadd.s32 %v7792, %v7794
          %vm7798 = vc.u32 %v7792, %v7794
          %v7799 = vadd.s32 %v7795, 1
          %v7800 = vsel %vm7798, %v7799, %v7795
          %v7801 = vadd.s32 %v7796, %v7800
          %v7802 = vadd.s32 %v7801, 536870912
          %v7803 = vshrl.u32 %v7802, 30
          %v7804 = vshll.u32 %v7803, 30
          %v7805 = vsub.s32 %v7801, %v7804
          %vm7806 = vcmp.lt.s32.totalorder %v7805, 0
          %v7807 = vsub.s32 0, %v7805
          %v7808 = vsel %vm7806, %v7807, %v7805
          %v7809 = vclz %v7808
          %v7810 = vsub.s32 %v7809, 2
          %vm7811 = vcmp.gt.s32.totalorder 0, %v7810
          %v7812 = vsel %vm7811, 0, %v7810
          %v7813 = vsub.s32 32, %v7812
          %v7814 = vshll.u32 %v7805, %v7812
          %v7815 = vshrl.u32 %v7797, %v7813
          %v7816 = vor.u32 %v7814, %v7815
          %v7817 = vsub.s32 4294967266, %v7812
          %v7818 = vadd.s32 %v7817, 127
          %v7819 = vshll.u32 %v7818, 23
          %v7820 = vor.u32 4788187, %v7819
          %v7821 = vand.u32 2147483647, %v7820
          %v7823 = vcvt.s32.f32 %v7816
          %v7824 = vmul.f32 %v7823, %v7821
          %v7825 = vxor.u32 %v7824, 2147483648
          %v7826 = vsel %vm7743, %v7825, %v7824
          %v7827 = vsub.s32 4, %v7803
          %v7828 = vsel %vm7743, %v7827, %v7803
          %v7829 = vsel %vm7742, %v1529, %v7826
          %v7830 = vsel %vm7742, 0, %v7828
          %v7831 = vcosq.f32.pop %v7829
          %v7832 = vsinq.f32.pop %v7829
          %vm7833 = vweird.f32 %v1529
          %v7834 = vadd.s32 %v7830, 3
          %v7835 = vand.u32 %v7834, 3
          %vm7836 = vcmp.lt.s32.totalorder %v7835, 2
          %vm7837 = vcmp.eq.s32.totalorder %v7835, 0
          %v7838 = vxor.u32 %v7832, 2147483648
          %v7839 = vsel %vm7837, %v7831, %v7838
          %vm7840 = vcmp.eq.s32.totalorder %v7835, 2
          %v7841 = vxor.u32 %v7831, 2147483648
          %v7842 = vsel %vm7840, %v7841, %v7832
          %v7843 = vsel %vm7836, %v7839, %v7842
          %v7844 = vsel %vm7833, nan, %v7843
          %v7845 = vand.u32 2147483647, %v1530
          %vm7846 = vcmp.le.f32.partialorder %v7845, 0.7853982
          %vm7847 = vcmp.lt.s32.totalorder %v1530, 0
          %v7848 = vand.u32 %v1530, 2139095040
          %v7849 = vshrl.u32 %v7848, 23
          %v7850 = vsub.s32 %v7849, 127
          %v7851 = vand.u32 2147483647, %v1530
          %v7852 = vand.u32 %v7851, 8388607
          %v7853 = vor.u32 %v7852, 8388608
          %v7854 = vsub.s32 0, %v7853
          %v7855 = vadd.s32 %v7850, 1
          %vm7856 = vcmp.gt.s32.totalorder %v7855, 0
          %v7857 = vsel %vm7856, %v7855, 0
          %v7858 = vshrl.u32 %v7857, 5
          %v7859 = vand.u32 %v7857, 31
          %v7860 = vsub.s32 32, %v7859
          %v7861 = vshrl.u32 683565275, %v7860
          %v7862 = vshll.u32 683565275, %v7859
          %v7863 = vshrl.u32 2475754826, %v7860
          %v7864 = vor.u32 %v7862, %v7863
          %v7865 = vshll.u32 2475754826, %v7859
          %v7866 = vshrl.u32 2131351028, %v7860
          %v7867 = vor.u32 %v7865, %v7866
          %v7868 = vshll.u32 2131351028, %v7859
          %v7869 = vshrl.u32 2102212464, %v7860
          %v7870 = vor.u32 %v7868, %v7869
          %v7871 = vshll.u32 2102212464, %v7859
          %v7872 = vshrl.u32 920167782, %v7860
          %v7873 = vor.u32 %v7871, %v7872
          %v7874 = vshll.u32 920167782, %v7859
          %v7875 = vshrl.u32 1326507024, %v7860
          %v7876 = vor.u32 %v7874, %v7875
          %vm7877 = vcmp.lt.s32.totalorder %v7858, 1
          %vm7878 = vcmp.lt.s32.totalorder %v7858, 2
          %vm7879 = vcmp.lt.s32.totalorder %v7858, 3
          %vm7880 = vcmp.lt.s32.totalorder %v7858, 4
          %v7881 = vsel %vm7877, %v7861, %v7864
          %v7882 = vsel %vm7880, %v7870, 2102212464
          %v7883 = vsel %vm7879, %v7867, %v7882
          %v7884 = vsel %vm7878, %v7881, %v7883
          %v7885 = vsel %vm7877, %v7864, %v7867
          %v7886 = vsel %vm7880, %v7873, 920167782
          %v7887 = vsel %vm7879, %v7870, %v7886
          %v7888 = vsel %vm7878, %v7885, %v7887
          %v7889 = vsel %vm7877, %v7867, %v7870
          %v7890 = vsel %vm7880, %v7876, 1326507024
          %v7891 = vsel %vm7879, %v7873, %v7890
          %v7892 = vsel %vm7878, %v7889, %v7891
          %v7893 = vshll.u32 %v7853, 8
          %v7894 = vmul.u32.u64.compose %v7893, %v7892
          %v7895 = vextract.low.u32 %v7894
          %v7896 = vextract.high.u32 %v7894
          %v7897 = vmul.u32.u64.compose %v7893, %v7888
          %v7898 = vextract.low.u32 %v7897
          %v7899 = vextract.high.u32 %v7897
          %v7900 = vmul.u32 %v7893, %v7884
          %v7901 = vadd.s32 %v7896, %v7898
          %vm7902 = vc.u32 %v7896, %v7898
          %v7903 = vadd.s32 %v7899, 1
          %v7904 = vsel %vm7902, %v7903, %v7899
          %v7905 = vadd.s32 %v7900, %v7904
          %v7906 = vadd.s32 %v7905, 536870912
          %v7907 = vshrl.u32 %v7906, 30
          %v7908 = vshll.u32 %v7907, 30
          %v7909 = vsub.s32 %v7905, %v7908
          %vm7910 = vcmp.lt.s32.totalorder %v7909, 0
          %v7911 = vsub.s32 0, %v7909
          %v7912 = vsel %vm7910, %v7911, %v7909
          %v7913 = vclz %v7912
          %v7914 = vsub.s32 %v7913, 2
          %vm7915 = vcmp.gt.s32.totalorder 0, %v7914
          %v7916 = vsel %vm7915, 0, %v7914
          %v7917 = vsub.s32 32, %v7916
          %v7918 = vshll.u32 %v7909, %v7916
          %v7919 = vshrl.u32 %v7901, %v7917
          %v7920 = vor.u32 %v7918, %v7919
          %v7921 = vsub.s32 4294967266, %v7916
          %v7922 = vadd.s32 %v7921, 127
          %v7923 = vshll.u32 %v7922, 23
          %v7924 = vor.u32 4788187, %v7923
          %v7925 = vand.u32 2147483647, %v7924
          %v7927 = vcvt.s32.f32 %v7920
          %v7928 = vmul.f32 %v7927, %v7925
          %v7929 = vxor.u32 %v7928, 2147483648
          %v7930 = vsel %vm7847, %v7929, %v7928
          %v7931 = vsub.s32 4, %v7907
          %v7932 = vsel %vm7847, %v7931, %v7907
          %v7933 = vsel %vm7846, %v1530, %v7930
          %v7934 = vsel %vm7846, 0, %v7932
          %v7935 = vcosq.f32.pop %v7933
          %v7936 = vsinq.f32.pop %v7933
          %vm7937 = vweird.f32 %v1530
          %v7938 = vadd.s32 %v7934, 3
          %v7939 = vand.u32 %v7938, 3
          %vm7940 = vcmp.lt.s32.totalorder %v7939, 2
          %vm7941 = vcmp.eq.s32.totalorder %v7939, 0
          %v7942 = vxor.u32 %v7936, 2147483648
          %v7943 = vsel %vm7941, %v7935, %v7942
          %vm7944 = vcmp.eq.s32.totalorder %v7939, 2
          %v7945 = vxor.u32 %v7935, 2147483648
          %v7946 = vsel %vm7944, %v7945, %v7936
          %v7947 = vsel %vm7940, %v7943, %v7946
          %v7948 = vsel %vm7937, nan, %v7947
          %v7949 = vand.u32 2147483647, %v1531
          %vm7950 = vcmp.le.f32.partialorder %v7949, 0.7853982
          %vm7951 = vcmp.lt.s32.totalorder %v1531, 0
          %v7952 = vand.u32 %v1531, 2139095040
          %v7953 = vshrl.u32 %v7952, 23
          %v7954 = vsub.s32 %v7953, 127
          %v7955 = vand.u32 2147483647, %v1531
          %v7956 = vand.u32 %v7955, 8388607
          %v7957 = vor.u32 %v7956, 8388608
          %v7958 = vsub.s32 0, %v7957
          %v7959 = vadd.s32 %v7954, 1
          %vm7960 = vcmp.gt.s32.totalorder %v7959, 0
          %v7961 = vsel %vm7960, %v7959, 0
          %v7962 = vshrl.u32 %v7961, 5
          %v7963 = vand.u32 %v7961, 31
          %v7964 = vsub.s32 32, %v7963
          %v7965 = vshrl.u32 683565275, %v7964
          %v7966 = vshll.u32 683565275, %v7963
          %v7967 = vshrl.u32 2475754826, %v7964
          %v7968 = vor.u32 %v7966, %v7967
          %v7969 = vshll.u32 2475754826, %v7963
          %v7970 = vshrl.u32 2131351028, %v7964
          %v7971 = vor.u32 %v7969, %v7970
          %v7972 = vshll.u32 2131351028, %v7963
          %v7973 = vshrl.u32 2102212464, %v7964
          %v7974 = vor.u32 %v7972, %v7973
          %v7975 = vshll.u32 2102212464, %v7963
          %v7976 = vshrl.u32 920167782, %v7964
          %v7977 = vor.u32 %v7975, %v7976
          %v7978 = vshll.u32 920167782, %v7963
          %v7979 = vshrl.u32 1326507024, %v7964
          %v7980 = vor.u32 %v7978, %v7979
          %vm7981 = vcmp.lt.s32.totalorder %v7962, 1
          %vm7982 = vcmp.lt.s32.totalorder %v7962, 2
          %vm7983 = vcmp.lt.s32.totalorder %v7962, 3
          %vm7984 = vcmp.lt.s32.totalorder %v7962, 4
          %v7985 = vsel %vm7981, %v7965, %v7968
          %v7986 = vsel %vm7984, %v7974, 2102212464
          %v7987 = vsel %vm7983, %v7971, %v7986
          %v7988 = vsel %vm7982, %v7985, %v7987
          %v7989 = vsel %vm7981, %v7968, %v7971
          %v7990 = vsel %vm7984, %v7977, 920167782
          %v7991 = vsel %vm7983, %v7974, %v7990
          %v7992 = vsel %vm7982, %v7989, %v7991
          %v7993 = vsel %vm7981, %v7971, %v7974
          %v7994 = vsel %vm7984, %v7980, 1326507024
          %v7995 = vsel %vm7983, %v7977, %v7994
          %v7996 = vsel %vm7982, %v7993, %v7995
          %v7997 = vshll.u32 %v7957, 8
          %v7998 = vmul.u32.u64.compose %v7997, %v7996
          %v7999 = vextract.low.u32 %v7998
          %v8000 = vextract.high.u32 %v7998
          %v8001 = vmul.u32.u64.compose %v7997, %v7992
          %v8002 = vextract.low.u32 %v8001
          %v8003 = vextract.high.u32 %v8001
          %v8004 = vmul.u32 %v7997, %v7988
          %v8005 = vadd.s32 %v8000, %v8002
          %vm8006 = vc.u32 %v8000, %v8002
          %v8007 = vadd.s32 %v8003, 1
          %v8008 = vsel %vm8006, %v8007, %v8003
          %v8009 = vadd.s32 %v8004, %v8008
          %v8010 = vadd.s32 %v8009, 536870912
          %v8011 = vshrl.u32 %v8010, 30
          %v8012 = vshll.u32 %v8011, 30
          %v8013 = vsub.s32 %v8009, %v8012
          %vm8014 = vcmp.lt.s32.totalorder %v8013, 0
          %v8015 = vsub.s32 0, %v8013
          %v8016 = vsel %vm8014, %v8015, %v8013
          %v8017 = vclz %v8016
          %v8018 = vsub.s32 %v8017, 2
          %vm8019 = vcmp.gt.s32.totalorder 0, %v8018
          %v8020 = vsel %vm8019, 0, %v8018
          %v8021 = vsub.s32 32, %v8020
          %v8022 = vshll.u32 %v8013, %v8020
          %v8023 = vshrl.u32 %v8005, %v8021
          %v8024 = vor.u32 %v8022, %v8023
          %v8025 = vsub.s32 4294967266, %v8020
          %v8026 = vadd.s32 %v8025, 127
          %v8027 = vshll.u32 %v8026, 23
          %v8028 = vor.u32 4788187, %v8027
          %v8029 = vand.u32 2147483647, %v8028
          %v8031 = vcvt.s32.f32 %v8024
          %v8032 = vmul.f32 %v8031, %v8029
          %v8033 = vxor.u32 %v8032, 2147483648
          %v8034 = vsel %vm7951, %v8033, %v8032
          %v8035 = vsub.s32 4, %v8011
          %v8036 = vsel %vm7951, %v8035, %v8011
          %v8037 = vsel %vm7950, %v1531, %v8034
          %v8038 = vsel %vm7950, 0, %v8036
          %v8039 = vcosq.f32.pop %v8037
          %v8040 = vsinq.f32.pop %v8037
          %vm8041 = vweird.f32 %v1531
          %v8042 = vadd.s32 %v8038, 3
          %v8043 = vand.u32 %v8042, 3
          %vm8044 = vcmp.lt.s32.totalorder %v8043, 2
          %vm8045 = vcmp.eq.s32.totalorder %v8043, 0
          %v8046 = vxor.u32 %v8040, 2147483648
          %v8047 = vsel %vm8045, %v8039, %v8046
          %vm8048 = vcmp.eq.s32.totalorder %v8043, 2
          %v8049 = vxor.u32 %v8039, 2147483648
          %v8050 = vsel %vm8048, %v8049, %v8040
          %v8051 = vsel %vm8044, %v8047, %v8050
          %v8052 = vsel %vm8041, nan, %v8051
          %v8053 = vand.u32 2147483647, %v1532
          %vm8054 = vcmp.le.f32.partialorder %v8053, 0.7853982
          %vm8055 = vcmp.lt.s32.totalorder %v1532, 0
          %v8056 = vand.u32 %v1532, 2139095040
          %v8057 = vshrl.u32 %v8056, 23
          %v8058 = vsub.s32 %v8057, 127
          %v8059 = vand.u32 2147483647, %v1532
          %v8060 = vand.u32 %v8059, 8388607
          %v8061 = vor.u32 %v8060, 8388608
          %v8062 = vsub.s32 0, %v8061
          %v8063 = vadd.s32 %v8058, 1
          %vm8064 = vcmp.gt.s32.totalorder %v8063, 0
          %v8065 = vsel %vm8064, %v8063, 0
          %v8066 = vshrl.u32 %v8065, 5
          %v8067 = vand.u32 %v8065, 31
          %v8068 = vsub.s32 32, %v8067
          %v8069 = vshrl.u32 683565275, %v8068
          %v8070 = vshll.u32 683565275, %v8067
          %v8071 = vshrl.u32 2475754826, %v8068
          %v8072 = vor.u32 %v8070, %v8071
          %v8073 = vshll.u32 2475754826, %v8067
          %v8074 = vshrl.u32 2131351028, %v8068
          %v8075 = vor.u32 %v8073, %v8074
          %v8076 = vshll.u32 2131351028, %v8067
          %v8077 = vshrl.u32 2102212464, %v8068
          %v8078 = vor.u32 %v8076, %v8077
          %v8079 = vshll.u32 2102212464, %v8067
          %v8080 = vshrl.u32 920167782, %v8068
          %v8081 = vor.u32 %v8079, %v8080
          %v8082 = vshll.u32 920167782, %v8067
          %v8083 = vshrl.u32 1326507024, %v8068
          %v8084 = vor.u32 %v8082, %v8083
          %vm8085 = vcmp.lt.s32.totalorder %v8066, 1
          %vm8086 = vcmp.lt.s32.totalorder %v8066, 2
          %vm8087 = vcmp.lt.s32.totalorder %v8066, 3
          %vm8088 = vcmp.lt.s32.totalorder %v8066, 4
          %v8089 = vsel %vm8085, %v8069, %v8072
          %v8090 = vsel %vm8088, %v8078, 2102212464
          %v8091 = vsel %vm8087, %v8075, %v8090
          %v8092 = vsel %vm8086, %v8089, %v8091
          %v8093 = vsel %vm8085, %v8072, %v8075
          %v8094 = vsel %vm8088, %v8081, 920167782
          %v8095 = vsel %vm8087, %v8078, %v8094
          %v8096 = vsel %vm8086, %v8093, %v8095
          %v8097 = vsel %vm8085, %v8075, %v8078
          %v8098 = vsel %vm8088, %v8084, 1326507024
          %v8099 = vsel %vm8087, %v8081, %v8098
          %v8100 = vsel %vm8086, %v8097, %v8099
          %v8101 = vshll.u32 %v8061, 8
          %v8102 = vmul.u32.u64.compose %v8101, %v8100
          %v8103 = vextract.low.u32 %v8102
          %v8104 = vextract.high.u32 %v8102
          %v8105 = vmul.u32.u64.compose %v8101, %v8096
          %v8106 = vextract.low.u32 %v8105
          %v8107 = vextract.high.u32 %v8105
          %v8108 = vmul.u32 %v8101, %v8092
          %v8109 = vadd.s32 %v8104, %v8106
          %vm8110 = vc.u32 %v8104, %v8106
          %v8111 = vadd.s32 %v8107, 1
          %v8112 = vsel %vm8110, %v8111, %v8107
          %v8113 = vadd.s32 %v8108, %v8112
          %v8114 = vadd.s32 %v8113, 536870912
          %v8115 = vshrl.u32 %v8114, 30
          %v8116 = vshll.u32 %v8115, 30
          %v8117 = vsub.s32 %v8113, %v8116
          %vm8118 = vcmp.lt.s32.totalorder %v8117, 0
          %v8119 = vsub.s32 0, %v8117
          %v8120 = vsel %vm8118, %v8119, %v8117
          %v8121 = vclz %v8120
          %v8122 = vsub.s32 %v8121, 2
          %vm8123 = vcmp.gt.s32.totalorder 0, %v8122
          %v8124 = vsel %vm8123, 0, %v8122
          %v8125 = vsub.s32 32, %v8124
          %v8126 = vshll.u32 %v8117, %v8124
          %v8127 = vshrl.u32 %v8109, %v8125
          %v8128 = vor.u32 %v8126, %v8127
          %v8129 = vsub.s32 4294967266, %v8124
          %v8130 = vadd.s32 %v8129, 127
          %v8131 = vshll.u32 %v8130, 23
          %v8132 = vor.u32 4788187, %v8131
          %v8133 = vand.u32 2147483647, %v8132
          %v8135 = vcvt.s32.f32 %v8128
          %v8136 = vmul.f32 %v8135, %v8133
          %v8137 = vxor.u32 %v8136, 2147483648
          %v8138 = vsel %vm8055, %v8137, %v8136
          %v8139 = vsub.s32 4, %v8115
          %v8140 = vsel %vm8055, %v8139, %v8115
          %v8141 = vsel %vm8054, %v1532, %v8138
          %v8142 = vsel %vm8054, 0, %v8140
          %v8143 = vcosq.f32.pop %v8141
          %v8144 = vsinq.f32.pop %v8141
          %vm8145 = vweird.f32 %v1532
          %v8146 = vadd.s32 %v8142, 3
          %v8147 = vand.u32 %v8146, 3
          %vm8148 = vcmp.lt.s32.totalorder %v8147, 2
          %vm8149 = vcmp.eq.s32.totalorder %v8147, 0
          %v8150 = vxor.u32 %v8144, 2147483648
          %v8151 = vsel %vm8149, %v8143, %v8150
          %vm8152 = vcmp.eq.s32.totalorder %v8147, 2
          %v8153 = vxor.u32 %v8143, 2147483648
          %v8154 = vsel %vm8152, %v8153, %v8144
          %v8155 = vsel %vm8148, %v8151, %v8154
          %v8156 = vsel %vm8145, nan, %v8155
          %v8157 = vlaneseq
          %v8158 = vand.u32 %v8157, 127
          %vm8159 = vcmp.lt.s32.totalorder %v8158, 64
          %8160 = vrot.lane.b32.xlu0 %v4932, 64
          %v8161 = vpop.permute.xlu0 %8160
          %8162 = vrot.lane.b32.xlu0 %v5036, 64
          %v8163 = vpop.permute.xlu0 %8162
          %8164 = vrot.lane.b32.xlu0 %v5140, 64
          %v8165 = vpop.permute.xlu0 %8164
          %8166 = vrot.lane.b32.xlu0 %v5244, 64
          %v8167 = vpop.permute.xlu0 %8166
          %8168 = vrot.lane.b32.xlu0 %v5348, 64
          %v8169 = vpop.permute.xlu0 %8168
          %8170 = vrot.lane.b32.xlu0 %v5452, 64
          %v8171 = vpop.permute.xlu0 %8170
          %8172 = vrot.lane.b32.xlu0 %v5556, 64
          %v8173 = vpop.permute.xlu0 %8172
          %8174 = vrot.lane.b32.xlu0 %v5660, 64
          %v8175 = vpop.permute.xlu0 %8174
          %8176 = vrot.lane.b32.xlu0 %v5764, 64
          %v8177 = vpop.permute.xlu0 %8176
          %8178 = vrot.lane.b32.xlu0 %v5868, 64
          %v8179 = vpop.permute.xlu0 %8178
          %8180 = vrot.lane.b32.xlu0 %v5972, 64
          %v8181 = vpop.permute.xlu0 %8180
          %8182 = vrot.lane.b32.xlu0 %v6076, 64
          %v8183 = vpop.permute.xlu0 %8182
          %8184 = vrot.lane.b32.xlu0 %v6180, 64
          %v8185 = vpop.permute.xlu0 %8184
          %8186 = vrot.lane.b32.xlu0 %v6284, 64
          %v8187 = vpop.permute.xlu0 %8186
          %8188 = vrot.lane.b32.xlu0 %v6388, 64
          %v8189 = vpop.permute.xlu0 %8188
          %8190 = vrot.lane.b32.xlu0 %v6492, 64
          %v8191 = vpop.permute.xlu0 %8190
          %8192 = vrot.lane.b32.xlu0 %v6596, 64
          %v8193 = vpop.permute.xlu0 %8192
          %8194 = vrot.lane.b32.xlu0 %v6700, 64
          %v8195 = vpop.permute.xlu0 %8194
          %8196 = vrot.lane.b32.xlu0 %v6804, 64
          %v8197 = vpop.permute.xlu0 %8196
          %8198 = vrot.lane.b32.xlu0 %v6908, 64
          %v8199 = vpop.permute.xlu0 %8198
          %8200 = vrot.lane.b32.xlu0 %v7012, 64
          %v8201 = vpop.permute.xlu0 %8200
          %8202 = vrot.lane.b32.xlu0 %v7116, 64
          %v8203 = vpop.permute.xlu0 %8202
          %8204 = vrot.lane.b32.xlu0 %v7220, 64
          %v8205 = vpop.permute.xlu0 %8204
          %8206 = vrot.lane.b32.xlu0 %v7324, 64
          %v8207 = vpop.permute.xlu0 %8206
          %8208 = vrot.lane.b32.xlu0 %v7428, 64
          %v8209 = vpop.permute.xlu0 %8208
          %8210 = vrot.lane.b32.xlu0 %v7532, 64
          %v8211 = vpop.permute.xlu0 %8210
          %8212 = vrot.lane.b32.xlu0 %v7636, 64
          %v8213 = vpop.permute.xlu0 %8212
          %8214 = vrot.lane.b32.xlu0 %v7740, 64
          %v8215 = vpop.permute.xlu0 %8214
          %8216 = vrot.lane.b32.xlu0 %v7844, 64
          %v8217 = vpop.permute.xlu0 %8216
          %8218 = vrot.lane.b32.xlu0 %v7948, 64
          %v8219 = vpop.permute.xlu0 %8218
          %8220 = vrot.lane.b32.xlu0 %v8052, 64
          %v8221 = vpop.permute.xlu0 %8220
          %8222 = vrot.lane.b32.xlu0 %v8156, 64
          %v8223 = vpop.permute.xlu0 %8222
          %v8224 = vsel %vm8159, %v1635, %v8161
          %v8225 = vsel %vm8159, %v1738, %v8163
          %v8226 = vsel %vm8159, %v1841, %v8165
          %v8227 = vsel %vm8159, %v1944, %v8167
          %v8228 = vsel %vm8159, %v2047, %v8169
          %v8229 = vsel %vm8159, %v2150, %v8171
          %v8230 = vsel %vm8159, %v2253, %v8173
          %v8231 = vsel %vm8159, %v2356, %v8175
          %v8232 = vsel %vm8159, %v2459, %v8177
          %v8233 = vsel %vm8159, %v2562, %v8179
          %v8234 = vsel %vm8159, %v2665, %v8181
          %v8235 = vsel %vm8159, %v2768, %v8183
          %v8236 = vsel %vm8159, %v2871, %v8185
          %v8237 = vsel %vm8159, %v2974, %v8187
          %v8238 = vsel %vm8159, %v3077, %v8189
          %v8239 = vsel %vm8159, %v3180, %v8191
          %v8240 = vsel %vm8159, %v3283, %v8193
          %v8241 = vsel %vm8159, %v3386, %v8195
          %v8242 = vsel %vm8159, %v3489, %v8197
          %v8243 = vsel %vm8159, %v3592, %v8199
          %v8244 = vsel %vm8159, %v3695, %v8201
          %v8245 = vsel %vm8159, %v3798, %v8203
          %v8246 = vsel %vm8159, %v3901, %v8205
          %v8247 = vsel %vm8159, %v4004, %v8207
          %v8248 = vsel %vm8159, %v4107, %v8209
          %v8249 = vsel %vm8159, %v4210, %v8211
          %v8250 = vsel %vm8159, %v4313, %v8213
          %v8251 = vsel %vm8159, %v4416, %v8215
          %v8252 = vsel %vm8159, %v4519, %v8217
          %v8253 = vsel %vm8159, %v4622, %v8219
          %v8254 = vsel %vm8159, %v4725, %v8221
          %v8255 = vsel %vm8159, %v4828, %v8223
          %v8256 = vpack.c.bf16 %v8225, %v8224
          %v8257 = vpack.c.bf16 %v8227, %v8226
          %v8258 = vpack.c.bf16 %v8229, %v8228
          %v8259 = vpack.c.bf16 %v8231, %v8230
          %v8260 = vpack.c.bf16 %v8233, %v8232
          %v8261 = vpack.c.bf16 %v8235, %v8234
          %v8262 = vpack.c.bf16 %v8237, %v8236
          %v8263 = vpack.c.bf16 %v8239, %v8238
          %v8264 = vpack.c.bf16 %v8241, %v8240
          %v8265 = vpack.c.bf16 %v8243, %v8242
          %v8266 = vpack.c.bf16 %v8245, %v8244
          %v8267 = vpack.c.bf16 %v8247, %v8246
          %v8268 = vpack.c.bf16 %v8249, %v8248
          %v8269 = vpack.c.bf16 %v8251, %v8250
          %v8270 = vpack.c.bf16 %v8253, %v8252
          %v8271 = vpack.c.bf16 %v8255, %v8254
          %v8272 = vmul.f32 %v1635, %v1635
          %v8273 = vmul.f32 %v1738, %v1738
          %v8274 = vmul.f32 %v1841, %v1841
          %v8275 = vmul.f32 %v1944, %v1944
          %v8276 = vmul.f32 %v2047, %v2047
          %v8277 = vmul.f32 %v2150, %v2150
          %v8278 = vmul.f32 %v2253, %v2253
          %v8279 = vmul.f32 %v2356, %v2356
          %v8280 = vmul.f32 %v2459, %v2459
          %v8281 = vmul.f32 %v2562, %v2562
          %v8282 = vmul.f32 %v2665, %v2665
          %v8283 = vmul.f32 %v2768, %v2768
          %v8284 = vmul.f32 %v2871, %v2871
          %v8285 = vmul.f32 %v2974, %v2974
          %v8286 = vmul.f32 %v3077, %v3077
          %v8287 = vmul.f32 %v3180, %v3180
          %v8288 = vmul.f32 %v3283, %v3283
          %v8289 = vmul.f32 %v3386, %v3386
          %v8290 = vmul.f32 %v3489, %v3489
          %v8291 = vmul.f32 %v3592, %v3592
          %v8292 = vmul.f32 %v3695, %v3695
          %v8293 = vmul.f32 %v3798, %v3798
          %v8294 = vmul.f32 %v3901, %v3901
          %v8295 = vmul.f32 %v4004, %v4004
          %v8296 = vmul.f32 %v4107, %v4107
          %v8297 = vmul.f32 %v4210, %v4210
          %v8298 = vmul.f32 %v4313, %v4313
          %v8299 = vmul.f32 %v4416, %v4416
          %v8300 = vmul.f32 %v4519, %v4519
          %v8301 = vmul.f32 %v4622, %v4622
          %v8302 = vmul.f32 %v4725, %v4725
          %v8303 = vmul.f32 %v4828, %v4828
          %v8304 = vmul.f32 %v4932, %v4932
          %v8305 = vmul.f32 %v5036, %v5036
          %v8306 = vmul.f32 %v5140, %v5140
          %v8307 = vmul.f32 %v5244, %v5244
          %v8308 = vmul.f32 %v5348, %v5348
          %v8309 = vmul.f32 %v5452, %v5452
          %v8310 = vmul.f32 %v5556, %v5556
          %v8311 = vmul.f32 %v5660, %v5660
          %v8312 = vmul.f32 %v5764, %v5764
          %v8313 = vmul.f32 %v5868, %v5868
          %v8314 = vmul.f32 %v5972, %v5972
          %v8315 = vmul.f32 %v6076, %v6076
          %v8316 = vmul.f32 %v6180, %v6180
          %v8317 = vmul.f32 %v6284, %v6284
          %v8318 = vmul.f32 %v6388, %v6388
          %v8319 = vmul.f32 %v6492, %v6492
          %v8320 = vmul.f32 %v6596, %v6596
          %v8321 = vmul.f32 %v6700, %v6700
          %v8322 = vmul.f32 %v6804, %v6804
          %v8323 = vmul.f32 %v6908, %v6908
          %v8324 = vmul.f32 %v7012, %v7012
          %v8325 = vmul.f32 %v7116, %v7116
          %v8326 = vmul.f32 %v7220, %v7220
          %v8327 = vmul.f32 %v7324, %v7324
          %v8328 = vmul.f32 %v7428, %v7428
          %v8329 = vmul.f32 %v7532, %v7532
          %v8330 = vmul.f32 %v7636, %v7636
          %v8331 = vmul.f32 %v7740, %v7740
          %v8332 = vmul.f32 %v7844, %v7844
          %v8333 = vmul.f32 %v7948, %v7948
          %v8334 = vmul.f32 %v8052, %v8052
          %v8335 = vmul.f32 %v8156, %v8156
          %v8336 = vsub.f32 %v8272, %v8304
          %v8337 = vsub.f32 %v8273, %v8305
          %v8338 = vsub.f32 %v8274, %v8306
          %v8339 = vsub.f32 %v8275, %v8307
          %v8340 = vsub.f32 %v8276, %v8308
          %v8341 = vsub.f32 %v8277, %v8309
          %v8342 = vsub.f32 %v8278, %v8310
          %v8343 = vsub.f32 %v8279, %v8311
          %v8344 = vsub.f32 %v8280, %v8312
          %v8345 = vsub.f32 %v8281, %v8313
          %v8346 = vsub.f32 %v8282, %v8314
          %v8347 = vsub.f32 %v8283, %v8315
          %v8348 = vsub.f32 %v8284, %v8316
          %v8349 = vsub.f32 %v8285, %v8317
          %v8350 = vsub.f32 %v8286, %v8318
          %v8351 = vsub.f32 %v8287, %v8319
          %v8352 = vsub.f32 %v8288, %v8320
          %v8353 = vsub.f32 %v8289, %v8321
          %v8354 = vsub.f32 %v8290, %v8322
          %v8355 = vsub.f32 %v8291, %v8323
          %v8356 = vsub.f32 %v8292, %v8324
          %v8357 = vsub.f32 %v8293, %v8325
          %v8358 = vsub.f32 %v8294, %v8326
          %v8359 = vsub.f32 %v8295, %v8327
          %v8360 = vsub.f32 %v8296, %v8328
          %v8361 = vsub.f32 %v8297, %v8329
          %v8362 = vsub.f32 %v8298, %v8330
          %v8363 = vsub.f32 %v8299, %v8331
          %v8364 = vsub.f32 %v8300, %v8332
          %v8365 = vsub.f32 %v8301, %v8333
          %v8366 = vsub.f32 %v8302, %v8334
          %v8367 = vsub.f32 %v8303, %v8335
          %v8368 = vmul.f32 %v4932, %v1635
          %v8369 = vmul.f32 %v5036, %v1738
          %v8370 = vmul.f32 %v5140, %v1841
          %v8371 = vmul.f32 %v5244, %v1944
          %v8372 = vmul.f32 %v5348, %v2047
          %v8373 = vmul.f32 %v5452, %v2150
          %v8374 = vmul.f32 %v5556, %v2253
          %v8375 = vmul.f32 %v5660, %v2356
          %v8376 = vmul.f32 %v5764, %v2459
          %v8377 = vmul.f32 %v5868, %v2562
          %v8378 = vmul.f32 %v5972, %v2665
          %v8379 = vmul.f32 %v6076, %v2768
          %v8380 = vmul.f32 %v6180, %v2871
          %v8381 = vmul.f32 %v6284, %v2974
          %v8382 = vmul.f32 %v6388, %v3077
          %v8383 = vmul.f32 %v6492, %v3180
          %v8384 = vmul.f32 %v6596, %v3283
          %v8385 = vmul.f32 %v6700, %v3386
          %v8386 = vmul.f32 %v6804, %v3489
          %v8387 = vmul.f32 %v6908, %v3592
          %v8388 = vmul.f32 %v7012, %v3695
          %v8389 = vmul.f32 %v7116, %v3798
          %v8390 = vmul.f32 %v7220, %v3901
          %v8391 = vmul.f32 %v7324, %v4004
          %v8392 = vmul.f32 %v7428, %v4107
          %v8393 = vmul.f32 %v7532, %v4210
          %v8394 = vmul.f32 %v7636, %v4313
          %v8395 = vmul.f32 %v7740, %v4416
          %v8396 = vmul.f32 %v7844, %v4519
          %v8397 = vmul.f32 %v7948, %v4622
          %v8398 = vmul.f32 %v8052, %v4725
          %v8399 = vmul.f32 %v8156, %v4828
          %v8400 = vadd.f32 %v8368, %v8368
          %v8401 = vadd.f32 %v8369, %v8369
          %v8402 = vadd.f32 %v8370, %v8370
          %v8403 = vadd.f32 %v8371, %v8371
          %v8404 = vadd.f32 %v8372, %v8372
          %v8405 = vadd.f32 %v8373, %v8373
          %v8406 = vadd.f32 %v8374, %v8374
          %v8407 = vadd.f32 %v8375, %v8375
          %v8408 = vadd.f32 %v8376, %v8376
          %v8409 = vadd.f32 %v8377, %v8377
          %v8410 = vadd.f32 %v8378, %v8378
          %v8411 = vadd.f32 %v8379, %v8379
          %v8412 = vadd.f32 %v8380, %v8380
          %v8413 = vadd.f32 %v8381, %v8381
          %v8414 = vadd.f32 %v8382, %v8382
          %v8415 = vadd.f32 %v8383, %v8383
          %v8416 = vadd.f32 %v8384, %v8384
          %v8417 = vadd.f32 %v8385, %v8385
          %v8418 = vadd.f32 %v8386, %v8386
          %v8419 = vadd.f32 %v8387, %v8387
          %v8420 = vadd.f32 %v8388, %v8388
          %v8421 = vadd.f32 %v8389, %v8389
          %v8422 = vadd.f32 %v8390, %v8390
          %v8423 = vadd.f32 %v8391, %v8391
          %v8424 = vadd.f32 %v8392, %v8392
          %v8425 = vadd.f32 %v8393, %v8393
          %v8426 = vadd.f32 %v8394, %v8394
          %v8427 = vadd.f32 %v8395, %v8395
          %v8428 = vadd.f32 %v8396, %v8396
          %v8429 = vadd.f32 %v8397, %v8397
          %v8430 = vadd.f32 %v8398, %v8398
          %v8431 = vadd.f32 %v8399, %v8399
          %8432 = vrot.lane.b32.xlu0 %v8400, 64
          %v8433 = vpop.permute.xlu0 %8432
          %8434 = vrot.lane.b32.xlu0 %v8401, 64
          %v8435 = vpop.permute.xlu0 %8434
          %8436 = vrot.lane.b32.xlu0 %v8402, 64
          %v8437 = vpop.permute.xlu0 %8436
          %8438 = vrot.lane.b32.xlu0 %v8403, 64
          %v8439 = vpop.permute.xlu0 %8438
          %8440 = vrot.lane.b32.xlu0 %v8404, 64
          %v8441 = vpop.permute.xlu0 %8440
          %8442 = vrot.lane.b32.xlu0 %v8405, 64
          %v8443 = vpop.permute.xlu0 %8442
          %8444 = vrot.lane.b32.xlu0 %v8406, 64
          %v8445 = vpop.permute.xlu0 %8444
          %8446 = vrot.lane.b32.xlu0 %v8407, 64
          %v8447 = vpop.permute.xlu0 %8446
          %8448 = vrot.lane.b32.xlu0 %v8408, 64
          %v8449 = vpop.permute.xlu0 %8448
          %8450 = vrot.lane.b32.xlu0 %v8409, 64
          %v8451 = vpop.permute.xlu0 %8450
          %8452 = vrot.lane.b32.xlu0 %v8410, 64
          %v8453 = vpop.permute.xlu0 %8452
          %8454 = vrot.lane.b32.xlu0 %v8411, 64
          %v8455 = vpop.permute.xlu0 %8454
          %8456 = vrot.lane.b32.xlu0 %v8412, 64
          %v8457 = vpop.permute.xlu0 %8456
          %8458 = vrot.lane.b32.xlu0 %v8413, 64
          %v8459 = vpop.permute.xlu0 %8458
          %8460 = vrot.lane.b32.xlu0 %v8414, 64
          %v8461 = vpop.permute.xlu0 %8460
          %8462 = vrot.lane.b32.xlu0 %v8415, 64
          %v8463 = vpop.permute.xlu0 %8462
          %8464 = vrot.lane.b32.xlu0 %v8416, 64
          %v8465 = vpop.permute.xlu0 %8464
          %8466 = vrot.lane.b32.xlu0 %v8417, 64
          %v8467 = vpop.permute.xlu0 %8466
          %8468 = vrot.lane.b32.xlu0 %v8418, 64
          %v8469 = vpop.permute.xlu0 %8468
          %8470 = vrot.lane.b32.xlu0 %v8419, 64
          %v8471 = vpop.permute.xlu0 %8470
          %8472 = vrot.lane.b32.xlu0 %v8420, 64
          %v8473 = vpop.permute.xlu0 %8472
          %8474 = vrot.lane.b32.xlu0 %v8421, 64
          %v8475 = vpop.permute.xlu0 %8474
          %8476 = vrot.lane.b32.xlu0 %v8422, 64
          %v8477 = vpop.permute.xlu0 %8476
          %8478 = vrot.lane.b32.xlu0 %v8423, 64
          %v8479 = vpop.permute.xlu0 %8478
          %8480 = vrot.lane.b32.xlu0 %v8424, 64
          %v8481 = vpop.permute.xlu0 %8480
          %8482 = vrot.lane.b32.xlu0 %v8425, 64
          %v8483 = vpop.permute.xlu0 %8482
          %8484 = vrot.lane.b32.xlu0 %v8426, 64
          %v8485 = vpop.permute.xlu0 %8484
          %8486 = vrot.lane.b32.xlu0 %v8427, 64
          %v8487 = vpop.permute.xlu0 %8486
          %8488 = vrot.lane.b32.xlu0 %v8428, 64
          %v8489 = vpop.permute.xlu0 %8488
          %8490 = vrot.lane.b32.xlu0 %v8429, 64
          %v8491 = vpop.permute.xlu0 %8490
          %8492 = vrot.lane.b32.xlu0 %v8430, 64
          %v8493 = vpop.permute.xlu0 %8492
          %8494 = vrot.lane.b32.xlu0 %v8431, 64
          %v8495 = vpop.permute.xlu0 %8494
          %v8496 = vsel %vm8159, %v8336, %v8433
          %v8497 = vsel %vm8159, %v8337, %v8435
          %v8498 = vsel %vm8159, %v8338, %v8437
          %v8499 = vsel %vm8159, %v8339, %v8439
          %v8500 = vsel %vm8159, %v8340, %v8441
          %v8501 = vsel %vm8159, %v8341, %v8443
          %v8502 = vsel %vm8159, %v8342, %v8445
          %v8503 = vsel %vm8159, %v8343, %v8447
          %v8504 = vsel %vm8159, %v8344, %v8449
          %v8505 = vsel %vm8159, %v8345, %v8451
          %v8506 = vsel %vm8159, %v8346, %v8453
          %v8507 = vsel %vm8159, %v8347, %v8455
          %v8508 = vsel %vm8159, %v8348, %v8457
          %v8509 = vsel %vm8159, %v8349, %v8459
          %v8510 = vsel %vm8159, %v8350, %v8461
          %v8511 = vsel %vm8159, %v8351, %v8463
          %v8512 = vsel %vm8159, %v8352, %v8465
          %v8513 = vsel %vm8159, %v8353, %v8467
          %v8514 = vsel %vm8159, %v8354, %v8469
          %v8515 = vsel %vm8159, %v8355, %v8471
          %v8516 = vsel %vm8159, %v8356, %v8473
          %v8517 = vsel %vm8159, %v8357, %v8475
          %v8518 = vsel %vm8159, %v8358, %v8477
          %v8519 = vsel %vm8159, %v8359, %v8479
          %v8520 = vsel %vm8159, %v8360, %v8481
          %v8521 = vsel %vm8159, %v8361, %v8483
          %v8522 = vsel %vm8159, %v8362, %v8485
          %v8523 = vsel %vm8159, %v8363, %v8487
          %v8524 = vsel %vm8159, %v8364, %v8489
          %v8525 = vsel %vm8159, %v8365, %v8491
          %v8526 = vsel %vm8159, %v8366, %v8493
          %v8527 = vsel %vm8159, %v8367, %v8495
          %v8528 = vpack.c.bf16 %v8497, %v8496
          %v8529 = vpack.c.bf16 %v8499, %v8498
          %v8530 = vpack.c.bf16 %v8501, %v8500
          %v8531 = vpack.c.bf16 %v8503, %v8502
          %v8532 = vpack.c.bf16 %v8505, %v8504
          %v8533 = vpack.c.bf16 %v8507, %v8506
          %v8534 = vpack.c.bf16 %v8509, %v8508
          %v8535 = vpack.c.bf16 %v8511, %v8510
          %v8536 = vpack.c.bf16 %v8513, %v8512
          %v8537 = vpack.c.bf16 %v8515, %v8514
          %v8538 = vpack.c.bf16 %v8517, %v8516
          %v8539 = vpack.c.bf16 %v8519, %v8518
          %v8540 = vpack.c.bf16 %v8521, %v8520
          %v8541 = vpack.c.bf16 %v8523, %v8522
          %v8542 = vpack.c.bf16 %v8525, %v8524
          %v8543 = vpack.c.bf16 %v8527, %v8526
          %v8544 = vmul.f32 %v8336, %v1635
          %v8545 = vmul.f32 %v8337, %v1738
          %v8546 = vmul.f32 %v8338, %v1841
          %v8547 = vmul.f32 %v8339, %v1944
          %v8548 = vmul.f32 %v8340, %v2047
          %v8549 = vmul.f32 %v8341, %v2150
          %v8550 = vmul.f32 %v8342, %v2253
          %v8551 = vmul.f32 %v8343, %v2356
          %v8552 = vmul.f32 %v8344, %v2459
          %v8553 = vmul.f32 %v8345, %v2562
          %v8554 = vmul.f32 %v8346, %v2665
          %v8555 = vmul.f32 %v8347, %v2768
          %v8556 = vmul.f32 %v8348, %v2871
          %v8557 = vmul.f32 %v8349, %v2974
          %v8558 = vmul.f32 %v8350, %v3077
          %v8559 = vmul.f32 %v8351, %v3180
          %v8560 = vmul.f32 %v8352, %v3283
          %v8561 = vmul.f32 %v8353, %v3386
          %v8562 = vmul.f32 %v8354, %v3489
          %v8563 = vmul.f32 %v8355, %v3592
          %v8564 = vmul.f32 %v8356, %v3695
          %v8565 = vmul.f32 %v8357, %v3798
          %v8566 = vmul.f32 %v8358, %v3901
          %v8567 = vmul.f32 %v8359, %v4004
          %v8568 = vmul.f32 %v8360, %v4107
          %v8569 = vmul.f32 %v8361, %v4210
          %v8570 = vmul.f32 %v8362, %v4313
          %v8571 = vmul.f32 %v8363, %v4416
          %v8572 = vmul.f32 %v8364, %v4519
          %v8573 = vmul.f32 %v8365, %v4622
          %v8574 = vmul.f32 %v8366, %v4725
          %v8575 = vmul.f32 %v8367, %v4828
          %v8576 = vmul.f32 %v8400, %v4932
          %v8577 = vmul.f32 %v8401, %v5036
          %v8578 = vmul.f32 %v8402, %v5140
          %v8579 = vmul.f32 %v8403, %v5244
          %v8580 = vmul.f32 %v8404, %v5348
          %v8581 = vmul.f32 %v8405, %v5452
          %v8582 = vmul.f32 %v8406, %v5556
          %v8583 = vmul.f32 %v8407, %v5660
          %v8584 = vmul.f32 %v8408, %v5764
          %v8585 = vmul.f32 %v8409, %v5868
          %v8586 = vmul.f32 %v8410, %v5972
          %v8587 = vmul.f32 %v8411, %v6076
          %v8588 = vmul.f32 %v8412, %v6180
          %v8589 = vmul.f32 %v8413, %v6284
          %v8590 = vmul.f32 %v8414, %v6388
          %v8591 = vmul.f32 %v8415, %v6492
          %v8592 = vmul.f32 %v8416, %v6596
          %v8593 = vmul.f32 %v8417, %v6700
          %v8594 = vmul.f32 %v8418, %v6804
          %v8595 = vmul.f32 %v8419, %v6908
          %v8596 = vmul.f32 %v8420, %v7012
          %v8597 = vmul.f32 %v8421, %v7116
          %v8598 = vmul.f32 %v8422, %v7220
          %v8599 = vmul.f32 %v8423, %v7324
          %v8600 = vmul.f32 %v8424, %v7428
          %v8601 = vmul.f32 %v8425, %v7532
          %v8602 = vmul.f32 %v8426, %v7636
          %v8603 = vmul.f32 %v8427, %v7740
          %v8604 = vmul.f32 %v8428, %v7844
          %v8605 = vmul.f32 %v8429, %v7948
          %v8606 = vmul.f32 %v8430, %v8052
          %v8607 = vmul.f32 %v8431, %v8156
          %v8608 = vsub.f32 %v8544, %v8576
          %v8609 = vsub.f32 %v8545, %v8577
          %v8610 = vsub.f32 %v8546, %v8578
          %v8611 = vsub.f32 %v8547, %v8579
          %v8612 = vsub.f32 %v8548, %v8580
          %v8613 = vsub.f32 %v8549, %v8581
          %v8614 = vsub.f32 %v8550, %v8582
          %v8615 = vsub.f32 %v8551, %v8583
          %v8616 = vsub.f32 %v8552, %v8584
          %v8617 = vsub.f32 %v8553, %v8585
          %v8618 = vsub.f32 %v8554, %v8586
          %v8619 = vsub.f32 %v8555, %v8587
          %v8620 = vsub.f32 %v8556, %v8588
          %v8621 = vsub.f32 %v8557, %v8589
          %v8622 = vsub.f32 %v8558, %v8590
          %v8623 = vsub.f32 %v8559, %v8591
          %v8624 = vsub.f32 %v8560, %v8592
          %v8625 = vsub.f32 %v8561, %v8593
          %v8626 = vsub.f32 %v8562, %v8594
          %v8627 = vsub.f32 %v8563, %v8595
          %v8628 = vsub.f32 %v8564, %v8596
          %v8629 = vsub.f32 %v8565, %v8597
          %v8630 = vsub.f32 %v8566, %v8598
          %v8631 = vsub.f32 %v8567, %v8599
          %v8632 = vsub.f32 %v8568, %v8600
          %v8633 = vsub.f32 %v8569, %v8601
          %v8634 = vsub.f32 %v8570, %v8602
          %v8635 = vsub.f32 %v8571, %v8603
          %v8636 = vsub.f32 %v8572, %v8604
          %v8637 = vsub.f32 %v8573, %v8605
          %v8638 = vsub.f32 %v8574, %v8606
          %v8639 = vsub.f32 %v8575, %v8607
          %v8640 = vmul.f32 %v8400, %v1635
          %v8641 = vmul.f32 %v8401, %v1738
          %v8642 = vmul.f32 %v8402, %v1841
          %v8643 = vmul.f32 %v8403, %v1944
          %v8644 = vmul.f32 %v8404, %v2047
          %v8645 = vmul.f32 %v8405, %v2150
          %v8646 = vmul.f32 %v8406, %v2253
          %v8647 = vmul.f32 %v8407, %v2356
          %v8648 = vmul.f32 %v8408, %v2459
          %v8649 = vmul.f32 %v8409, %v2562
          %v8650 = vmul.f32 %v8410, %v2665
          %v8651 = vmul.f32 %v8411, %v2768
          %v8652 = vmul.f32 %v8412, %v2871
          %v8653 = vmul.f32 %v8413, %v2974
          %v8654 = vmul.f32 %v8414, %v3077
          %v8655 = vmul.f32 %v8415, %v3180
          %v8656 = vmul.f32 %v8416, %v3283
          %v8657 = vmul.f32 %v8417, %v3386
          %v8658 = vmul.f32 %v8418, %v3489
          %v8659 = vmul.f32 %v8419, %v3592
          %v8660 = vmul.f32 %v8420, %v3695
          %v8661 = vmul.f32 %v8421, %v3798
          %v8662 = vmul.f32 %v8422, %v3901
          %v8663 = vmul.f32 %v8423, %v4004
          %v8664 = vmul.f32 %v8424, %v4107
          %v8665 = vmul.f32 %v8425, %v4210
          %v8666 = vmul.f32 %v8426, %v4313
          %v8667 = vmul.f32 %v8427, %v4416
          %v8668 = vmul.f32 %v8428, %v4519
          %v8669 = vmul.f32 %v8429, %v4622
          %v8670 = vmul.f32 %v8430, %v4725
          %v8671 = vmul.f32 %v8431, %v4828
          %v8672 = vmul.f32 %v8336, %v4932
          %v8673 = vmul.f32 %v8337, %v5036
          %v8674 = vmul.f32 %v8338, %v5140
          %v8675 = vmul.f32 %v8339, %v5244
          %v8676 = vmul.f32 %v8340, %v5348
          %v8677 = vmul.f32 %v8341, %v5452
          %v8678 = vmul.f32 %v8342, %v5556
          %v8679 = vmul.f32 %v8343, %v5660
          %v8680 = vmul.f32 %v8344, %v5764
          %v8681 = vmul.f32 %v8345, %v5868
          %v8682 = vmul.f32 %v8346, %v5972
          %v8683 = vmul.f32 %v8347, %v6076
          %v8684 = vmul.f32 %v8348, %v6180
          %v8685 = vmul.f32 %v8349, %v6284
          %v8686 = vmul.f32 %v8350, %v6388
          %v8687 = vmul.f32 %v8351, %v6492
          %v8688 = vmul.f32 %v8352, %v6596
          %v8689 = vmul.f32 %v8353, %v6700
          %v8690 = vmul.f32 %v8354, %v6804
          %v8691 = vmul.f32 %v8355, %v6908
          %v8692 = vmul.f32 %v8356, %v7012
          %v8693 = vmul.f32 %v8357, %v7116
          %v8694 = vmul.f32 %v8358, %v7220
          %v8695 = vmul.f32 %v8359, %v7324
          %v8696 = vmul.f32 %v8360, %v7428
          %v8697 = vmul.f32 %v8361, %v7532
          %v8698 = vmul.f32 %v8362, %v7636
          %v8699 = vmul.f32 %v8363, %v7740
          %v8700 = vmul.f32 %v8364, %v7844
          %v8701 = vmul.f32 %v8365, %v7948
          %v8702 = vmul.f32 %v8366, %v8052
          %v8703 = vmul.f32 %v8367, %v8156
          %v8704 = vadd.f32 %v8640, %v8672
          %v8705 = vadd.f32 %v8641, %v8673
          %v8706 = vadd.f32 %v8642, %v8674
          %v8707 = vadd.f32 %v8643, %v8675
          %v8708 = vadd.f32 %v8644, %v8676
          %v8709 = vadd.f32 %v8645, %v8677
          %v8710 = vadd.f32 %v8646, %v8678
          %v8711 = vadd.f32 %v8647, %v8679
          %v8712 = vadd.f32 %v8648, %v8680
          %v8713 = vadd.f32 %v8649, %v8681
          %v8714 = vadd.f32 %v8650, %v8682
          %v8715 = vadd.f32 %v8651, %v8683
          %v8716 = vadd.f32 %v8652, %v8684
          %v8717 = vadd.f32 %v8653, %v8685
          %v8718 = vadd.f32 %v8654, %v8686
          %v8719 = vadd.f32 %v8655, %v8687
          %v8720 = vadd.f32 %v8656, %v8688
          %v8721 = vadd.f32 %v8657, %v8689
          %v8722 = vadd.f32 %v8658, %v8690
          %v8723 = vadd.f32 %v8659, %v8691
          %v8724 = vadd.f32 %v8660, %v8692
          %v8725 = vadd.f32 %v8661, %v8693
          %v8726 = vadd.f32 %v8662, %v8694
          %v8727 = vadd.f32 %v8663, %v8695
          %v8728 = vadd.f32 %v8664, %v8696
          %v8729 = vadd.f32 %v8665, %v8697
          %v8730 = vadd.f32 %v8666, %v8698
          %v8731 = vadd.f32 %v8667, %v8699
          %v8732 = vadd.f32 %v8668, %v8700
          %v8733 = vadd.f32 %v8669, %v8701
          %v8734 = vadd.f32 %v8670, %v8702
          %v8735 = vadd.f32 %v8671, %v8703
          %8736 = vrot.lane.b32.xlu0 %v8704, 64
          %v8737 = vpop.permute.xlu0 %8736
          %8738 = vrot.lane.b32.xlu0 %v8705, 64
          %v8739 = vpop.permute.xlu0 %8738
          %8740 = vrot.lane.b32.xlu0 %v8706, 64
          %v8741 = vpop.permute.xlu0 %8740
          %8742 = vrot.lane.b32.xlu0 %v8707, 64
          %v8743 = vpop.permute.xlu0 %8742
          %8744 = vrot.lane.b32.xlu0 %v8708, 64
          %v8745 = vpop.permute.xlu0 %8744
          %8746 = vrot.lane.b32.xlu0 %v8709, 64
          %v8747 = vpop.permute.xlu0 %8746
          %8748 = vrot.lane.b32.xlu0 %v8710, 64
          %v8749 = vpop.permute.xlu0 %8748
          %8750 = vrot.lane.b32.xlu0 %v8711, 64
          %v8751 = vpop.permute.xlu0 %8750
          %8752 = vrot.lane.b32.xlu0 %v8712, 64
          %v8753 = vpop.permute.xlu0 %8752
          %8754 = vrot.lane.b32.xlu0 %v8713, 64
          %v8755 = vpop.permute.xlu0 %8754
          %8756 = vrot.lane.b32.xlu0 %v8714, 64
          %v8757 = vpop.permute.xlu0 %8756
          %8758 = vrot.lane.b32.xlu0 %v8715, 64
          %v8759 = vpop.permute.xlu0 %8758
          %8760 = vrot.lane.b32.xlu0 %v8716, 64
          %v8761 = vpop.permute.xlu0 %8760
          %8762 = vrot.lane.b32.xlu0 %v8717, 64
          %v8763 = vpop.permute.xlu0 %8762
          %8764 = vrot.lane.b32.xlu0 %v8718, 64
          %v8765 = vpop.permute.xlu0 %8764
          %8766 = vrot.lane.b32.xlu0 %v8719, 64
          %v8767 = vpop.permute.xlu0 %8766
          %8768 = vrot.lane.b32.xlu0 %v8720, 64
          %v8769 = vpop.permute.xlu0 %8768
          %8770 = vrot.lane.b32.xlu0 %v8721, 64
          %v8771 = vpop.permute.xlu0 %8770
          %8772 = vrot.lane.b32.xlu0 %v8722, 64
          %v8773 = vpop.permute.xlu0 %8772
          %8774 = vrot.lane.b32.xlu0 %v8723, 64
          %v8775 = vpop.permute.xlu0 %8774
          %8776 = vrot.lane.b32.xlu0 %v8724, 64
          %v8777 = vpop.permute.xlu0 %8776
          %8778 = vrot.lane.b32.xlu0 %v8725, 64
          %v8779 = vpop.permute.xlu0 %8778
          %8780 = vrot.lane.b32.xlu0 %v8726, 64
          %v8781 = vpop.permute.xlu0 %8780
          %8782 = vrot.lane.b32.xlu0 %v8727, 64
          %v8783 = vpop.permute.xlu0 %8782
          %8784 = vrot.lane.b32.xlu0 %v8728, 64
          %v8785 = vpop.permute.xlu0 %8784
          %8786 = vrot.lane.b32.xlu0 %v8729, 64
          %v8787 = vpop.permute.xlu0 %8786
          %8788 = vrot.lane.b32.xlu0 %v8730, 64
          %v8789 = vpop.permute.xlu0 %8788
          %8790 = vrot.lane.b32.xlu0 %v8731, 64
          %v8791 = vpop.permute.xlu0 %8790
          %8792 = vrot.lane.b32.xlu0 %v8732, 64
          %v8793 = vpop.permute.xlu0 %8792
          %8794 = vrot.lane.b32.xlu0 %v8733, 64
          %v8795 = vpop.permute.xlu0 %8794
          %8796 = vrot.lane.b32.xlu0 %v8734, 64
          %v8797 = vpop.permute.xlu0 %8796
          %8798 = vrot.lane.b32.xlu0 %v8735, 64
          %v8799 = vpop.permute.xlu0 %8798
          %v8800 = vsel %vm8159, %v8608, %v8737
          %v8801 = vsel %vm8159, %v8609, %v8739
          %v8802 = vsel %vm8159, %v8610, %v8741
          %v8803 = vsel %vm8159, %v8611, %v8743
          %v8804 = vsel %vm8159, %v8612, %v8745
          %v8805 = vsel %vm8159, %v8613, %v8747
          %v8806 = vsel %vm8159, %v8614, %v8749
          %v8807 = vsel %vm8159, %v8615, %v8751
          %v8808 = vsel %vm8159, %v8616, %v8753
          %v8809 = vsel %vm8159, %v8617, %v8755
          %v8810 = vsel %vm8159, %v8618, %v8757
          %v8811 = vsel %vm8159, %v8619, %v8759
          %v8812 = vsel %vm8159, %v8620, %v8761
          %v8813 = vsel %vm8159, %v8621, %v8763
          %v8814 = vsel %vm8159, %v8622, %v8765
          %v8815 = vsel %vm8159, %v8623, %v8767
          %v8816 = vsel %vm8159, %v8624, %v8769
          %v8817 = vsel %vm8159, %v8625, %v8771
          %v8818 = vsel %vm8159, %v8626, %v8773
          %v8819 = vsel %vm8159, %v8627, %v8775
          %v8820 = vsel %vm8159, %v8628, %v8777
          %v8821 = vsel %vm8159, %v8629, %v8779
          %v8822 = vsel %vm8159, %v8630, %v8781
          %v8823 = vsel %vm8159, %v8631, %v8783
          %v8824 = vsel %vm8159, %v8632, %v8785
          %v8825 = vsel %vm8159, %v8633, %v8787
          %v8826 = vsel %vm8159, %v8634, %v8789
          %v8827 = vsel %vm8159, %v8635, %v8791
          %v8828 = vsel %vm8159, %v8636, %v8793
          %v8829 = vsel %vm8159, %v8637, %v8795
          %v8830 = vsel %vm8159, %v8638, %v8797
          %v8831 = vsel %vm8159, %v8639, %v8799
          %v8832 = vpack.c.bf16 %v8801, %v8800
          %v8833 = vpack.c.bf16 %v8803, %v8802
          %v8834 = vpack.c.bf16 %v8805, %v8804
          %v8835 = vpack.c.bf16 %v8807, %v8806
          %v8836 = vpack.c.bf16 %v8809, %v8808
          %v8837 = vpack.c.bf16 %v8811, %v8810
          %v8838 = vpack.c.bf16 %v8813, %v8812
          %v8839 = vpack.c.bf16 %v8815, %v8814
          %v8840 = vpack.c.bf16 %v8817, %v8816
          %v8841 = vpack.c.bf16 %v8819, %v8818
          %v8842 = vpack.c.bf16 %v8821, %v8820
          %v8843 = vpack.c.bf16 %v8823, %v8822
          %v8844 = vpack.c.bf16 %v8825, %v8824
          %v8845 = vpack.c.bf16 %v8827, %v8826
          %v8846 = vpack.c.bf16 %v8829, %v8828
          %v8847 = vpack.c.bf16 %v8831, %v8830
          %v8848 = vmul.f32 %v8608, %v1635
          %v8849 = vmul.f32 %v8609, %v1738
          %v8850 = vmul.f32 %v8610, %v1841
          %v8851 = vmul.f32 %v8611, %v1944
          %v8852 = vmul.f32 %v8612, %v2047
          %v8853 = vmul.f32 %v8613, %v2150
          %v8854 = vmul.f32 %v8614, %v2253
          %v8855 = vmul.f32 %v8615, %v2356
          %v8856 = vmul.f32 %v8616, %v2459
          %v8857 = vmul.f32 %v8617, %v2562
          %v8858 = vmul.f32 %v8618, %v2665
          %v8859 = vmul.f32 %v8619, %v2768
          %v8860 = vmul.f32 %v8620, %v2871
          %v8861 = vmul.f32 %v8621, %v2974
          %v8862 = vmul.f32 %v8622, %v3077
          %v8863 = vmul.f32 %v8623, %v3180
          %v8864 = vmul.f32 %v8624, %v3283
          %v8865 = vmul.f32 %v8625, %v3386
          %v8866 = vmul.f32 %v8626, %v3489
          %v8867 = vmul.f32 %v8627, %v3592
          %v8868 = vmul.f32 %v8628, %v3695
          %v8869 = vmul.f32 %v8629, %v3798
          %v8870 = vmul.f32 %v8630, %v3901
          %v8871 = vmul.f32 %v8631, %v4004
          %v8872 = vmul.f32 %v8632, %v4107
          %v8873 = vmul.f32 %v8633, %v4210
          %v8874 = vmul.f32 %v8634, %v4313
          %v8875 = vmul.f32 %v8635, %v4416
          %v8876 = vmul.f32 %v8636, %v4519
          %v8877 = vmul.f32 %v8637, %v4622
          %v8878 = vmul.f32 %v8638, %v4725
          %v8879 = vmul.f32 %v8639, %v4828
          %v8880 = vmul.f32 %v8704, %v4932
          %v8881 = vmul.f32 %v8705, %v5036
          %v8882 = vmul.f32 %v8706, %v5140
          %v8883 = vmul.f32 %v8707, %v5244
          %v8884 = vmul.f32 %v8708, %v5348
          %v8885 = vmul.f32 %v8709, %v5452
          %v8886 = vmul.f32 %v8710, %v5556
          %v8887 = vmul.f32 %v8711, %v5660
          %v8888 = vmul.f32 %v8712, %v5764
          %v8889 = vmul.f32 %v8713, %v5868
          %v8890 = vmul.f32 %v8714, %v5972
          %v8891 = vmul.f32 %v8715, %v6076
          %v8892 = vmul.f32 %v8716, %v6180
          %v8893 = vmul.f32 %v8717, %v6284
          %v8894 = vmul.f32 %v8718, %v6388
          %v8895 = vmul.f32 %v8719, %v6492
          %v8896 = vmul.f32 %v8720, %v6596
          %v8897 = vmul.f32 %v8721, %v6700
          %v8898 = vmul.f32 %v8722, %v6804
          %v8899 = vmul.f32 %v8723, %v6908
          %v8900 = vmul.f32 %v8724, %v7012
          %v8901 = vmul.f32 %v8725, %v7116
          %v8902 = vmul.f32 %v8726, %v7220
          %v8903 = vmul.f32 %v8727, %v7324
          %v8904 = vmul.f32 %v8728, %v7428
          %v8905 = vmul.f32 %v8729, %v7532
          %v8906 = vmul.f32 %v8730, %v7636
          %v8907 = vmul.f32 %v8731, %v7740
          %v8908 = vmul.f32 %v8732, %v7844
          %v8909 = vmul.f32 %v8733, %v7948
          %v8910 = vmul.f32 %v8734, %v8052
          %v8911 = vmul.f32 %v8735, %v8156
          %v8912 = vsub.f32 %v8848, %v8880
          %v8913 = vsub.f32 %v8849, %v8881
          %v8914 = vsub.f32 %v8850, %v8882
          %v8915 = vsub.f32 %v8851, %v8883
          %v8916 = vsub.f32 %v8852, %v8884
          %v8917 = vsub.f32 %v8853, %v8885
          %v8918 = vsub.f32 %v8854, %v8886
          %v8919 = vsub.f32 %v8855, %v8887
          %v8920 = vsub.f32 %v8856, %v8888
          %v8921 = vsub.f32 %v8857, %v8889
          %v8922 = vsub.f32 %v8858, %v8890
          %v8923 = vsub.f32 %v8859, %v8891
          %v8924 = vsub.f32 %v8860, %v8892
          %v8925 = vsub.f32 %v8861, %v8893
          %v8926 = vsub.f32 %v8862, %v8894
          %v8927 = vsub.f32 %v8863, %v8895
          %v8928 = vsub.f32 %v8864, %v8896
          %v8929 = vsub.f32 %v8865, %v8897
          %v8930 = vsub.f32 %v8866, %v8898
          %v8931 = vsub.f32 %v8867, %v8899
          %v8932 = vsub.f32 %v8868, %v8900
          %v8933 = vsub.f32 %v8869, %v8901
          %v8934 = vsub.f32 %v8870, %v8902
          %v8935 = vsub.f32 %v8871, %v8903
          %v8936 = vsub.f32 %v8872, %v8904
          %v8937 = vsub.f32 %v8873, %v8905
          %v8938 = vsub.f32 %v8874, %v8906
          %v8939 = vsub.f32 %v8875, %v8907
          %v8940 = vsub.f32 %v8876, %v8908
          %v8941 = vsub.f32 %v8877, %v8909
          %v8942 = vsub.f32 %v8878, %v8910
          %v8943 = vsub.f32 %v8879, %v8911
          %v8944 = vmul.f32 %v8704, %v1635
          %v8945 = vmul.f32 %v8705, %v1738
          %v8946 = vmul.f32 %v8706, %v1841
          %v8947 = vmul.f32 %v8707, %v1944
          %v8948 = vmul.f32 %v8708, %v2047
          %v8949 = vmul.f32 %v8709, %v2150
          %v8950 = vmul.f32 %v8710, %v2253
          %v8951 = vmul.f32 %v8711, %v2356
          %v8952 = vmul.f32 %v8712, %v2459
          %v8953 = vmul.f32 %v8713, %v2562
          %v8954 = vmul.f32 %v8714, %v2665
          %v8955 = vmul.f32 %v8715, %v2768
          %v8956 = vmul.f32 %v8716, %v2871
          %v8957 = vmul.f32 %v8717, %v2974
          %v8958 = vmul.f32 %v8718, %v3077
          %v8959 = vmul.f32 %v8719, %v3180
          %v8960 = vmul.f32 %v8720, %v3283
          %v8961 = vmul.f32 %v8721, %v3386
          %v8962 = vmul.f32 %v8722, %v3489
          %v8963 = vmul.f32 %v8723, %v3592
          %v8964 = vmul.f32 %v8724, %v3695
          %v8965 = vmul.f32 %v8725, %v3798
          %v8966 = vmul.f32 %v8726, %v3901
          %v8967 = vmul.f32 %v8727, %v4004
          %v8968 = vmul.f32 %v8728, %v4107
          %v8969 = vmul.f32 %v8729, %v4210
          %v8970 = vmul.f32 %v8730, %v4313
          %v8971 = vmul.f32 %v8731, %v4416
          %v8972 = vmul.f32 %v8732, %v4519
          %v8973 = vmul.f32 %v8733, %v4622
          %v8974 = vmul.f32 %v8734, %v4725
          %v8975 = vmul.f32 %v8735, %v4828
          %v8976 = vmul.f32 %v8608, %v4932
          %v8977 = vmul.f32 %v8609, %v5036
          %v8978 = vmul.f32 %v8610, %v5140
          %v8979 = vmul.f32 %v8611, %v5244
          %v8980 = vmul.f32 %v8612, %v5348
          %v8981 = vmul.f32 %v8613, %v5452
          %v8982 = vmul.f32 %v8614, %v5556
          %v8983 = vmul.f32 %v8615, %v5660
          %v8984 = vmul.f32 %v8616, %v5764
          %v8985 = vmul.f32 %v8617, %v5868
          %v8986 = vmul.f32 %v8618, %v5972
          %v8987 = vmul.f32 %v8619, %v6076
          %v8988 = vmul.f32 %v8620, %v6180
          %v8989 = vmul.f32 %v8621, %v6284
          %v8990 = vmul.f32 %v8622, %v6388
          %v8991 = vmul.f32 %v8623, %v6492
          %v8992 = vmul.f32 %v8624, %v6596
          %v8993 = vmul.f32 %v8625, %v6700
          %v8994 = vmul.f32 %v8626, %v6804
          %v8995 = vmul.f32 %v8627, %v6908
          %v8996 = vmul.f32 %v8628, %v7012
          %v8997 = vmul.f32 %v8629, %v7116
          %v8998 = vmul.f32 %v8630, %v7220
          %v8999 = vmul.f32 %v8631, %v7324
          %v9000 = vmul.f32 %v8632, %v7428
          %v9001 = vmul.f32 %v8633, %v7532
          %v9002 = vmul.f32 %v8634, %v7636
          %v9003 = vmul.f32 %v8635, %v7740
          %v9004 = vmul.f32 %v8636, %v7844
          %v9005 = vmul.f32 %v8637, %v7948
          %v9006 = vmul.f32 %v8638, %v8052
          %v9007 = vmul.f32 %v8639, %v8156
          %v9008 = vadd.f32 %v8944, %v8976
          %v9009 = vadd.f32 %v8945, %v8977
          %v9010 = vadd.f32 %v8946, %v8978
          %v9011 = vadd.f32 %v8947, %v8979
          %v9012 = vadd.f32 %v8948, %v8980
          %v9013 = vadd.f32 %v8949, %v8981
          %v9014 = vadd.f32 %v8950, %v8982
          %v9015 = vadd.f32 %v8951, %v8983
          %v9016 = vadd.f32 %v8952, %v8984
          %v9017 = vadd.f32 %v8953, %v8985
          %v9018 = vadd.f32 %v8954, %v8986
          %v9019 = vadd.f32 %v8955, %v8987
          %v9020 = vadd.f32 %v8956, %v8988
          %v9021 = vadd.f32 %v8957, %v8989
          %v9022 = vadd.f32 %v8958, %v8990
          %v9023 = vadd.f32 %v8959, %v8991
          %v9024 = vadd.f32 %v8960, %v8992
          %v9025 = vadd.f32 %v8961, %v8993
          %v9026 = vadd.f32 %v8962, %v8994
          %v9027 = vadd.f32 %v8963, %v8995
          %v9028 = vadd.f32 %v8964, %v8996
          %v9029 = vadd.f32 %v8965, %v8997
          %v9030 = vadd.f32 %v8966, %v8998
          %v9031 = vadd.f32 %v8967, %v8999
          %v9032 = vadd.f32 %v8968, %v9000
          %v9033 = vadd.f32 %v8969, %v9001
          %v9034 = vadd.f32 %v8970, %v9002
          %v9035 = vadd.f32 %v8971, %v9003
          %v9036 = vadd.f32 %v8972, %v9004
          %v9037 = vadd.f32 %v8973, %v9005
          %v9038 = vadd.f32 %v8974, %v9006
          %v9039 = vadd.f32 %v8975, %v9007
          %9040 = vrot.lane.b32.xlu0 %v9008, 64
          %v9041 = vpop.permute.xlu0 %9040
          %9042 = vrot.lane.b32.xlu0 %v9009, 64
          %v9043 = vpop.permute.xlu0 %9042
          %9044 = vrot.lane.b32.xlu0 %v9010, 64
          %v9045 = vpop.permute.xlu0 %9044
          %9046 = vrot.lane.b32.xlu0 %v9011, 64
          %v9047 = vpop.permute.xlu0 %9046
          %9048 = vrot.lane.b32.xlu0 %v9012, 64
          %v9049 = vpop.permute.xlu0 %9048
          %9050 = vrot.lane.b32.xlu0 %v9013, 64
          %v9051 = vpop.permute.xlu0 %9050
          %9052 = vrot.lane.b32.xlu0 %v9014, 64
          %v9053 = vpop.permute.xlu0 %9052
          %9054 = vrot.lane.b32.xlu0 %v9015, 64
          %v9055 = vpop.permute.xlu0 %9054
          %9056 = vrot.lane.b32.xlu0 %v9016, 64
          %v9057 = vpop.permute.xlu0 %9056
          %9058 = vrot.lane.b32.xlu0 %v9017, 64
          %v9059 = vpop.permute.xlu0 %9058
          %9060 = vrot.lane.b32.xlu0 %v9018, 64
          %v9061 = vpop.permute.xlu0 %9060
          %9062 = vrot.lane.b32.xlu0 %v9019, 64
          %v9063 = vpop.permute.xlu0 %9062
          %9064 = vrot.lane.b32.xlu0 %v9020, 64
          %v9065 = vpop.permute.xlu0 %9064
          %9066 = vrot.lane.b32.xlu0 %v9021, 64
          %v9067 = vpop.permute.xlu0 %9066
          %9068 = vrot.lane.b32.xlu0 %v9022, 64
          %v9069 = vpop.permute.xlu0 %9068
          %9070 = vrot.lane.b32.xlu0 %v9023, 64
          %v9071 = vpop.permute.xlu0 %9070
          %9072 = vrot.lane.b32.xlu0 %v9024, 64
          %v9073 = vpop.permute.xlu0 %9072
          %9074 = vrot.lane.b32.xlu0 %v9025, 64
          %v9075 = vpop.permute.xlu0 %9074
          %9076 = vrot.lane.b32.xlu0 %v9026, 64
          %v9077 = vpop.permute.xlu0 %9076
          %9078 = vrot.lane.b32.xlu0 %v9027, 64
          %v9079 = vpop.permute.xlu0 %9078
          %9080 = vrot.lane.b32.xlu0 %v9028, 64
          %v9081 = vpop.permute.xlu0 %9080
          %9082 = vrot.lane.b32.xlu0 %v9029, 64
          %v9083 = vpop.permute.xlu0 %9082
          %9084 = vrot.lane.b32.xlu0 %v9030, 64
          %v9085 = vpop.permute.xlu0 %9084
          %9086 = vrot.lane.b32.xlu0 %v9031, 64
          %v9087 = vpop.permute.xlu0 %9086
          %9088 = vrot.lane.b32.xlu0 %v9032, 64
          %v9089 = vpop.permute.xlu0 %9088
          %9090 = vrot.lane.b32.xlu0 %v9033, 64
          %v9091 = vpop.permute.xlu0 %9090
          %9092 = vrot.lane.b32.xlu0 %v9034, 64
          %v9093 = vpop.permute.xlu0 %9092
          %9094 = vrot.lane.b32.xlu0 %v9035, 64
          %v9095 = vpop.permute.xlu0 %9094
          %9096 = vrot.lane.b32.xlu0 %v9036, 64
          %v9097 = vpop.permute.xlu0 %9096
          %9098 = vrot.lane.b32.xlu0 %v9037, 64
          %v9099 = vpop.permute.xlu0 %9098
          %9100 = vrot.lane.b32.xlu0 %v9038, 64
          %v9101 = vpop.permute.xlu0 %9100
          %9102 = vrot.lane.b32.xlu0 %v9039, 64
          %v9103 = vpop.permute.xlu0 %9102
          %v9104 = vsel %vm8159, %v8912, %v9041
          %v9105 = vsel %vm8159, %v8913, %v9043
          %v9106 = vsel %vm8159, %v8914, %v9045
          %v9107 = vsel %vm8159, %v8915, %v9047
          %v9108 = vsel %vm8159, %v8916, %v9049
          %v9109 = vsel %vm8159, %v8917, %v9051
          %v9110 = vsel %vm8159, %v8918, %v9053
          %v9111 = vsel %vm8159, %v8919, %v9055
          %v9112 = vsel %vm8159, %v8920, %v9057
          %v9113 = vsel %vm8159, %v8921, %v9059
          %v9114 = vsel %vm8159, %v8922, %v9061
          %v9115 = vsel %vm8159, %v8923, %v9063
          %v9116 = vsel %vm8159, %v8924, %v9065
          %v9117 = vsel %vm8159, %v8925, %v9067
          %v9118 = vsel %vm8159, %v8926, %v9069
          %v9119 = vsel %vm8159, %v8927, %v9071
          %v9120 = vsel %vm8159, %v8928, %v9073
          %v9121 = vsel %vm8159, %v8929, %v9075
          %v9122 = vsel %vm8159, %v8930, %v9077
          %v9123 = vsel %vm8159, %v8931, %v9079
          %v9124 = vsel %vm8159, %v8932, %v9081
          %v9125 = vsel %vm8159, %v8933, %v9083
          %v9126 = vsel %vm8159, %v8934, %v9085
          %v9127 = vsel %vm8159, %v8935, %v9087
          %v9128 = vsel %vm8159, %v8936, %v9089
          %v9129 = vsel %vm8159, %v8937, %v9091
          %v9130 = vsel %vm8159, %v8938, %v9093
          %v9131 = vsel %vm8159, %v8939, %v9095
          %v9132 = vsel %vm8159, %v8940, %v9097
          %v9133 = vsel %vm8159, %v8941, %v9099
          %v9134 = vsel %vm8159, %v8942, %v9101
          %v9135 = vsel %vm8159, %v8943, %v9103
          %v9136 = vpack.c.bf16 %v9105, %v9104
          %v9137 = vpack.c.bf16 %v9107, %v9106
          %v9138 = vpack.c.bf16 %v9109, %v9108
          %v9139 = vpack.c.bf16 %v9111, %v9110
          %v9140 = vpack.c.bf16 %v9113, %v9112
          %v9141 = vpack.c.bf16 %v9115, %v9114
          %v9142 = vpack.c.bf16 %v9117, %v9116
          %v9143 = vpack.c.bf16 %v9119, %v9118
          %v9144 = vpack.c.bf16 %v9121, %v9120
          %v9145 = vpack.c.bf16 %v9123, %v9122
          %v9146 = vpack.c.bf16 %v9125, %v9124
          %v9147 = vpack.c.bf16 %v9127, %v9126
          %v9148 = vpack.c.bf16 %v9129, %v9128
          %v9149 = vpack.c.bf16 %v9131, %v9130
          %v9150 = vpack.c.bf16 %v9133, %v9132
          %v9151 = vpack.c.bf16 %v9135, %v9134
          %v9152 = vld [vmem:[#allocation9] sm:$0xf]
          %v9153 = vld [vmem:[#allocation9 + $0x4] sm:$0xf]
          %v9154 = vld [vmem:[#allocation9 + $0x8] sm:$0xf]
          %v9155 = vld [vmem:[#allocation9 + $0xc] sm:$0xf]
          %v9156 = vld [vmem:[#allocation9 + $0x10] sm:$0xf]
          %v9157 = vld [vmem:[#allocation9 + $0x14] sm:$0xf]
          %v9158 = vld [vmem:[#allocation9 + $0x18] sm:$0xf]
          %v9159 = vld [vmem:[#allocation9 + $0x1c] sm:$0xf]
          %v9160 = vld [vmem:[#allocation9 + $0x20] sm:$0xf]
          %v9161 = vld [vmem:[#allocation9 + $0x24] sm:$0xf]
          %v9162 = vld [vmem:[#allocation9 + $0x28] sm:$0xf]
          %v9163 = vld [vmem:[#allocation9 + $0x2c] sm:$0xf]
          %v9164 = vld [vmem:[#allocation9 + $0x30] sm:$0xf]
          %v9165 = vld [vmem:[#allocation9 + $0x34] sm:$0xf]
          %v9166 = vld [vmem:[#allocation9 + $0x38] sm:$0xf]
          %v9167 = vld [vmem:[#allocation9 + $0x3c] sm:$0xf]
          %v9168 = vld [vmem:[#allocation9 + $0x40] sm:$0xf]
          %v9169 = vld [vmem:[#allocation9 + $0x44] sm:$0xf]
          %v9170 = vld [vmem:[#allocation9 + $0x48] sm:$0xf]
          %v9171 = vld [vmem:[#allocation9 + $0x4c] sm:$0xf]
          %v9172 = vld [vmem:[#allocation9 + $0x50] sm:$0xf]
          %v9173 = vld [vmem:[#allocation9 + $0x54] sm:$0xf]
          %v9174 = vld [vmem:[#allocation9 + $0x58] sm:$0xf]
          %v9175 = vld [vmem:[#allocation9 + $0x5c] sm:$0xf]
          %v9176 = vld [vmem:[#allocation9 + $0x60] sm:$0xf]
          %v9177 = vld [vmem:[#allocation9 + $0x64] sm:$0xf]
          %v9178 = vld [vmem:[#allocation9 + $0x68] sm:$0xf]
          %v9179 = vld [vmem:[#allocation9 + $0x6c] sm:$0xf]
          %v9180 = vld [vmem:[#allocation9 + $0x70] sm:$0xf]
          %v9181 = vld [vmem:[#allocation9 + $0x74] sm:$0xf]
          %v9182 = vld [vmem:[#allocation9 + $0x78] sm:$0xf]
          %v9183 = vld [vmem:[#allocation9 + $0x7c] sm:$0xf]
          %v9184 = vld [vmem:[#allocation9 + $0x80] sm:$0xf]
          %v9185 = vld [vmem:[#allocation9 + $0x84] sm:$0xf]
          %v9186 = vld [vmem:[#allocation9 + $0x88] sm:$0xf]
          %v9187 = vld [vmem:[#allocation9 + $0x8c] sm:$0xf]
          %v9188 = vld [vmem:[#allocation9 + $0x90] sm:$0xf]
          %v9189 = vld [vmem:[#allocation9 + $0x94] sm:$0xf]
          %v9190 = vld [vmem:[#allocation9 + $0x98] sm:$0xf]
          %v9191 = vld [vmem:[#allocation9 + $0x9c] sm:$0xf]
          %v9192 = vld [vmem:[#allocation9 + $0xa0] sm:$0xf]
          %v9193 = vld [vmem:[#allocation9 + $0xa4] sm:$0xf]
          %v9194 = vld [vmem:[#allocation9 + $0xa8] sm:$0xf]
          %v9195 = vld [vmem:[#allocation9 + $0xac] sm:$0xf]
          %v9196 = vld [vmem:[#allocation9 + $0xb0] sm:$0xf]
          %v9197 = vld [vmem:[#allocation9 + $0xb4] sm:$0xf]
          %v9198 = vld [vmem:[#allocation9 + $0xb8] sm:$0xf]
          %v9199 = vld [vmem:[#allocation9 + $0xbc] sm:$0xf]
          %v9200 = vld [vmem:[#allocation9 + $0xc0] sm:$0xf]
          %v9201 = vld [vmem:[#allocation9 + $0xc4] sm:$0xf]
          %v9202 = vld [vmem:[#allocation9 + $0xc8] sm:$0xf]
          %v9203 = vld [vmem:[#allocation9 + $0xcc] sm:$0xf]
          %v9204 = vld [vmem:[#allocation9 + $0xd0] sm:$0xf]
          %v9205 = vld [vmem:[#allocation9 + $0xd4] sm:$0xf]
          %v9206 = vld [vmem:[#allocation9 + $0xd8] sm:$0xf]
          %v9207 = vld [vmem:[#allocation9 + $0xdc] sm:$0xf]
          %v9208 = vld [vmem:[#allocation9 + $0xe0] sm:$0xf]
          %v9209 = vld [vmem:[#allocation9 + $0xe4] sm:$0xf]
          %v9210 = vld [vmem:[#allocation9 + $0xe8] sm:$0xf]
          %v9211 = vld [vmem:[#allocation9 + $0xec] sm:$0xf]
          %v9212 = vld [vmem:[#allocation9 + $0xf0] sm:$0xf]
          %v9213 = vld [vmem:[#allocation9 + $0xf4] sm:$0xf]
          %v9214 = vld [vmem:[#allocation9 + $0xf8] sm:$0xf]
          %v9215 = vld [vmem:[#allocation9 + $0xfc] sm:$0xf]
          %v9280 = vunpack.c.l.b16 %v9152
          %v9281 = vunpack.c.l.b16 %v9153
          %v9282 = vunpack.c.l.b16 %v9154
          %v9283 = vunpack.c.l.b16 %v9155
          %v9284 = vunpack.c.l.b16 %v9156
          %v9285 = vunpack.c.l.b16 %v9157
          %v9286 = vunpack.c.l.b16 %v9158
          %v9287 = vunpack.c.l.b16 %v9159
          %v9288 = vunpack.c.l.b16 %v9160
          %v9289 = vunpack.c.l.b16 %v9161
          %v9290 = vunpack.c.l.b16 %v9162
          %v9291 = vunpack.c.l.b16 %v9163
          %v9292 = vunpack.c.l.b16 %v9164
          %v9293 = vunpack.c.l.b16 %v9165
          %v9294 = vunpack.c.l.b16 %v9166
          %v9295 = vunpack.c.l.b16 %v9167
          %v9296 = vunpack.c.l.b16 %v9168
          %v9297 = vunpack.c.l.b16 %v9169
          %v9298 = vunpack.c.l.b16 %v9170
          %v9299 = vunpack.c.l.b16 %v9171
          %v9300 = vunpack.c.l.b16 %v9172
          %v9301 = vunpack.c.l.b16 %v9173
          %v9302 = vunpack.c.l.b16 %v9174
          %v9303 = vunpack.c.l.b16 %v9175
          %v9304 = vunpack.c.l.b16 %v9176
          %v9305 = vunpack.c.l.b16 %v9177
          %v9306 = vunpack.c.l.b16 %v9178
          %v9307 = vunpack.c.l.b16 %v9179
          %v9308 = vunpack.c.l.b16 %v9180
          %v9309 = vunpack.c.l.b16 %v9181
          %v9310 = vunpack.c.l.b16 %v9182
          %v9311 = vunpack.c.l.b16 %v9183
          %v9312 = vunpack.c.l.b16 %v9184
          %v9313 = vunpack.c.l.b16 %v9185
          %v9314 = vunpack.c.l.b16 %v9186
          %v9315 = vunpack.c.l.b16 %v9187
          %v9316 = vunpack.c.l.b16 %v9188
          %v9317 = vunpack.c.l.b16 %v9189
          %v9318 = vunpack.c.l.b16 %v9190
          %v9319 = vunpack.c.l.b16 %v9191
          %v9320 = vunpack.c.l.b16 %v9192
          %v9321 = vunpack.c.l.b16 %v9193
          %v9322 = vunpack.c.l.b16 %v9194
          %v9323 = vunpack.c.l.b16 %v9195
          %v9324 = vunpack.c.l.b16 %v9196
          %v9325 = vunpack.c.l.b16 %v9197
          %v9326 = vunpack.c.l.b16 %v9198
          %v9327 = vunpack.c.l.b16 %v9199
          %v9328 = vunpack.c.l.b16 %v9200
          %v9329 = vunpack.c.l.b16 %v9201
          %v9330 = vunpack.c.l.b16 %v9202
          %v9331 = vunpack.c.l.b16 %v9203
          %v9332 = vunpack.c.l.b16 %v9204
          %v9333 = vunpack.c.l.b16 %v9205
          %v9334 = vunpack.c.l.b16 %v9206
          %v9335 = vunpack.c.l.b16 %v9207
          %v9336 = vunpack.c.l.b16 %v9208
          %v9337 = vunpack.c.l.b16 %v9209
          %v9338 = vunpack.c.l.b16 %v9210
          %v9339 = vunpack.c.l.b16 %v9211
          %v9340 = vunpack.c.l.b16 %v9212
          %v9341 = vunpack.c.l.b16 %v9213
          %v9342 = vunpack.c.l.b16 %v9214
          %v9343 = vunpack.c.l.b16 %v9215
          %v9344 = vpack.c.b16 %v9281, %v9280
          %v9345 = vpack.c.b16 %v9283, %v9282
          %v9346 = vpack.c.b16 %v9285, %v9284
          %v9347 = vpack.c.b16 %v9287, %v9286
          %v9348 = vpack.c.b16 %v9289, %v9288
          %v9349 = vpack.c.b16 %v9291, %v9290
          %v9350 = vpack.c.b16 %v9293, %v9292
          %v9351 = vpack.c.b16 %v9295, %v9294
          %v9352 = vpack.c.b16 %v9297, %v9296
          %v9353 = vpack.c.b16 %v9299, %v9298
          %v9354 = vpack.c.b16 %v9301, %v9300
          %v9355 = vpack.c.b16 %v9303, %v9302
          %v9356 = vpack.c.b16 %v9305, %v9304
          %v9357 = vpack.c.b16 %v9307, %v9306
          %v9358 = vpack.c.b16 %v9309, %v9308
          %v9359 = vpack.c.b16 %v9311, %v9310
          %v9360 = vpack.c.b16 %v9313, %v9312
          %v9361 = vpack.c.b16 %v9315, %v9314
          %v9362 = vpack.c.b16 %v9317, %v9316
          %v9363 = vpack.c.b16 %v9319, %v9318
          %v9364 = vpack.c.b16 %v9321, %v9320
          %v9365 = vpack.c.b16 %v9323, %v9322
          %v9366 = vpack.c.b16 %v9325, %v9324
          %v9367 = vpack.c.b16 %v9327, %v9326
          %v9368 = vpack.c.b16 %v9329, %v9328
          %v9369 = vpack.c.b16 %v9331, %v9330
          %v9370 = vpack.c.b16 %v9333, %v9332
          %v9371 = vpack.c.b16 %v9335, %v9334
          %v9372 = vpack.c.b16 %v9337, %v9336
          %v9373 = vpack.c.b16 %v9339, %v9338
          %v9374 = vpack.c.b16 %v9341, %v9340
          %v9375 = vpack.c.b16 %v9343, %v9342
          %9408 = vmatprep.subr.bf16.mxu0 0
          %9409 = vmatpush1.bf16.msra.mxu0 %v9344
          %9410 = vmatprep.subr.bf16.mxu0 0
          %9411 = vmatpush1.bf16.msra.mxu0 %v9345
          %9412 = vmatprep.subr.bf16.mxu0 0
          %9413 = vmatpush1.bf16.msra.mxu0 %v9346
          %9414 = vmatprep.subr.bf16.mxu0 0
          %9415 = vmatpush1.bf16.msra.mxu0 %v9347
          %9416 = vmatprep.subr.bf16.mxu0 0
          %9417 = vmatpush1.bf16.msra.mxu0 %v9348
          %9418 = vmatprep.subr.bf16.mxu0 0
          %9419 = vmatpush1.bf16.msra.mxu0 %v9349
          %9420 = vmatprep.subr.bf16.mxu0 0
          %9421 = vmatpush1.bf16.msra.mxu0 %v9350
          %9422 = vmatprep.subr.bf16.mxu0 0
          %9423 = vmatpush1.bf16.msra.mxu0 %v9351
          %9424 = vmatprep.subr.bf16.mxu0 0
          %9425 = vmatpush1.bf16.msra.mxu0 %v9352
          %9426 = vmatprep.subr.bf16.mxu0 0
          %9427 = vmatpush1.bf16.msra.mxu0 %v9353
          %9428 = vmatprep.subr.bf16.mxu0 0
          %9429 = vmatpush1.bf16.msra.mxu0 %v9354
          %9430 = vmatprep.subr.bf16.mxu0 0
          %9431 = vmatpush1.bf16.msra.mxu0 %v9355
          %9432 = vmatprep.subr.bf16.mxu0 0
          %9433 = vmatpush1.bf16.msra.mxu0 %v9356
          %9434 = vmatprep.subr.bf16.mxu0 0
          %9435 = vmatpush1.bf16.msra.mxu0 %v9357
          %9436 = vmatprep.subr.bf16.mxu0 0
          %9437 = vmatpush1.bf16.msra.mxu0 %v9358
          %9438 = vmatprep.subr.bf16.mxu0 0
          %9439 = vmatpush1.bf16.msra.mxu0 %v9359
          %9440 = vmatprep.mubr.bf16.mxu0 %v8528
          %9441 = vmatmul.mubr.bf16.gmra.mrb[0].mxu0 %v8256
          %v9442 = vpop.f32.mrb[0].mxu0
          %v9443 = vadd.f32 0.0, %v9442
          %v9444 = vpop.f32.mrb[0].mxu0
          %v9445 = vpop.f32.mrb[0].mxu0
          %v9446 = vadd.f32 0.0, %v9445
          %v9447 = vpop.f32.mrb[0].mxu0
          %9448 = vmatprep.mubr.bf16.mxu0 %v8529
          %9449 = vmatmul.mubr.bf16.gmra.mrb[0].mxu0 %v8257
          %v9450 = vpop.f32.mrb[0].mxu0
          %v9451 = vadd.f32 0.0, %v9450
          %v9452 = vpop.f32.mrb[0].mxu0
          %v9453 = vpop.f32.mrb[0].mxu0
          %v9454 = vadd.f32 0.0, %v9453
          %v9455 = vpop.f32.mrb[0].mxu0
          %9456 = vmatprep.mubr.bf16.mxu0 %v8530
          %9457 = vmatmul.mubr.bf16.gmra.mrb[0].mxu0 %v8258
          %v9458 = vpop.f32.mrb[0].mxu0
          %v9459 = vadd.f32 0.0, %v9458
          %v9460 = vpop.f32.mrb[0].mxu0
          %v9461 = vpop.f32.mrb[0].mxu0
          %v9462 = vadd.f32 0.0, %v9461
          %v9463 = vpop.f32.mrb[0].mxu0
          %9464 = vmatprep.mubr.bf16.mxu0 %v8531
          %9465 = vmatmul.mubr.bf16.gmra.mrb[0].mxu0 %v8259
          %v9466 = vpop.f32.mrb[0].mxu0
          %v9467 = vadd.f32 0.0, %v9466
          %v9468 = vpop.f32.mrb[0].mxu0
          %v9469 = vpop.f32.mrb[0].mxu0
          %v9470 = vadd.f32 0.0, %v9469
          %v9471 = vpop.f32.mrb[0].mxu0
          %9472 = vmatprep.mubr.bf16.mxu0 %v8532
          %9473 = vmatmul.mubr.bf16.gmra.mrb[0].mxu0 %v8260
          %v9474 = vpop.f32.mrb[0].mxu0
          %v9475 = vadd.f32 0.0, %v9474
          %v9476 = vpop.f32.mrb[0].mxu0
          %v9477 = vpop.f32.mrb[0].mxu0
          %v9478 = vadd.f32 0.0, %v9477
          %v9479 = vpop.f32.mrb[0].mxu0
          %9480 = vmatprep.mubr.bf16.mxu0 %v8533
          %9481 = vmatmul.mubr.bf16.gmra.mrb[0].mxu0 %v8261
          %v9482 = vpop.f32.mrb[0].mxu0
          %v9483 = vadd.f32 0.0, %v9482
          %v9484 = vpop.f32.mrb[0].mxu0
          %v9485 = vpop.f32.mrb[0].mxu0
          %v9486 = vadd.f32 0.0, %v9485
          %v9487 = vpop.f32.mrb[0].mxu0
          %9488 = vmatprep.mubr.bf16.mxu0 %v8534
          %9489 = vmatmul.mubr.bf16.gmra.mrb[0].mxu0 %v8262
          %v9490 = vpop.f32.mrb[0].mxu0
          %v9491 = vadd.f32 0.0, %v9490
          %v9492 = vpop.f32.mrb[0].mxu0
          %v9493 = vpop.f32.mrb[0].mxu0
          %v9494 = vadd.f32 0.0, %v9493
          %v9495 = vpop.f32.mrb[0].mxu0
          %9496 = vmatprep.mubr.bf16.mxu0 %v8535
          %9497 = vmatmul.mubr.bf16.gmra.mrb[0].mxu0 %v8263
          %v9498 = vpop.f32.mrb[0].mxu0
          %v9499 = vadd.f32 0.0, %v9498
          %v9500 = vpop.f32.mrb[0].mxu0
          %v9501 = vpop.f32.mrb[0].mxu0
          %v9502 = vadd.f32 0.0, %v9501
          %v9503 = vpop.f32.mrb[0].mxu0
          %9504 = vmatprep.mubr.bf16.mxu0 %v8536
          %9505 = vmatmul.mubr.bf16.gmra.mrb[0].mxu0 %v8264
          %v9506 = vpop.f32.mrb[0].mxu0
          %v9507 = vadd.f32 0.0, %v9506
          %v9508 = vpop.f32.mrb[0].mxu0
          %v9509 = vpop.f32.mrb[0].mxu0
          %v9510 = vadd.f32 0.0, %v9509
          %v9511 = vpop.f32.mrb[0].mxu0
          %9512 = vmatprep.mubr.bf16.mxu0 %v8537
          %9513 = vmatmul.mubr.bf16.gmra.mrb[0].mxu0 %v8265
          %v9514 = vpop.f32.mrb[0].mxu0
          %v9515 = vadd.f32 0.0, %v9514
          %v9516 = vpop.f32.mrb[0].mxu0
          %v9517 = vpop.f32.mrb[0].mxu0
          %v9518 = vadd.f32 0.0, %v9517
          %v9519 = vpop.f32.mrb[0].mxu0
          %9520 = vmatprep.mubr.bf16.mxu0 %v8538
          %9521 = vmatmul.mubr.bf16.gmra.mrb[0].mxu0 %v8266
          %v9522 = vpop.f32.mrb[0].mxu0
          %v9523 = vadd.f32 0.0, %v9522
          %v9524 = vpop.f32.mrb[0].mxu0
          %v9525 = vpop.f32.mrb[0].mxu0
          %v9526 = vadd.f32 0.0, %v9525
          %v9527 = vpop.f32.mrb[0].mxu0
          %9528 = vmatprep.mubr.bf16.mxu0 %v8539
          %9529 = vmatmul.mubr.bf16.gmra.mrb[0].mxu0 %v8267
          %v9530 = vpop.f32.mrb[0].mxu0
          %v9531 = vadd.f32 0.0, %v9530
          %v9532 = vpop.f32.mrb[0].mxu0
          %v9533 = vpop.f32.mrb[0].mxu0
          %v9534 = vadd.f32 0.0, %v9533
          %v9535 = vpop.f32.mrb[0].mxu0
          %9536 = vmatprep.mubr.bf16.mxu0 %v8540
          %9537 = vmatmul.mubr.bf16.gmra.mrb[0].mxu0 %v8268
          %v9538 = vpop.f32.mrb[0].mxu0
          %v9539 = vadd.f32 0.0, %v9538
          %v9540 = vpop.f32.mrb[0].mxu0
          %v9541 = vpop.f32.mrb[0].mxu0
          %v9542 = vadd.f32 0.0, %v9541
          %v9543 = vpop.f32.mrb[0].mxu0
          %9544 = vmatprep.mubr.bf16.mxu0 %v8541
          %9545 = vmatmul.mubr.bf16.gmra.mrb[0].mxu0 %v8269
          %v9546 = vpop.f32.mrb[0].mxu0
          %v9547 = vadd.f32 0.0, %v9546
          %v9548 = vpop.f32.mrb[0].mxu0
          %v9549 = vpop.f32.mrb[0].mxu0
          %v9550 = vadd.f32 0.0, %v9549
          %v9551 = vpop.f32.mrb[0].mxu0
          %9552 = vmatprep.mubr.bf16.mxu0 %v8542
          %9553 = vmatmul.mubr.bf16.gmra.mrb[0].mxu0 %v8270
          %v9554 = vpop.f32.mrb[0].mxu0
          %v9555 = vadd.f32 0.0, %v9554
          %v9556 = vpop.f32.mrb[0].mxu0
          %v9557 = vpop.f32.mrb[0].mxu0
          %v9558 = vadd.f32 0.0, %v9557
          %v9559 = vpop.f32.mrb[0].mxu0
          %9560 = vmatprep.mubr.bf16.mxu0 %v8543
          %9561 = vmatmul.mubr.bf16.gmra.mrb[0].mxu0 %v8271
          %v9562 = vpop.f32.mrb[0].mxu0
          %v9563 = vadd.f32 0.0, %v9562
          %v9564 = vpop.f32.mrb[0].mxu0
          %v9565 = vpop.f32.mrb[0].mxu0
          %v9566 = vadd.f32 0.0, %v9565
          %v9567 = vpop.f32.mrb[0].mxu0
          %9568 = vdwg.mxu0
          %9569 = vmatprep.subr.bf16.mxu0 0
          %9570 = vmatpush1.bf16.msra.mxu0 %v9360
          %9571 = vmatprep.subr.bf16.mxu0 0
          %9572 = vmatpush1.bf16.msra.mxu0 %v9361
          %9573 = vmatprep.subr.bf16.mxu0 0
          %9574 = vmatpush1.bf16.msra.mxu0 %v9362
          %9575 = vmatprep.subr.bf16.mxu0 0
          %9576 = vmatpush1.bf16.msra.mxu0 %v9363
          %9577 = vmatprep.subr.bf16.mxu0 0
          %9578 = vmatpush1.bf16.msra.mxu0 %v9364
          %9579 = vmatprep.subr.bf16.mxu0 0
          %9580 = vmatpush1.bf16.msra.mxu0 %v9365
          %9581 = vmatprep.subr.bf16.mxu0 0
          %9582 = vmatpush1.bf16.msra.mxu0 %v9366
          %9583 = vmatprep.subr.bf16.mxu0 0
          %9584 = vmatpush1.bf16.msra.mxu0 %v9367
          %9585 = vmatprep.subr.bf16.mxu0 0
          %9586 = vmatpush1.bf16.msra.mxu0 %v9368
          %9587 = vmatprep.subr.bf16.mxu0 0
          %9588 = vmatpush1.bf16.msra.mxu0 %v9369
          %9589 = vmatprep.subr.bf16.mxu0 0
          %9590 = vmatpush1.bf16.msra.mxu0 %v9370
          %9591 = vmatprep.subr.bf16.mxu0 0
          %9592 = vmatpush1.bf16.msra.mxu0 %v9371
          %9593 = vmatprep.subr.bf16.mxu0 0
          %9594 = vmatpush1.bf16.msra.mxu0 %v9372
          %9595 = vmatprep.subr.bf16.mxu0 0
          %9596 = vmatpush1.bf16.msra.mxu0 %v9373
          %9597 = vmatprep.subr.bf16.mxu0 0
          %9598 = vmatpush1.bf16.msra.mxu0 %v9374
          %9599 = vmatprep.subr.bf16.mxu0 0
          %9600 = vmatpush1.bf16.msra.mxu0 %v9375
          %9601 = vmatprep.mubr.bf16.mxu0 %v9136
          %9602 = vmatmul.mubr.bf16.gmra.mrb[0].mxu0 %v8832
          %v9603 = vpop.f32.mrb[0].mxu0
          %v9604 = vadd.f32 %v9443, %v9603
          %v9605 = vpop.f32.mrb[0].mxu0
          %v9606 = vpop.f32.mrb[0].mxu0
          %v9607 = vadd.f32 %v9446, %v9606
          %v9608 = vpop.f32.mrb[0].mxu0
          %9609 = vmatprep.mubr.bf16.mxu0 %v9137
          %9610 = vmatmul.mubr.bf16.gmra.mrb[0].mxu0 %v8833
          %v9611 = vpop.f32.mrb[0].mxu0
          %v9612 = vadd.f32 %v9451, %v9611
          %v9613 = vpop.f32.mrb[0].mxu0
          %v9614 = vpop.f32.mrb[0].mxu0
          %v9615 = vadd.f32 %v9454, %v9614
          %v9616 = vpop.f32.mrb[0].mxu0
          %9617 = vmatprep.mubr.bf16.mxu0 %v9138
          %9618 = vmatmul.mubr.bf16.gmra.mrb[0].mxu0 %v8834
          %v9619 = vpop.f32.mrb[0].mxu0
          %v9620 = vadd.f32 %v9459, %v9619
          %v9621 = vpop.f32.mrb[0].mxu0
          %v9622 = vpop.f32.mrb[0].mxu0
          %v9623 = vadd.f32 %v9462, %v9622
          %v9624 = vpop.f32.mrb[0].mxu0
          %9625 = vmatprep.mubr.bf16.mxu0 %v9139
          %9626 = vmatmul.mubr.bf16.gmra.mrb[0].mxu0 %v8835
          %v9627 = vpop.f32.mrb[0].mxu0
          %v9628 = vadd.f32 %v9467, %v9627
          %v9629 = vpop.f32.mrb[0].mxu0
          %v9630 = vpop.f32.mrb[0].mxu0
          %v9631 = vadd.f32 %v9470, %v9630
          %v9632 = vpop.f32.mrb[0].mxu0
          %9633 = vmatprep.mubr.bf16.mxu0 %v9140
          %9634 = vmatmul.mubr.bf16.gmra.mrb[0].mxu0 %v8836
          %v9635 = vpop.f32.mrb[0].mxu0
          %v9636 = vadd.f32 %v9475, %v9635
          %v9637 = vpop.f32.mrb[0].mxu0
          %v9638 = vpop.f32.mrb[0].mxu0
          %v9639 = vadd.f32 %v9478, %v9638
          %v9640 = vpop.f32.mrb[0].mxu0
          %9641 = vmatprep.mubr.bf16.mxu0 %v9141
          %9642 = vmatmul.mubr.bf16.gmra.mrb[0].mxu0 %v8837
          %v9643 = vpop.f32.mrb[0].mxu0
          %v9644 = vadd.f32 %v9483, %v9643
          %v9645 = vpop.f32.mrb[0].mxu0
          %v9646 = vpop.f32.mrb[0].mxu0
          %v9647 = vadd.f32 %v9486, %v9646
          %v9648 = vpop.f32.mrb[0].mxu0
          %9649 = vmatprep.mubr.bf16.mxu0 %v9142
          %9650 = vmatmul.mubr.bf16.gmra.mrb[0].mxu0 %v8838
          %v9651 = vpop.f32.mrb[0].mxu0
          %v9652 = vadd.f32 %v9491, %v9651
          %v9653 = vpop.f32.mrb[0].mxu0
          %v9654 = vpop.f32.mrb[0].mxu0
          %v9655 = vadd.f32 %v9494, %v9654
          %v9656 = vpop.f32.mrb[0].mxu0
          %9657 = vmatprep.mubr.bf16.mxu0 %v9143
          %9658 = vmatmul.mubr.bf16.gmra.mrb[0].mxu0 %v8839
          %v9659 = vpop.f32.mrb[0].mxu0
          %v9660 = vadd.f32 %v9499, %v9659
          %v9661 = vpop.f32.mrb[0].mxu0
          %v9662 = vpop.f32.mrb[0].mxu0
          %v9663 = vadd.f32 %v9502, %v9662
          %v9664 = vpop.f32.mrb[0].mxu0
          %9665 = vmatprep.mubr.bf16.mxu0 %v9144
          %9666 = vmatmul.mubr.bf16.gmra.mrb[0].mxu0 %v8840
          %v9667 = vpop.f32.mrb[0].mxu0
          %v9668 = vadd.f32 %v9507, %v9667
          %v9669 = vpop.f32.mrb[0].mxu0
          %v9670 = vpop.f32.mrb[0].mxu0
          %v9671 = vadd.f32 %v9510, %v9670
          %v9672 = vpop.f32.mrb[0].mxu0
          %9673 = vmatprep.mubr.bf16.mxu0 %v9145
          %9674 = vmatmul.mubr.bf16.gmra.mrb[0].mxu0 %v8841
          %v9675 = vpop.f32.mrb[0].mxu0
          %v9676 = vadd.f32 %v9515, %v9675
          %v9677 = vpop.f32.mrb[0].mxu0
          %v9678 = vpop.f32.mrb[0].mxu0
          %v9679 = vadd.f32 %v9518, %v9678
          %v9680 = vpop.f32.mrb[0].mxu0
          %9681 = vmatprep.mubr.bf16.mxu0 %v9146
          %9682 = vmatmul.mubr.bf16.gmra.mrb[0].mxu0 %v8842
          %v9683 = vpop.f32.mrb[0].mxu0
          %v9684 = vadd.f32 %v9523, %v9683
          %v9685 = vpop.f32.mrb[0].mxu0
          %v9686 = vpop.f32.mrb[0].mxu0
          %v9687 = vadd.f32 %v9526, %v9686
          %v9688 = vpop.f32.mrb[0].mxu0
          %9689 = vmatprep.mubr.bf16.mxu0 %v9147
          %9690 = vmatmul.mubr.bf16.gmra.mrb[0].mxu0 %v8843
          %v9691 = vpop.f32.mrb[0].mxu0
          %v9692 = vadd.f32 %v9531, %v9691
          %v9693 = vpop.f32.mrb[0].mxu0
          %v9694 = vpop.f32.mrb[0].mxu0
          %v9695 = vadd.f32 %v9534, %v9694
          %v9696 = vpop.f32.mrb[0].mxu0
          %9697 = vmatprep.mubr.bf16.mxu0 %v9148
          %9698 = vmatmul.mubr.bf16.gmra.mrb[0].mxu0 %v8844
          %v9699 = vpop.f32.mrb[0].mxu0
          %v9700 = vadd.f32 %v9539, %v9699
          %v9701 = vpop.f32.mrb[0].mxu0
          %v9702 = vpop.f32.mrb[0].mxu0
          %v9703 = vadd.f32 %v9542, %v9702
          %v9704 = vpop.f32.mrb[0].mxu0
          %9705 = vmatprep.mubr.bf16.mxu0 %v9149
          %9706 = vmatmul.mubr.bf16.gmra.mrb[0].mxu0 %v8845
          %v9707 = vpop.f32.mrb[0].mxu0
          %v9708 = vadd.f32 %v9547, %v9707
          %v9709 = vpop.f32.mrb[0].mxu0
          %v9710 = vpop.f32.mrb[0].mxu0
          %v9711 = vadd.f32 %v9550, %v9710
          %v9712 = vpop.f32.mrb[0].mxu0
          %9713 = vmatprep.mubr.bf16.mxu0 %v9150
          %9714 = vmatmul.mubr.bf16.gmra.mrb[0].mxu0 %v8846
          %v9715 = vpop.f32.mrb[0].mxu0
          %v9716 = vadd.f32 %v9555, %v9715
          %v9717 = vpop.f32.mrb[0].mxu0
          %v9718 = vpop.f32.mrb[0].mxu0
          %v9719 = vadd.f32 %v9558, %v9718
          %v9720 = vpop.f32.mrb[0].mxu0
          %9721 = vmatprep.mubr.bf16.mxu0 %v9151
          %9722 = vmatmul.mubr.bf16.gmra.mrb[0].mxu0 %v8847
          %v9723 = vpop.f32.mrb[0].mxu0
          %v9724 = vadd.f32 %v9563, %v9723
          %v9725 = vpop.f32.mrb[0].mxu0
          %v9726 = vpop.f32.mrb[0].mxu0
          %v9727 = vadd.f32 %v9566, %v9726
          %v9728 = vpop.f32.mrb[0].mxu0
          %9729 = vdwg.mxu0
          %v9730 = vadd.f32 %v1437, %v1469
          %v9731 = vadd.f32 %v1438, %v1470
          %v9732 = vadd.f32 %v1439, %v1471
          %v9733 = vadd.f32 %v1440, %v1472
          %v9734 = vadd.f32 %v1441, %v1473
          %v9735 = vadd.f32 %v1442, %v1474
          %v9736 = vadd.f32 %v1443, %v1475
          %v9737 = vadd.f32 %v1444, %v1476
          %v9738 = vadd.f32 %v1445, %v1477
          %v9739 = vadd.f32 %v1446, %v1478
          %v9740 = vadd.f32 %v1447, %v1479
          %v9741 = vadd.f32 %v1448, %v1480
          %v9742 = vadd.f32 %v1449, %v1481
          %v9743 = vadd.f32 %v1450, %v1482
          %v9744 = vadd.f32 %v1451, %v1483
          %v9745 = vadd.f32 %v1452, %v1484
          %v9746 = vadd.f32 %v1453, %v1485
          %v9747 = vadd.f32 %v1454, %v1486
          %v9748 = vadd.f32 %v1455, %v1487
          %v9749 = vadd.f32 %v1456, %v1488
          %v9750 = vadd.f32 %v1457, %v1489
          %v9751 = vadd.f32 %v1458, %v1490
          %v9752 = vadd.f32 %v1459, %v1491
          %v9753 = vadd.f32 %v1460, %v1492
          %v9754 = vadd.f32 %v1461, %v1493
          %v9755 = vadd.f32 %v1462, %v1494
          %v9756 = vadd.f32 %v1463, %v1495
          %v9757 = vadd.f32 %v1464, %v1496
          %v9758 = vadd.f32 %v1465, %v1497
          %v9759 = vadd.f32 %v1466, %v1498
          %v9760 = vadd.f32 %v1467, %v1499
          %v9761 = vadd.f32 %v1468, %v1500
          %v9762 = vadd.f32 %v9730, %v9604
          %v9763 = vadd.f32 %v9731, %v9607
          %v9764 = vadd.f32 %v9732, %v9612
          %v9765 = vadd.f32 %v9733, %v9615
          %v9766 = vadd.f32 %v9734, %v9620
          %v9767 = vadd.f32 %v9735, %v9623
          %v9768 = vadd.f32 %v9736, %v9628
          %v9769 = vadd.f32 %v9737, %v9631
          %v9770 = vadd.f32 %v9738, %v9636
          %v9771 = vadd.f32 %v9739, %v9639
          %v9772 = vadd.f32 %v9740, %v9644
          %v9773 = vadd.f32 %v9741, %v9647
          %v9774 = vadd.f32 %v9742, %v9652
          %v9775 = vadd.f32 %v9743, %v9655
          %v9776 = vadd.f32 %v9744, %v9660
          %v9777 = vadd.f32 %v9745, %v9663
          %v9778 = vadd.f32 %v9746, %v9668
          %v9779 = vadd.f32 %v9747, %v9671
          %v9780 = vadd.f32 %v9748, %v9676
          %v9781 = vadd.f32 %v9749, %v9679
          %v9782 = vadd.f32 %v9750, %v9684
          %v9783 = vadd.f32 %v9751, %v9687
          %v9784 = vadd.f32 %v9752, %v9692
          %v9785 = vadd.f32 %v9753, %v9695
          %v9786 = vadd.f32 %v9754, %v9700
          %v9787 = vadd.f32 %v9755, %v9703
          %v9788 = vadd.f32 %v9756, %v9708
          %v9789 = vadd.f32 %v9757, %v9711
          %v9790 = vadd.f32 %v9758, %v9716
          %v9791 = vadd.f32 %v9759, %v9719
          %v9792 = vadd.f32 %v9760, %v9724
          %v9793 = vadd.f32 %v9761, %v9727
          %v9794 = vld [vmem:[%s4] sm:$0x1]
          %v9796 = vlaneseq
          %v9797 = vshrl.u32 %v9796, 7
          %v9798 = vsub.s32 0, %v9797
          %v9799 = vrot.slane %v9794, %v9798
          %v9801 = vadd.f32 %v9762, %v9799
          %v9802 = vadd.f32 %v9763, %v9799
          %v9803 = vadd.f32 %v9764, %v9799
          %v9804 = vadd.f32 %v9765, %v9799
          %v9805 = vadd.f32 %v9766, %v9799
          %v9806 = vadd.f32 %v9767, %v9799
          %v9807 = vadd.f32 %v9768, %v9799
          %v9808 = vadd.f32 %v9769, %v9799
          %v9809 = vadd.f32 %v9770, %v9799
          %v9810 = vadd.f32 %v9771, %v9799
          %v9811 = vadd.f32 %v9772, %v9799
          %v9812 = vadd.f32 %v9773, %v9799
          %v9813 = vadd.f32 %v9774, %v9799
          %v9814 = vadd.f32 %v9775, %v9799
          %v9815 = vadd.f32 %v9776, %v9799
          %v9816 = vadd.f32 %v9777, %v9799
          %v9817 = vadd.f32 %v9778, %v9799
          %v9818 = vadd.f32 %v9779, %v9799
          %v9819 = vadd.f32 %v9780, %v9799
          %v9820 = vadd.f32 %v9781, %v9799
          %v9821 = vadd.f32 %v9782, %v9799
          %v9822 = vadd.f32 %v9783, %v9799
          %v9823 = vadd.f32 %v9784, %v9799
          %v9824 = vadd.f32 %v9785, %v9799
          %v9825 = vadd.f32 %v9786, %v9799
          %v9826 = vadd.f32 %v9787, %v9799
          %v9827 = vadd.f32 %v9788, %v9799
          %v9828 = vadd.f32 %v9789, %v9799
          %v9829 = vadd.f32 %v9790, %v9799
          %v9830 = vadd.f32 %v9791, %v9799
          %v9831 = vadd.f32 %v9792, %v9799
          %v9832 = vadd.f32 %v9793, %v9799
          %9833 = vst [vmem:[%s333] sm:$0xff] %v9801
          %9834 = vst [vmem:[%s333 + $0x8] sm:$0xff] %v9802
          %9835 = vst [vmem:[%s333 + $0x10] sm:$0xff] %v9803
          %9836 = vst [vmem:[%s333 + $0x18] sm:$0xff] %v9804
          %9837 = vst [vmem:[%s333 + $0x20] sm:$0xff] %v9805
          %9838 = vst [vmem:[%s333 + $0x28] sm:$0xff] %v9806
          %9839 = vst [vmem:[%s333 + $0x30] sm:$0xff] %v9807
          %9840 = vst [vmem:[%s333 + $0x38] sm:$0xff] %v9808
          %9841 = vst [vmem:[%s333 + $0x40] sm:$0xff] %v9809
          %9842 = vst [vmem:[%s333 + $0x48] sm:$0xff] %v9810
          %9843 = vst [vmem:[%s333 + $0x50] sm:$0xff] %v9811
          %9844 = vst [vmem:[%s333 + $0x58] sm:$0xff] %v9812
          %9845 = vst [vmem:[%s333 + $0x60] sm:$0xff] %v9813
          %9846 = vst [vmem:[%s333 + $0x68] sm:$0xff] %v9814
          %9847 = vst [vmem:[%s333 + $0x70] sm:$0xff] %v9815
          %9848 = vst [vmem:[%s333 + $0x78] sm:$0xff] %v9816
          %9849 = vst [vmem:[%s333 + $0x80] sm:$0xff] %v9817
          %9850 = vst [vmem:[%s333 + $0x88] sm:$0xff] %v9818
          %9851 = vst [vmem:[%s333 + $0x90] sm:$0xff] %v9819
          %9852 = vst [vmem:[%s333 + $0x98] sm:$0xff] %v9820
          %9853 = vst [vmem:[%s333 + $0xa0] sm:$0xff] %v9821
          %9854 = vst [vmem:[%s333 + $0xa8] sm:$0xff] %v9822
          %9855 = vst [vmem:[%s333 + $0xb0] sm:$0xff] %v9823
          %9856 = vst [vmem:[%s333 + $0xb8] sm:$0xff] %v9824
          %9857 = vst [vmem:[%s333 + $0xc0] sm:$0xff] %v9825
          %9858 = vst [vmem:[%s333 + $0xc8] sm:$0xff] %v9826
          %9859 = vst [vmem:[%s333 + $0xd0] sm:$0xff] %v9827
          %9860 = vst [vmem:[%s333 + $0xd8] sm:$0xff] %v9828
          %9861 = vst [vmem:[%s333 + $0xe0] sm:$0xff] %v9829
          %9862 = vst [vmem:[%s333 + $0xe8] sm:$0xff] %v9830
          %9863 = vst [vmem:[%s333 + $0xf0] sm:$0xff] %v9831
          %9864 = vst [vmem:[%s333 + $0xf8] sm:$0xff] %v9832
        $region64: #{tpu_custom_call.1} parent=39 // pred_fallthru
          _
        %s9865 = sand.u32 %s165, 1
        %s9866 = scalar_lea.sflag [#allocation5], %s9865
        %s9867 = sand.u32 %s165, 1
        %s9868 = smul.addr %s9867, 256
        %s9869 = scalar_lea.vmem [#allocation10], %s9868
        // Predicated region
        $region65: #{tpu_custom_call.1} parent=39 // pred_check
          %p9870 = pneg %p175
        $region66: #{tpu_custom_call.1} parent=39 // pred_check_branch
          %9872 = sbr.rel (%p9870) target = $region68
        $region67: #{tpu_custom_call.1} parent=39 // pred_region
          %s9873 = smul.u32 32, %s27
          %s9875 = ssub.s32 4096, 4096
          %9876 = vsyncadd %s9866, %s9875
          %s9877 = smul.addr %s9873, 128
          %s9878 = scalar_lea.hbm %s5, %s9877
          %s9879 = sshll.u32 %s9869, 4
          %s9880 = int_to_ptr.vmem [resolvable:$true] %s9879
          %9885 = dma.vmem_to_hbm [thread:$0]  %s9880, 4096, %s9878, %s9866, 128, 128, 8
        $region68: #{tpu_custom_call.1} parent=39 // pred_fallthru
          _
      $region40: #{tpu_custom_call.1} parent=5 // pred_fallthru
        _
      %p9886 = scmp.le.s32.totalorder 2, %s18
      // Predicated region
      $region69: #{tpu_custom_call.1} parent=5 // pred_check
        %p9887 = pneg %p9886
      $region70: #{tpu_custom_call.1} parent=5 // pred_check_branch
        %9889 = sbr.rel (%p9887) target = $region72
      $region71: #{tpu_custom_call.1} parent=5 // pred_region
        %s9890 = ssub.s32 %s18, 2
        // Predicated region
        $region73: #{tpu_custom_call.1} parent=71 // pred_check
          %p9891 = pneg %p181
        $region74: #{tpu_custom_call.1} parent=71 // pred_check_branch
          %9893 = sbr.rel (%p9891) target = $region76
        $region75: #{tpu_custom_call.1} parent=71 // pred_region
          %s9894 = sand.u32 %s166, 1
          %s9895 = scalar_lea.sflag [#allocation5], %s9894
          %s9896 = sand.u32 %s166, 1
          %s9897 = smul.addr %s9896, 256
          %s9898 = scalar_lea.vmem [#allocation10], %s9897
          %9899 = dma.done %s9895, 4096
        $region76: #{tpu_custom_call.1} parent=71 // pred_fallthru
          _
      $region72: #{tpu_custom_call.1} parent=5 // pred_fallthru
        _
    $region6: #{tpu_custom_call.1} parent=1 // loop_footer
      %s22 = sadd.s32 1, %s18
    $region7: #{tpu_custom_call.1} parent=1 // loop_footer_branch
      %17 = sbr.rel target = $region3
    $region8: #{tpu_custom_call.1} parent=1 // loop_exit
      _
    %9900 = vsyncpa [#allocation4], 1
    %s9901 = scalar_lea.sflag [#allocation4], 1
    %9902 = vsyncpa %s9901, 1
    %9903 = vsyncpa [#allocation7], 1
    %9904 = vsyncpa [#allocation5], 1
    %s9905 = scalar_lea.sflag [#allocation5], 1
    %9906 = vsyncpa %s9905, 1

</llo_original>
